<compile_context>
chip_gen: v7x
topology: tpu7x:2x2x1
jax: 0.10.0
libtpu: 0.0.40
codegen_flags: <defaults>
</compile_context>

<pallas_src>
import functools

import jax
import jax.numpy as jnp
from jax.experimental import pallas as pl
from jax.experimental.pallas import tpu as pltpu

RES_NUM = 5


def _round_up(x, m):
    return (x + m - 1) // m * m


# ----------------------------------------------------------------------------
# Fused kernel: one grid step per batch element, all 13 convs inside.
# ----------------------------------------------------------------------------
def _fused_vit_kernel(x_ref, ml_ref, mr_ref, w_ref, b_ref, wu_ref, bu_ref,
                      o_ref, pad_ref, res_ref, *, H, W, base):
    N = H * W

    # Zero the halo of the raster buffer once per image, then place the
    # (channel-padded, bf16) input activation at column offset `base`.
    pad_ref[...] = jnp.zeros_like(pad_ref)
    pad_ref[:, base:base + N] = x_ref[0]

    mask_l = ml_ref[...]          # (1, N) bf16: 0 where w == 0
    mask_r = mr_ref[...]          # (1, N) bf16: 0 where w == W-1

    def conv(w, b):
        # w: (cout, 9*feat) bf16, b: (cout, 1) f32  ->  (cout, N) f32
        taps = []
        for dy in range(3):
            for adx in (-1, 0, 1):
                start = base + (dy - 1) * W + adx
                sl = pad_ref[:, start:start + N]      # (feat, N) bf16 lane shift
                if adx == -1:
                    sl = sl * mask_l                  # kill wrapped left column
                elif adx == 1:
                    sl = sl * mask_r                  # kill wrapped right column
                taps.append(sl)
        patch = jnp.concatenate(taps, axis=0)         # (9*feat, N) bf16 im2col
        return jnp.dot(w, patch, preferred_element_type=jnp.float32) + b

    def store_act(a):
        pad_ref[:, base:base + N] = a.astype(jnp.bfloat16)

    # input conv (weights channel-padded to `feat`, extra rows are zero)
    a = conv(w_ref[0], b_ref[0])
    res_ref[...] = a                                   # residual kept in f32
    store_act(a)

    # 5x OSAG: conv3x3 + ReLU, conv3x3   (window pad is a no-op: H,W % ws == 0)
    for i in range(RES_NUM):
        a = jnp.maximum(conv(w_ref[1 + 2 * i], b_ref[1 + 2 * i]), 0.0)
        store_act(a)
        a = conv(w_ref[2 + 2 * i], b_ref[2 + 2 * i])
        store_act(a)

    # output conv + residual add
    a = conv(w_ref[1 + 2 * RES_NUM], b_ref[1 + 2 * RES_NUM]) + res_ref[...]
    store_act(a)

    # up conv (feat -> num_out_ch * r^2), stored lane-dense as (C_up, H*W)
    o_ref[0] = conv(wu_ref[...], bu_ref[...]).astype(o_ref.dtype)


# ----------------------------------------------------------------------------
# Wrapper: weight packing, layout glue, pixel shuffle, crop.
# ----------------------------------------------------------------------------
def _prep_conv(w_hwio, b, cin_pad):
    kh, kw, cin, cout = w_hwio.shape
    if cin < cin_pad:
        w_hwio = jnp.pad(w_hwio, ((0, 0), (0, 0), (0, cin_pad - cin), (0, 0)))
    w = jnp.transpose(w_hwio, (3, 0, 1, 2)).reshape(cout, kh * kw * cin_pad)
    return w.astype(jnp.bfloat16), b.reshape(cout, 1).astype(jnp.float32)


def pixel_shuffle_nchw(x, r):
    B, C, H, W = x.shape
    co = C // (r * r)
    x = x.reshape(B, co, r, r, H, W)
    x = x.transpose(0, 1, 4, 2, 5, 3)
    return x.reshape(B, co, H * r, W * r)


def vit_forward(x, params, *, window_size, up_scale, num_feat):
    B, cin, H0, W0 = x.shape
    ph = (window_size - H0 % window_size) % window_size
    pw = (window_size - W0 % window_size) % window_size
    xp = jnp.pad(x, ((0, 0), (0, 0), (0, ph), (0, pw)))   # check_image_size
    H, W = H0 + ph, W0 + pw
    N = H * W

    # Pack weights: 12 convs (input, 10 OSAG, output) as (12, feat, 9*feat).
    packed = [_prep_conv(*params["input"], num_feat)]
    for i in range(RES_NUM):
        packed.append(_prep_conv(*params[f"res{i}_c1"], num_feat))
        packed.append(_prep_conv(*params[f"res{i}_c2"], num_feat))
    packed.append(_prep_conv(*params["output"], num_feat))
    w_all = jnp.stack([w for w, _ in packed])              # (12, feat, 9*feat)
    b_all = jnp.stack([b for _, b in packed])              # (12, feat, 1)
    w_up, b_up = _prep_conv(*params["up"], num_feat)       # (cup, 9*feat)
    cup = w_up.shape[0]

    # Activations enter as (C, H*W): NCHW maps to this layout with a reshape.
    x_in = jnp.pad(xp.reshape(B, cin, N),
                   ((0, 0), (0, num_feat - cin), (0, 0))).astype(jnp.bfloat16)

    # Horizontal-padding masks (0/1), one lane per output pixel.
    wcol = jnp.arange(N, dtype=jnp.int32) % W
    mask_l = (wcol != 0).astype(jnp.bfloat16).reshape(1, N)
    mask_r = (wcol != W - 1).astype(jnp.bfloat16).reshape(1, N)

    base = _round_up(max(W + 1, 128), 128)                 # aligned act offset
    pw_buf = _round_up(base + N + W + 1, 128)              # raster buffer width

    kernel = functools.partial(_fused_vit_kernel, H=H, W=W, base=base)
    up_flat = pl.pallas_call(
        kernel,
        out_shape=jax.ShapeDtypeStruct((B, cup, N), jnp.float32),
        grid=(B,),
        in_specs=[
            pl.BlockSpec((1, num_feat, N), lambda b: (b, 0, 0)),
            pl.BlockSpec((1, N), lambda b: (0, 0)),
            pl.BlockSpec((1, N), lambda b: (0, 0)),
            pl.BlockSpec((2 * RES_NUM + 2, num_feat, 9 * num_feat),
                         lambda b: (0, 0, 0)),
            pl.BlockSpec((2 * RES_NUM + 2, num_feat, 1), lambda b: (0, 0, 0)),
            pl.BlockSpec((cup, 9 * num_feat), lambda b: (0, 0)),
            pl.BlockSpec((cup, 1), lambda b: (0, 0)),
        ],
        out_specs=pl.BlockSpec((1, cup, N), lambda b: (b, 0, 0)),
        scratch_shapes=[
            pltpu.VMEM((num_feat, pw_buf), jnp.bfloat16),   # padded raster act
            pltpu.VMEM((num_feat, N), jnp.float32),         # residual
        ],
        compiler_params=pltpu.CompilerParams(
            dimension_semantics=("parallel",),
            vmem_limit_bytes=64 * 1024 * 1024),
    )(x_in, mask_l, mask_r, w_all, b_all, w_up, b_up)

    # Pixel shuffle + crop: layout glue on the final tensor (plain JAX).
    out = pixel_shuffle_nchw(up_flat.reshape(B, cup, H, W), up_scale)
    return out[:, :, :H0 * up_scale, :W0 * up_scale]


# ----------------------------------------------------------------------------
# Pure-JAX reference (lax.conv, NCHW) with matching bf16 quantization points.
# ----------------------------------------------------------------------------
def _conv_ref(x, w, b, relu=False):
    xb = x.astype(jnp.bfloat16).astype(jnp.float32)
    wb = w.astype(jnp.bfloat16).astype(jnp.float32)
    y = jax.lax.conv_general_dilated(
        xb, wb, (1, 1), "SAME",
        dimension_numbers=("NCHW", "HWIO", "NCHW"),
        preferred_element_type=jnp.float32) + b.reshape(1, -1, 1, 1)
    return jnp.maximum(y, 0.0) if relu else y


def vit_forward_ref(x, params, *, window_size, up_scale):
    H0, W0 = x.shape[2], x.shape[3]
    ph = (window_size - H0 % window_size) % window_size
    pw = (window_size - W0 % window_size) % window_size
    x = jnp.pad(x, ((0, 0), (0, 0), (0, ph), (0, pw)))
    residual = _conv_ref(x, *params["input"])
    out = residual
    for i in range(RES_NUM):
        out = _conv_ref(out, *params[f"res{i}_c1"], relu=True)
        out = _conv_ref(out, *params[f"res{i}_c2"])
    out = _conv_ref(out, *params["output"]) + residual
    out = _conv_ref(out, *params["up"])
    out = pixel_shuffle_nchw(out, up_scale)
    return out[:, :, :H0 * up_scale, :W0 * up_scale]


# ----------------------------------------------------------------------------
# Deterministic synthetic parameters.
# ----------------------------------------------------------------------------
def make_conv_params(key, cin, cout, w_scale=0.05):
    kw, kb = jax.random.split(key)
    w = jax.random.normal(kw, (3, 3, cin, cout), jnp.float32) * w_scale
    b = jax.random.normal(kb, (cout,), jnp.float32) * 0.01
    return w, b


def make_params(key, num_in_ch, num_out_ch, num_feat, up_scale):
    params = {}
    keys = jax.random.split(key, 2 * RES_NUM + 3)
    params["input"] = make_conv_params(keys[0], num_in_ch, num_feat)
    for i in range(RES_NUM):
        params[f"res{i}_c1"] = make_conv_params(keys[1 + 2 * i], num_feat, num_feat)
        params[f"res{i}_c2"] = make_conv_params(keys[2 + 2 * i], num_feat, num_feat)
    params["output"] = make_conv_params(keys[2 * RES_NUM + 1], num_feat, num_feat)
    params["up"] = make_conv_params(keys[2 * RES_NUM + 2],
                                    num_feat, num_out_ch * up_scale ** 2)
    return params


if __name__ == "__main__":
    B, num_in_ch, num_out_ch = 2, 3, 3
    num_feat, up_scale, window_size = 32, 4, 8
    H = W = 16

    key = jax.random.PRNGKey(0)
    kx, kp = jax.random.split(key)
    x = jax.random.normal(kx, (B, num_in_ch, H, W), jnp.float32)   # NCHW
    params = make_params(kp, num_in_ch, num_out_ch, num_feat, up_scale)

    fwd = jax.jit(functools.partial(vit_forward, window_size=window_size,
                                    up_scale=up_scale, num_feat=num_feat))
    out = jax.block_until_ready(fwd(x, params))
    assert out.shape == (B, num_out_ch, H * up_scale, W * up_scale), out.shape

    ref_fn = jax.jit(functools.partial(vit_forward_ref, window_size=window_size,
                                       up_scale=up_scale))
    ref = jax.block_until_ready(ref_fn(x, params))
    err = float(jnp.max(jnp.abs(out - ref)))
    assert jnp.allclose(out, ref, atol=1e-2, rtol=1e-2), err

    print("KERNEL_OK")
</pallas_src>

<mosaic_0001>
module attributes {stable_mosaic.version = 11 : i64} {
  func.func @_fused_vit_kernel(%arg0: i32, %arg1: memref<1x32x256xbf16, #tpu.memory_space<vmem>>, %arg2: memref<1x256xbf16, #tpu.memory_space<vmem>>, %arg3: memref<1x256xbf16, #tpu.memory_space<vmem>>, %arg4: memref<12x32x288xbf16, #tpu.memory_space<vmem>>, %arg5: memref<12x32x1xf32, #tpu.memory_space<vmem>>, %arg6: memref<48x288xbf16, #tpu.memory_space<vmem>>, %arg7: memref<48x1xf32, #tpu.memory_space<vmem>>, %arg8: memref<1x48x256xf32, #tpu.memory_space<vmem>>, %arg9: memref<32x512xbf16, #tpu.memory_space<vmem>>, %arg10: memref<32x256xf32, #tpu.memory_space<vmem>>) attributes {dimension_semantics = [#tpu.dimension_semantics<parallel>], iteration_bounds = array<i64: 2>, scalar_prefetch = 0 : i64, scratch_operands = 2 : i64, tpu.core_type = #tpu.core_type<tc>, window_params = [{transform_indices = @transform_0, window_bounds = array<i64: 1, 32, 256>}, {pipeline_mode = #tpu.pipeline_mode<synchronous>, transform_indices = @transform_1, window_bounds = array<i64: 1, 256>}, {pipeline_mode = #tpu.pipeline_mode<synchronous>, transform_indices = @transform_2, window_bounds = array<i64: 1, 256>}, {pipeline_mode = #tpu.pipeline_mode<synchronous>, transform_indices = @transform_3, window_bounds = array<i64: 12, 32, 288>}, {pipeline_mode = #tpu.pipeline_mode<synchronous>, transform_indices = @transform_4, window_bounds = array<i64: 12, 32, 1>}, {pipeline_mode = #tpu.pipeline_mode<synchronous>, transform_indices = @transform_5, window_bounds = array<i64: 48, 288>}, {pipeline_mode = #tpu.pipeline_mode<synchronous>, transform_indices = @transform_6, window_bounds = array<i64: 48, 1>}, {transform_indices = @transform_7, window_bounds = array<i64: 1, 48, 256>}]} {
    %cst = arith.constant 0.000000e+00 : bf16
    %0 = vector.broadcast %cst : bf16 to vector<32x512xbf16>
    %c0 = arith.constant 0 : index
    %c0_0 = arith.constant 0 : index
    %1 = vector.load %arg9[%c0, %c0_0] : memref<32x512xbf16, #tpu.memory_space<vmem>>, vector<32x512xbf16>
    tpu.vector_store %arg9[%c0, %c0_0], %0 {strides = array<i32>} : memref<32x512xbf16, #tpu.memory_space<vmem>>, vector<32x512xbf16>,
    %c0_1 = arith.constant 0 : index
    %c0_2 = arith.constant 0 : index
    %c0_3 = arith.constant 0 : index
    %2 = vector.load %arg1[%c0_1, %c0_2, %c0_3] : memref<1x32x256xbf16, #tpu.memory_space<vmem>>, vector<1x32x256xbf16>
    %3 = vector.shape_cast %2 : vector<1x32x256xbf16> to vector<32x256xbf16>
    %c0_4 = arith.constant 0 : index
    %c128 = arith.constant 128 : index
    %4 = vector.load %arg9[%c0_4, %c128] : memref<32x512xbf16, #tpu.memory_space<vmem>>, vector<32x256xbf16>
    tpu.vector_store %arg9[%c0_4, %c128], %3 {strides = array<i32>} : memref<32x512xbf16, #tpu.memory_space<vmem>>, vector<32x256xbf16>,
    %c0_5 = arith.constant 0 : index
    %c0_6 = arith.constant 0 : index
    %5 = vector.load %arg2[%c0_5, %c0_6] : memref<1x256xbf16, #tpu.memory_space<vmem>>, vector<1x256xbf16>
    %c0_7 = arith.constant 0 : index
    %c0_8 = arith.constant 0 : index
    %6 = vector.load %arg3[%c0_7, %c0_8] : memref<1x256xbf16, #tpu.memory_space<vmem>>, vector<1x256xbf16>
    %c0_9 = arith.constant 0 : index
    %c0_10 = arith.constant 0 : index
    %c0_11 = arith.constant 0 : index
    %7 = vector.load %arg4[%c0_9, %c0_10, %c0_11] : memref<12x32x288xbf16, #tpu.memory_space<vmem>>, vector<1x32x288xbf16>
    %8 = vector.shape_cast %7 : vector<1x32x288xbf16> to vector<32x288xbf16>
    %c0_12 = arith.constant 0 : index
    %c0_13 = arith.constant 0 : index
    %c0_14 = arith.constant 0 : index
    %9 = vector.load %arg5[%c0_12, %c0_13, %c0_14] : memref<12x32x1xf32, #tpu.memory_space<vmem>>, vector<1x32x1xf32>
    %10 = vector.shape_cast %9 : vector<1x32x1xf32> to vector<32x1xf32>
    %c0_15 = arith.constant 0 : index
    %c111 = arith.constant 111 : index
    %11 = vector.load %arg9[%c0_15, %c111] : memref<32x512xbf16, #tpu.memory_space<vmem>>, vector<32x256xbf16>
    %12 = vector.broadcast %5 : vector<1x256xbf16> to vector<32x256xbf16>
    %13 = arith.mulf %11, %12 : vector<32x256xbf16>
    %c0_16 = arith.constant 0 : index
    %c112 = arith.constant 112 : index
    %14 = vector.load %arg9[%c0_16, %c112] : memref<32x512xbf16, #tpu.memory_space<vmem>>, vector<32x256xbf16>
    %c0_17 = arith.constant 0 : index
    %c113 = arith.constant 113 : index
    %15 = vector.load %arg9[%c0_17, %c113] : memref<32x512xbf16, #tpu.memory_space<vmem>>, vector<32x256xbf16>
    %16 = vector.broadcast %6 : vector<1x256xbf16> to vector<32x256xbf16>
    %17 = arith.mulf %15, %16 : vector<32x256xbf16>
    %c0_18 = arith.constant 0 : index
    %c127 = arith.constant 127 : index
    %18 = vector.load %arg9[%c0_18, %c127] : memref<32x512xbf16, #tpu.memory_space<vmem>>, vector<32x256xbf16>
    %19 = vector.broadcast %5 : vector<1x256xbf16> to vector<32x256xbf16>
    %20 = arith.mulf %18, %19 : vector<32x256xbf16>
    %c0_19 = arith.constant 0 : index
    %c128_20 = arith.constant 128 : index
    %21 = vector.load %arg9[%c0_19, %c128_20] : memref<32x512xbf16, #tpu.memory_space<vmem>>, vector<32x256xbf16>
    %c0_21 = arith.constant 0 : index
    %c129 = arith.constant 129 : index
    %22 = vector.load %arg9[%c0_21, %c129] : memref<32x512xbf16, #tpu.memory_space<vmem>>, vector<32x256xbf16>
    %23 = vector.broadcast %6 : vector<1x256xbf16> to vector<32x256xbf16>
    %24 = arith.mulf %22, %23 : vector<32x256xbf16>
    %c0_22 = arith.constant 0 : index
    %c143 = arith.constant 143 : index
    %25 = vector.load %arg9[%c0_22, %c143] : memref<32x512xbf16, #tpu.memory_space<vmem>>, vector<32x256xbf16>
    %26 = vector.broadcast %5 : vector<1x256xbf16> to vector<32x256xbf16>
    %27 = arith.mulf %25, %26 : vector<32x256xbf16>
    %c0_23 = arith.constant 0 : index
    %c144 = arith.constant 144 : index
    %28 = vector.load %arg9[%c0_23, %c144] : memref<32x512xbf16, #tpu.memory_space<vmem>>, vector<32x256xbf16>
    %c0_24 = arith.constant 0 : index
    %c145 = arith.constant 145 : index
    %29 = vector.load %arg9[%c0_24, %c145] : memref<32x512xbf16, #tpu.memory_space<vmem>>, vector<32x256xbf16>
    %30 = vector.broadcast %6 : vector<1x256xbf16> to vector<32x256xbf16>
    %31 = arith.mulf %29, %30 : vector<32x256xbf16>
    %32 = tpu.concatenate %13, %14, %17, %20, %21, %24, %27, %28, %31 in 0 : vector<32x256xbf16>, vector<32x256xbf16>, vector<32x256xbf16>, vector<32x256xbf16>, vector<32x256xbf16>, vector<32x256xbf16>, vector<32x256xbf16>, vector<32x256xbf16>, vector<32x256xbf16> -> vector<288x256xbf16>
    %cst_25 = arith.constant dense<0.000000e+00> : vector<32x256xf32>
    %33 = tpu.matmul %8, %32, %cst_25 {dimension_numbers = #tpu.dot_dimension_numbers<[1], [0], [0], [1], [0, 0, 1, 1], [], []>} : vector<32x288xbf16>, vector<288x256xbf16>, vector<32x256xf32> -> vector<32x256xf32>
    %34 = vector.broadcast %10 : vector<32x1xf32> to vector<32x256xf32>
    %35 = arith.addf %33, %34 : vector<32x256xf32>
    %c0_26 = arith.constant 0 : index
    %c0_27 = arith.constant 0 : index
    %36 = vector.load %arg10[%c0_26, %c0_27] : memref<32x256xf32, #tpu.memory_space<vmem>>, vector<32x256xf32>
    tpu.vector_store %arg10[%c0_26, %c0_27], %35 {strides = array<i32>} : memref<32x256xf32, #tpu.memory_space<vmem>>, vector<32x256xf32>,
    %37 = arith.truncf %35 : vector<32x256xf32> to vector<32x256xbf16>
    %c0_28 = arith.constant 0 : index
    %c128_29 = arith.constant 128 : index
    %38 = vector.load %arg9[%c0_28, %c128_29] : memref<32x512xbf16, #tpu.memory_space<vmem>>, vector<32x256xbf16>
    tpu.vector_store %arg9[%c0_28, %c128_29], %37 {strides = array<i32>} : memref<32x512xbf16, #tpu.memory_space<vmem>>, vector<32x256xbf16>,
    %c1 = arith.constant 1 : index
    %c0_30 = arith.constant 0 : index
    %c0_31 = arith.constant 0 : index
    %39 = vector.load %arg4[%c1, %c0_30, %c0_31] : memref<12x32x288xbf16, #tpu.memory_space<vmem>>, vector<1x32x288xbf16>
    %40 = vector.shape_cast %39 : vector<1x32x288xbf16> to vector<32x288xbf16>
    %c1_32 = arith.constant 1 : index
    %c0_33 = arith.constant 0 : index
    %c0_34 = arith.constant 0 : index
    %41 = vector.load %arg5[%c1_32, %c0_33, %c0_34] : memref<12x32x1xf32, #tpu.memory_space<vmem>>, vector<1x32x1xf32>
    %42 = vector.shape_cast %41 : vector<1x32x1xf32> to vector<32x1xf32>
    %c0_35 = arith.constant 0 : index
    %c111_36 = arith.constant 111 : index
    %43 = vector.load %arg9[%c0_35, %c111_36] : memref<32x512xbf16, #tpu.memory_space<vmem>>, vector<32x256xbf16>
    %44 = vector.broadcast %5 : vector<1x256xbf16> to vector<32x256xbf16>
    %45 = arith.mulf %43, %44 : vector<32x256xbf16>
    %c0_37 = arith.constant 0 : index
    %c112_38 = arith.constant 112 : index
    %46 = vector.load %arg9[%c0_37, %c112_38] : memref<32x512xbf16, #tpu.memory_space<vmem>>, vector<32x256xbf16>
    %c0_39 = arith.constant 0 : index
    %c113_40 = arith.constant 113 : index
    %47 = vector.load %arg9[%c0_39, %c113_40] : memref<32x512xbf16, #tpu.memory_space<vmem>>, vector<32x256xbf16>
    %48 = vector.broadcast %6 : vector<1x256xbf16> to vector<32x256xbf16>
    %49 = arith.mulf %47, %48 : vector<32x256xbf16>
    %c0_41 = arith.constant 0 : index
    %c127_42 = arith.constant 127 : index
    %50 = vector.load %arg9[%c0_41, %c127_42] : memref<32x512xbf16, #tpu.memory_space<vmem>>, vector<32x256xbf16>
    %51 = vector.broadcast %5 : vector<1x256xbf16> to vector<32x256xbf16>
    %52 = arith.mulf %50, %51 : vector<32x256xbf16>
    %c0_43 = arith.constant 0 : index
    %c128_44 = arith.constant 128 : index
    %53 = vector.load %arg9[%c0_43, %c128_44] : memref<32x512xbf16, #tpu.memory_space<vmem>>, vector<32x256xbf16>
    %c0_45 = arith.constant 0 : index
    %c129_46 = arith.constant 129 : index
    %54 = vector.load %arg9[%c0_45, %c129_46] : memref<32x512xbf16, #tpu.memory_space<vmem>>, vector<32x256xbf16>
    %55 = vector.broadcast %6 : vector<1x256xbf16> to vector<32x256xbf16>
    %56 = arith.mulf %54, %55 : vector<32x256xbf16>
    %c0_47 = arith.constant 0 : index
    %c143_48 = arith.constant 143 : index
    %57 = vector.load %arg9[%c0_47, %c143_48] : memref<32x512xbf16, #tpu.memory_space<vmem>>, vector<32x256xbf16>
    %58 = vector.broadcast %5 : vector<1x256xbf16> to vector<32x256xbf16>
    %59 = arith.mulf %57, %58 : vector<32x256xbf16>
    %c0_49 = arith.constant 0 : index
    %c144_50 = arith.constant 144 : index
    %60 = vector.load %arg9[%c0_49, %c144_50] : memref<32x512xbf16, #tpu.memory_space<vmem>>, vector<32x256xbf16>
    %c0_51 = arith.constant 0 : index
    %c145_52 = arith.constant 145 : index
    %61 = vector.load %arg9[%c0_51, %c145_52] : memref<32x512xbf16, #tpu.memory_space<vmem>>, vector<32x256xbf16>
    %62 = vector.broadcast %6 : vector<1x256xbf16> to vector<32x256xbf16>
    %63 = arith.mulf %61, %62 : vector<32x256xbf16>
    %64 = tpu.concatenate %45, %46, %49, %52, %53, %56, %59, %60, %63 in 0 : vector<32x256xbf16>, vector<32x256xbf16>, vector<32x256xbf16>, vector<32x256xbf16>, vector<32x256xbf16>, vector<32x256xbf16>, vector<32x256xbf16>, vector<32x256xbf16>, vector<32x256xbf16> -> vector<288x256xbf16>
    %cst_53 = arith.constant dense<0.000000e+00> : vector<32x256xf32>
    %65 = tpu.matmul %40, %64, %cst_53 {dimension_numbers = #tpu.dot_dimension_numbers<[1], [0], [0], [1], [0, 0, 1, 1], [], []>} : vector<32x288xbf16>, vector<288x256xbf16>, vector<32x256xf32> -> vector<32x256xf32>
    %66 = vector.broadcast %42 : vector<32x1xf32> to vector<32x256xf32>
    %67 = arith.addf %65, %66 : vector<32x256xf32>
    %cst_54 = arith.constant 0.000000e+00 : f32
    %68 = vector.broadcast %cst_54 : f32 to vector<32x256xf32>
    %69 = arith.maximumf %67, %68 : vector<32x256xf32>
    %70 = arith.truncf %69 : vector<32x256xf32> to vector<32x256xbf16>
    %c0_55 = arith.constant 0 : index
    %c128_56 = arith.constant 128 : index
    %71 = vector.load %arg9[%c0_55, %c128_56] : memref<32x512xbf16, #tpu.memory_space<vmem>>, vector<32x256xbf16>
    tpu.vector_store %arg9[%c0_55, %c128_56], %70 {strides = array<i32>} : memref<32x512xbf16, #tpu.memory_space<vmem>>, vector<32x256xbf16>,
    %c2 = arith.constant 2 : index
    %c0_57 = arith.constant 0 : index
    %c0_58 = arith.constant 0 : index
    %72 = vector.load %arg4[%c2, %c0_57, %c0_58] : memref<12x32x288xbf16, #tpu.memory_space<vmem>>, vector<1x32x288xbf16>
    %73 = vector.shape_cast %72 : vector<1x32x288xbf16> to vector<32x288xbf16>
    %c2_59 = arith.constant 2 : index
    %c0_60 = arith.constant 0 : index
    %c0_61 = arith.constant 0 : index
    %74 = vector.load %arg5[%c2_59, %c0_60, %c0_61] : memref<12x32x1xf32, #tpu.memory_space<vmem>>, vector<1x32x1xf32>
    %75 = vector.shape_cast %74 : vector<1x32x1xf32> to vector<32x1xf32>
    %c0_62 = arith.constant 0 : index
    %c111_63 = arith.constant 111 : index
    %76 = vector.load %arg9[%c0_62, %c111_63] : memref<32x512xbf16, #tpu.memory_space<vmem>>, vector<32x256xbf16>
    %77 = vector.broadcast %5 : vector<1x256xbf16> to vector<32x256xbf16>
    %78 = arith.mulf %76, %77 : vector<32x256xbf16>
    %c0_64 = arith.constant 0 : index
    %c112_65 = arith.constant 112 : index
    %79 = vector.load %arg9[%c0_64, %c112_65] : memref<32x512xbf16, #tpu.memory_space<vmem>>, vector<32x256xbf16>
    %c0_66 = arith.constant 0 : index
    %c113_67 = arith.constant 113 : index
    %80 = vector.load %arg9[%c0_66, %c113_67] : memref<32x512xbf16, #tpu.memory_space<vmem>>, vector<32x256xbf16>
    %81 = vector.broadcast %6 : vector<1x256xbf16> to vector<32x256xbf16>
    %82 = arith.mulf %80, %81 : vector<32x256xbf16>
    %c0_68 = arith.constant 0 : index
    %c127_69 = arith.constant 127 : index
    %83 = vector.load %arg9[%c0_68, %c127_69] : memref<32x512xbf16, #tpu.memory_space<vmem>>, vector<32x256xbf16>
    %84 = vector.broadcast %5 : vector<1x256xbf16> to vector<32x256xbf16>
    %85 = arith.mulf %83, %84 : vector<32x256xbf16>
    %c0_70 = arith.constant 0 : index
    %c128_71 = arith.constant 128 : index
    %86 = vector.load %arg9[%c0_70, %c128_71] : memref<32x512xbf16, #tpu.memory_space<vmem>>, vector<32x256xbf16>
    %c0_72 = arith.constant 0 : index
    %c129_73 = arith.constant 129 : index
    %87 = vector.load %arg9[%c0_72, %c129_73] : memref<32x512xbf16, #tpu.memory_space<vmem>>, vector<32x256xbf16>
    %88 = vector.broadcast %6 : vector<1x256xbf16> to vector<32x256xbf16>
    %89 = arith.mulf %87, %88 : vector<32x256xbf16>
    %c0_74 = arith.constant 0 : index
    %c143_75 = arith.constant 143 : index
    %90 = vector.load %arg9[%c0_74, %c143_75] : memref<32x512xbf16, #tpu.memory_space<vmem>>, vector<32x256xbf16>
    %91 = vector.broadcast %5 : vector<1x256xbf16> to vector<32x256xbf16>
    %92 = arith.mulf %90, %91 : vector<32x256xbf16>
    %c0_76 = arith.constant 0 : index
    %c144_77 = arith.constant 144 : index
    %93 = vector.load %arg9[%c0_76, %c144_77] : memref<32x512xbf16, #tpu.memory_space<vmem>>, vector<32x256xbf16>
    %c0_78 = arith.constant 0 : index
    %c145_79 = arith.constant 145 : index
    %94 = vector.load %arg9[%c0_78, %c145_79] : memref<32x512xbf16, #tpu.memory_space<vmem>>, vector<32x256xbf16>
    %95 = vector.broadcast %6 : vector<1x256xbf16> to vector<32x256xbf16>
    %96 = arith.mulf %94, %95 : vector<32x256xbf16>
    %97 = tpu.concatenate %78, %79, %82, %85, %86, %89, %92, %93, %96 in 0 : vector<32x256xbf16>, vector<32x256xbf16>, vector<32x256xbf16>, vector<32x256xbf16>, vector<32x256xbf16>, vector<32x256xbf16>, vector<32x256xbf16>, vector<32x256xbf16>, vector<32x256xbf16> -> vector<288x256xbf16>
    %cst_80 = arith.constant dense<0.000000e+00> : vector<32x256xf32>
    %98 = tpu.matmul %73, %97, %cst_80 {dimension_numbers = #tpu.dot_dimension_numbers<[1], [0], [0], [1], [0, 0, 1, 1], [], []>} : vector<32x288xbf16>, vector<288x256xbf16>, vector<32x256xf32> -> vector<32x256xf32>
    %99 = vector.broadcast %75 : vector<32x1xf32> to vector<32x256xf32>
    %100 = arith.addf %98, %99 : vector<32x256xf32>
    %101 = arith.truncf %100 : vector<32x256xf32> to vector<32x256xbf16>
    %c0_81 = arith.constant 0 : index
    %c128_82 = arith.constant 128 : index
    %102 = vector.load %arg9[%c0_81, %c128_82] : memref<32x512xbf16, #tpu.memory_space<vmem>>, vector<32x256xbf16>
    tpu.vector_store %arg9[%c0_81, %c128_82], %101 {strides = array<i32>} : memref<32x512xbf16, #tpu.memory_space<vmem>>, vector<32x256xbf16>,
    %c3 = arith.constant 3 : index
    %c0_83 = arith.constant 0 : index
    %c0_84 = arith.constant 0 : index
    %103 = vector.load %arg4[%c3, %c0_83, %c0_84] : memref<12x32x288xbf16, #tpu.memory_space<vmem>>, vector<1x32x288xbf16>
    %104 = vector.shape_cast %103 : vector<1x32x288xbf16> to vector<32x288xbf16>
    %c3_85 = arith.constant 3 : index
    %c0_86 = arith.constant 0 : index
    %c0_87 = arith.constant 0 : index
    %105 = vector.load %arg5[%c3_85, %c0_86, %c0_87] : memref<12x32x1xf32, #tpu.memory_space<vmem>>, vector<1x32x1xf32>
    %106 = vector.shape_cast %105 : vector<1x32x1xf32> to vector<32x1xf32>
    %c0_88 = arith.constant 0 : index
    %c111_89 = arith.constant 111 : index
    %107 = vector.load %arg9[%c0_88, %c111_89] : memref<32x512xbf16, #tpu.memory_space<vmem>>, vector<32x256xbf16>
    %108 = vector.broadcast %5 : vector<1x256xbf16> to vector<32x256xbf16>
    %109 = arith.mulf %107, %108 : vector<32x256xbf16>
    %c0_90 = arith.constant 0 : index
    %c112_91 = arith.constant 112 : index
    %110 = vector.load %arg9[%c0_90, %c112_91] : memref<32x512xbf16, #tpu.memory_space<vmem>>, vector<32x256xbf16>
    %c0_92 = arith.constant 0 : index
    %c113_93 = arith.constant 113 : index
    %111 = vector.load %arg9[%c0_92, %c113_93] : memref<32x512xbf16, #tpu.memory_space<vmem>>, vector<32x256xbf16>
    %112 = vector.broadcast %6 : vector<1x256xbf16> to vector<32x256xbf16>
    %113 = arith.mulf %111, %112 : vector<32x256xbf16>
    %c0_94 = arith.constant 0 : index
    %c127_95 = arith.constant 127 : index
    %114 = vector.load %arg9[%c0_94, %c127_95] : memref<32x512xbf16, #tpu.memory_space<vmem>>, vector<32x256xbf16>
    %115 = vector.broadcast %5 : vector<1x256xbf16> to vector<32x256xbf16>
    %116 = arith.mulf %114, %115 : vector<32x256xbf16>
    %c0_96 = arith.constant 0 : index
    %c128_97 = arith.constant 128 : index
    %117 = vector.load %arg9[%c0_96, %c128_97] : memref<32x512xbf16, #tpu.memory_space<vmem>>, vector<32x256xbf16>
    %c0_98 = arith.constant 0 : index
    %c129_99 = arith.constant 129 : index
    %118 = vector.load %arg9[%c0_98, %c129_99] : memref<32x512xbf16, #tpu.memory_space<vmem>>, vector<32x256xbf16>
    %119 = vector.broadcast %6 : vector<1x256xbf16> to vector<32x256xbf16>
    %120 = arith.mulf %118, %119 : vector<32x256xbf16>
    %c0_100 = arith.constant 0 : index
    %c143_101 = arith.constant 143 : index
    %121 = vector.load %arg9[%c0_100, %c143_101] : memref<32x512xbf16, #tpu.memory_space<vmem>>, vector<32x256xbf16>
    %122 = vector.broadcast %5 : vector<1x256xbf16> to vector<32x256xbf16>
    %123 = arith.mulf %121, %122 : vector<32x256xbf16>
    %c0_102 = arith.constant 0 : index
    %c144_103 = arith.constant 144 : index
    %124 = vector.load %arg9[%c0_102, %c144_103] : memref<32x512xbf16, #tpu.memory_space<vmem>>, vector<32x256xbf16>
    %c0_104 = arith.constant 0 : index
    %c145_105 = arith.constant 145 : index
    %125 = vector.load %arg9[%c0_104, %c145_105] : memref<32x512xbf16, #tpu.memory_space<vmem>>, vector<32x256xbf16>
    %126 = vector.broadcast %6 : vector<1x256xbf16> to vector<32x256xbf16>
    %127 = arith.mulf %125, %126 : vector<32x256xbf16>
    %128 = tpu.concatenate %109, %110, %113, %116, %117, %120, %123, %124, %127 in 0 : vector<32x256xbf16>, vector<32x256xbf16>, vector<32x256xbf16>, vector<32x256xbf16>, vector<32x256xbf16>, vector<32x256xbf16>, vector<32x256xbf16>, vector<32x256xbf16>, vector<32x256xbf16> -> vector<288x256xbf16>
    %cst_106 = arith.constant dense<0.000000e+00> : vector<32x256xf32>
    %129 = tpu.matmul %104, %128, %cst_106 {dimension_numbers = #tpu.dot_dimension_numbers<[1], [0], [0], [1], [0, 0, 1, 1], [], []>} : vector<32x288xbf16>, vector<288x256xbf16>, vector<32x256xf32> -> vector<32x256xf32>
    %130 = vector.broadcast %106 : vector<32x1xf32> to vector<32x256xf32>
    %131 = arith.addf %129, %130 : vector<32x256xf32>
    %cst_107 = arith.constant 0.000000e+00 : f32
    %132 = vector.broadcast %cst_107 : f32 to vector<32x256xf32>
    %133 = arith.maximumf %131, %132 : vector<32x256xf32>
    %134 = arith.truncf %133 : vector<32x256xf32> to vector<32x256xbf16>
    %c0_108 = arith.constant 0 : index
    %c128_109 = arith.constant 128 : index
    %135 = vector.load %arg9[%c0_108, %c128_109] : memref<32x512xbf16, #tpu.memory_space<vmem>>, vector<32x256xbf16>
    tpu.vector_store %arg9[%c0_108, %c128_109], %134 {strides = array<i32>} : memref<32x512xbf16, #tpu.memory_space<vmem>>, vector<32x256xbf16>,
    %c4 = arith.constant 4 : index
    %c0_110 = arith.constant 0 : index
    %c0_111 = arith.constant 0 : index
    %136 = vector.load %arg4[%c4, %c0_110, %c0_111] : memref<12x32x288xbf16, #tpu.memory_space<vmem>>, vector<1x32x288xbf16>
    %137 = vector.shape_cast %136 : vector<1x32x288xbf16> to vector<32x288xbf16>
    %c4_112 = arith.constant 4 : index
    %c0_113 = arith.constant 0 : index
    %c0_114 = arith.constant 0 : index
    %138 = vector.load %arg5[%c4_112, %c0_113, %c0_114] : memref<12x32x1xf32, #tpu.memory_space<vmem>>, vector<1x32x1xf32>
    %139 = vector.shape_cast %138 : vector<1x32x1xf32> to vector<32x1xf32>
    %c0_115 = arith.constant 0 : index
    %c111_116 = arith.constant 111 : index
    %140 = vector.load %arg9[%c0_115, %c111_116] : memref<32x512xbf16, #tpu.memory_space<vmem>>, vector<32x256xbf16>
    %141 = vector.broadcast %5 : vector<1x256xbf16> to vector<32x256xbf16>
    %142 = arith.mulf %140, %141 : vector<32x256xbf16>
    %c0_117 = arith.constant 0 : index
    %c112_118 = arith.constant 112 : index
    %143 = vector.load %arg9[%c0_117, %c112_118] : memref<32x512xbf16, #tpu.memory_space<vmem>>, vector<32x256xbf16>
    %c0_119 = arith.constant 0 : index
    %c113_120 = arith.constant 113 : index
    %144 = vector.load %arg9[%c0_119, %c113_120] : memref<32x512xbf16, #tpu.memory_space<vmem>>, vector<32x256xbf16>
    %145 = vector.broadcast %6 : vector<1x256xbf16> to vector<32x256xbf16>
    %146 = arith.mulf %144, %145 : vector<32x256xbf16>
    %c0_121 = arith.constant 0 : index
    %c127_122 = arith.constant 127 : index
    %147 = vector.load %arg9[%c0_121, %c127_122] : memref<32x512xbf16, #tpu.memory_space<vmem>>, vector<32x256xbf16>
    %148 = vector.broadcast %5 : vector<1x256xbf16> to vector<32x256xbf16>
    %149 = arith.mulf %147, %148 : vector<32x256xbf16>
    %c0_123 = arith.constant 0 : index
    %c128_124 = arith.constant 128 : index
    %150 = vector.load %arg9[%c0_123, %c128_124] : memref<32x512xbf16, #tpu.memory_space<vmem>>, vector<32x256xbf16>
    %c0_125 = arith.constant 0 : index
    %c129_126 = arith.constant 129 : index
    %151 = vector.load %arg9[%c0_125, %c129_126] : memref<32x512xbf16, #tpu.memory_space<vmem>>, vector<32x256xbf16>
    %152 = vector.broadcast %6 : vector<1x256xbf16> to vector<32x256xbf16>
    %153 = arith.mulf %151, %152 : vector<32x256xbf16>
    %c0_127 = arith.constant 0 : index
    %c143_128 = arith.constant 143 : index
    %154 = vector.load %arg9[%c0_127, %c143_128] : memref<32x512xbf16, #tpu.memory_space<vmem>>, vector<32x256xbf16>
    %155 = vector.broadcast %5 : vector<1x256xbf16> to vector<32x256xbf16>
    %156 = arith.mulf %154, %155 : vector<32x256xbf16>
    %c0_129 = arith.constant 0 : index
    %c144_130 = arith.constant 144 : index
    %157 = vector.load %arg9[%c0_129, %c144_130] : memref<32x512xbf16, #tpu.memory_space<vmem>>, vector<32x256xbf16>
    %c0_131 = arith.constant 0 : index
    %c145_132 = arith.constant 145 : index
    %158 = vector.load %arg9[%c0_131, %c145_132] : memref<32x512xbf16, #tpu.memory_space<vmem>>, vector<32x256xbf16>
    %159 = vector.broadcast %6 : vector<1x256xbf16> to vector<32x256xbf16>
    %160 = arith.mulf %158, %159 : vector<32x256xbf16>
    %161 = tpu.concatenate %142, %143, %146, %149, %150, %153, %156, %157, %160 in 0 : vector<32x256xbf16>, vector<32x256xbf16>, vector<32x256xbf16>, vector<32x256xbf16>, vector<32x256xbf16>, vector<32x256xbf16>, vector<32x256xbf16>, vector<32x256xbf16>, vector<32x256xbf16> -> vector<288x256xbf16>
    %cst_133 = arith.constant dense<0.000000e+00> : vector<32x256xf32>
    %162 = tpu.matmul %137, %161, %cst_133 {dimension_numbers = #tpu.dot_dimension_numbers<[1], [0], [0], [1], [0, 0, 1, 1], [], []>} : vector<32x288xbf16>, vector<288x256xbf16>, vector<32x256xf32> -> vector<32x256xf32>
    %163 = vector.broadcast %139 : vector<32x1xf32> to vector<32x256xf32>
    %164 = arith.addf %162, %163 : vector<32x256xf32>
    %165 = arith.truncf %164 : vector<32x256xf32> to vector<32x256xbf16>
    %c0_134 = arith.constant 0 : index
    %c128_135 = arith.constant 128 : index
    %166 = vector.load %arg9[%c0_134, %c128_135] : memref<32x512xbf16, #tpu.memory_space<vmem>>, vector<32x256xbf16>
    tpu.vector_store %arg9[%c0_134, %c128_135], %165 {strides = array<i32>} : memref<32x512xbf16, #tpu.memory_space<vmem>>, vector<32x256xbf16>,
    %c5 = arith.constant 5 : index
    %c0_136 = arith.constant 0 : index
    %c0_137 = arith.constant 0 : index
    %167 = vector.load %arg4[%c5, %c0_136, %c0_137] : memref<12x32x288xbf16, #tpu.memory_space<vmem>>, vector<1x32x288xbf16>
    %168 = vector.shape_cast %167 : vector<1x32x288xbf16> to vector<32x288xbf16>
    %c5_138 = arith.constant 5 : index
    %c0_139 = arith.constant 0 : index
    %c0_140 = arith.constant 0 : index
    %169 = vector.load %arg5[%c5_138, %c0_139, %c0_140] : memref<12x32x1xf32, #tpu.memory_space<vmem>>, vector<1x32x1xf32>
    %170 = vector.shape_cast %169 : vector<1x32x1xf32> to vector<32x1xf32>
    %c0_141 = arith.constant 0 : index
    %c111_142 = arith.constant 111 : index
    %171 = vector.load %arg9[%c0_141, %c111_142] : memref<32x512xbf16, #tpu.memory_space<vmem>>, vector<32x256xbf16>
    %172 = vector.broadcast %5 : vector<1x256xbf16> to vector<32x256xbf16>
    %173 = arith.mulf %171, %172 : vector<32x256xbf16>
    %c0_143 = arith.constant 0 : index
    %c112_144 = arith.constant 112 : index
    %174 = vector.load %arg9[%c0_143, %c112_144] : memref<32x512xbf16, #tpu.memory_space<vmem>>, vector<32x256xbf16>
    %c0_145 = arith.constant 0 : index
    %c113_146 = arith.constant 113 : index
    %175 = vector.load %arg9[%c0_145, %c113_146] : memref<32x512xbf16, #tpu.memory_space<vmem>>, vector<32x256xbf16>
    %176 = vector.broadcast %6 : vector<1x256xbf16> to vector<32x256xbf16>
    %177 = arith.mulf %175, %176 : vector<32x256xbf16>
    %c0_147 = arith.constant 0 : index
    %c127_148 = arith.constant 127 : index
    %178 = vector.load %arg9[%c0_147, %c127_148] : memref<32x512xbf16, #tpu.memory_space<vmem>>, vector<32x256xbf16>
    %179 = vector.broadcast %5 : vector<1x256xbf16> to vector<32x256xbf16>
    %180 = arith.mulf %178, %179 : vector<32x256xbf16>
    %c0_149 = arith.constant 0 : index
    %c128_150 = arith.constant 128 : index
    %181 = vector.load %arg9[%c0_149, %c128_150] : memref<32x512xbf16, #tpu.memory_space<vmem>>, vector<32x256xbf16>
    %c0_151 = arith.constant 0 : index
    %c129_152 = arith.constant 129 : index
    %182 = vector.load %arg9[%c0_151, %c129_152] : memref<32x512xbf16, #tpu.memory_space<vmem>>, vector<32x256xbf16>
    %183 = vector.broadcast %6 : vector<1x256xbf16> to vector<32x256xbf16>
    %184 = arith.mulf %182, %183 : vector<32x256xbf16>
    %c0_153 = arith.constant 0 : index
    %c143_154 = arith.constant 143 : index
    %185 = vector.load %arg9[%c0_153, %c143_154] : memref<32x512xbf16, #tpu.memory_space<vmem>>, vector<32x256xbf16>
    %186 = vector.broadcast %5 : vector<1x256xbf16> to vector<32x256xbf16>
    %187 = arith.mulf %185, %186 : vector<32x256xbf16>
    %c0_155 = arith.constant 0 : index
    %c144_156 = arith.constant 144 : index
    %188 = vector.load %arg9[%c0_155, %c144_156] : memref<32x512xbf16, #tpu.memory_space<vmem>>, vector<32x256xbf16>
    %c0_157 = arith.constant 0 : index
    %c145_158 = arith.constant 145 : index
    %189 = vector.load %arg9[%c0_157, %c145_158] : memref<32x512xbf16, #tpu.memory_space<vmem>>, vector<32x256xbf16>
    %190 = vector.broadcast %6 : vector<1x256xbf16> to vector<32x256xbf16>
    %191 = arith.mulf %189, %190 : vector<32x256xbf16>
    %192 = tpu.concatenate %173, %174, %177, %180, %181, %184, %187, %188, %191 in 0 : vector<32x256xbf16>, vector<32x256xbf16>, vector<32x256xbf16>, vector<32x256xbf16>, vector<32x256xbf16>, vector<32x256xbf16>, vector<32x256xbf16>, vector<32x256xbf16>, vector<32x256xbf16> -> vector<288x256xbf16>
    %cst_159 = arith.constant dense<0.000000e+00> : vector<32x256xf32>
    %193 = tpu.matmul %168, %192, %cst_159 {dimension_numbers = #tpu.dot_dimension_numbers<[1], [0], [0], [1], [0, 0, 1, 1], [], []>} : vector<32x288xbf16>, vector<288x256xbf16>, vector<32x256xf32> -> vector<32x256xf32>
    %194 = vector.broadcast %170 : vector<32x1xf32> to vector<32x256xf32>
    %195 = arith.addf %193, %194 : vector<32x256xf32>
    %cst_160 = arith.constant 0.000000e+00 : f32
    %196 = vector.broadcast %cst_160 : f32 to vector<32x256xf32>
    %197 = arith.maximumf %195, %196 : vector<32x256xf32>
    %198 = arith.truncf %197 : vector<32x256xf32> to vector<32x256xbf16>
    %c0_161 = arith.constant 0 : index
    %c128_162 = arith.constant 128 : index
    %199 = vector.load %arg9[%c0_161, %c128_162] : memref<32x512xbf16, #tpu.memory_space<vmem>>, vector<32x256xbf16>
    tpu.vector_store %arg9[%c0_161, %c128_162], %198 {strides = array<i32>} : memref<32x512xbf16, #tpu.memory_space<vmem>>, vector<32x256xbf16>,
    %c6 = arith.constant 6 : index
    %c0_163 = arith.constant 0 : index
    %c0_164 = arith.constant 0 : index
    %200 = vector.load %arg4[%c6, %c0_163, %c0_164] : memref<12x32x288xbf16, #tpu.memory_space<vmem>>, vector<1x32x288xbf16>
    %201 = vector.shape_cast %200 : vector<1x32x288xbf16> to vector<32x288xbf16>
    %c6_165 = arith.constant 6 : index
    %c0_166 = arith.constant 0 : index
    %c0_167 = arith.constant 0 : index
    %202 = vector.load %arg5[%c6_165, %c0_166, %c0_167] : memref<12x32x1xf32, #tpu.memory_space<vmem>>, vector<1x32x1xf32>
    %203 = vector.shape_cast %202 : vector<1x32x1xf32> to vector<32x1xf32>
    %c0_168 = arith.constant 0 : index
    %c111_169 = arith.constant 111 : index
    %204 = vector.load %arg9[%c0_168, %c111_169] : memref<32x512xbf16, #tpu.memory_space<vmem>>, vector<32x256xbf16>
    %205 = vector.broadcast %5 : vector<1x256xbf16> to vector<32x256xbf16>
    %206 = arith.mulf %204, %205 : vector<32x256xbf16>
    %c0_170 = arith.constant 0 : index
    %c112_171 = arith.constant 112 : index
    %207 = vector.load %arg9[%c0_170, %c112_171] : memref<32x512xbf16, #tpu.memory_space<vmem>>, vector<32x256xbf16>
    %c0_172 = arith.constant 0 : index
    %c113_173 = arith.constant 113 : index
    %208 = vector.load %arg9[%c0_172, %c113_173] : memref<32x512xbf16, #tpu.memory_space<vmem>>, vector<32x256xbf16>
    %209 = vector.broadcast %6 : vector<1x256xbf16> to vector<32x256xbf16>
    %210 = arith.mulf %208, %209 : vector<32x256xbf16>
    %c0_174 = arith.constant 0 : index
    %c127_175 = arith.constant 127 : index
    %211 = vector.load %arg9[%c0_174, %c127_175] : memref<32x512xbf16, #tpu.memory_space<vmem>>, vector<32x256xbf16>
    %212 = vector.broadcast %5 : vector<1x256xbf16> to vector<32x256xbf16>
    %213 = arith.mulf %211, %212 : vector<32x256xbf16>
    %c0_176 = arith.constant 0 : index
    %c128_177 = arith.constant 128 : index
    %214 = vector.load %arg9[%c0_176, %c128_177] : memref<32x512xbf16, #tpu.memory_space<vmem>>, vector<32x256xbf16>
    %c0_178 = arith.constant 0 : index
    %c129_179 = arith.constant 129 : index
    %215 = vector.load %arg9[%c0_178, %c129_179] : memref<32x512xbf16, #tpu.memory_space<vmem>>, vector<32x256xbf16>
    %216 = vector.broadcast %6 : vector<1x256xbf16> to vector<32x256xbf16>
    %217 = arith.mulf %215, %216 : vector<32x256xbf16>
    %c0_180 = arith.constant 0 : index
    %c143_181 = arith.constant 143 : index
    %218 = vector.load %arg9[%c0_180, %c143_181] : memref<32x512xbf16, #tpu.memory_space<vmem>>, vector<32x256xbf16>
    %219 = vector.broadcast %5 : vector<1x256xbf16> to vector<32x256xbf16>
    %220 = arith.mulf %218, %219 : vector<32x256xbf16>
    %c0_182 = arith.constant 0 : index
    %c144_183 = arith.constant 144 : index
    %221 = vector.load %arg9[%c0_182, %c144_183] : memref<32x512xbf16, #tpu.memory_space<vmem>>, vector<32x256xbf16>
    %c0_184 = arith.constant 0 : index
    %c145_185 = arith.constant 145 : index
    %222 = vector.load %arg9[%c0_184, %c145_185] : memref<32x512xbf16, #tpu.memory_space<vmem>>, vector<32x256xbf16>
    %223 = vector.broadcast %6 : vector<1x256xbf16> to vector<32x256xbf16>
    %224 = arith.mulf %222, %223 : vector<32x256xbf16>
    %225 = tpu.concatenate %206, %207, %210, %213, %214, %217, %220, %221, %224 in 0 : vector<32x256xbf16>, vector<32x256xbf16>, vector<32x256xbf16>, vector<32x256xbf16>, vector<32x256xbf16>, vector<32x256xbf16>, vector<32x256xbf16>, vector<32x256xbf16>, vector<32x256xbf16> -> vector<288x256xbf16>
    %cst_186 = arith.constant dense<0.000000e+00> : vector<32x256xf32>
    %226 = tpu.matmul %201, %225, %cst_186 {dimension_numbers = #tpu.dot_dimension_numbers<[1], [0], [0], [1], [0, 0, 1, 1], [], []>} : vector<32x288xbf16>, vector<288x256xbf16>, vector<32x256xf32> -> vector<32x256xf32>
    %227 = vector.broadcast %203 : vector<32x1xf32> to vector<32x256xf32>
    %228 = arith.addf %226, %227 : vector<32x256xf32>
    %229 = arith.truncf %228 : vector<32x256xf32> to vector<32x256xbf16>
    %c0_187 = arith.constant 0 : index
    %c128_188 = arith.constant 128 : index
    %230 = vector.load %arg9[%c0_187, %c128_188] : memref<32x512xbf16, #tpu.memory_space<vmem>>, vector<32x256xbf16>
    tpu.vector_store %arg9[%c0_187, %c128_188], %229 {strides = array<i32>} : memref<32x512xbf16, #tpu.memory_space<vmem>>, vector<32x256xbf16>,
    %c7 = arith.constant 7 : index
    %c0_189 = arith.constant 0 : index
    %c0_190 = arith.constant 0 : index
    %231 = vector.load %arg4[%c7, %c0_189, %c0_190] : memref<12x32x288xbf16, #tpu.memory_space<vmem>>, vector<1x32x288xbf16>
    %232 = vector.shape_cast %231 : vector<1x32x288xbf16> to vector<32x288xbf16>
    %c7_191 = arith.constant 7 : index
    %c0_192 = arith.constant 0 : index
    %c0_193 = arith.constant 0 : index
    %233 = vector.load %arg5[%c7_191, %c0_192, %c0_193] : memref<12x32x1xf32, #tpu.memory_space<vmem>>, vector<1x32x1xf32>
    %234 = vector.shape_cast %233 : vector<1x32x1xf32> to vector<32x1xf32>
    %c0_194 = arith.constant 0 : index
    %c111_195 = arith.constant 111 : index
    %235 = vector.load %arg9[%c0_194, %c111_195] : memref<32x512xbf16, #tpu.memory_space<vmem>>, vector<32x256xbf16>
    %236 = vector.broadcast %5 : vector<1x256xbf16> to vector<32x256xbf16>
    %237 = arith.mulf %235, %236 : vector<32x256xbf16>
    %c0_196 = arith.constant 0 : index
    %c112_197 = arith.constant 112 : index
    %238 = vector.load %arg9[%c0_196, %c112_197] : memref<32x512xbf16, #tpu.memory_space<vmem>>, vector<32x256xbf16>
    %c0_198 = arith.constant 0 : index
    %c113_199 = arith.constant 113 : index
    %239 = vector.load %arg9[%c0_198, %c113_199] : memref<32x512xbf16, #tpu.memory_space<vmem>>, vector<32x256xbf16>
    %240 = vector.broadcast %6 : vector<1x256xbf16> to vector<32x256xbf16>
    %241 = arith.mulf %239, %240 : vector<32x256xbf16>
    %c0_200 = arith.constant 0 : index
    %c127_201 = arith.constant 127 : index
    %242 = vector.load %arg9[%c0_200, %c127_201] : memref<32x512xbf16, #tpu.memory_space<vmem>>, vector<32x256xbf16>
    %243 = vector.broadcast %5 : vector<1x256xbf16> to vector<32x256xbf16>
    %244 = arith.mulf %242, %243 : vector<32x256xbf16>
    %c0_202 = arith.constant 0 : index
    %c128_203 = arith.constant 128 : index
    %245 = vector.load %arg9[%c0_202, %c128_203] : memref<32x512xbf16, #tpu.memory_space<vmem>>, vector<32x256xbf16>
    %c0_204 = arith.constant 0 : index
    %c129_205 = arith.constant 129 : index
    %246 = vector.load %arg9[%c0_204, %c129_205] : memref<32x512xbf16, #tpu.memory_space<vmem>>, vector<32x256xbf16>
    %247 = vector.broadcast %6 : vector<1x256xbf16> to vector<32x256xbf16>
    %248 = arith.mulf %246, %247 : vector<32x256xbf16>
    %c0_206 = arith.constant 0 : index
    %c143_207 = arith.constant 143 : index
    %249 = vector.load %arg9[%c0_206, %c143_207] : memref<32x512xbf16, #tpu.memory_space<vmem>>, vector<32x256xbf16>
    %250 = vector.broadcast %5 : vector<1x256xbf16> to vector<32x256xbf16>
    %251 = arith.mulf %249, %250 : vector<32x256xbf16>
    %c0_208 = arith.constant 0 : index
    %c144_209 = arith.constant 144 : index
    %252 = vector.load %arg9[%c0_208, %c144_209] : memref<32x512xbf16, #tpu.memory_space<vmem>>, vector<32x256xbf16>
    %c0_210 = arith.constant 0 : index
    %c145_211 = arith.constant 145 : index
    %253 = vector.load %arg9[%c0_210, %c145_211] : memref<32x512xbf16, #tpu.memory_space<vmem>>, vector<32x256xbf16>
    %254 = vector.broadcast %6 : vector<1x256xbf16> to vector<32x256xbf16>
    %255 = arith.mulf %253, %254 : vector<32x256xbf16>
    %256 = tpu.concatenate %237, %238, %241, %244, %245, %248, %251, %252, %255 in 0 : vector<32x256xbf16>, vector<32x256xbf16>, vector<32x256xbf16>, vector<32x256xbf16>, vector<32x256xbf16>, vector<32x256xbf16>, vector<32x256xbf16>, vector<32x256xbf16>, vector<32x256xbf16> -> vector<288x256xbf16>
    %cst_212 = arith.constant dense<0.000000e+00> : vector<32x256xf32>
    %257 = tpu.matmul %232, %256, %cst_212 {dimension_numbers = #tpu.dot_dimension_numbers<[1], [0], [0], [1], [0, 0, 1, 1], [], []>} : vector<32x288xbf16>, vector<288x256xbf16>, vector<32x256xf32> -> vector<32x256xf32>
    %258 = vector.broadcast %234 : vector<32x1xf32> to vector<32x256xf32>
    %259 = arith.addf %257, %258 : vector<32x256xf32>
    %cst_213 = arith.constant 0.000000e+00 : f32
    %260 = vector.broadcast %cst_213 : f32 to vector<32x256xf32>
    %261 = arith.maximumf %259, %260 : vector<32x256xf32>
    %262 = arith.truncf %261 : vector<32x256xf32> to vector<32x256xbf16>
    %c0_214 = arith.constant 0 : index
    %c128_215 = arith.constant 128 : index
    %263 = vector.load %arg9[%c0_214, %c128_215] : memref<32x512xbf16, #tpu.memory_space<vmem>>, vector<32x256xbf16>
    tpu.vector_store %arg9[%c0_214, %c128_215], %262 {strides = array<i32>} : memref<32x512xbf16, #tpu.memory_space<vmem>>, vector<32x256xbf16>,
    %c8 = arith.constant 8 : index
    %c0_216 = arith.constant 0 : index
    %c0_217 = arith.constant 0 : index
    %264 = vector.load %arg4[%c8, %c0_216, %c0_217] : memref<12x32x288xbf16, #tpu.memory_space<vmem>>, vector<1x32x288xbf16>
    %265 = vector.shape_cast %264 : vector<1x32x288xbf16> to vector<32x288xbf16>
    %c8_218 = arith.constant 8 : index
    %c0_219 = arith.constant 0 : index
    %c0_220 = arith.constant 0 : index
    %266 = vector.load %arg5[%c8_218, %c0_219, %c0_220] : memref<12x32x1xf32, #tpu.memory_space<vmem>>, vector<1x32x1xf32>
    %267 = vector.shape_cast %266 : vector<1x32x1xf32> to vector<32x1xf32>
    %c0_221 = arith.constant 0 : index
    %c111_222 = arith.constant 111 : index
    %268 = vector.load %arg9[%c0_221, %c111_222] : memref<32x512xbf16, #tpu.memory_space<vmem>>, vector<32x256xbf16>
    %269 = vector.broadcast %5 : vector<1x256xbf16> to vector<32x256xbf16>
    %270 = arith.mulf %268, %269 : vector<32x256xbf16>
    %c0_223 = arith.constant 0 : index
    %c112_224 = arith.constant 112 : index
    %271 = vector.load %arg9[%c0_223, %c112_224] : memref<32x512xbf16, #tpu.memory_space<vmem>>, vector<32x256xbf16>
    %c0_225 = arith.constant 0 : index
    %c113_226 = arith.constant 113 : index
    %272 = vector.load %arg9[%c0_225, %c113_226] : memref<32x512xbf16, #tpu.memory_space<vmem>>, vector<32x256xbf16>
    %273 = vector.broadcast %6 : vector<1x256xbf16> to vector<32x256xbf16>
    %274 = arith.mulf %272, %273 : vector<32x256xbf16>
    %c0_227 = arith.constant 0 : index
    %c127_228 = arith.constant 127 : index
    %275 = vector.load %arg9[%c0_227, %c127_228] : memref<32x512xbf16, #tpu.memory_space<vmem>>, vector<32x256xbf16>
    %276 = vector.broadcast %5 : vector<1x256xbf16> to vector<32x256xbf16>
    %277 = arith.mulf %275, %276 : vector<32x256xbf16>
    %c0_229 = arith.constant 0 : index
    %c128_230 = arith.constant 128 : index
    %278 = vector.load %arg9[%c0_229, %c128_230] : memref<32x512xbf16, #tpu.memory_space<vmem>>, vector<32x256xbf16>
    %c0_231 = arith.constant 0 : index
    %c129_232 = arith.constant 129 : index
    %279 = vector.load %arg9[%c0_231, %c129_232] : memref<32x512xbf16, #tpu.memory_space<vmem>>, vector<32x256xbf16>
    %280 = vector.broadcast %6 : vector<1x256xbf16> to vector<32x256xbf16>
    %281 = arith.mulf %279, %280 : vector<32x256xbf16>
    %c0_233 = arith.constant 0 : index
    %c143_234 = arith.constant 143 : index
    %282 = vector.load %arg9[%c0_233, %c143_234] : memref<32x512xbf16, #tpu.memory_space<vmem>>, vector<32x256xbf16>
    %283 = vector.broadcast %5 : vector<1x256xbf16> to vector<32x256xbf16>
    %284 = arith.mulf %282, %283 : vector<32x256xbf16>
    %c0_235 = arith.constant 0 : index
    %c144_236 = arith.constant 144 : index
    %285 = vector.load %arg9[%c0_235, %c144_236] : memref<32x512xbf16, #tpu.memory_space<vmem>>, vector<32x256xbf16>
    %c0_237 = arith.constant 0 : index
    %c145_238 = arith.constant 145 : index
    %286 = vector.load %arg9[%c0_237, %c145_238] : memref<32x512xbf16, #tpu.memory_space<vmem>>, vector<32x256xbf16>
    %287 = vector.broadcast %6 : vector<1x256xbf16> to vector<32x256xbf16>
    %288 = arith.mulf %286, %287 : vector<32x256xbf16>
    %289 = tpu.concatenate %270, %271, %274, %277, %278, %281, %284, %285, %288 in 0 : vector<32x256xbf16>, vector<32x256xbf16>, vector<32x256xbf16>, vector<32x256xbf16>, vector<32x256xbf16>, vector<32x256xbf16>, vector<32x256xbf16>, vector<32x256xbf16>, vector<32x256xbf16> -> vector<288x256xbf16>
    %cst_239 = arith.constant dense<0.000000e+00> : vector<32x256xf32>
    %290 = tpu.matmul %265, %289, %cst_239 {dimension_numbers = #tpu.dot_dimension_numbers<[1], [0], [0], [1], [0, 0, 1, 1], [], []>} : vector<32x288xbf16>, vector<288x256xbf16>, vector<32x256xf32> -> vector<32x256xf32>
    %291 = vector.broadcast %267 : vector<32x1xf32> to vector<32x256xf32>
    %292 = arith.addf %290, %291 : vector<32x256xf32>
    %293 = arith.truncf %292 : vector<32x256xf32> to vector<32x256xbf16>
    %c0_240 = arith.constant 0 : index
    %c128_241 = arith.constant 128 : index
    %294 = vector.load %arg9[%c0_240, %c128_241] : memref<32x512xbf16, #tpu.memory_space<vmem>>, vector<32x256xbf16>
    tpu.vector_store %arg9[%c0_240, %c128_241], %293 {strides = array<i32>} : memref<32x512xbf16, #tpu.memory_space<vmem>>, vector<32x256xbf16>,
    %c9 = arith.constant 9 : index
    %c0_242 = arith.constant 0 : index
    %c0_243 = arith.constant 0 : index
    %295 = vector.load %arg4[%c9, %c0_242, %c0_243] : memref<12x32x288xbf16, #tpu.memory_space<vmem>>, vector<1x32x288xbf16>
    %296 = vector.shape_cast %295 : vector<1x32x288xbf16> to vector<32x288xbf16>
    %c9_244 = arith.constant 9 : index
    %c0_245 = arith.constant 0 : index
    %c0_246 = arith.constant 0 : index
    %297 = vector.load %arg5[%c9_244, %c0_245, %c0_246] : memref<12x32x1xf32, #tpu.memory_space<vmem>>, vector<1x32x1xf32>
    %298 = vector.shape_cast %297 : vector<1x32x1xf32> to vector<32x1xf32>
    %c0_247 = arith.constant 0 : index
    %c111_248 = arith.constant 111 : index
    %299 = vector.load %arg9[%c0_247, %c111_248] : memref<32x512xbf16, #tpu.memory_space<vmem>>, vector<32x256xbf16>
    %300 = vector.broadcast %5 : vector<1x256xbf16> to vector<32x256xbf16>
    %301 = arith.mulf %299, %300 : vector<32x256xbf16>
    %c0_249 = arith.constant 0 : index
    %c112_250 = arith.constant 112 : index
    %302 = vector.load %arg9[%c0_249, %c112_250] : memref<32x512xbf16, #tpu.memory_space<vmem>>, vector<32x256xbf16>
    %c0_251 = arith.constant 0 : index
    %c113_252 = arith.constant 113 : index
    %303 = vector.load %arg9[%c0_251, %c113_252] : memref<32x512xbf16, #tpu.memory_space<vmem>>, vector<32x256xbf16>
    %304 = vector.broadcast %6 : vector<1x256xbf16> to vector<32x256xbf16>
    %305 = arith.mulf %303, %304 : vector<32x256xbf16>
    %c0_253 = arith.constant 0 : index
    %c127_254 = arith.constant 127 : index
    %306 = vector.load %arg9[%c0_253, %c127_254] : memref<32x512xbf16, #tpu.memory_space<vmem>>, vector<32x256xbf16>
    %307 = vector.broadcast %5 : vector<1x256xbf16> to vector<32x256xbf16>
    %308 = arith.mulf %306, %307 : vector<32x256xbf16>
    %c0_255 = arith.constant 0 : index
    %c128_256 = arith.constant 128 : index
    %309 = vector.load %arg9[%c0_255, %c128_256] : memref<32x512xbf16, #tpu.memory_space<vmem>>, vector<32x256xbf16>
    %c0_257 = arith.constant 0 : index
    %c129_258 = arith.constant 129 : index
    %310 = vector.load %arg9[%c0_257, %c129_258] : memref<32x512xbf16, #tpu.memory_space<vmem>>, vector<32x256xbf16>
    %311 = vector.broadcast %6 : vector<1x256xbf16> to vector<32x256xbf16>
    %312 = arith.mulf %310, %311 : vector<32x256xbf16>
    %c0_259 = arith.constant 0 : index
    %c143_260 = arith.constant 143 : index
    %313 = vector.load %arg9[%c0_259, %c143_260] : memref<32x512xbf16, #tpu.memory_space<vmem>>, vector<32x256xbf16>
    %314 = vector.broadcast %5 : vector<1x256xbf16> to vector<32x256xbf16>
    %315 = arith.mulf %313, %314 : vector<32x256xbf16>
    %c0_261 = arith.constant 0 : index
    %c144_262 = arith.constant 144 : index
    %316 = vector.load %arg9[%c0_261, %c144_262] : memref<32x512xbf16, #tpu.memory_space<vmem>>, vector<32x256xbf16>
    %c0_263 = arith.constant 0 : index
    %c145_264 = arith.constant 145 : index
    %317 = vector.load %arg9[%c0_263, %c145_264] : memref<32x512xbf16, #tpu.memory_space<vmem>>, vector<32x256xbf16>
    %318 = vector.broadcast %6 : vector<1x256xbf16> to vector<32x256xbf16>
    %319 = arith.mulf %317, %318 : vector<32x256xbf16>
    %320 = tpu.concatenate %301, %302, %305, %308, %309, %312, %315, %316, %319 in 0 : vector<32x256xbf16>, vector<32x256xbf16>, vector<32x256xbf16>, vector<32x256xbf16>, vector<32x256xbf16>, vector<32x256xbf16>, vector<32x256xbf16>, vector<32x256xbf16>, vector<32x256xbf16> -> vector<288x256xbf16>
    %cst_265 = arith.constant dense<0.000000e+00> : vector<32x256xf32>
    %321 = tpu.matmul %296, %320, %cst_265 {dimension_numbers = #tpu.dot_dimension_numbers<[1], [0], [0], [1], [0, 0, 1, 1], [], []>} : vector<32x288xbf16>, vector<288x256xbf16>, vector<32x256xf32> -> vector<32x256xf32>
    %322 = vector.broadcast %298 : vector<32x1xf32> to vector<32x256xf32>
    %323 = arith.addf %321, %322 : vector<32x256xf32>
    %cst_266 = arith.constant 0.000000e+00 : f32
    %324 = vector.broadcast %cst_266 : f32 to vector<32x256xf32>
    %325 = arith.maximumf %323, %324 : vector<32x256xf32>
    %326 = arith.truncf %325 : vector<32x256xf32> to vector<32x256xbf16>
    %c0_267 = arith.constant 0 : index
    %c128_268 = arith.constant 128 : index
    %327 = vector.load %arg9[%c0_267, %c128_268] : memref<32x512xbf16, #tpu.memory_space<vmem>>, vector<32x256xbf16>
    tpu.vector_store %arg9[%c0_267, %c128_268], %326 {strides = array<i32>} : memref<32x512xbf16, #tpu.memory_space<vmem>>, vector<32x256xbf16>,
    %c10 = arith.constant 10 : index
    %c0_269 = arith.constant 0 : index
    %c0_270 = arith.constant 0 : index
    %328 = vector.load %arg4[%c10, %c0_269, %c0_270] : memref<12x32x288xbf16, #tpu.memory_space<vmem>>, vector<1x32x288xbf16>
    %329 = vector.shape_cast %328 : vector<1x32x288xbf16> to vector<32x288xbf16>
    %c10_271 = arith.constant 10 : index
    %c0_272 = arith.constant 0 : index
    %c0_273 = arith.constant 0 : index
    %330 = vector.load %arg5[%c10_271, %c0_272, %c0_273] : memref<12x32x1xf32, #tpu.memory_space<vmem>>, vector<1x32x1xf32>
    %331 = vector.shape_cast %330 : vector<1x32x1xf32> to vector<32x1xf32>
    %c0_274 = arith.constant 0 : index
    %c111_275 = arith.constant 111 : index
    %332 = vector.load %arg9[%c0_274, %c111_275] : memref<32x512xbf16, #tpu.memory_space<vmem>>, vector<32x256xbf16>
    %333 = vector.broadcast %5 : vector<1x256xbf16> to vector<32x256xbf16>
    %334 = arith.mulf %332, %333 : vector<32x256xbf16>
    %c0_276 = arith.constant 0 : index
    %c112_277 = arith.constant 112 : index
    %335 = vector.load %arg9[%c0_276, %c112_277] : memref<32x512xbf16, #tpu.memory_space<vmem>>, vector<32x256xbf16>
    %c0_278 = arith.constant 0 : index
    %c113_279 = arith.constant 113 : index
    %336 = vector.load %arg9[%c0_278, %c113_279] : memref<32x512xbf16, #tpu.memory_space<vmem>>, vector<32x256xbf16>
    %337 = vector.broadcast %6 : vector<1x256xbf16> to vector<32x256xbf16>
    %338 = arith.mulf %336, %337 : vector<32x256xbf16>
    %c0_280 = arith.constant 0 : index
    %c127_281 = arith.constant 127 : index
    %339 = vector.load %arg9[%c0_280, %c127_281] : memref<32x512xbf16, #tpu.memory_space<vmem>>, vector<32x256xbf16>
    %340 = vector.broadcast %5 : vector<1x256xbf16> to vector<32x256xbf16>
    %341 = arith.mulf %339, %340 : vector<32x256xbf16>
    %c0_282 = arith.constant 0 : index
    %c128_283 = arith.constant 128 : index
    %342 = vector.load %arg9[%c0_282, %c128_283] : memref<32x512xbf16, #tpu.memory_space<vmem>>, vector<32x256xbf16>
    %c0_284 = arith.constant 0 : index
    %c129_285 = arith.constant 129 : index
    %343 = vector.load %arg9[%c0_284, %c129_285] : memref<32x512xbf16, #tpu.memory_space<vmem>>, vector<32x256xbf16>
    %344 = vector.broadcast %6 : vector<1x256xbf16> to vector<32x256xbf16>
    %345 = arith.mulf %343, %344 : vector<32x256xbf16>
    %c0_286 = arith.constant 0 : index
    %c143_287 = arith.constant 143 : index
    %346 = vector.load %arg9[%c0_286, %c143_287] : memref<32x512xbf16, #tpu.memory_space<vmem>>, vector<32x256xbf16>
    %347 = vector.broadcast %5 : vector<1x256xbf16> to vector<32x256xbf16>
    %348 = arith.mulf %346, %347 : vector<32x256xbf16>
    %c0_288 = arith.constant 0 : index
    %c144_289 = arith.constant 144 : index
    %349 = vector.load %arg9[%c0_288, %c144_289] : memref<32x512xbf16, #tpu.memory_space<vmem>>, vector<32x256xbf16>
    %c0_290 = arith.constant 0 : index
    %c145_291 = arith.constant 145 : index
    %350 = vector.load %arg9[%c0_290, %c145_291] : memref<32x512xbf16, #tpu.memory_space<vmem>>, vector<32x256xbf16>
    %351 = vector.broadcast %6 : vector<1x256xbf16> to vector<32x256xbf16>
    %352 = arith.mulf %350, %351 : vector<32x256xbf16>
    %353 = tpu.concatenate %334, %335, %338, %341, %342, %345, %348, %349, %352 in 0 : vector<32x256xbf16>, vector<32x256xbf16>, vector<32x256xbf16>, vector<32x256xbf16>, vector<32x256xbf16>, vector<32x256xbf16>, vector<32x256xbf16>, vector<32x256xbf16>, vector<32x256xbf16> -> vector<288x256xbf16>
    %cst_292 = arith.constant dense<0.000000e+00> : vector<32x256xf32>
    %354 = tpu.matmul %329, %353, %cst_292 {dimension_numbers = #tpu.dot_dimension_numbers<[1], [0], [0], [1], [0, 0, 1, 1], [], []>} : vector<32x288xbf16>, vector<288x256xbf16>, vector<32x256xf32> -> vector<32x256xf32>
    %355 = vector.broadcast %331 : vector<32x1xf32> to vector<32x256xf32>
    %356 = arith.addf %354, %355 : vector<32x256xf32>
    %357 = arith.truncf %356 : vector<32x256xf32> to vector<32x256xbf16>
    %c0_293 = arith.constant 0 : index
    %c128_294 = arith.constant 128 : index
    %358 = vector.load %arg9[%c0_293, %c128_294] : memref<32x512xbf16, #tpu.memory_space<vmem>>, vector<32x256xbf16>
    tpu.vector_store %arg9[%c0_293, %c128_294], %357 {strides = array<i32>} : memref<32x512xbf16, #tpu.memory_space<vmem>>, vector<32x256xbf16>,
    %c11 = arith.constant 11 : index
    %c0_295 = arith.constant 0 : index
    %c0_296 = arith.constant 0 : index
    %359 = vector.load %arg4[%c11, %c0_295, %c0_296] : memref<12x32x288xbf16, #tpu.memory_space<vmem>>, vector<1x32x288xbf16>
    %360 = vector.shape_cast %359 : vector<1x32x288xbf16> to vector<32x288xbf16>
    %c11_297 = arith.constant 11 : index
    %c0_298 = arith.constant 0 : index
    %c0_299 = arith.constant 0 : index
    %361 = vector.load %arg5[%c11_297, %c0_298, %c0_299] : memref<12x32x1xf32, #tpu.memory_space<vmem>>, vector<1x32x1xf32>
    %362 = vector.shape_cast %361 : vector<1x32x1xf32> to vector<32x1xf32>
    %c0_300 = arith.constant 0 : index
    %c111_301 = arith.constant 111 : index
    %363 = vector.load %arg9[%c0_300, %c111_301] : memref<32x512xbf16, #tpu.memory_space<vmem>>, vector<32x256xbf16>
    %364 = vector.broadcast %5 : vector<1x256xbf16> to vector<32x256xbf16>
    %365 = arith.mulf %363, %364 : vector<32x256xbf16>
    %c0_302 = arith.constant 0 : index
    %c112_303 = arith.constant 112 : index
    %366 = vector.load %arg9[%c0_302, %c112_303] : memref<32x512xbf16, #tpu.memory_space<vmem>>, vector<32x256xbf16>
    %c0_304 = arith.constant 0 : index
    %c113_305 = arith.constant 113 : index
    %367 = vector.load %arg9[%c0_304, %c113_305] : memref<32x512xbf16, #tpu.memory_space<vmem>>, vector<32x256xbf16>
    %368 = vector.broadcast %6 : vector<1x256xbf16> to vector<32x256xbf16>
    %369 = arith.mulf %367, %368 : vector<32x256xbf16>
    %c0_306 = arith.constant 0 : index
    %c127_307 = arith.constant 127 : index
    %370 = vector.load %arg9[%c0_306, %c127_307] : memref<32x512xbf16, #tpu.memory_space<vmem>>, vector<32x256xbf16>
    %371 = vector.broadcast %5 : vector<1x256xbf16> to vector<32x256xbf16>
    %372 = arith.mulf %370, %371 : vector<32x256xbf16>
    %c0_308 = arith.constant 0 : index
    %c128_309 = arith.constant 128 : index
    %373 = vector.load %arg9[%c0_308, %c128_309] : memref<32x512xbf16, #tpu.memory_space<vmem>>, vector<32x256xbf16>
    %c0_310 = arith.constant 0 : index
    %c129_311 = arith.constant 129 : index
    %374 = vector.load %arg9[%c0_310, %c129_311] : memref<32x512xbf16, #tpu.memory_space<vmem>>, vector<32x256xbf16>
    %375 = vector.broadcast %6 : vector<1x256xbf16> to vector<32x256xbf16>
    %376 = arith.mulf %374, %375 : vector<32x256xbf16>
    %c0_312 = arith.constant 0 : index
    %c143_313 = arith.constant 143 : index
    %377 = vector.load %arg9[%c0_312, %c143_313] : memref<32x512xbf16, #tpu.memory_space<vmem>>, vector<32x256xbf16>
    %378 = vector.broadcast %5 : vector<1x256xbf16> to vector<32x256xbf16>
    %379 = arith.mulf %377, %378 : vector<32x256xbf16>
    %c0_314 = arith.constant 0 : index
    %c144_315 = arith.constant 144 : index
    %380 = vector.load %arg9[%c0_314, %c144_315] : memref<32x512xbf16, #tpu.memory_space<vmem>>, vector<32x256xbf16>
    %c0_316 = arith.constant 0 : index
    %c145_317 = arith.constant 145 : index
    %381 = vector.load %arg9[%c0_316, %c145_317] : memref<32x512xbf16, #tpu.memory_space<vmem>>, vector<32x256xbf16>
    %382 = vector.broadcast %6 : vector<1x256xbf16> to vector<32x256xbf16>
    %383 = arith.mulf %381, %382 : vector<32x256xbf16>
    %384 = tpu.concatenate %365, %366, %369, %372, %373, %376, %379, %380, %383 in 0 : vector<32x256xbf16>, vector<32x256xbf16>, vector<32x256xbf16>, vector<32x256xbf16>, vector<32x256xbf16>, vector<32x256xbf16>, vector<32x256xbf16>, vector<32x256xbf16>, vector<32x256xbf16> -> vector<288x256xbf16>
    %cst_318 = arith.constant dense<0.000000e+00> : vector<32x256xf32>
    %385 = tpu.matmul %360, %384, %cst_318 {dimension_numbers = #tpu.dot_dimension_numbers<[1], [0], [0], [1], [0, 0, 1, 1], [], []>} : vector<32x288xbf16>, vector<288x256xbf16>, vector<32x256xf32> -> vector<32x256xf32>
    %386 = vector.broadcast %362 : vector<32x1xf32> to vector<32x256xf32>
    %387 = arith.addf %385, %386 : vector<32x256xf32>
    %c0_319 = arith.constant 0 : index
    %c0_320 = arith.constant 0 : index
    %388 = vector.load %arg10[%c0_319, %c0_320] : memref<32x256xf32, #tpu.memory_space<vmem>>, vector<32x256xf32>
    %389 = arith.addf %387, %388 : vector<32x256xf32>
    %390 = arith.truncf %389 : vector<32x256xf32> to vector<32x256xbf16>
    %c0_321 = arith.constant 0 : index
    %c128_322 = arith.constant 128 : index
    %391 = vector.load %arg9[%c0_321, %c128_322] : memref<32x512xbf16, #tpu.memory_space<vmem>>, vector<32x256xbf16>
    tpu.vector_store %arg9[%c0_321, %c128_322], %390 {strides = array<i32>} : memref<32x512xbf16, #tpu.memory_space<vmem>>, vector<32x256xbf16>,
    %c0_323 = arith.constant 0 : index
    %c0_324 = arith.constant 0 : index
    %392 = vector.load %arg6[%c0_323, %c0_324] : memref<48x288xbf16, #tpu.memory_space<vmem>>, vector<48x288xbf16>
    %c0_325 = arith.constant 0 : index
    %c0_326 = arith.constant 0 : index
    %393 = vector.load %arg7[%c0_325, %c0_326] : memref<48x1xf32, #tpu.memory_space<vmem>>, vector<48x1xf32>
    %c0_327 = arith.constant 0 : index
    %c111_328 = arith.constant 111 : index
    %394 = vector.load %arg9[%c0_327, %c111_328] : memref<32x512xbf16, #tpu.memory_space<vmem>>, vector<32x256xbf16>
    %395 = vector.broadcast %5 : vector<1x256xbf16> to vector<32x256xbf16>
    %396 = arith.mulf %394, %395 : vector<32x256xbf16>
    %c0_329 = arith.constant 0 : index
    %c112_330 = arith.constant 112 : index
    %397 = vector.load %arg9[%c0_329, %c112_330] : memref<32x512xbf16, #tpu.memory_space<vmem>>, vector<32x256xbf16>
    %c0_331 = arith.constant 0 : index
    %c113_332 = arith.constant 113 : index
    %398 = vector.load %arg9[%c0_331, %c113_332] : memref<32x512xbf16, #tpu.memory_space<vmem>>, vector<32x256xbf16>
    %399 = vector.broadcast %6 : vector<1x256xbf16> to vector<32x256xbf16>
    %400 = arith.mulf %398, %399 : vector<32x256xbf16>
    %c0_333 = arith.constant 0 : index
    %c127_334 = arith.constant 127 : index
    %401 = vector.load %arg9[%c0_333, %c127_334] : memref<32x512xbf16, #tpu.memory_space<vmem>>, vector<32x256xbf16>
    %402 = vector.broadcast %5 : vector<1x256xbf16> to vector<32x256xbf16>
    %403 = arith.mulf %401, %402 : vector<32x256xbf16>
    %c0_335 = arith.constant 0 : index
    %c128_336 = arith.constant 128 : index
    %404 = vector.load %arg9[%c0_335, %c128_336] : memref<32x512xbf16, #tpu.memory_space<vmem>>, vector<32x256xbf16>
    %c0_337 = arith.constant 0 : index
    %c129_338 = arith.constant 129 : index
    %405 = vector.load %arg9[%c0_337, %c129_338] : memref<32x512xbf16, #tpu.memory_space<vmem>>, vector<32x256xbf16>
    %406 = vector.broadcast %6 : vector<1x256xbf16> to vector<32x256xbf16>
    %407 = arith.mulf %405, %406 : vector<32x256xbf16>
    %c0_339 = arith.constant 0 : index
    %c143_340 = arith.constant 143 : index
    %408 = vector.load %arg9[%c0_339, %c143_340] : memref<32x512xbf16, #tpu.memory_space<vmem>>, vector<32x256xbf16>
    %409 = vector.broadcast %5 : vector<1x256xbf16> to vector<32x256xbf16>
    %410 = arith.mulf %408, %409 : vector<32x256xbf16>
    %c0_341 = arith.constant 0 : index
    %c144_342 = arith.constant 144 : index
    %411 = vector.load %arg9[%c0_341, %c144_342] : memref<32x512xbf16, #tpu.memory_space<vmem>>, vector<32x256xbf16>
    %c0_343 = arith.constant 0 : index
    %c145_344 = arith.constant 145 : index
    %412 = vector.load %arg9[%c0_343, %c145_344] : memref<32x512xbf16, #tpu.memory_space<vmem>>, vector<32x256xbf16>
    %413 = vector.broadcast %6 : vector<1x256xbf16> to vector<32x256xbf16>
    %414 = arith.mulf %412, %413 : vector<32x256xbf16>
    %415 = tpu.concatenate %396, %397, %400, %403, %404, %407, %410, %411, %414 in 0 : vector<32x256xbf16>, vector<32x256xbf16>, vector<32x256xbf16>, vector<32x256xbf16>, vector<32x256xbf16>, vector<32x256xbf16>, vector<32x256xbf16>, vector<32x256xbf16>, vector<32x256xbf16> -> vector<288x256xbf16>
    %cst_345 = arith.constant dense<0.000000e+00> : vector<48x256xf32>
    %416 = tpu.matmul %392, %415, %cst_345 {dimension_numbers = #tpu.dot_dimension_numbers<[1], [0], [0], [1], [0, 0, 1, 1], [], []>} : vector<48x288xbf16>, vector<288x256xbf16>, vector<48x256xf32> -> vector<48x256xf32>
    %417 = vector.broadcast %393 : vector<48x1xf32> to vector<48x256xf32>
    %418 = arith.addf %416, %417 : vector<48x256xf32>
    %c0_346 = arith.constant 0 : index
    %c0_347 = arith.constant 0 : index
    %c0_348 = arith.constant 0 : index
    %419 = vector.load %arg8[%c0_346, %c0_347, %c0_348] : memref<1x48x256xf32, #tpu.memory_space<vmem>>, vector<1x48x256xf32>
    %420 = vector.shape_cast %419 : vector<1x48x256xf32> to vector<48x256xf32>
    %421 = vector.shape_cast %418 : vector<48x256xf32> to vector<1x48x256xf32>
    tpu.vector_store %arg8[%c0_346, %c0_347, %c0_348], %421 {strides = array<i32>} : memref<1x48x256xf32, #tpu.memory_space<vmem>>, vector<1x48x256xf32>,
    return
  }
  func.func @transform_0(%arg0: i32) -> (i32, i32, i32) {
    %c0_i32 = arith.constant 0 : i32
    %c0_i32_0 = arith.constant 0 : i32
    %c0_i32_1 = arith.constant 0 : i32
    return %arg0, %c0_i32, %c0_i32_0 : i32, i32, i32
  }
  func.func @transform_1(%arg0: i32) -> (i32, i32) {
    %c0_i32 = arith.constant 0 : i32
    %c0_i32_0 = arith.constant 0 : i32
    %c0_i32_1 = arith.constant 0 : i32
    return %c0_i32, %c0_i32_0 : i32, i32
  }
  func.func @transform_2(%arg0: i32) -> (i32, i32) {
    %c0_i32 = arith.constant 0 : i32
    %c0_i32_0 = arith.constant 0 : i32
    %c0_i32_1 = arith.constant 0 : i32
    return %c0_i32, %c0_i32_0 : i32, i32
  }
  func.func @transform_3(%arg0: i32) -> (i32, i32, i32) {
    %c0_i32 = arith.constant 0 : i32
    %c0_i32_0 = arith.constant 0 : i32
    %c0_i32_1 = arith.constant 0 : i32
    %c0_i32_2 = arith.constant 0 : i32
    return %c0_i32, %c0_i32_0, %c0_i32_1 : i32, i32, i32
  }
  func.func @transform_4(%arg0: i32) -> (i32, i32, i32) {
    %c0_i32 = arith.constant 0 : i32
    %c0_i32_0 = arith.constant 0 : i32
    %c0_i32_1 = arith.constant 0 : i32
    %c0_i32_2 = arith.constant 0 : i32
    return %c0_i32, %c0_i32_0, %c0_i32_1 : i32, i32, i32
  }
  func.func @transform_5(%arg0: i32) -> (i32, i32) {
    %c0_i32 = arith.constant 0 : i32
    %c0_i32_0 = arith.constant 0 : i32
    %c0_i32_1 = arith.constant 0 : i32
    return %c0_i32, %c0_i32_0 : i32, i32
  }
  func.func @transform_6(%arg0: i32) -> (i32, i32) {
    %c0_i32 = arith.constant 0 : i32
    %c0_i32_0 = arith.constant 0 : i32
    %c0_i32_1 = arith.constant 0 : i32
    return %c0_i32, %c0_i32_0 : i32, i32
  }
  func.func @transform_7(%arg0: i32) -> (i32, i32, i32) {
    %c0_i32 = arith.constant 0 : i32
    %c0_i32_0 = arith.constant 0 : i32
    %c0_i32_1 = arith.constant 0 : i32
    return %arg0, %c0_i32, %c0_i32_0 : i32, i32, i32
  }
}

</mosaic_0001>

<llo_original>
// kernel: vit_forward.1
$region0: #{vit_forward.1}
  #allocation0 [shape = 'u32[]', space=smem, size = 0x4, offset = 0x4, fixed_abs, tag = 'smem constant byte address 0x4 - core index']
  #allocation1 [shape = 'u32[144,128]{1,0:T(1,128)}', space=vmem, size = 0x12000, scoped, tag = 'internal scratch']
  #allocation2 [shape = 'bf16[32,512]{1,0:T(16,128)(2,1)}', space=vmem, size = 0x8000, scoped, tag = 'scratch operand']
  #allocation3 [shape = 'f32[32,256]{1,0:T(8,128)}', space=vmem, size = 0x8000, scoped, tag = 'scratch operand']
  %s0 = inlined_call_operand.hbm [shape: bf16[2,32,256], index: 0, kind: input, shape index: {}]
  %s1 = inlined_call_operand.hbm [shape: bf16[1,256], index: 1, kind: input, shape index: {}]
  %s2 = inlined_call_operand.hbm [shape: bf16[1,256], index: 2, kind: input, shape index: {}]
  %s3 = inlined_call_operand.hbm [shape: bf16[12,32,288], index: 3, kind: input, shape index: {}]
  %s4 = inlined_call_operand.hbm [shape: f32[12,32,1], index: 4, kind: input, shape index: {}]
  %s5 = inlined_call_operand.hbm [shape: bf16[48,288], index: 5, kind: input, shape index: {}]
  %s6 = inlined_call_operand.hbm [shape: f32[48,1], index: 6, kind: input, shape index: {}]
  %s7 = inlined_call_operand.hbm [shape: f32[2,48,256], index: 7, kind: output, shape index: {}]
  %s8 = sld [smem:[#allocation0]]
  $region89: #{vit_forward.1} parent=0
    _
  %s10 = ssub.s32 1, %s8
  %s11 = scalar_select 0, %s10, %s8
  $region1: #{vit_forward.1} parent=0
    #allocation4 [shape = 'u8[32768]{0}', space=vmem, size = 0x8000, scoped, tag = 'input window, operand 0']
    #allocation5 [shape = 's32[2]{0}', space=sflag, size = 0x8, scoped, tag = 'scoped memory for vit_forward.1']
    #allocation6 [shape = 's32[2]{0}', space=sflag, size = 0x8, scoped, tag = 'scoped memory for vit_forward.1']
    #allocation7 [shape = 'u8[1024]{0}', space=vmem, size = 0x400, scoped, tag = 'input window, operand 1, single buffered']
    #allocation8 [shape = 's32[1]{0}', space=sflag, size = 0x4, scoped, tag = 'scoped memory for vit_forward.1']
    #allocation9 [shape = 'u8[1024]{0}', space=vmem, size = 0x400, scoped, tag = 'input window, operand 2, single buffered']
    #allocation10 [shape = 'u8[294912]{0}', space=vmem, size = 0x48000, scoped, tag = 'input window, operand 3, single buffered']
    #allocation11 [shape = 's32[1]{0}', space=sflag, size = 0x4, scoped, tag = 'scoped memory for vit_forward.1']
    #allocation12 [shape = 'u8[196608]{0}', space=vmem, size = 0x30000, scoped, tag = 'input window, operand 4, single buffered']
    #allocation13 [shape = 'u8[36864]{0}', space=vmem, size = 0x9000, scoped, tag = 'input window, operand 5, single buffered']
    #allocation14 [shape = 's32[1]{0}', space=sflag, size = 0x4, scoped, tag = 'scoped memory for vit_forward.1']
    #allocation15 [shape = 'u8[24576]{0}', space=vmem, size = 0x6000, scoped, tag = 'input window, operand 6, single buffered']
    #allocation16 [shape = 'u8[98304]{0}', space=vmem, size = 0x18000, scoped, tag = 'output window, operand 0']
    %12 = vsyncpa [#allocation5], 0
    %s13 = scalar_lea.sflag [#allocation5], 1
    %14 = vsyncpa %s13, 0
    %15 = vsyncpa [#allocation8], 0
    %16 = vsyncpa [#allocation11], 0
    %17 = vsyncpa [#allocation14], 0
    %18 = vsyncpa [#allocation6], 0
    %s19 = scalar_lea.sflag [#allocation6], 1
    %20 = vsyncpa %s19, 0
    loop: start=0, step=1, limit=4
    $region2: #{vit_forward.1} parent=1 // loop_pre_header
      _
    $region3: #{vit_forward.1} parent=1 // loop_header
      %s22 = sphi 0, %s26
      %p23 = scmp.ge.s32.totalorder %s22, 4
      %s32 = sphi 0, %s34
      %s35 = sphi 0, %s32
      %s36 = sphi 0, %s35
      %s52 = sphi 0, %s36
      %s56 = sphi 0, %s56
      %s58 = sphi 0, %s56
      %s59 = sphi 0, %s58
      %s73 = sphi 0, %s59
      %s77 = sphi 0, %s77
      %s79 = sphi 0, %s77
      %s80 = sphi 0, %s79
      %s94 = sphi 0, %s80
      %s98 = sphi 0, %s98
      %s100 = sphi 0, %s98
      %s101 = sphi 0, %s100
      %s115 = sphi 0, %s101
      %s119 = sphi 0, %s119
      %s121 = sphi 0, %s119
      %s122 = sphi 0, %s121
      %s136 = sphi 0, %s122
      %s140 = sphi 0, %s140
      %s142 = sphi 0, %s140
      %s143 = sphi 0, %s142
      %s157 = sphi 0, %s143
      %s161 = sphi 0, %s161
      %s163 = sphi 0, %s161
      %s164 = sphi 0, %s163
      %s178 = sphi 0, %s164
      %s184 = sphi 0, %s186
      %s187 = sphi 0, %s184
      %s188 = sphi 0, %s187
      %s204 = sphi 0, %s188
    $region4: #{vit_forward.1} parent=1 // loop_header_branch
      %25 = sbr.rel (%p23) target = $region8
    $region5: #{vit_forward.1} parent=1 // loop_body
      %s27 = ssub.s32 %s22, 1
      %s28 = ssub.s32 %s22, 2
      %s29 = sadd.s32 %s22, 1
      %s30 = ssub.s32 %s22, %s29
      %p31 = scmp.eq.s32.totalorder %s30, 0
      %s33 = sadd.s32 %s32, 1
      %s34 = scalar_select %p31, %s32, %s33
      %p37 = pneg %p31
      %p38 = scmp.eq.s32.totalorder %s22, 1
      %p39 = por %p37, %p38
      %p40 = scmp.ne.s32.totalorder %s32, %s35
      %p41 = scmp.eq.s32.totalorder %s22, 0
      %p42 = por %p40, %p41
      %p43 = scmp.ne.s32.totalorder %s32, %s35
      %p44 = scmp.eq.s32.totalorder %s27, 1
      %p45 = por %p43, %p44
      %p46 = scmp.ne.s32.totalorder %s35, %s36
      %p47 = scmp.eq.s32.totalorder %s27, 0
      %p48 = por %p46, %p47
      %p49 = scmp.ne.s32.totalorder %s35, %s36
      %p50 = scmp.eq.s32.totalorder %s28, 1
      %p51 = por %p49, %p50
      %p53 = scmp.ne.s32.totalorder %s36, %s52
      %p54 = scmp.eq.s32.totalorder %s28, 0
      %p55 = por %p53, %p54
      %s57 = sadd.s32 %s56, 1
      %p60 = scmp.eq.s32.totalorder %s22, 1
      %p61 = scmp.ne.s32.totalorder %s56, %s58
      %p62 = scmp.eq.s32.totalorder %s22, 0
      %p63 = por %p61, %p62
      %p64 = scmp.ne.s32.totalorder %s56, %s58
      %p65 = scmp.eq.s32.totalorder %s27, 1
      %p66 = por %p64, %p65
      %p67 = scmp.ne.s32.totalorder %s58, %s59
      %p68 = scmp.eq.s32.totalorder %s27, 0
      %p69 = por %p67, %p68
      %p70 = scmp.ne.s32.totalorder %s58, %s59
      %p71 = scmp.eq.s32.totalorder %s28, 1
      %p72 = por %p70, %p71
      %p74 = scmp.ne.s32.totalorder %s59, %s73
      %p75 = scmp.eq.s32.totalorder %s28, 0
      %p76 = por %p74, %p75
      %s78 = sadd.s32 %s77, 1
      %p81 = scmp.eq.s32.totalorder %s22, 1
      %p82 = scmp.ne.s32.totalorder %s77, %s79
      %p83 = scmp.eq.s32.totalorder %s22, 0
      %p84 = por %p82, %p83
      %p85 = scmp.ne.s32.totalorder %s77, %s79
      %p86 = scmp.eq.s32.totalorder %s27, 1
      %p87 = por %p85, %p86
      %p88 = scmp.ne.s32.totalorder %s79, %s80
      %p89 = scmp.eq.s32.totalorder %s27, 0
      %p90 = por %p88, %p89
      %p91 = scmp.ne.s32.totalorder %s79, %s80
      %p92 = scmp.eq.s32.totalorder %s28, 1
      %p93 = por %p91, %p92
      %p95 = scmp.ne.s32.totalorder %s80, %s94
      %p96 = scmp.eq.s32.totalorder %s28, 0
      %p97 = por %p95, %p96
      %s99 = sadd.s32 %s98, 1
      %p102 = scmp.eq.s32.totalorder %s22, 1
      %p103 = scmp.ne.s32.totalorder %s98, %s100
      %p104 = scmp.eq.s32.totalorder %s22, 0
      %p105 = por %p103, %p104
      %p106 = scmp.ne.s32.totalorder %s98, %s100
      %p107 = scmp.eq.s32.totalorder %s27, 1
      %p108 = por %p106, %p107
      %p109 = scmp.ne.s32.totalorder %s100, %s101
      %p110 = scmp.eq.s32.totalorder %s27, 0
      %p111 = por %p109, %p110
      %p112 = scmp.ne.s32.totalorder %s100, %s101
      %p113 = scmp.eq.s32.totalorder %s28, 1
      %p114 = por %p112, %p113
      %p116 = scmp.ne.s32.totalorder %s101, %s115
      %p117 = scmp.eq.s32.totalorder %s28, 0
      %p118 = por %p116, %p117
      %s120 = sadd.s32 %s119, 1
      %p123 = scmp.eq.s32.totalorder %s22, 1
      %p124 = scmp.ne.s32.totalorder %s119, %s121
      %p125 = scmp.eq.s32.totalorder %s22, 0
      %p126 = por %p124, %p125
      %p127 = scmp.ne.s32.totalorder %s119, %s121
      %p128 = scmp.eq.s32.totalorder %s27, 1
      %p129 = por %p127, %p128
      %p130 = scmp.ne.s32.totalorder %s121, %s122
      %p131 = scmp.eq.s32.totalorder %s27, 0
      %p132 = por %p130, %p131
      %p133 = scmp.ne.s32.totalorder %s121, %s122
      %p134 = scmp.eq.s32.totalorder %s28, 1
      %p135 = por %p133, %p134
      %p137 = scmp.ne.s32.totalorder %s122, %s136
      %p138 = scmp.eq.s32.totalorder %s28, 0
      %p139 = por %p137, %p138
      %s141 = sadd.s32 %s140, 1
      %p144 = scmp.eq.s32.totalorder %s22, 1
      %p145 = scmp.ne.s32.totalorder %s140, %s142
      %p146 = scmp.eq.s32.totalorder %s22, 0
      %p147 = por %p145, %p146
      %p148 = scmp.ne.s32.totalorder %s140, %s142
      %p149 = scmp.eq.s32.totalorder %s27, 1
      %p150 = por %p148, %p149
      %p151 = scmp.ne.s32.totalorder %s142, %s143
      %p152 = scmp.eq.s32.totalorder %s27, 0
      %p153 = por %p151, %p152
      %p154 = scmp.ne.s32.totalorder %s142, %s143
      %p155 = scmp.eq.s32.totalorder %s28, 1
      %p156 = por %p154, %p155
      %p158 = scmp.ne.s32.totalorder %s143, %s157
      %p159 = scmp.eq.s32.totalorder %s28, 0
      %p160 = por %p158, %p159
      %s162 = sadd.s32 %s161, 1
      %p165 = scmp.eq.s32.totalorder %s22, 1
      %p166 = scmp.ne.s32.totalorder %s161, %s163
      %p167 = scmp.eq.s32.totalorder %s22, 0
      %p168 = por %p166, %p167
      %p169 = scmp.ne.s32.totalorder %s161, %s163
      %p170 = scmp.eq.s32.totalorder %s27, 1
      %p171 = por %p169, %p170
      %p172 = scmp.ne.s32.totalorder %s163, %s164
      %p173 = scmp.eq.s32.totalorder %s27, 0
      %p174 = por %p172, %p173
      %p175 = scmp.ne.s32.totalorder %s163, %s164
      %p176 = scmp.eq.s32.totalorder %s28, 1
      %p177 = por %p175, %p176
      %p179 = scmp.ne.s32.totalorder %s164, %s178
      %p180 = scmp.eq.s32.totalorder %s28, 0
      %p181 = por %p179, %p180
      %s182 = ssub.s32 %s22, %s29
      %p183 = scmp.eq.s32.totalorder %s182, 0
      %s185 = sadd.s32 %s184, 1
      %s186 = scalar_select %p183, %s184, %s185
      %p189 = pneg %p183
      %p190 = scmp.eq.s32.totalorder %s22, 1
      %p191 = por %p189, %p190
      %p192 = scmp.ne.s32.totalorder %s184, %s187
      %p193 = scmp.eq.s32.totalorder %s22, 0
      %p194 = por %p192, %p193
      %p195 = scmp.ne.s32.totalorder %s184, %s187
      %p196 = scmp.eq.s32.totalorder %s27, 1
      %p197 = por %p195, %p196
      %p198 = scmp.ne.s32.totalorder %s187, %s188
      %p199 = scmp.eq.s32.totalorder %s27, 0
      %p200 = por %p198, %p199
      %p201 = scmp.ne.s32.totalorder %s187, %s188
      %p202 = scmp.eq.s32.totalorder %s28, 1
      %p203 = por %p201, %p202
      %p205 = scmp.ne.s32.totalorder %s188, %s204
      %p206 = scmp.eq.s32.totalorder %s28, 0
      %p207 = por %p205, %p206
      %p208 = scmp.le.s32.totalorder 1, %s22
      %p209 = scmp.lt.s32.totalorder %s22, 3
      %p210 = pnand %p208, %p209
      %p211 = pneg %p210
      // Predicated region
      $region9: #{vit_forward.1} parent=5 // pred_check
        _
      $region10: #{vit_forward.1} parent=5 // pred_check_branch
        %213 = sbr.rel (%p210) target = $region12
      $region11: #{vit_forward.1} parent=5 // pred_region
        %s214 = ssub.s32 %s22, 1
        // Predicated region
        $region13: #{vit_forward.1} parent=11 // pred_check
          %p215 = pneg %p69
        $region14: #{vit_forward.1} parent=11 // pred_check_branch
          %217 = sbr.rel (%p215) target = $region16
        $region15: #{vit_forward.1} parent=11 // pred_region
          %s219 = ssub.s32 32, 32
          %220 = vsyncadd [#allocation8], %s219
          %s222 = sshll.u32 [#allocation7], 4
          %s223 = int_to_ptr.vmem [resolvable:$true] %s222
          %225 = dma.hbm_to_vmem [thread:$0]  %s1, 32, %s223, [#allocation8]
        $region16: #{vit_forward.1} parent=11 // pred_fallthru
          _
        // Predicated region
        $region17: #{vit_forward.1} parent=11 // pred_check
          %p226 = pneg %p90
        $region18: #{vit_forward.1} parent=11 // pred_check_branch
          %228 = sbr.rel (%p226) target = $region20
        $region19: #{vit_forward.1} parent=11 // pred_region
          %s230 = ssub.s32 32, 32
          %231 = vsyncadd [#allocation8], %s230
          %s233 = sshll.u32 [#allocation9], 4
          %s234 = int_to_ptr.vmem [resolvable:$true] %s233
          %236 = dma.hbm_to_vmem [thread:$0]  %s2, 32, %s234, [#allocation8]
        $region20: #{vit_forward.1} parent=11 // pred_fallthru
          _
        // Predicated region
        $region21: #{vit_forward.1} parent=11 // pred_check
          %p237 = pneg %p111
        $region22: #{vit_forward.1} parent=11 // pred_check_branch
          %239 = sbr.rel (%p237) target = $region24
        $region23: #{vit_forward.1} parent=11 // pred_region
          %s241 = ssub.s32 9216, 9216
          %242 = vsyncadd [#allocation11], %s241
          %s243 = sshll.u32 [#allocation10], 4
          %s244 = int_to_ptr.vmem [resolvable:$true] %s243
          %249 = dma.hbm_to_vmem [thread:$0]  %s3, 9216, %s244, [#allocation11], 192, 192, 12
        $region24: #{vit_forward.1} parent=11 // pred_fallthru
          _
        // Predicated region
        $region25: #{vit_forward.1} parent=11 // pred_check
          %p250 = pneg %p132
        $region26: #{vit_forward.1} parent=11 // pred_check_branch
          %252 = sbr.rel (%p250) target = $region28
        $region27: #{vit_forward.1} parent=11 // pred_region
          %s254 = ssub.s32 6144, 6144
          %255 = vsyncadd [#allocation11], %s254
          %s256 = sshll.u32 [#allocation12], 4
          %s257 = int_to_ptr.vmem [resolvable:$true] %s256
          %262 = dma.hbm_to_vmem [thread:$0]  %s4, 6144, %s257, [#allocation11], 128, 128, 8
        $region28: #{vit_forward.1} parent=11 // pred_fallthru
          _
        // Predicated region
        $region29: #{vit_forward.1} parent=11 // pred_check
          %p263 = pneg %p153
        $region30: #{vit_forward.1} parent=11 // pred_check_branch
          %265 = sbr.rel (%p263) target = $region32
        $region31: #{vit_forward.1} parent=11 // pred_region
          %s267 = ssub.s32 1152, 1152
          %268 = vsyncadd [#allocation14], %s267
          %s269 = sshll.u32 [#allocation13], 4
          %s270 = int_to_ptr.vmem [resolvable:$true] %s269
          %275 = dma.hbm_to_vmem [thread:$0]  %s5, 1152, %s270, [#allocation14], 192, 192, 12
        $region32: #{vit_forward.1} parent=11 // pred_fallthru
          _
        // Predicated region
        $region33: #{vit_forward.1} parent=11 // pred_check
          %p276 = pneg %p174
        $region34: #{vit_forward.1} parent=11 // pred_check_branch
          %278 = sbr.rel (%p276) target = $region36
        $region35: #{vit_forward.1} parent=11 // pred_region
          %s280 = ssub.s32 768, 768
          %281 = vsyncadd [#allocation14], %s280
          %s282 = sshll.u32 [#allocation15], 4
          %s283 = int_to_ptr.vmem [resolvable:$true] %s282
          %288 = dma.hbm_to_vmem [thread:$0]  %s6, 768, %s283, [#allocation14], 128, 128, 8
        $region36: #{vit_forward.1} parent=11 // pred_fallthru
          _
      $region12: #{vit_forward.1} parent=5 // pred_fallthru
        _
      %p289 = scmp.lt.s32.totalorder %s22, 2
      // Predicated region
      $region37: #{vit_forward.1} parent=5 // pred_check
        %p290 = pneg %p289
      $region38: #{vit_forward.1} parent=5 // pred_check_branch
        %292 = sbr.rel (%p290) target = $region40
      $region39: #{vit_forward.1} parent=5 // pred_region
        // Predicated region
        $region41: #{vit_forward.1} parent=39 // pred_check
          %p293 = pneg %p42
        $region42: #{vit_forward.1} parent=39 // pred_check_branch
          %295 = sbr.rel (%p293) target = $region44
        $region43: #{vit_forward.1} parent=39 // pred_region
          %s296 = sand.u32 %s32, 1
          %s297 = scalar_lea.sflag [#allocation5], %s296
          %s298 = sand.u32 %s32, 1
          %s299 = smul.addr %s298, 32
          %s300 = scalar_lea.vmem [#allocation4], %s299
          %s302 = ssub.s32 512, 512
          %303 = vsyncadd %s297, %s302
          %s304 = smul.addr %s22, 8
          %s305 = smul.addr %s304, 64
          %s306 = scalar_lea.hbm %s0, %s305
          %s307 = sshll.u32 %s300, 4
          %s308 = int_to_ptr.vmem [resolvable:$true] %s307
          %313 = dma.hbm_to_vmem [thread:$0]  %s306, 512, %s308, %s297, 128, 128, 8
        $region44: #{vit_forward.1} parent=39 // pred_fallthru
          _
      $region40: #{vit_forward.1} parent=5 // pred_fallthru
        _
      %p314 = scmp.le.s32.totalorder 1, %s22
      %p315 = scmp.lt.s32.totalorder %s22, 3
      %p316 = pnand %p314, %p315
      %p317 = pneg %p316
      // Predicated region
      $region45: #{vit_forward.1} parent=5 // pred_check
        _
      $region46: #{vit_forward.1} parent=5 // pred_check_branch
        %319 = sbr.rel (%p316) target = $region48
      $region47: #{vit_forward.1} parent=5 // pred_region
        %s320 = ssub.s32 %s22, 1
        %s321 = sand.u32 %s35, 1
        %s322 = scalar_lea.sflag [#allocation5], %s321
        %s323 = sand.u32 %s35, 1
        %s324 = smul.addr %s323, 32
        %s325 = scalar_lea.vmem [#allocation4], %s324
        // Predicated region
        $region49: #{vit_forward.1} parent=47 // pred_check
          %p326 = pneg %p48
        $region50: #{vit_forward.1} parent=47 // pred_check_branch
          %328 = sbr.rel (%p326) target = $region52
        $region51: #{vit_forward.1} parent=47 // pred_region
          %329 = dma.done %s322, 512
        $region52: #{vit_forward.1} parent=47 // pred_fallthru
          _
        // Predicated region
        $region53: #{vit_forward.1} parent=47 // pred_check
          %p330 = pneg %p69
        $region54: #{vit_forward.1} parent=47 // pred_check_branch
          %332 = sbr.rel (%p330) target = $region56
        $region55: #{vit_forward.1} parent=47 // pred_region
          %333 = dma.done [#allocation8], 32
        $region56: #{vit_forward.1} parent=47 // pred_fallthru
          _
        // Predicated region
        $region57: #{vit_forward.1} parent=47 // pred_check
          %p334 = pneg %p90
        $region58: #{vit_forward.1} parent=47 // pred_check_branch
          %336 = sbr.rel (%p334) target = $region60
        $region59: #{vit_forward.1} parent=47 // pred_region
          %337 = dma.done [#allocation8], 32
        $region60: #{vit_forward.1} parent=47 // pred_fallthru
          _
        // Predicated region
        $region61: #{vit_forward.1} parent=47 // pred_check
          %p338 = pneg %p111
        $region62: #{vit_forward.1} parent=47 // pred_check_branch
          %340 = sbr.rel (%p338) target = $region64
        $region63: #{vit_forward.1} parent=47 // pred_region
          %341 = dma.done [#allocation11], 9216
        $region64: #{vit_forward.1} parent=47 // pred_fallthru
          _
        // Predicated region
        $region65: #{vit_forward.1} parent=47 // pred_check
          %p342 = pneg %p132
        $region66: #{vit_forward.1} parent=47 // pred_check_branch
          %344 = sbr.rel (%p342) target = $region68
        $region67: #{vit_forward.1} parent=47 // pred_region
          %345 = dma.done [#allocation11], 6144
        $region68: #{vit_forward.1} parent=47 // pred_fallthru
          _
        // Predicated region
        $region69: #{vit_forward.1} parent=47 // pred_check
          %p346 = pneg %p153
        $region70: #{vit_forward.1} parent=47 // pred_check_branch
          %348 = sbr.rel (%p346) target = $region72
        $region71: #{vit_forward.1} parent=47 // pred_region
          %349 = dma.done [#allocation14], 1152
        $region72: #{vit_forward.1} parent=47 // pred_fallthru
          _
        // Predicated region
        $region73: #{vit_forward.1} parent=47 // pred_check
          %p350 = pneg %p174
        $region74: #{vit_forward.1} parent=47 // pred_check_branch
          %352 = sbr.rel (%p350) target = $region76
        $region75: #{vit_forward.1} parent=47 // pred_region
          %353 = dma.done [#allocation14], 768
        $region76: #{vit_forward.1} parent=47 // pred_fallthru
          _
        %s354 = sand.u32 %s35, 1
        %s355 = scalar_lea.sflag [#allocation5], %s354
        %s356 = sand.u32 %s35, 1
        %s357 = smul.addr %s356, 32
        %s358 = scalar_lea.vmem [#allocation4], %s357
        %p359 = pneg %p48
        %p360 = pneg %p45
        %p361 = pneg %p69
        %p362 = pneg %p66
        %p363 = pneg %p90
        %p364 = pneg %p87
        %p365 = pneg %p111
        %p366 = pneg %p108
        %p367 = pneg %p132
        %p368 = pneg %p129
        %p369 = pneg %p153
        %p370 = pneg %p150
        %p371 = pneg %p174
        %p372 = pneg %p171
        %p373 = pneg %p200
        %p374 = pneg %p197
        %s375 = sand.u32 %s187, 1
        %s376 = scalar_lea.sflag [#allocation6], %s375
        %s377 = sand.u32 %s187, 1
        %s378 = smul.addr %s377, 96
        %s379 = scalar_lea.vmem [#allocation16], %s378
        %381 = vst [vmem:[#allocation2] sm:$0xff] 0
        %382 = vst [vmem:[#allocation2 + $0x8] sm:$0xff] 0
        %383 = vst [vmem:[#allocation2 + $0x10] sm:$0xff] 0
        %384 = vst [vmem:[#allocation2 + $0x18] sm:$0xff] 0
        %385 = vst [vmem:[#allocation2 + $0x20] sm:$0xff] 0
        %386 = vst [vmem:[#allocation2 + $0x28] sm:$0xff] 0
        %387 = vst [vmem:[#allocation2 + $0x30] sm:$0xff] 0
        %388 = vst [vmem:[#allocation2 + $0x38] sm:$0xff] 0
        %v389 = vld [vmem:[%s325] sm:$0xff]
        %v390 = vld [vmem:[%s325 + $0x8] sm:$0xff]
        %v391 = vld [vmem:[%s325 + $0x10] sm:$0xff]
        %v392 = vld [vmem:[%s325 + $0x18] sm:$0xff]
        %v397 = vunpack.c.l.b16 %v389
        %v398 = vunpack.c.h.b16 %v389
        %v399 = vunpack.c.l.b16 %v390
        %v400 = vunpack.c.h.b16 %v390
        %v401 = vunpack.c.l.b16 %v391
        %v402 = vunpack.c.h.b16 %v391
        %v403 = vunpack.c.l.b16 %v392
        %v404 = vunpack.c.h.b16 %v392
        %v405 = vpack.c.b16 %v399, %v397
        %v406 = vpack.c.b16 %v400, %v398
        %v407 = vpack.c.b16 %v403, %v401
        %v408 = vpack.c.b16 %v404, %v402
        %413 = vst [vmem:[#allocation2 + $0x8] sm:$0xff] %v405
        %414 = vst [vmem:[#allocation2 + $0x10] sm:$0xff] %v406
        %415 = vst [vmem:[#allocation2 + $0x28] sm:$0xff] %v407
        %416 = vst [vmem:[#allocation2 + $0x30] sm:$0xff] %v408
        %v417 = vld [vmem:[#allocation7] sm:$0x3]
        %v418 = vld [vmem:[#allocation9] sm:$0x3]
        %v419 = vld [vmem:[#allocation10] sm:$0xff]
        %v420 = vld [vmem:[#allocation10 + $0x8] sm:$0xf]
        %v421 = vld [vmem:[#allocation10 + $0xc] sm:$0xff]
        %v422 = vld [vmem:[#allocation10 + $0x14] sm:$0xf]
        %v423 = vld [vmem:[#allocation10 + $0x18] sm:$0xff]
        %v424 = vld [vmem:[#allocation10 + $0x20] sm:$0xf]
        %v425 = vld [vmem:[#allocation10 + $0x24] sm:$0xff]
        %v426 = vld [vmem:[#allocation10 + $0x2c] sm:$0xf]
        %v427 = vld [vmem:[#allocation12] sm:$0xff]
        %v428 = vld [vmem:[#allocation12 + $0x8] sm:$0xff]
        %v429 = vld [vmem:[#allocation12 + $0x10] sm:$0xff]
        %v430 = vld [vmem:[#allocation12 + $0x18] sm:$0xff]
        %v431 = vld [vmem:[#allocation2] sm:$0xff]
        %v432 = vld [vmem:[#allocation2 + $0x8] sm:$0xff]
        %v433 = vld [vmem:[#allocation2 + $0x10] sm:$0xff]
        %v434 = vld [vmem:[#allocation2 + $0x20] sm:$0xff]
        %v435 = vld [vmem:[#allocation2 + $0x28] sm:$0xff]
        %v436 = vld [vmem:[#allocation2 + $0x30] sm:$0xff]
        %v439 = vunpack.c.l.s4 1966171168
        %v440 = vunpack.c.0.s8 %v439
        %v441 = vlaneseq
        %v442 = vshrl.u32 %v441, 7
        %v443 = vsub.s32 %v440, %v442
        %v444 = vrot.slane %v417, %v443
        %v445 = vcombine.high %v444, %v444
        %v447 = vunpack.c.l.s4 1966171168
        %v448 = vunpack.c.0.s8 %v447
        %v449 = vlaneseq
        %v450 = vshrl.u32 %v449, 7
        %v451 = vsub.s32 %v448, %v450
        %v452 = vrot.slane %v444, %v451
        %v454 = vunpack.c.l.s4 1966171168
        %v455 = vunpack.c.0.s8 %v454
        %v456 = vlaneseq
        %v457 = vshrl.u32 %v456, 7
        %v458 = vsub.s32 %v455, %v457
        %v459 = vrot.slane %v445, %v458
        %v461 = vpack.i.b16 %v452, %v452
        %v463 = vlaneseq
        %v464 = vshrl.u32 %v463, 7
        %v465 = vsub.s32 0, %v464
        %v466 = vrot.slane %v461, %v465
        %v468 = vpack.i.b16 %v459, %v459
        %v470 = vlaneseq
        %v471 = vshrl.u32 %v470, 7
        %v472 = vsub.s32 0, %v471
        %v473 = vrot.slane %v468, %v472
        %476 = vrot.lane.b32.xlu0 %v466, 111
        %v477 = vpop.permute.xlu0 %476
        %478 = vrot.lane.b32.xlu0 %v473, 111
        %v479 = vpop.permute.xlu0 %478
        %vm480 = vcmask 908288
        %v481 = vsel %vm480, %v477, %v479
        %v485 = vmul.bf16 %v431, %v477
        %v486 = vmul.bf16 %v432, %v481
        %v487 = vmul.bf16 %v433, %v479
        %v488 = vmul.bf16 %v434, %v477
        %v489 = vmul.bf16 %v435, %v481
        %v490 = vmul.bf16 %v436, %v479
        %v493 = vunpack.c.l.s4 1966171168
        %v494 = vunpack.c.0.s8 %v493
        %v495 = vlaneseq
        %v496 = vshrl.u32 %v495, 7
        %v497 = vsub.s32 %v494, %v496
        %v498 = vrot.slane %v418, %v497
        %v499 = vcombine.high %v498, %v498
        %v501 = vunpack.c.l.s4 1966171168
        %v502 = vunpack.c.0.s8 %v501
        %v503 = vlaneseq
        %v504 = vshrl.u32 %v503, 7
        %v505 = vsub.s32 %v502, %v504
        %v506 = vrot.slane %v498, %v505
        %v508 = vunpack.c.l.s4 1966171168
        %v509 = vunpack.c.0.s8 %v508
        %v510 = vlaneseq
        %v511 = vshrl.u32 %v510, 7
        %v512 = vsub.s32 %v509, %v511
        %v513 = vrot.slane %v499, %v512
        %v515 = vpack.i.b16 %v506, %v506
        %v517 = vlaneseq
        %v518 = vshrl.u32 %v517, 7
        %v519 = vsub.s32 0, %v518
        %v520 = vrot.slane %v515, %v519
        %v522 = vpack.i.b16 %v513, %v513
        %v524 = vlaneseq
        %v525 = vshrl.u32 %v524, 7
        %v526 = vsub.s32 0, %v525
        %v527 = vrot.slane %v522, %v526
        %530 = vrot.lane.b32.xlu0 %v520, 113
        %v531 = vpop.permute.xlu0 %530
        %532 = vrot.lane.b32.xlu0 %v527, 113
        %v533 = vpop.permute.xlu0 %532
        %vm534 = vcmask 924672
        %v535 = vsel %vm534, %v531, %v533
        %v539 = vmul.bf16 %v431, %v531
        %v540 = vmul.bf16 %v432, %v535
        %v541 = vmul.bf16 %v433, %v533
        %v542 = vmul.bf16 %v434, %v531
        %v543 = vmul.bf16 %v435, %v535
        %v544 = vmul.bf16 %v436, %v533
        %545 = vrot.lane.b32.xlu0 %v466, 127
        %v546 = vpop.permute.xlu0 %545
        %547 = vrot.lane.b32.xlu0 %v473, 127
        %v548 = vpop.permute.xlu0 %547
        %vm549 = vcmask 1039360
        %v550 = vsel %vm549, %v546, %v548
        %v554 = vmul.bf16 %v431, %v546
        %v555 = vmul.bf16 %v432, %v550
        %v556 = vmul.bf16 %v433, %v548
        %v557 = vmul.bf16 %v434, %v546
        %v558 = vmul.bf16 %v435, %v550
        %v559 = vmul.bf16 %v436, %v548
        %v560 = vld [vmem:[#allocation2 + $0x8] sm:$0xff]
        %v561 = vld [vmem:[#allocation2 + $0x10] sm:$0xff]
        %v562 = vld [vmem:[#allocation2 + $0x18] sm:$0xff]
        %v563 = vld [vmem:[#allocation2 + $0x28] sm:$0xff]
        %v564 = vld [vmem:[#allocation2 + $0x30] sm:$0xff]
        %v565 = vld [vmem:[#allocation2 + $0x38] sm:$0xff]
        %566 = vrot.lane.b32.xlu0 %v520, 1
        %v567 = vpop.permute.xlu0 %566
        %568 = vrot.lane.b32.xlu0 %v527, 1
        %v569 = vpop.permute.xlu0 %568
        %vm570 = vcmask 7168
        %v571 = vsel %vm570, %v567, %v569
        %v575 = vmul.bf16 %v560, %v567
        %v576 = vmul.bf16 %v561, %v571
        %v577 = vmul.bf16 %v562, %v569
        %v578 = vmul.bf16 %v563, %v567
        %v579 = vmul.bf16 %v564, %v571
        %v580 = vmul.bf16 %v565, %v569
        %581 = vrot.lane.b32.xlu0 %v466, 15
        %v582 = vpop.permute.xlu0 %581
        %583 = vrot.lane.b32.xlu0 %v473, 15
        %v584 = vpop.permute.xlu0 %583
        %vm585 = vcmask 121856
        %v586 = vsel %vm585, %v582, %v584
        %v590 = vmul.bf16 %v560, %v582
        %v591 = vmul.bf16 %v561, %v586
        %v592 = vmul.bf16 %v562, %v584
        %v593 = vmul.bf16 %v563, %v582
        %v594 = vmul.bf16 %v564, %v586
        %v595 = vmul.bf16 %v565, %v584
        %596 = vrot.lane.b32.xlu0 %v520, 17
        %v597 = vpop.permute.xlu0 %596
        %598 = vrot.lane.b32.xlu0 %v527, 17
        %v599 = vpop.permute.xlu0 %598
        %vm600 = vcmask 138240
        %v601 = vsel %vm600, %v597, %v599
        %v605 = vmul.bf16 %v560, %v597
        %v606 = vmul.bf16 %v561, %v601
        %v607 = vmul.bf16 %v562, %v599
        %v608 = vmul.bf16 %v563, %v597
        %v609 = vmul.bf16 %v564, %v601
        %v610 = vmul.bf16 %v565, %v599
        %617 = vrot.lane.b32.xlu0 %v431, 127
        %v618 = vpop.permute.xlu0 %617
        %619 = vrot.lane.b32.xlu0 %v432, 127
        %v620 = vpop.permute.xlu0 %619
        %621 = vrot.lane.b32.xlu0 %v433, 127
        %v622 = vpop.permute.xlu0 %621
        %623 = vrot.lane.b32.xlu0 %v434, 127
        %v624 = vpop.permute.xlu0 %623
        %625 = vrot.lane.b32.xlu0 %v435, 127
        %v626 = vpop.permute.xlu0 %625
        %627 = vrot.lane.b32.xlu0 %v436, 127
        %v628 = vpop.permute.xlu0 %627
        %v629 = vsel %vm549, %v618, %v620
        %v630 = vsel %vm549, %v620, %v622
        %v631 = vsel %vm549, %v624, %v626
        %v632 = vsel %vm549, %v626, %v628
        %639 = vrot.lane.b32.xlu0 %v539, 126
        %v640 = vpop.permute.xlu0 %639
        %641 = vrot.lane.b32.xlu0 %v540, 126
        %v642 = vpop.permute.xlu0 %641
        %643 = vrot.lane.b32.xlu0 %v541, 126
        %v644 = vpop.permute.xlu0 %643
        %645 = vrot.lane.b32.xlu0 %v542, 126
        %v646 = vpop.permute.xlu0 %645
        %647 = vrot.lane.b32.xlu0 %v543, 126
        %v648 = vpop.permute.xlu0 %647
        %649 = vrot.lane.b32.xlu0 %v544, 126
        %v650 = vpop.permute.xlu0 %649
        %vm651 = vcmask 1031168
        %v652 = vsel %vm651, %v640, %v642
        %v653 = vsel %vm651, %v642, %v644
        %v654 = vsel %vm651, %v646, %v648
        %v655 = vsel %vm651, %v648, %v650
        %662 = vrot.lane.b32.xlu0 %v554, 112
        %v663 = vpop.permute.xlu0 %662
        %664 = vrot.lane.b32.xlu0 %v555, 112
        %v665 = vpop.permute.xlu0 %664
        %666 = vrot.lane.b32.xlu0 %v556, 112
        %v667 = vpop.permute.xlu0 %666
        %668 = vrot.lane.b32.xlu0 %v557, 112
        %v669 = vpop.permute.xlu0 %668
        %670 = vrot.lane.b32.xlu0 %v558, 112
        %v671 = vpop.permute.xlu0 %670
        %672 = vrot.lane.b32.xlu0 %v559, 112
        %v673 = vpop.permute.xlu0 %672
        %vm674 = vcmask 916480
        %v675 = vsel %vm674, %v663, %v665
        %v676 = vsel %vm674, %v665, %v667
        %v677 = vsel %vm674, %v669, %v671
        %v678 = vsel %vm674, %v671, %v673
        %679 = vrot.lane.b32.xlu0 %v432, 111
        %v680 = vpop.permute.xlu0 %679
        %681 = vrot.lane.b32.xlu0 %v433, 111
        %v682 = vpop.permute.xlu0 %681
        %683 = vrot.lane.b32.xlu0 %v435, 111
        %v684 = vpop.permute.xlu0 %683
        %685 = vrot.lane.b32.xlu0 %v436, 111
        %v686 = vpop.permute.xlu0 %685
        %v687 = vsel %vm480, %v680, %v682
        %v688 = vsel %vm480, %v684, %v686
        %695 = vrot.lane.b32.xlu0 %v575, 110
        %v696 = vpop.permute.xlu0 %695
        %697 = vrot.lane.b32.xlu0 %v576, 110
        %v698 = vpop.permute.xlu0 %697
        %699 = vrot.lane.b32.xlu0 %v577, 110
        %v700 = vpop.permute.xlu0 %699
        %701 = vrot.lane.b32.xlu0 %v578, 110
        %v702 = vpop.permute.xlu0 %701
        %703 = vrot.lane.b32.xlu0 %v579, 110
        %v704 = vpop.permute.xlu0 %703
        %705 = vrot.lane.b32.xlu0 %v580, 110
        %v706 = vpop.permute.xlu0 %705
        %vm707 = vcmask 900096
        %v708 = vsel %vm707, %v696, %v698
        %v709 = vsel %vm707, %v698, %v700
        %v710 = vsel %vm707, %v702, %v704
        %v711 = vsel %vm707, %v704, %v706
        %718 = vrot.lane.b32.xlu0 %v590, 96
        %v719 = vpop.permute.xlu0 %718
        %720 = vrot.lane.b32.xlu0 %v591, 96
        %v721 = vpop.permute.xlu0 %720
        %722 = vrot.lane.b32.xlu0 %v592, 96
        %v723 = vpop.permute.xlu0 %722
        %724 = vrot.lane.b32.xlu0 %v593, 96
        %v725 = vpop.permute.xlu0 %724
        %726 = vrot.lane.b32.xlu0 %v594, 96
        %v727 = vpop.permute.xlu0 %726
        %728 = vrot.lane.b32.xlu0 %v595, 96
        %v729 = vpop.permute.xlu0 %728
        %vm730 = vcmask 785408
        %v731 = vsel %vm730, %v719, %v721
        %v732 = vsel %vm730, %v721, %v723
        %v733 = vsel %vm730, %v725, %v727
        %v734 = vsel %vm730, %v727, %v729
        %741 = vrot.lane.b32.xlu0 %v560, 95
        %v742 = vpop.permute.xlu0 %741
        %743 = vrot.lane.b32.xlu0 %v561, 95
        %v744 = vpop.permute.xlu0 %743
        %745 = vrot.lane.b32.xlu0 %v562, 95
        %v746 = vpop.permute.xlu0 %745
        %747 = vrot.lane.b32.xlu0 %v563, 95
        %v748 = vpop.permute.xlu0 %747
        %749 = vrot.lane.b32.xlu0 %v564, 95
        %v750 = vpop.permute.xlu0 %749
        %751 = vrot.lane.b32.xlu0 %v565, 95
        %v752 = vpop.permute.xlu0 %751
        %vm753 = vcmask 777216
        %v754 = vsel %vm753, %v742, %v744
        %v755 = vsel %vm753, %v744, %v746
        %v756 = vsel %vm753, %v748, %v750
        %v757 = vsel %vm753, %v750, %v752
        %764 = vrot.lane.b32.xlu0 %v605, 94
        %v765 = vpop.permute.xlu0 %764
        %766 = vrot.lane.b32.xlu0 %v606, 94
        %v767 = vpop.permute.xlu0 %766
        %768 = vrot.lane.b32.xlu0 %v607, 94
        %v769 = vpop.permute.xlu0 %768
        %770 = vrot.lane.b32.xlu0 %v608, 94
        %v771 = vpop.permute.xlu0 %770
        %772 = vrot.lane.b32.xlu0 %v609, 94
        %v773 = vpop.permute.xlu0 %772
        %774 = vrot.lane.b32.xlu0 %v610, 94
        %v775 = vpop.permute.xlu0 %774
        %vm776 = vcmask 769024
        %v777 = vsel %vm776, %v765, %v767
        %v778 = vsel %vm776, %v767, %v769
        %v779 = vsel %vm776, %v771, %v773
        %v780 = vsel %vm776, %v773, %v775
        %782 = vset.pattern.permute.xlu0 0
        %783 = vperm.xlu0 %782, %v427
        %v784 = vpop.permute.xlu0 %783
        %787 = vset.pattern.permute.xlu0 0
        %788 = vperm.xlu0 %787, %v428
        %v789 = vpop.permute.xlu0 %788
        %792 = vset.pattern.permute.xlu0 0
        %793 = vperm.xlu0 %792, %v429
        %v794 = vpop.permute.xlu0 %793
        %797 = vset.pattern.permute.xlu0 0
        %798 = vperm.xlu0 %797, %v430
        %v799 = vpop.permute.xlu0 %798
        %v809 = vunpack.c.l.b16 %v419
        %v810 = vunpack.c.h.b16 %v419
        %v811 = vunpack.c.l.b16 %v420
        %v812 = vunpack.c.l.b16 %v421
        %v813 = vunpack.c.h.b16 %v421
        %v814 = vunpack.c.l.b16 %v422
        %v815 = vunpack.c.l.b16 %v423
        %v816 = vunpack.c.h.b16 %v423
        %v817 = vunpack.c.l.b16 %v424
        %v818 = vunpack.c.l.b16 %v425
        %v819 = vunpack.c.h.b16 %v425
        %v820 = vunpack.c.l.b16 %v426
        %v821 = vpack.c.b16 %v812, %v809
        %v822 = vpack.c.b16 %v813, %v810
        %v823 = vpack.c.b16 %v814, %v811
        %v824 = vpack.c.b16 %v818, %v815
        %v825 = vpack.c.b16 %v819, %v816
        %v826 = vpack.c.b16 %v820, %v817
        %837 = vrot.lane.b32.xlu0 %v485, 17
        %v838 = vpop.permute.xlu0 %837
        %839 = vrot.lane.b32.xlu0 %v486, 17
        %v840 = vpop.permute.xlu0 %839
        %841 = vrot.lane.b32.xlu0 %v487, 17
        %v842 = vpop.permute.xlu0 %841
        %843 = vrot.lane.b32.xlu0 %v488, 17
        %v844 = vpop.permute.xlu0 %843
        %845 = vrot.lane.b32.xlu0 %v489, 17
        %v846 = vpop.permute.xlu0 %845
        %847 = vrot.lane.b32.xlu0 %v490, 17
        %v848 = vpop.permute.xlu0 %847
        %849 = vrot.lane.b32.xlu0 %v629, 17
        %v850 = vpop.permute.xlu0 %849
        %851 = vrot.lane.b32.xlu0 %v630, 17
        %v852 = vpop.permute.xlu0 %851
        %853 = vrot.lane.b32.xlu0 %v622, 17
        %v854 = vpop.permute.xlu0 %853
        %855 = vrot.lane.b32.xlu0 %v631, 17
        %v856 = vpop.permute.xlu0 %855
        %857 = vrot.lane.b32.xlu0 %v632, 17
        %v858 = vpop.permute.xlu0 %857
        %859 = vrot.lane.b32.xlu0 %v628, 17
        %v860 = vpop.permute.xlu0 %859
        %861 = vrot.lane.b32.xlu0 %v652, 17
        %v862 = vpop.permute.xlu0 %861
        %863 = vrot.lane.b32.xlu0 %v653, 17
        %v864 = vpop.permute.xlu0 %863
        %865 = vrot.lane.b32.xlu0 %v644, 17
        %v866 = vpop.permute.xlu0 %865
        %867 = vrot.lane.b32.xlu0 %v654, 17
        %v868 = vpop.permute.xlu0 %867
        %869 = vrot.lane.b32.xlu0 %v655, 17
        %v870 = vpop.permute.xlu0 %869
        %871 = vrot.lane.b32.xlu0 %v650, 17
        %v872 = vpop.permute.xlu0 %871
        %873 = vrot.lane.b32.xlu0 %v675, 17
        %v874 = vpop.permute.xlu0 %873
        %875 = vrot.lane.b32.xlu0 %v676, 17
        %v876 = vpop.permute.xlu0 %875
        %877 = vrot.lane.b32.xlu0 %v667, 17
        %v878 = vpop.permute.xlu0 %877
        %879 = vrot.lane.b32.xlu0 %v677, 17
        %v880 = vpop.permute.xlu0 %879
        %881 = vrot.lane.b32.xlu0 %v678, 17
        %v882 = vpop.permute.xlu0 %881
        %883 = vrot.lane.b32.xlu0 %v673, 17
        %v884 = vpop.permute.xlu0 %883
        %885 = vrot.lane.b32.xlu0 %v680, 17
        %v886 = vpop.permute.xlu0 %885
        %887 = vrot.lane.b32.xlu0 %v687, 17
        %v888 = vpop.permute.xlu0 %887
        %889 = vrot.lane.b32.xlu0 %v682, 17
        %v890 = vpop.permute.xlu0 %889
        %891 = vrot.lane.b32.xlu0 %v684, 17
        %v892 = vpop.permute.xlu0 %891
        %893 = vrot.lane.b32.xlu0 %v688, 17
        %v894 = vpop.permute.xlu0 %893
        %895 = vrot.lane.b32.xlu0 %v686, 17
        %v896 = vpop.permute.xlu0 %895
        %897 = vrot.lane.b32.xlu0 %v696, 17
        %v898 = vpop.permute.xlu0 %897
        %899 = vrot.lane.b32.xlu0 %v708, 17
        %v900 = vpop.permute.xlu0 %899
        %901 = vrot.lane.b32.xlu0 %v709, 17
        %v902 = vpop.permute.xlu0 %901
        %903 = vrot.lane.b32.xlu0 %v702, 17
        %v904 = vpop.permute.xlu0 %903
        %905 = vrot.lane.b32.xlu0 %v710, 17
        %v906 = vpop.permute.xlu0 %905
        %907 = vrot.lane.b32.xlu0 %v711, 17
        %v908 = vpop.permute.xlu0 %907
        %909 = vrot.lane.b32.xlu0 %v719, 17
        %v910 = vpop.permute.xlu0 %909
        %911 = vrot.lane.b32.xlu0 %v731, 17
        %v912 = vpop.permute.xlu0 %911
        %913 = vrot.lane.b32.xlu0 %v732, 17
        %v914 = vpop.permute.xlu0 %913
        %915 = vrot.lane.b32.xlu0 %v725, 17
        %v916 = vpop.permute.xlu0 %915
        %917 = vrot.lane.b32.xlu0 %v733, 17
        %v918 = vpop.permute.xlu0 %917
        %919 = vrot.lane.b32.xlu0 %v734, 17
        %v920 = vpop.permute.xlu0 %919
        %921 = vrot.lane.b32.xlu0 %v742, 17
        %v922 = vpop.permute.xlu0 %921
        %923 = vrot.lane.b32.xlu0 %v754, 17
        %v924 = vpop.permute.xlu0 %923
        %925 = vrot.lane.b32.xlu0 %v755, 17
        %v926 = vpop.permute.xlu0 %925
        %927 = vrot.lane.b32.xlu0 %v748, 17
        %v928 = vpop.permute.xlu0 %927
        %929 = vrot.lane.b32.xlu0 %v756, 17
        %v930 = vpop.permute.xlu0 %929
        %931 = vrot.lane.b32.xlu0 %v757, 17
        %v932 = vpop.permute.xlu0 %931
        %933 = vrot.lane.b32.xlu0 %v765, 17
        %v934 = vpop.permute.xlu0 %933
        %935 = vrot.lane.b32.xlu0 %v777, 17
        %v936 = vpop.permute.xlu0 %935
        %937 = vrot.lane.b32.xlu0 %v778, 17
        %v938 = vpop.permute.xlu0 %937
        %939 = vrot.lane.b32.xlu0 %v771, 17
        %v940 = vpop.permute.xlu0 %939
        %941 = vrot.lane.b32.xlu0 %v779, 17
        %v942 = vpop.permute.xlu0 %941
        %943 = vrot.lane.b32.xlu0 %v780, 17
        %v944 = vpop.permute.xlu0 %943
        %v945 = vsel %vm600, %v838, %v840
        %v946 = vsel %vm600, %v840, %v842
        %v947 = vsel %vm600, %v844, %v846
        %v948 = vsel %vm600, %v846, %v848
        %v949 = vsel %vm600, %v850, %v852
        %v950 = vsel %vm600, %v852, %v854
        %v951 = vsel %vm600, %v856, %v858
        %v952 = vsel %vm600, %v858, %v860
        %v953 = vsel %vm600, %v862, %v864
        %v954 = vsel %vm600, %v864, %v866
        %v955 = vsel %vm600, %v868, %v870
        %v956 = vsel %vm600, %v870, %v872
        %v957 = vsel %vm600, %v874, %v876
        %v958 = vsel %vm600, %v876, %v878
        %v959 = vsel %vm600, %v880, %v882
        %v960 = vsel %vm600, %v882, %v884
        %v961 = vsel %vm600, %v886, %v888
        %v962 = vsel %vm600, %v888, %v890
        %v963 = vsel %vm600, %v892, %v894
        %v964 = vsel %vm600, %v894, %v896
        %v965 = vsel %vm600, %v898, %v900
        %v966 = vsel %vm600, %v900, %v902
        %v967 = vsel %vm600, %v904, %v906
        %v968 = vsel %vm600, %v906, %v908
        %v969 = vsel %vm600, %v910, %v912
        %v970 = vsel %vm600, %v912, %v914
        %v971 = vsel %vm600, %v916, %v918
        %v972 = vsel %vm600, %v918, %v920
        %v973 = vsel %vm600, %v922, %v924
        %v974 = vsel %vm600, %v924, %v926
        %v975 = vsel %vm600, %v928, %v930
        %v976 = vsel %vm600, %v930, %v932
        %v977 = vsel %vm600, %v934, %v936
        %v978 = vsel %vm600, %v936, %v938
        %v979 = vsel %vm600, %v940, %v942
        %v980 = vsel %vm600, %v942, %v944
        %vm1017 = vcmask 261120
        %v1019 = vsel %vm1017, %v823, 0
        %v1022 = vsel %vm1017, %v826, 0
        %1024 = vmatprep.subr.bf16.mxu0 %v946
        %1025 = vmatpush1.bf16.msra.mxu0 %v945
        %1026 = vmatprep.subr.bf16.mxu0 %v948
        %1027 = vmatpush1.bf16.msra.mxu0 %v947
        %1028 = vmatprep.subr.bf16.mxu0 %v950
        %1029 = vmatpush1.bf16.msra.mxu0 %v949
        %1030 = vmatprep.subr.bf16.mxu0 %v952
        %1031 = vmatpush1.bf16.msra.mxu0 %v951
        %1032 = vmatprep.subr.bf16.mxu0 %v954
        %1033 = vmatpush1.bf16.msra.mxu0 %v953
        %1034 = vmatprep.subr.bf16.mxu0 %v956
        %1035 = vmatpush1.bf16.msra.mxu0 %v955
        %1036 = vmatprep.subr.bf16.mxu0 %v958
        %1037 = vmatpush1.bf16.msra.mxu0 %v957
        %1038 = vmatprep.subr.bf16.mxu0 %v960
        %1039 = vmatpush1.bf16.msra.mxu0 %v959
        %1040 = vmatprep.subr.bf16.mxu0 %v962
        %1041 = vmatpush1.bf16.msra.mxu0 %v961
        %1042 = vmatprep.subr.bf16.mxu0 %v964
        %1043 = vmatpush1.bf16.msra.mxu0 %v963
        %1044 = vmatprep.subr.bf16.mxu0 %v966
        %1045 = vmatpush1.bf16.msra.mxu0 %v965
        %1046 = vmatprep.subr.bf16.mxu0 %v968
        %1047 = vmatpush1.bf16.msra.mxu0 %v967
        %1048 = vmatprep.subr.bf16.mxu0 %v970
        %1049 = vmatpush1.bf16.msra.mxu0 %v969
        %1050 = vmatprep.subr.bf16.mxu0 %v972
        %1051 = vmatpush1.bf16.msra.mxu0 %v971
        %1052 = vmatprep.subr.bf16.mxu0 %v974
        %1053 = vmatpush1.bf16.msra.mxu0 %v973
        %1054 = vmatprep.subr.bf16.mxu0 %v976
        %1055 = vmatpush1.bf16.msra.mxu0 %v975
        %1056 = vmatprep.mubr.bf16.mxu0 %v822
        %1057 = vmatmul.mubr.bf16.gmra.mrb[0].mxu0 %v821
        %v1058 = vpop.f32.mrb[0].mxu0
        %v1059 = vadd.f32 %v784, %v1058
        %v1060 = vpop.f32.mrb[0].mxu0
        %v1061 = vadd.f32 %v784, %v1060
        %v1062 = vpop.f32.mrb[0].mxu0
        %v1063 = vadd.f32 %v789, %v1062
        %v1064 = vpop.f32.mrb[0].mxu0
        %v1065 = vadd.f32 %v789, %v1064
        %1066 = vmatprep.mubr.bf16.mxu0 %v825
        %1067 = vmatmul.mubr.bf16.gmra.mrb[0].mxu0 %v824
        %v1068 = vpop.f32.mrb[0].mxu0
        %v1069 = vadd.f32 %v794, %v1068
        %v1070 = vpop.f32.mrb[0].mxu0
        %v1071 = vadd.f32 %v794, %v1070
        %v1072 = vpop.f32.mrb[0].mxu0
        %v1073 = vadd.f32 %v799, %v1072
        %v1074 = vpop.f32.mrb[0].mxu0
        %v1075 = vadd.f32 %v799, %v1074
        %1076 = vdwg.mxu0
        %1077 = vmatprep.subr.bf16.mxu0 %v978
        %1078 = vmatpush1.bf16.msra.mxu0 %v977
        %1079 = vmatprep.subr.bf16.mxu0 %v980
        %1080 = vmatpush1.bf16.msra.mxu0 %v979
        %1081 = vmatprep.subr.bf16.mxu0 0
        %1082 = vmatpush1.bf16.msra.mxu0 0
        %1083 = vmatprep.subr.bf16.mxu0 0
        %1084 = vmatpush1.bf16.msra.mxu0 0
        %1085 = vmatprep.subr.bf16.mxu0 0
        %1086 = vmatpush1.bf16.msra.mxu0 0
        %1087 = vmatprep.subr.bf16.mxu0 0
        %1088 = vmatpush1.bf16.msra.mxu0 0
        %1089 = vmatprep.subr.bf16.mxu0 0
        %1090 = vmatpush1.bf16.msra.mxu0 0
        %1091 = vmatprep.subr.bf16.mxu0 0
        %1092 = vmatpush1.bf16.msra.mxu0 0
        %1093 = vmatprep.subr.bf16.mxu0 0
        %1094 = vmatpush1.bf16.msra.mxu0 0
        %1095 = vmatprep.subr.bf16.mxu0 0
        %1096 = vmatpush1.bf16.msra.mxu0 0
        %1097 = vmatprep.subr.bf16.mxu0 0
        %1098 = vmatpush1.bf16.msra.mxu0 0
        %1099 = vmatprep.subr.bf16.mxu0 0
        %1100 = vmatpush1.bf16.msra.mxu0 0
        %1101 = vmatprep.subr.bf16.mxu0 0
        %1102 = vmatpush1.bf16.msra.mxu0 0
        %1103 = vmatprep.subr.bf16.mxu0 0
        %1104 = vmatpush1.bf16.msra.mxu0 0
        %1105 = vmatprep.subr.bf16.mxu0 0
        %1106 = vmatpush1.bf16.msra.mxu0 0
        %1107 = vmatprep.subr.bf16.mxu0 0
        %1108 = vmatpush1.bf16.msra.mxu0 0
        %1109 = vmatprep.mubr.bf16.mxu0 0
        %1110 = vmatmul.mubr.bf16.gmra.mrb[0].mxu0 %v1019
        %v1111 = vpop.f32.mrb[0].mxu0
        %v1112 = vadd.f32 %v1059, %v1111
        %v1113 = vpop.f32.mrb[0].mxu0
        %v1114 = vadd.f32 %v1061, %v1113
        %v1115 = vpop.f32.mrb[0].mxu0
        %v1116 = vadd.f32 %v1063, %v1115
        %v1117 = vpop.f32.mrb[0].mxu0
        %v1118 = vadd.f32 %v1065, %v1117
        %1119 = vmatprep.mubr.bf16.mxu0 0
        %1120 = vmatmul.mubr.bf16.gmra.mrb[0].mxu0 %v1022
        %v1121 = vpop.f32.mrb[0].mxu0
        %v1122 = vadd.f32 %v1069, %v1121
        %v1123 = vpop.f32.mrb[0].mxu0
        %v1124 = vadd.f32 %v1071, %v1123
        %v1125 = vpop.f32.mrb[0].mxu0
        %v1126 = vadd.f32 %v1073, %v1125
        %v1127 = vpop.f32.mrb[0].mxu0
        %v1128 = vadd.f32 %v1075, %v1127
        %1129 = vdwg.mxu0
        %1130 = vst [vmem:[#allocation3] sm:$0xff] %v1112
        %1131 = vst [vmem:[#allocation3 + $0x8] sm:$0xff] %v1114
        %1132 = vst [vmem:[#allocation3 + $0x10] sm:$0xff] %v1116
        %1133 = vst [vmem:[#allocation3 + $0x18] sm:$0xff] %v1118
        %1134 = vst [vmem:[#allocation3 + $0x20] sm:$0xff] %v1122
        %1135 = vst [vmem:[#allocation3 + $0x28] sm:$0xff] %v1124
        %1136 = vst [vmem:[#allocation3 + $0x30] sm:$0xff] %v1126
        %1137 = vst [vmem:[#allocation3 + $0x38] sm:$0xff] %v1128
        %v1138 = vpack.c.bf16 %v1116, %v1112
        %v1139 = vpack.c.bf16 %v1118, %v1114
        %v1140 = vpack.c.bf16 %v1126, %v1122
        %v1141 = vpack.c.bf16 %v1128, %v1124
        %1142 = vst [vmem:[#allocation2 + $0x8] sm:$0xff] %v1138
        %1143 = vst [vmem:[#allocation2 + $0x10] sm:$0xff] %v1139
        %1144 = vst [vmem:[#allocation2 + $0x28] sm:$0xff] %v1140
        %1145 = vst [vmem:[#allocation2 + $0x30] sm:$0xff] %v1141
        %s1146 = scalar_lea.vmem [#allocation10], 48
        %v1147 = vld [vmem:[%s1146] sm:$0xff]
        %v1148 = vld [vmem:[%s1146 + $0x8] sm:$0xf]
        %v1149 = vld [vmem:[%s1146 + $0xc] sm:$0xff]
        %v1150 = vld [vmem:[%s1146 + $0x14] sm:$0xf]
        %v1151 = vld [vmem:[%s1146 + $0x18] sm:$0xff]
        %v1152 = vld [vmem:[%s1146 + $0x20] sm:$0xf]
        %v1153 = vld [vmem:[%s1146 + $0x24] sm:$0xff]
        %v1154 = vld [vmem:[%s1146 + $0x2c] sm:$0xf]
        %s1155 = scalar_lea.vmem [#allocation12], 32
        %v1156 = vld [vmem:[%s1155] sm:$0xff]
        %v1157 = vld [vmem:[%s1155 + $0x8] sm:$0xff]
        %v1158 = vld [vmem:[%s1155 + $0x10] sm:$0xff]
        %v1159 = vld [vmem:[%s1155 + $0x18] sm:$0xff]
        %v1160 = vld [vmem:[#allocation2] sm:$0xff]
        %v1161 = vld [vmem:[#allocation2 + $0x8] sm:$0xff]
        %v1162 = vld [vmem:[#allocation2 + $0x10] sm:$0xff]
        %v1163 = vld [vmem:[#allocation2 + $0x20] sm:$0xff]
        %v1164 = vld [vmem:[#allocation2 + $0x28] sm:$0xff]
        %v1165 = vld [vmem:[#allocation2 + $0x30] sm:$0xff]
        %v1166 = vmul.bf16 %v1160, %v477
        %v1167 = vmul.bf16 %v1161, %v481
        %v1168 = vmul.bf16 %v1162, %v479
        %v1169 = vmul.bf16 %v1163, %v477
        %v1170 = vmul.bf16 %v1164, %v481
        %v1171 = vmul.bf16 %v1165, %v479
        %v1172 = vmul.bf16 %v1160, %v531
        %v1173 = vmul.bf16 %v1161, %v535
        %v1174 = vmul.bf16 %v1162, %v533
        %v1175 = vmul.bf16 %v1163, %v531
        %v1176 = vmul.bf16 %v1164, %v535
        %v1177 = vmul.bf16 %v1165, %v533
        %v1178 = vmul.bf16 %v1160, %v546
        %v1179 = vmul.bf16 %v1161, %v550
        %v1180 = vmul.bf16 %v1162, %v548
        %v1181 = vmul.bf16 %v1163, %v546
        %v1182 = vmul.bf16 %v1164, %v550
        %v1183 = vmul.bf16 %v1165, %v548
        %v1184 = vld [vmem:[#allocation2 + $0x8] sm:$0xff]
        %v1185 = vld [vmem:[#allocation2 + $0x10] sm:$0xff]
        %v1186 = vld [vmem:[#allocation2 + $0x18] sm:$0xff]
        %v1187 = vld [vmem:[#allocation2 + $0x28] sm:$0xff]
        %v1188 = vld [vmem:[#allocation2 + $0x30] sm:$0xff]
        %v1189 = vld [vmem:[#allocation2 + $0x38] sm:$0xff]
        %v1190 = vmul.bf16 %v1184, %v567
        %v1191 = vmul.bf16 %v1185, %v571
        %v1192 = vmul.bf16 %v1186, %v569
        %v1193 = vmul.bf16 %v1187, %v567
        %v1194 = vmul.bf16 %v1188, %v571
        %v1195 = vmul.bf16 %v1189, %v569
        %v1196 = vmul.bf16 %v1184, %v582
        %v1197 = vmul.bf16 %v1185, %v586
        %v1198 = vmul.bf16 %v1186, %v584
        %v1199 = vmul.bf16 %v1187, %v582
        %v1200 = vmul.bf16 %v1188, %v586
        %v1201 = vmul.bf16 %v1189, %v584
        %v1202 = vmul.bf16 %v1184, %v597
        %v1203 = vmul.bf16 %v1185, %v601
        %v1204 = vmul.bf16 %v1186, %v599
        %v1205 = vmul.bf16 %v1187, %v597
        %v1206 = vmul.bf16 %v1188, %v601
        %v1207 = vmul.bf16 %v1189, %v599
        %1214 = vrot.lane.b32.xlu0 %v1160, 127
        %v1215 = vpop.permute.xlu0 %1214
        %1216 = vrot.lane.b32.xlu0 %v1161, 127
        %v1217 = vpop.permute.xlu0 %1216
        %1218 = vrot.lane.b32.xlu0 %v1162, 127
        %v1219 = vpop.permute.xlu0 %1218
        %1220 = vrot.lane.b32.xlu0 %v1163, 127
        %v1221 = vpop.permute.xlu0 %1220
        %1222 = vrot.lane.b32.xlu0 %v1164, 127
        %v1223 = vpop.permute.xlu0 %1222
        %1224 = vrot.lane.b32.xlu0 %v1165, 127
        %v1225 = vpop.permute.xlu0 %1224
        %v1226 = vsel %vm549, %v1215, %v1217
        %v1227 = vsel %vm549, %v1217, %v1219
        %v1228 = vsel %vm549, %v1221, %v1223
        %v1229 = vsel %vm549, %v1223, %v1225
        %1236 = vrot.lane.b32.xlu0 %v1172, 126
        %v1237 = vpop.permute.xlu0 %1236
        %1238 = vrot.lane.b32.xlu0 %v1173, 126
        %v1239 = vpop.permute.xlu0 %1238
        %1240 = vrot.lane.b32.xlu0 %v1174, 126
        %v1241 = vpop.permute.xlu0 %1240
        %1242 = vrot.lane.b32.xlu0 %v1175, 126
        %v1243 = vpop.permute.xlu0 %1242
        %1244 = vrot.lane.b32.xlu0 %v1176, 126
        %v1245 = vpop.permute.xlu0 %1244
        %1246 = vrot.lane.b32.xlu0 %v1177, 126
        %v1247 = vpop.permute.xlu0 %1246
        %v1248 = vsel %vm651, %v1237, %v1239
        %v1249 = vsel %vm651, %v1239, %v1241
        %v1250 = vsel %vm651, %v1243, %v1245
        %v1251 = vsel %vm651, %v1245, %v1247
        %1258 = vrot.lane.b32.xlu0 %v1178, 112
        %v1259 = vpop.permute.xlu0 %1258
        %1260 = vrot.lane.b32.xlu0 %v1179, 112
        %v1261 = vpop.permute.xlu0 %1260
        %1262 = vrot.lane.b32.xlu0 %v1180, 112
        %v1263 = vpop.permute.xlu0 %1262
        %1264 = vrot.lane.b32.xlu0 %v1181, 112
        %v1265 = vpop.permute.xlu0 %1264
        %1266 = vrot.lane.b32.xlu0 %v1182, 112
        %v1267 = vpop.permute.xlu0 %1266
        %1268 = vrot.lane.b32.xlu0 %v1183, 112
        %v1269 = vpop.permute.xlu0 %1268
        %v1270 = vsel %vm674, %v1259, %v1261
        %v1271 = vsel %vm674, %v1261, %v1263
        %v1272 = vsel %vm674, %v1265, %v1267
        %v1273 = vsel %vm674, %v1267, %v1269
        %1274 = vrot.lane.b32.xlu0 %v1161, 111
        %v1275 = vpop.permute.xlu0 %1274
        %1276 = vrot.lane.b32.xlu0 %v1162, 111
        %v1277 = vpop.permute.xlu0 %1276
        %1278 = vrot.lane.b32.xlu0 %v1164, 111
        %v1279 = vpop.permute.xlu0 %1278
        %1280 = vrot.lane.b32.xlu0 %v1165, 111
        %v1281 = vpop.permute.xlu0 %1280
        %v1282 = vsel %vm480, %v1275, %v1277
        %v1283 = vsel %vm480, %v1279, %v1281
        %1290 = vrot.lane.b32.xlu0 %v1190, 110
        %v1291 = vpop.permute.xlu0 %1290
        %1292 = vrot.lane.b32.xlu0 %v1191, 110
        %v1293 = vpop.permute.xlu0 %1292
        %1294 = vrot.lane.b32.xlu0 %v1192, 110
        %v1295 = vpop.permute.xlu0 %1294
        %1296 = vrot.lane.b32.xlu0 %v1193, 110
        %v1297 = vpop.permute.xlu0 %1296
        %1298 = vrot.lane.b32.xlu0 %v1194, 110
        %v1299 = vpop.permute.xlu0 %1298
        %1300 = vrot.lane.b32.xlu0 %v1195, 110
        %v1301 = vpop.permute.xlu0 %1300
        %v1302 = vsel %vm707, %v1291, %v1293
        %v1303 = vsel %vm707, %v1293, %v1295
        %v1304 = vsel %vm707, %v1297, %v1299
        %v1305 = vsel %vm707, %v1299, %v1301
        %1312 = vrot.lane.b32.xlu0 %v1196, 96
        %v1313 = vpop.permute.xlu0 %1312
        %1314 = vrot.lane.b32.xlu0 %v1197, 96
        %v1315 = vpop.permute.xlu0 %1314
        %1316 = vrot.lane.b32.xlu0 %v1198, 96
        %v1317 = vpop.permute.xlu0 %1316
        %1318 = vrot.lane.b32.xlu0 %v1199, 96
        %v1319 = vpop.permute.xlu0 %1318
        %1320 = vrot.lane.b32.xlu0 %v1200, 96
        %v1321 = vpop.permute.xlu0 %1320
        %1322 = vrot.lane.b32.xlu0 %v1201, 96
        %v1323 = vpop.permute.xlu0 %1322
        %v1324 = vsel %vm730, %v1313, %v1315
        %v1325 = vsel %vm730, %v1315, %v1317
        %v1326 = vsel %vm730, %v1319, %v1321
        %v1327 = vsel %vm730, %v1321, %v1323
        %1334 = vrot.lane.b32.xlu0 %v1184, 95
        %v1335 = vpop.permute.xlu0 %1334
        %1336 = vrot.lane.b32.xlu0 %v1185, 95
        %v1337 = vpop.permute.xlu0 %1336
        %1338 = vrot.lane.b32.xlu0 %v1186, 95
        %v1339 = vpop.permute.xlu0 %1338
        %1340 = vrot.lane.b32.xlu0 %v1187, 95
        %v1341 = vpop.permute.xlu0 %1340
        %1342 = vrot.lane.b32.xlu0 %v1188, 95
        %v1343 = vpop.permute.xlu0 %1342
        %1344 = vrot.lane.b32.xlu0 %v1189, 95
        %v1345 = vpop.permute.xlu0 %1344
        %v1346 = vsel %vm753, %v1335, %v1337
        %v1347 = vsel %vm753, %v1337, %v1339
        %v1348 = vsel %vm753, %v1341, %v1343
        %v1349 = vsel %vm753, %v1343, %v1345
        %1356 = vrot.lane.b32.xlu0 %v1202, 94
        %v1357 = vpop.permute.xlu0 %1356
        %1358 = vrot.lane.b32.xlu0 %v1203, 94
        %v1359 = vpop.permute.xlu0 %1358
        %1360 = vrot.lane.b32.xlu0 %v1204, 94
        %v1361 = vpop.permute.xlu0 %1360
        %1362 = vrot.lane.b32.xlu0 %v1205, 94
        %v1363 = vpop.permute.xlu0 %1362
        %1364 = vrot.lane.b32.xlu0 %v1206, 94
        %v1365 = vpop.permute.xlu0 %1364
        %1366 = vrot.lane.b32.xlu0 %v1207, 94
        %v1367 = vpop.permute.xlu0 %1366
        %v1368 = vsel %vm776, %v1357, %v1359
        %v1369 = vsel %vm776, %v1359, %v1361
        %v1370 = vsel %vm776, %v1363, %v1365
        %v1371 = vsel %vm776, %v1365, %v1367
        %1373 = vset.pattern.permute.xlu0 0
        %1374 = vperm.xlu0 %1373, %v1156
        %v1375 = vpop.permute.xlu0 %1374
        %1378 = vset.pattern.permute.xlu0 0
        %1379 = vperm.xlu0 %1378, %v1157
        %v1380 = vpop.permute.xlu0 %1379
        %1383 = vset.pattern.permute.xlu0 0
        %1384 = vperm.xlu0 %1383, %v1158
        %v1385 = vpop.permute.xlu0 %1384
        %1388 = vset.pattern.permute.xlu0 0
        %1389 = vperm.xlu0 %1388, %v1159
        %v1390 = vpop.permute.xlu0 %1389
        %v1400 = vunpack.c.l.b16 %v1147
        %v1401 = vunpack.c.h.b16 %v1147
        %v1402 = vunpack.c.l.b16 %v1148
        %v1403 = vunpack.c.l.b16 %v1149
        %v1404 = vunpack.c.h.b16 %v1149
        %v1405 = vunpack.c.l.b16 %v1150
        %v1406 = vunpack.c.l.b16 %v1151
        %v1407 = vunpack.c.h.b16 %v1151
        %v1408 = vunpack.c.l.b16 %v1152
        %v1409 = vunpack.c.l.b16 %v1153
        %v1410 = vunpack.c.h.b16 %v1153
        %v1411 = vunpack.c.l.b16 %v1154
        %v1412 = vpack.c.b16 %v1403, %v1400
        %v1413 = vpack.c.b16 %v1404, %v1401
        %v1414 = vpack.c.b16 %v1405, %v1402
        %v1415 = vpack.c.b16 %v1409, %v1406
        %v1416 = vpack.c.b16 %v1410, %v1407
        %v1417 = vpack.c.b16 %v1411, %v1408
        %1428 = vrot.lane.b32.xlu0 %v1166, 17
        %v1429 = vpop.permute.xlu0 %1428
        %1430 = vrot.lane.b32.xlu0 %v1167, 17
        %v1431 = vpop.permute.xlu0 %1430
        %1432 = vrot.lane.b32.xlu0 %v1168, 17
        %v1433 = vpop.permute.xlu0 %1432
        %1434 = vrot.lane.b32.xlu0 %v1169, 17
        %v1435 = vpop.permute.xlu0 %1434
        %1436 = vrot.lane.b32.xlu0 %v1170, 17
        %v1437 = vpop.permute.xlu0 %1436
        %1438 = vrot.lane.b32.xlu0 %v1171, 17
        %v1439 = vpop.permute.xlu0 %1438
        %1440 = vrot.lane.b32.xlu0 %v1226, 17
        %v1441 = vpop.permute.xlu0 %1440
        %1442 = vrot.lane.b32.xlu0 %v1227, 17
        %v1443 = vpop.permute.xlu0 %1442
        %1444 = vrot.lane.b32.xlu0 %v1219, 17
        %v1445 = vpop.permute.xlu0 %1444
        %1446 = vrot.lane.b32.xlu0 %v1228, 17
        %v1447 = vpop.permute.xlu0 %1446
        %1448 = vrot.lane.b32.xlu0 %v1229, 17
        %v1449 = vpop.permute.xlu0 %1448
        %1450 = vrot.lane.b32.xlu0 %v1225, 17
        %v1451 = vpop.permute.xlu0 %1450
        %1452 = vrot.lane.b32.xlu0 %v1248, 17
        %v1453 = vpop.permute.xlu0 %1452
        %1454 = vrot.lane.b32.xlu0 %v1249, 17
        %v1455 = vpop.permute.xlu0 %1454
        %1456 = vrot.lane.b32.xlu0 %v1241, 17
        %v1457 = vpop.permute.xlu0 %1456
        %1458 = vrot.lane.b32.xlu0 %v1250, 17
        %v1459 = vpop.permute.xlu0 %1458
        %1460 = vrot.lane.b32.xlu0 %v1251, 17
        %v1461 = vpop.permute.xlu0 %1460
        %1462 = vrot.lane.b32.xlu0 %v1247, 17
        %v1463 = vpop.permute.xlu0 %1462
        %1464 = vrot.lane.b32.xlu0 %v1270, 17
        %v1465 = vpop.permute.xlu0 %1464
        %1466 = vrot.lane.b32.xlu0 %v1271, 17
        %v1467 = vpop.permute.xlu0 %1466
        %1468 = vrot.lane.b32.xlu0 %v1263, 17
        %v1469 = vpop.permute.xlu0 %1468
        %1470 = vrot.lane.b32.xlu0 %v1272, 17
        %v1471 = vpop.permute.xlu0 %1470
        %1472 = vrot.lane.b32.xlu0 %v1273, 17
        %v1473 = vpop.permute.xlu0 %1472
        %1474 = vrot.lane.b32.xlu0 %v1269, 17
        %v1475 = vpop.permute.xlu0 %1474
        %1476 = vrot.lane.b32.xlu0 %v1275, 17
        %v1477 = vpop.permute.xlu0 %1476
        %1478 = vrot.lane.b32.xlu0 %v1282, 17
        %v1479 = vpop.permute.xlu0 %1478
        %1480 = vrot.lane.b32.xlu0 %v1277, 17
        %v1481 = vpop.permute.xlu0 %1480
        %1482 = vrot.lane.b32.xlu0 %v1279, 17
        %v1483 = vpop.permute.xlu0 %1482
        %1484 = vrot.lane.b32.xlu0 %v1283, 17
        %v1485 = vpop.permute.xlu0 %1484
        %1486 = vrot.lane.b32.xlu0 %v1281, 17
        %v1487 = vpop.permute.xlu0 %1486
        %1488 = vrot.lane.b32.xlu0 %v1291, 17
        %v1489 = vpop.permute.xlu0 %1488
        %1490 = vrot.lane.b32.xlu0 %v1302, 17
        %v1491 = vpop.permute.xlu0 %1490
        %1492 = vrot.lane.b32.xlu0 %v1303, 17
        %v1493 = vpop.permute.xlu0 %1492
        %1494 = vrot.lane.b32.xlu0 %v1297, 17
        %v1495 = vpop.permute.xlu0 %1494
        %1496 = vrot.lane.b32.xlu0 %v1304, 17
        %v1497 = vpop.permute.xlu0 %1496
        %1498 = vrot.lane.b32.xlu0 %v1305, 17
        %v1499 = vpop.permute.xlu0 %1498
        %1500 = vrot.lane.b32.xlu0 %v1313, 17
        %v1501 = vpop.permute.xlu0 %1500
        %1502 = vrot.lane.b32.xlu0 %v1324, 17
        %v1503 = vpop.permute.xlu0 %1502
        %1504 = vrot.lane.b32.xlu0 %v1325, 17
        %v1505 = vpop.permute.xlu0 %1504
        %1506 = vrot.lane.b32.xlu0 %v1319, 17
        %v1507 = vpop.permute.xlu0 %1506
        %1508 = vrot.lane.b32.xlu0 %v1326, 17
        %v1509 = vpop.permute.xlu0 %1508
        %1510 = vrot.lane.b32.xlu0 %v1327, 17
        %v1511 = vpop.permute.xlu0 %1510
        %1512 = vrot.lane.b32.xlu0 %v1335, 17
        %v1513 = vpop.permute.xlu0 %1512
        %1514 = vrot.lane.b32.xlu0 %v1346, 17
        %v1515 = vpop.permute.xlu0 %1514
        %1516 = vrot.lane.b32.xlu0 %v1347, 17
        %v1517 = vpop.permute.xlu0 %1516
        %1518 = vrot.lane.b32.xlu0 %v1341, 17
        %v1519 = vpop.permute.xlu0 %1518
        %1520 = vrot.lane.b32.xlu0 %v1348, 17
        %v1521 = vpop.permute.xlu0 %1520
        %1522 = vrot.lane.b32.xlu0 %v1349, 17
        %v1523 = vpop.permute.xlu0 %1522
        %1524 = vrot.lane.b32.xlu0 %v1357, 17
        %v1525 = vpop.permute.xlu0 %1524
        %1526 = vrot.lane.b32.xlu0 %v1368, 17
        %v1527 = vpop.permute.xlu0 %1526
        %1528 = vrot.lane.b32.xlu0 %v1369, 17
        %v1529 = vpop.permute.xlu0 %1528
        %1530 = vrot.lane.b32.xlu0 %v1363, 17
        %v1531 = vpop.permute.xlu0 %1530
        %1532 = vrot.lane.b32.xlu0 %v1370, 17
        %v1533 = vpop.permute.xlu0 %1532
        %1534 = vrot.lane.b32.xlu0 %v1371, 17
        %v1535 = vpop.permute.xlu0 %1534
        %v1536 = vsel %vm600, %v1429, %v1431
        %v1537 = vsel %vm600, %v1431, %v1433
        %v1538 = vsel %vm600, %v1435, %v1437
        %v1539 = vsel %vm600, %v1437, %v1439
        %v1540 = vsel %vm600, %v1441, %v1443
        %v1541 = vsel %vm600, %v1443, %v1445
        %v1542 = vsel %vm600, %v1447, %v1449
        %v1543 = vsel %vm600, %v1449, %v1451
        %v1544 = vsel %vm600, %v1453, %v1455
        %v1545 = vsel %vm600, %v1455, %v1457
        %v1546 = vsel %vm600, %v1459, %v1461
        %v1547 = vsel %vm600, %v1461, %v1463
        %v1548 = vsel %vm600, %v1465, %v1467
        %v1549 = vsel %vm600, %v1467, %v1469
        %v1550 = vsel %vm600, %v1471, %v1473
        %v1551 = vsel %vm600, %v1473, %v1475
        %v1552 = vsel %vm600, %v1477, %v1479
        %v1553 = vsel %vm600, %v1479, %v1481
        %v1554 = vsel %vm600, %v1483, %v1485
        %v1555 = vsel %vm600, %v1485, %v1487
        %v1556 = vsel %vm600, %v1489, %v1491
        %v1557 = vsel %vm600, %v1491, %v1493
        %v1558 = vsel %vm600, %v1495, %v1497
        %v1559 = vsel %vm600, %v1497, %v1499
        %v1560 = vsel %vm600, %v1501, %v1503
        %v1561 = vsel %vm600, %v1503, %v1505
        %v1562 = vsel %vm600, %v1507, %v1509
        %v1563 = vsel %vm600, %v1509, %v1511
        %v1564 = vsel %vm600, %v1513, %v1515
        %v1565 = vsel %vm600, %v1515, %v1517
        %v1566 = vsel %vm600, %v1519, %v1521
        %v1567 = vsel %vm600, %v1521, %v1523
        %v1568 = vsel %vm600, %v1525, %v1527
        %v1569 = vsel %vm600, %v1527, %v1529
        %v1570 = vsel %vm600, %v1531, %v1533
        %v1571 = vsel %vm600, %v1533, %v1535
        %v1609 = vsel %vm1017, %v1414, 0
        %v1612 = vsel %vm1017, %v1417, 0
        %1614 = vmatprep.subr.bf16.mxu0 %v1537
        %1615 = vmatpush1.bf16.msra.mxu0 %v1536
        %1616 = vmatprep.subr.bf16.mxu0 %v1539
        %1617 = vmatpush1.bf16.msra.mxu0 %v1538
        %1618 = vmatprep.subr.bf16.mxu0 %v1541
        %1619 = vmatpush1.bf16.msra.mxu0 %v1540
        %1620 = vmatprep.subr.bf16.mxu0 %v1543
        %1621 = vmatpush1.bf16.msra.mxu0 %v1542
        %1622 = vmatprep.subr.bf16.mxu0 %v1545
        %1623 = vmatpush1.bf16.msra.mxu0 %v1544
        %1624 = vmatprep.subr.bf16.mxu0 %v1547
        %1625 = vmatpush1.bf16.msra.mxu0 %v1546
        %1626 = vmatprep.subr.bf16.mxu0 %v1549
        %1627 = vmatpush1.bf16.msra.mxu0 %v1548
        %1628 = vmatprep.subr.bf16.mxu0 %v1551
        %1629 = vmatpush1.bf16.msra.mxu0 %v1550
        %1630 = vmatprep.subr.bf16.mxu0 %v1553
        %1631 = vmatpush1.bf16.msra.mxu0 %v1552
        %1632 = vmatprep.subr.bf16.mxu0 %v1555
        %1633 = vmatpush1.bf16.msra.mxu0 %v1554
        %1634 = vmatprep.subr.bf16.mxu0 %v1557
        %1635 = vmatpush1.bf16.msra.mxu0 %v1556
        %1636 = vmatprep.subr.bf16.mxu0 %v1559
        %1637 = vmatpush1.bf16.msra.mxu0 %v1558
        %1638 = vmatprep.subr.bf16.mxu0 %v1561
        %1639 = vmatpush1.bf16.msra.mxu0 %v1560
        %1640 = vmatprep.subr.bf16.mxu0 %v1563
        %1641 = vmatpush1.bf16.msra.mxu0 %v1562
        %1642 = vmatprep.subr.bf16.mxu0 %v1565
        %1643 = vmatpush1.bf16.msra.mxu0 %v1564
        %1644 = vmatprep.subr.bf16.mxu0 %v1567
        %1645 = vmatpush1.bf16.msra.mxu0 %v1566
        %1646 = vmatprep.mubr.bf16.mxu0 %v1413
        %1647 = vmatmul.mubr.bf16.gmra.mrb[0].mxu0 %v1412
        %v1648 = vpop.f32.mrb[0].mxu0
        %v1649 = vadd.f32 %v1375, %v1648
        %v1650 = vpop.f32.mrb[0].mxu0
        %v1651 = vadd.f32 %v1375, %v1650
        %v1652 = vpop.f32.mrb[0].mxu0
        %v1653 = vadd.f32 %v1380, %v1652
        %v1654 = vpop.f32.mrb[0].mxu0
        %v1655 = vadd.f32 %v1380, %v1654
        %1656 = vmatprep.mubr.bf16.mxu0 %v1416
        %1657 = vmatmul.mubr.bf16.gmra.mrb[0].mxu0 %v1415
        %v1658 = vpop.f32.mrb[0].mxu0
        %v1659 = vadd.f32 %v1385, %v1658
        %v1660 = vpop.f32.mrb[0].mxu0
        %v1661 = vadd.f32 %v1385, %v1660
        %v1662 = vpop.f32.mrb[0].mxu0
        %v1663 = vadd.f32 %v1390, %v1662
        %v1664 = vpop.f32.mrb[0].mxu0
        %v1665 = vadd.f32 %v1390, %v1664
        %1666 = vdwg.mxu0
        %1667 = vmatprep.subr.bf16.mxu0 %v1569
        %1668 = vmatpush1.bf16.msra.mxu0 %v1568
        %1669 = vmatprep.subr.bf16.mxu0 %v1571
        %1670 = vmatpush1.bf16.msra.mxu0 %v1570
        %1671 = vmatprep.subr.bf16.mxu0 0
        %1672 = vmatpush1.bf16.msra.mxu0 0
        %1673 = vmatprep.subr.bf16.mxu0 0
        %1674 = vmatpush1.bf16.msra.mxu0 0
        %1675 = vmatprep.subr.bf16.mxu0 0
        %1676 = vmatpush1.bf16.msra.mxu0 0
        %1677 = vmatprep.subr.bf16.mxu0 0
        %1678 = vmatpush1.bf16.msra.mxu0 0
        %1679 = vmatprep.subr.bf16.mxu0 0
        %1680 = vmatpush1.bf16.msra.mxu0 0
        %1681 = vmatprep.subr.bf16.mxu0 0
        %1682 = vmatpush1.bf16.msra.mxu0 0
        %1683 = vmatprep.subr.bf16.mxu0 0
        %1684 = vmatpush1.bf16.msra.mxu0 0
        %1685 = vmatprep.subr.bf16.mxu0 0
        %1686 = vmatpush1.bf16.msra.mxu0 0
        %1687 = vmatprep.subr.bf16.mxu0 0
        %1688 = vmatpush1.bf16.msra.mxu0 0
        %1689 = vmatprep.subr.bf16.mxu0 0
        %1690 = vmatpush1.bf16.msra.mxu0 0
        %1691 = vmatprep.subr.bf16.mxu0 0
        %1692 = vmatpush1.bf16.msra.mxu0 0
        %1693 = vmatprep.subr.bf16.mxu0 0
        %1694 = vmatpush1.bf16.msra.mxu0 0
        %1695 = vmatprep.subr.bf16.mxu0 0
        %1696 = vmatpush1.bf16.msra.mxu0 0
        %1697 = vmatprep.subr.bf16.mxu0 0
        %1698 = vmatpush1.bf16.msra.mxu0 0
        %1699 = vmatprep.mubr.bf16.mxu0 0
        %1700 = vmatmul.mubr.bf16.gmra.mrb[0].mxu0 %v1609
        %v1701 = vpop.f32.mrb[0].mxu0
        %v1702 = vadd.f32 %v1649, %v1701
        %v1703 = vpop.f32.mrb[0].mxu0
        %v1704 = vadd.f32 %v1651, %v1703
        %v1705 = vpop.f32.mrb[0].mxu0
        %v1706 = vadd.f32 %v1653, %v1705
        %v1707 = vpop.f32.mrb[0].mxu0
        %v1708 = vadd.f32 %v1655, %v1707
        %1709 = vmatprep.mubr.bf16.mxu0 0
        %1710 = vmatmul.mubr.bf16.gmra.mrb[0].mxu0 %v1612
        %v1711 = vpop.f32.mrb[0].mxu0
        %v1712 = vadd.f32 %v1659, %v1711
        %v1713 = vpop.f32.mrb[0].mxu0
        %v1714 = vadd.f32 %v1661, %v1713
        %v1715 = vpop.f32.mrb[0].mxu0
        %v1716 = vadd.f32 %v1663, %v1715
        %v1717 = vpop.f32.mrb[0].mxu0
        %v1718 = vadd.f32 %v1665, %v1717
        %1719 = vdwg.mxu0
        %v1720 = vmax.f32 %v1702, 0.0
        %v1721 = vmax.f32 %v1704, 0.0
        %v1722 = vmax.f32 %v1706, 0.0
        %v1723 = vmax.f32 %v1708, 0.0
        %v1724 = vmax.f32 %v1712, 0.0
        %v1725 = vmax.f32 %v1714, 0.0
        %v1726 = vmax.f32 %v1716, 0.0
        %v1727 = vmax.f32 %v1718, 0.0
        %v1728 = vpack.c.bf16 %v1722, %v1720
        %v1729 = vpack.c.bf16 %v1723, %v1721
        %v1730 = vpack.c.bf16 %v1726, %v1724
        %v1731 = vpack.c.bf16 %v1727, %v1725
        %1732 = vst [vmem:[#allocation2 + $0x8] sm:$0xff] %v1728
        %1733 = vst [vmem:[#allocation2 + $0x10] sm:$0xff] %v1729
        %1734 = vst [vmem:[#allocation2 + $0x28] sm:$0xff] %v1730
        %1735 = vst [vmem:[#allocation2 + $0x30] sm:$0xff] %v1731
        %s1736 = scalar_lea.vmem [#allocation10], 96
        %v1737 = vld [vmem:[%s1736] sm:$0xff]
        %v1738 = vld [vmem:[%s1736 + $0x8] sm:$0xf]
        %v1739 = vld [vmem:[%s1736 + $0xc] sm:$0xff]
        %v1740 = vld [vmem:[%s1736 + $0x14] sm:$0xf]
        %v1741 = vld [vmem:[%s1736 + $0x18] sm:$0xff]
        %v1742 = vld [vmem:[%s1736 + $0x20] sm:$0xf]
        %v1743 = vld [vmem:[%s1736 + $0x24] sm:$0xff]
        %v1744 = vld [vmem:[%s1736 + $0x2c] sm:$0xf]
        %s1745 = scalar_lea.vmem [#allocation12], 64
        %v1746 = vld [vmem:[%s1745] sm:$0xff]
        %v1747 = vld [vmem:[%s1745 + $0x8] sm:$0xff]
        %v1748 = vld [vmem:[%s1745 + $0x10] sm:$0xff]
        %v1749 = vld [vmem:[%s1745 + $0x18] sm:$0xff]
        %v1750 = vld [vmem:[#allocation2] sm:$0xff]
        %v1751 = vld [vmem:[#allocation2 + $0x8] sm:$0xff]
        %v1752 = vld [vmem:[#allocation2 + $0x10] sm:$0xff]
        %v1753 = vld [vmem:[#allocation2 + $0x20] sm:$0xff]
        %v1754 = vld [vmem:[#allocation2 + $0x28] sm:$0xff]
        %v1755 = vld [vmem:[#allocation2 + $0x30] sm:$0xff]
        %v1756 = vmul.bf16 %v1750, %v477
        %v1757 = vmul.bf16 %v1751, %v481
        %v1758 = vmul.bf16 %v1752, %v479
        %v1759 = vmul.bf16 %v1753, %v477
        %v1760 = vmul.bf16 %v1754, %v481
        %v1761 = vmul.bf16 %v1755, %v479
        %v1762 = vmul.bf16 %v1750, %v531
        %v1763 = vmul.bf16 %v1751, %v535
        %v1764 = vmul.bf16 %v1752, %v533
        %v1765 = vmul.bf16 %v1753, %v531
        %v1766 = vmul.bf16 %v1754, %v535
        %v1767 = vmul.bf16 %v1755, %v533
        %v1768 = vmul.bf16 %v1750, %v546
        %v1769 = vmul.bf16 %v1751, %v550
        %v1770 = vmul.bf16 %v1752, %v548
        %v1771 = vmul.bf16 %v1753, %v546
        %v1772 = vmul.bf16 %v1754, %v550
        %v1773 = vmul.bf16 %v1755, %v548
        %v1774 = vld [vmem:[#allocation2 + $0x8] sm:$0xff]
        %v1775 = vld [vmem:[#allocation2 + $0x10] sm:$0xff]
        %v1776 = vld [vmem:[#allocation2 + $0x18] sm:$0xff]
        %v1777 = vld [vmem:[#allocation2 + $0x28] sm:$0xff]
        %v1778 = vld [vmem:[#allocation2 + $0x30] sm:$0xff]
        %v1779 = vld [vmem:[#allocation2 + $0x38] sm:$0xff]
        %v1780 = vmul.bf16 %v1774, %v567
        %v1781 = vmul.bf16 %v1775, %v571
        %v1782 = vmul.bf16 %v1776, %v569
        %v1783 = vmul.bf16 %v1777, %v567
        %v1784 = vmul.bf16 %v1778, %v571
        %v1785 = vmul.bf16 %v1779, %v569
        %v1786 = vmul.bf16 %v1774, %v582
        %v1787 = vmul.bf16 %v1775, %v586
        %v1788 = vmul.bf16 %v1776, %v584
        %v1789 = vmul.bf16 %v1777, %v582
        %v1790 = vmul.bf16 %v1778, %v586
        %v1791 = vmul.bf16 %v1779, %v584
        %v1792 = vmul.bf16 %v1774, %v597
        %v1793 = vmul.bf16 %v1775, %v601
        %v1794 = vmul.bf16 %v1776, %v599
        %v1795 = vmul.bf16 %v1777, %v597
        %v1796 = vmul.bf16 %v1778, %v601
        %v1797 = vmul.bf16 %v1779, %v599
        %1804 = vrot.lane.b32.xlu0 %v1750, 127
        %v1805 = vpop.permute.xlu0 %1804
        %1806 = vrot.lane.b32.xlu0 %v1751, 127
        %v1807 = vpop.permute.xlu0 %1806
        %1808 = vrot.lane.b32.xlu0 %v1752, 127
        %v1809 = vpop.permute.xlu0 %1808
        %1810 = vrot.lane.b32.xlu0 %v1753, 127
        %v1811 = vpop.permute.xlu0 %1810
        %1812 = vrot.lane.b32.xlu0 %v1754, 127
        %v1813 = vpop.permute.xlu0 %1812
        %1814 = vrot.lane.b32.xlu0 %v1755, 127
        %v1815 = vpop.permute.xlu0 %1814
        %v1816 = vsel %vm549, %v1805, %v1807
        %v1817 = vsel %vm549, %v1807, %v1809
        %v1818 = vsel %vm549, %v1811, %v1813
        %v1819 = vsel %vm549, %v1813, %v1815
        %1826 = vrot.lane.b32.xlu0 %v1762, 126
        %v1827 = vpop.permute.xlu0 %1826
        %1828 = vrot.lane.b32.xlu0 %v1763, 126
        %v1829 = vpop.permute.xlu0 %1828
        %1830 = vrot.lane.b32.xlu0 %v1764, 126
        %v1831 = vpop.permute.xlu0 %1830
        %1832 = vrot.lane.b32.xlu0 %v1765, 126
        %v1833 = vpop.permute.xlu0 %1832
        %1834 = vrot.lane.b32.xlu0 %v1766, 126
        %v1835 = vpop.permute.xlu0 %1834
        %1836 = vrot.lane.b32.xlu0 %v1767, 126
        %v1837 = vpop.permute.xlu0 %1836
        %v1838 = vsel %vm651, %v1827, %v1829
        %v1839 = vsel %vm651, %v1829, %v1831
        %v1840 = vsel %vm651, %v1833, %v1835
        %v1841 = vsel %vm651, %v1835, %v1837
        %1848 = vrot.lane.b32.xlu0 %v1768, 112
        %v1849 = vpop.permute.xlu0 %1848
        %1850 = vrot.lane.b32.xlu0 %v1769, 112
        %v1851 = vpop.permute.xlu0 %1850
        %1852 = vrot.lane.b32.xlu0 %v1770, 112
        %v1853 = vpop.permute.xlu0 %1852
        %1854 = vrot.lane.b32.xlu0 %v1771, 112
        %v1855 = vpop.permute.xlu0 %1854
        %1856 = vrot.lane.b32.xlu0 %v1772, 112
        %v1857 = vpop.permute.xlu0 %1856
        %1858 = vrot.lane.b32.xlu0 %v1773, 112
        %v1859 = vpop.permute.xlu0 %1858
        %v1860 = vsel %vm674, %v1849, %v1851
        %v1861 = vsel %vm674, %v1851, %v1853
        %v1862 = vsel %vm674, %v1855, %v1857
        %v1863 = vsel %vm674, %v1857, %v1859
        %1864 = vrot.lane.b32.xlu0 %v1751, 111
        %v1865 = vpop.permute.xlu0 %1864
        %1866 = vrot.lane.b32.xlu0 %v1752, 111
        %v1867 = vpop.permute.xlu0 %1866
        %1868 = vrot.lane.b32.xlu0 %v1754, 111
        %v1869 = vpop.permute.xlu0 %1868
        %1870 = vrot.lane.b32.xlu0 %v1755, 111
        %v1871 = vpop.permute.xlu0 %1870
        %v1872 = vsel %vm480, %v1865, %v1867
        %v1873 = vsel %vm480, %v1869, %v1871
        %1880 = vrot.lane.b32.xlu0 %v1780, 110
        %v1881 = vpop.permute.xlu0 %1880
        %1882 = vrot.lane.b32.xlu0 %v1781, 110
        %v1883 = vpop.permute.xlu0 %1882
        %1884 = vrot.lane.b32.xlu0 %v1782, 110
        %v1885 = vpop.permute.xlu0 %1884
        %1886 = vrot.lane.b32.xlu0 %v1783, 110
        %v1887 = vpop.permute.xlu0 %1886
        %1888 = vrot.lane.b32.xlu0 %v1784, 110
        %v1889 = vpop.permute.xlu0 %1888
        %1890 = vrot.lane.b32.xlu0 %v1785, 110
        %v1891 = vpop.permute.xlu0 %1890
        %v1892 = vsel %vm707, %v1881, %v1883
        %v1893 = vsel %vm707, %v1883, %v1885
        %v1894 = vsel %vm707, %v1887, %v1889
        %v1895 = vsel %vm707, %v1889, %v1891
        %1902 = vrot.lane.b32.xlu0 %v1786, 96
        %v1903 = vpop.permute.xlu0 %1902
        %1904 = vrot.lane.b32.xlu0 %v1787, 96
        %v1905 = vpop.permute.xlu0 %1904
        %1906 = vrot.lane.b32.xlu0 %v1788, 96
        %v1907 = vpop.permute.xlu0 %1906
        %1908 = vrot.lane.b32.xlu0 %v1789, 96
        %v1909 = vpop.permute.xlu0 %1908
        %1910 = vrot.lane.b32.xlu0 %v1790, 96
        %v1911 = vpop.permute.xlu0 %1910
        %1912 = vrot.lane.b32.xlu0 %v1791, 96
        %v1913 = vpop.permute.xlu0 %1912
        %v1914 = vsel %vm730, %v1903, %v1905
        %v1915 = vsel %vm730, %v1905, %v1907
        %v1916 = vsel %vm730, %v1909, %v1911
        %v1917 = vsel %vm730, %v1911, %v1913
        %1924 = vrot.lane.b32.xlu0 %v1774, 95
        %v1925 = vpop.permute.xlu0 %1924
        %1926 = vrot.lane.b32.xlu0 %v1775, 95
        %v1927 = vpop.permute.xlu0 %1926
        %1928 = vrot.lane.b32.xlu0 %v1776, 95
        %v1929 = vpop.permute.xlu0 %1928
        %1930 = vrot.lane.b32.xlu0 %v1777, 95
        %v1931 = vpop.permute.xlu0 %1930
        %1932 = vrot.lane.b32.xlu0 %v1778, 95
        %v1933 = vpop.permute.xlu0 %1932
        %1934 = vrot.lane.b32.xlu0 %v1779, 95
        %v1935 = vpop.permute.xlu0 %1934
        %v1936 = vsel %vm753, %v1925, %v1927
        %v1937 = vsel %vm753, %v1927, %v1929
        %v1938 = vsel %vm753, %v1931, %v1933
        %v1939 = vsel %vm753, %v1933, %v1935
        %1946 = vrot.lane.b32.xlu0 %v1792, 94
        %v1947 = vpop.permute.xlu0 %1946
        %1948 = vrot.lane.b32.xlu0 %v1793, 94
        %v1949 = vpop.permute.xlu0 %1948
        %1950 = vrot.lane.b32.xlu0 %v1794, 94
        %v1951 = vpop.permute.xlu0 %1950
        %1952 = vrot.lane.b32.xlu0 %v1795, 94
        %v1953 = vpop.permute.xlu0 %1952
        %1954 = vrot.lane.b32.xlu0 %v1796, 94
        %v1955 = vpop.permute.xlu0 %1954
        %1956 = vrot.lane.b32.xlu0 %v1797, 94
        %v1957 = vpop.permute.xlu0 %1956
        %v1958 = vsel %vm776, %v1947, %v1949
        %v1959 = vsel %vm776, %v1949, %v1951
        %v1960 = vsel %vm776, %v1953, %v1955
        %v1961 = vsel %vm776, %v1955, %v1957
        %1963 = vset.pattern.permute.xlu0 0
        %1964 = vperm.xlu0 %1963, %v1746
        %v1965 = vpop.permute.xlu0 %1964
        %1968 = vset.pattern.permute.xlu0 0
        %1969 = vperm.xlu0 %1968, %v1747
        %v1970 = vpop.permute.xlu0 %1969
        %1973 = vset.pattern.permute.xlu0 0
        %1974 = vperm.xlu0 %1973, %v1748
        %v1975 = vpop.permute.xlu0 %1974
        %1978 = vset.pattern.permute.xlu0 0
        %1979 = vperm.xlu0 %1978, %v1749
        %v1980 = vpop.permute.xlu0 %1979
        %v1990 = vunpack.c.l.b16 %v1737
        %v1991 = vunpack.c.h.b16 %v1737
        %v1992 = vunpack.c.l.b16 %v1738
        %v1993 = vunpack.c.l.b16 %v1739
        %v1994 = vunpack.c.h.b16 %v1739
        %v1995 = vunpack.c.l.b16 %v1740
        %v1996 = vunpack.c.l.b16 %v1741
        %v1997 = vunpack.c.h.b16 %v1741
        %v1998 = vunpack.c.l.b16 %v1742
        %v1999 = vunpack.c.l.b16 %v1743
        %v2000 = vunpack.c.h.b16 %v1743
        %v2001 = vunpack.c.l.b16 %v1744
        %v2002 = vpack.c.b16 %v1993, %v1990
        %v2003 = vpack.c.b16 %v1994, %v1991
        %v2004 = vpack.c.b16 %v1995, %v1992
        %v2005 = vpack.c.b16 %v1999, %v1996
        %v2006 = vpack.c.b16 %v2000, %v1997
        %v2007 = vpack.c.b16 %v2001, %v1998
        %2018 = vrot.lane.b32.xlu0 %v1756, 17
        %v2019 = vpop.permute.xlu0 %2018
        %2020 = vrot.lane.b32.xlu0 %v1757, 17
        %v2021 = vpop.permute.xlu0 %2020
        %2022 = vrot.lane.b32.xlu0 %v1758, 17
        %v2023 = vpop.permute.xlu0 %2022
        %2024 = vrot.lane.b32.xlu0 %v1759, 17
        %v2025 = vpop.permute.xlu0 %2024
        %2026 = vrot.lane.b32.xlu0 %v1760, 17
        %v2027 = vpop.permute.xlu0 %2026
        %2028 = vrot.lane.b32.xlu0 %v1761, 17
        %v2029 = vpop.permute.xlu0 %2028
        %2030 = vrot.lane.b32.xlu0 %v1816, 17
        %v2031 = vpop.permute.xlu0 %2030
        %2032 = vrot.lane.b32.xlu0 %v1817, 17
        %v2033 = vpop.permute.xlu0 %2032
        %2034 = vrot.lane.b32.xlu0 %v1809, 17
        %v2035 = vpop.permute.xlu0 %2034
        %2036 = vrot.lane.b32.xlu0 %v1818, 17
        %v2037 = vpop.permute.xlu0 %2036
        %2038 = vrot.lane.b32.xlu0 %v1819, 17
        %v2039 = vpop.permute.xlu0 %2038
        %2040 = vrot.lane.b32.xlu0 %v1815, 17
        %v2041 = vpop.permute.xlu0 %2040
        %2042 = vrot.lane.b32.xlu0 %v1838, 17
        %v2043 = vpop.permute.xlu0 %2042
        %2044 = vrot.lane.b32.xlu0 %v1839, 17
        %v2045 = vpop.permute.xlu0 %2044
        %2046 = vrot.lane.b32.xlu0 %v1831, 17
        %v2047 = vpop.permute.xlu0 %2046
        %2048 = vrot.lane.b32.xlu0 %v1840, 17
        %v2049 = vpop.permute.xlu0 %2048
        %2050 = vrot.lane.b32.xlu0 %v1841, 17
        %v2051 = vpop.permute.xlu0 %2050
        %2052 = vrot.lane.b32.xlu0 %v1837, 17
        %v2053 = vpop.permute.xlu0 %2052
        %2054 = vrot.lane.b32.xlu0 %v1860, 17
        %v2055 = vpop.permute.xlu0 %2054
        %2056 = vrot.lane.b32.xlu0 %v1861, 17
        %v2057 = vpop.permute.xlu0 %2056
        %2058 = vrot.lane.b32.xlu0 %v1853, 17
        %v2059 = vpop.permute.xlu0 %2058
        %2060 = vrot.lane.b32.xlu0 %v1862, 17
        %v2061 = vpop.permute.xlu0 %2060
        %2062 = vrot.lane.b32.xlu0 %v1863, 17
        %v2063 = vpop.permute.xlu0 %2062
        %2064 = vrot.lane.b32.xlu0 %v1859, 17
        %v2065 = vpop.permute.xlu0 %2064
        %2066 = vrot.lane.b32.xlu0 %v1865, 17
        %v2067 = vpop.permute.xlu0 %2066
        %2068 = vrot.lane.b32.xlu0 %v1872, 17
        %v2069 = vpop.permute.xlu0 %2068
        %2070 = vrot.lane.b32.xlu0 %v1867, 17
        %v2071 = vpop.permute.xlu0 %2070
        %2072 = vrot.lane.b32.xlu0 %v1869, 17
        %v2073 = vpop.permute.xlu0 %2072
        %2074 = vrot.lane.b32.xlu0 %v1873, 17
        %v2075 = vpop.permute.xlu0 %2074
        %2076 = vrot.lane.b32.xlu0 %v1871, 17
        %v2077 = vpop.permute.xlu0 %2076
        %2078 = vrot.lane.b32.xlu0 %v1881, 17
        %v2079 = vpop.permute.xlu0 %2078
        %2080 = vrot.lane.b32.xlu0 %v1892, 17
        %v2081 = vpop.permute.xlu0 %2080
        %2082 = vrot.lane.b32.xlu0 %v1893, 17
        %v2083 = vpop.permute.xlu0 %2082
        %2084 = vrot.lane.b32.xlu0 %v1887, 17
        %v2085 = vpop.permute.xlu0 %2084
        %2086 = vrot.lane.b32.xlu0 %v1894, 17
        %v2087 = vpop.permute.xlu0 %2086
        %2088 = vrot.lane.b32.xlu0 %v1895, 17
        %v2089 = vpop.permute.xlu0 %2088
        %2090 = vrot.lane.b32.xlu0 %v1903, 17
        %v2091 = vpop.permute.xlu0 %2090
        %2092 = vrot.lane.b32.xlu0 %v1914, 17
        %v2093 = vpop.permute.xlu0 %2092
        %2094 = vrot.lane.b32.xlu0 %v1915, 17
        %v2095 = vpop.permute.xlu0 %2094
        %2096 = vrot.lane.b32.xlu0 %v1909, 17
        %v2097 = vpop.permute.xlu0 %2096
        %2098 = vrot.lane.b32.xlu0 %v1916, 17
        %v2099 = vpop.permute.xlu0 %2098
        %2100 = vrot.lane.b32.xlu0 %v1917, 17
        %v2101 = vpop.permute.xlu0 %2100
        %2102 = vrot.lane.b32.xlu0 %v1925, 17
        %v2103 = vpop.permute.xlu0 %2102
        %2104 = vrot.lane.b32.xlu0 %v1936, 17
        %v2105 = vpop.permute.xlu0 %2104
        %2106 = vrot.lane.b32.xlu0 %v1937, 17
        %v2107 = vpop.permute.xlu0 %2106
        %2108 = vrot.lane.b32.xlu0 %v1931, 17
        %v2109 = vpop.permute.xlu0 %2108
        %2110 = vrot.lane.b32.xlu0 %v1938, 17
        %v2111 = vpop.permute.xlu0 %2110
        %2112 = vrot.lane.b32.xlu0 %v1939, 17
        %v2113 = vpop.permute.xlu0 %2112
        %2114 = vrot.lane.b32.xlu0 %v1947, 17
        %v2115 = vpop.permute.xlu0 %2114
        %2116 = vrot.lane.b32.xlu0 %v1958, 17
        %v2117 = vpop.permute.xlu0 %2116
        %2118 = vrot.lane.b32.xlu0 %v1959, 17
        %v2119 = vpop.permute.xlu0 %2118
        %2120 = vrot.lane.b32.xlu0 %v1953, 17
        %v2121 = vpop.permute.xlu0 %2120
        %2122 = vrot.lane.b32.xlu0 %v1960, 17
        %v2123 = vpop.permute.xlu0 %2122
        %2124 = vrot.lane.b32.xlu0 %v1961, 17
        %v2125 = vpop.permute.xlu0 %2124
        %v2126 = vsel %vm600, %v2019, %v2021
        %v2127 = vsel %vm600, %v2021, %v2023
        %v2128 = vsel %vm600, %v2025, %v2027
        %v2129 = vsel %vm600, %v2027, %v2029
        %v2130 = vsel %vm600, %v2031, %v2033
        %v2131 = vsel %vm600, %v2033, %v2035
        %v2132 = vsel %vm600, %v2037, %v2039
        %v2133 = vsel %vm600, %v2039, %v2041
        %v2134 = vsel %vm600, %v2043, %v2045
        %v2135 = vsel %vm600, %v2045, %v2047
        %v2136 = vsel %vm600, %v2049, %v2051
        %v2137 = vsel %vm600, %v2051, %v2053
        %v2138 = vsel %vm600, %v2055, %v2057
        %v2139 = vsel %vm600, %v2057, %v2059
        %v2140 = vsel %vm600, %v2061, %v2063
        %v2141 = vsel %vm600, %v2063, %v2065
        %v2142 = vsel %vm600, %v2067, %v2069
        %v2143 = vsel %vm600, %v2069, %v2071
        %v2144 = vsel %vm600, %v2073, %v2075
        %v2145 = vsel %vm600, %v2075, %v2077
        %v2146 = vsel %vm600, %v2079, %v2081
        %v2147 = vsel %vm600, %v2081, %v2083
        %v2148 = vsel %vm600, %v2085, %v2087
        %v2149 = vsel %vm600, %v2087, %v2089
        %v2150 = vsel %vm600, %v2091, %v2093
        %v2151 = vsel %vm600, %v2093, %v2095
        %v2152 = vsel %vm600, %v2097, %v2099
        %v2153 = vsel %vm600, %v2099, %v2101
        %v2154 = vsel %vm600, %v2103, %v2105
        %v2155 = vsel %vm600, %v2105, %v2107
        %v2156 = vsel %vm600, %v2109, %v2111
        %v2157 = vsel %vm600, %v2111, %v2113
        %v2158 = vsel %vm600, %v2115, %v2117
        %v2159 = vsel %vm600, %v2117, %v2119
        %v2160 = vsel %vm600, %v2121, %v2123
        %v2161 = vsel %vm600, %v2123, %v2125
        %v2199 = vsel %vm1017, %v2004, 0
        %v2202 = vsel %vm1017, %v2007, 0
        %2204 = vmatprep.subr.bf16.mxu0 %v2127
        %2205 = vmatpush1.bf16.msra.mxu0 %v2126
        %2206 = vmatprep.subr.bf16.mxu0 %v2129
        %2207 = vmatpush1.bf16.msra.mxu0 %v2128
        %2208 = vmatprep.subr.bf16.mxu0 %v2131
        %2209 = vmatpush1.bf16.msra.mxu0 %v2130
        %2210 = vmatprep.subr.bf16.mxu0 %v2133
        %2211 = vmatpush1.bf16.msra.mxu0 %v2132
        %2212 = vmatprep.subr.bf16.mxu0 %v2135
        %2213 = vmatpush1.bf16.msra.mxu0 %v2134
        %2214 = vmatprep.subr.bf16.mxu0 %v2137
        %2215 = vmatpush1.bf16.msra.mxu0 %v2136
        %2216 = vmatprep.subr.bf16.mxu0 %v2139
        %2217 = vmatpush1.bf16.msra.mxu0 %v2138
        %2218 = vmatprep.subr.bf16.mxu0 %v2141
        %2219 = vmatpush1.bf16.msra.mxu0 %v2140
        %2220 = vmatprep.subr.bf16.mxu0 %v2143
        %2221 = vmatpush1.bf16.msra.mxu0 %v2142
        %2222 = vmatprep.subr.bf16.mxu0 %v2145
        %2223 = vmatpush1.bf16.msra.mxu0 %v2144
        %2224 = vmatprep.subr.bf16.mxu0 %v2147
        %2225 = vmatpush1.bf16.msra.mxu0 %v2146
        %2226 = vmatprep.subr.bf16.mxu0 %v2149
        %2227 = vmatpush1.bf16.msra.mxu0 %v2148
        %2228 = vmatprep.subr.bf16.mxu0 %v2151
        %2229 = vmatpush1.bf16.msra.mxu0 %v2150
        %2230 = vmatprep.subr.bf16.mxu0 %v2153
        %2231 = vmatpush1.bf16.msra.mxu0 %v2152
        %2232 = vmatprep.subr.bf16.mxu0 %v2155
        %2233 = vmatpush1.bf16.msra.mxu0 %v2154
        %2234 = vmatprep.subr.bf16.mxu0 %v2157
        %2235 = vmatpush1.bf16.msra.mxu0 %v2156
        %2236 = vmatprep.mubr.bf16.mxu0 %v2003
        %2237 = vmatmul.mubr.bf16.gmra.mrb[0].mxu0 %v2002
        %v2238 = vpop.f32.mrb[0].mxu0
        %v2239 = vadd.f32 %v1965, %v2238
        %v2240 = vpop.f32.mrb[0].mxu0
        %v2241 = vadd.f32 %v1965, %v2240
        %v2242 = vpop.f32.mrb[0].mxu0
        %v2243 = vadd.f32 %v1970, %v2242
        %v2244 = vpop.f32.mrb[0].mxu0
        %v2245 = vadd.f32 %v1970, %v2244
        %2246 = vmatprep.mubr.bf16.mxu0 %v2006
        %2247 = vmatmul.mubr.bf16.gmra.mrb[0].mxu0 %v2005
        %v2248 = vpop.f32.mrb[0].mxu0
        %v2249 = vadd.f32 %v1975, %v2248
        %v2250 = vpop.f32.mrb[0].mxu0
        %v2251 = vadd.f32 %v1975, %v2250
        %v2252 = vpop.f32.mrb[0].mxu0
        %v2253 = vadd.f32 %v1980, %v2252
        %v2254 = vpop.f32.mrb[0].mxu0
        %v2255 = vadd.f32 %v1980, %v2254
        %2256 = vdwg.mxu0
        %2257 = vmatprep.subr.bf16.mxu0 %v2159
        %2258 = vmatpush1.bf16.msra.mxu0 %v2158
        %2259 = vmatprep.subr.bf16.mxu0 %v2161
        %2260 = vmatpush1.bf16.msra.mxu0 %v2160
        %2261 = vmatprep.subr.bf16.mxu0 0
        %2262 = vmatpush1.bf16.msra.mxu0 0
        %2263 = vmatprep.subr.bf16.mxu0 0
        %2264 = vmatpush1.bf16.msra.mxu0 0
        %2265 = vmatprep.subr.bf16.mxu0 0
        %2266 = vmatpush1.bf16.msra.mxu0 0
        %2267 = vmatprep.subr.bf16.mxu0 0
        %2268 = vmatpush1.bf16.msra.mxu0 0
        %2269 = vmatprep.subr.bf16.mxu0 0
        %2270 = vmatpush1.bf16.msra.mxu0 0
        %2271 = vmatprep.subr.bf16.mxu0 0
        %2272 = vmatpush1.bf16.msra.mxu0 0
        %2273 = vmatprep.subr.bf16.mxu0 0
        %2274 = vmatpush1.bf16.msra.mxu0 0
        %2275 = vmatprep.subr.bf16.mxu0 0
        %2276 = vmatpush1.bf16.msra.mxu0 0
        %2277 = vmatprep.subr.bf16.mxu0 0
        %2278 = vmatpush1.bf16.msra.mxu0 0
        %2279 = vmatprep.subr.bf16.mxu0 0
        %2280 = vmatpush1.bf16.msra.mxu0 0
        %2281 = vmatprep.subr.bf16.mxu0 0
        %2282 = vmatpush1.bf16.msra.mxu0 0
        %2283 = vmatprep.subr.bf16.mxu0 0
        %2284 = vmatpush1.bf16.msra.mxu0 0
        %2285 = vmatprep.subr.bf16.mxu0 0
        %2286 = vmatpush1.bf16.msra.mxu0 0
        %2287 = vmatprep.subr.bf16.mxu0 0
        %2288 = vmatpush1.bf16.msra.mxu0 0
        %2289 = vmatprep.mubr.bf16.mxu0 0
        %2290 = vmatmul.mubr.bf16.gmra.mrb[0].mxu0 %v2199
        %v2291 = vpop.f32.mrb[0].mxu0
        %v2292 = vadd.f32 %v2239, %v2291
        %v2293 = vpop.f32.mrb[0].mxu0
        %v2294 = vadd.f32 %v2241, %v2293
        %v2295 = vpop.f32.mrb[0].mxu0
        %v2296 = vadd.f32 %v2243, %v2295
        %v2297 = vpop.f32.mrb[0].mxu0
        %v2298 = vadd.f32 %v2245, %v2297
        %2299 = vmatprep.mubr.bf16.mxu0 0
        %2300 = vmatmul.mubr.bf16.gmra.mrb[0].mxu0 %v2202
        %v2301 = vpop.f32.mrb[0].mxu0
        %v2302 = vadd.f32 %v2249, %v2301
        %v2303 = vpop.f32.mrb[0].mxu0
        %v2304 = vadd.f32 %v2251, %v2303
        %v2305 = vpop.f32.mrb[0].mxu0
        %v2306 = vadd.f32 %v2253, %v2305
        %v2307 = vpop.f32.mrb[0].mxu0
        %v2308 = vadd.f32 %v2255, %v2307
        %2309 = vdwg.mxu0
        %v2310 = vpack.c.bf16 %v2296, %v2292
        %v2311 = vpack.c.bf16 %v2298, %v2294
        %v2312 = vpack.c.bf16 %v2306, %v2302
        %v2313 = vpack.c.bf16 %v2308, %v2304
        %2314 = vst [vmem:[#allocation2 + $0x8] sm:$0xff] %v2310
        %2315 = vst [vmem:[#allocation2 + $0x10] sm:$0xff] %v2311
        %2316 = vst [vmem:[#allocation2 + $0x28] sm:$0xff] %v2312
        %2317 = vst [vmem:[#allocation2 + $0x30] sm:$0xff] %v2313
        %s2318 = scalar_lea.vmem [#allocation10], 144
        %v2319 = vld [vmem:[%s2318] sm:$0xff]
        %v2320 = vld [vmem:[%s2318 + $0x8] sm:$0xf]
        %v2321 = vld [vmem:[%s2318 + $0xc] sm:$0xff]
        %v2322 = vld [vmem:[%s2318 + $0x14] sm:$0xf]
        %v2323 = vld [vmem:[%s2318 + $0x18] sm:$0xff]
        %v2324 = vld [vmem:[%s2318 + $0x20] sm:$0xf]
        %v2325 = vld [vmem:[%s2318 + $0x24] sm:$0xff]
        %v2326 = vld [vmem:[%s2318 + $0x2c] sm:$0xf]
        %s2327 = scalar_lea.vmem [#allocation12], 96
        %v2328 = vld [vmem:[%s2327] sm:$0xff]
        %v2329 = vld [vmem:[%s2327 + $0x8] sm:$0xff]
        %v2330 = vld [vmem:[%s2327 + $0x10] sm:$0xff]
        %v2331 = vld [vmem:[%s2327 + $0x18] sm:$0xff]
        %v2332 = vld [vmem:[#allocation2] sm:$0xff]
        %v2333 = vld [vmem:[#allocation2 + $0x8] sm:$0xff]
        %v2334 = vld [vmem:[#allocation2 + $0x10] sm:$0xff]
        %v2335 = vld [vmem:[#allocation2 + $0x20] sm:$0xff]
        %v2336 = vld [vmem:[#allocation2 + $0x28] sm:$0xff]
        %v2337 = vld [vmem:[#allocation2 + $0x30] sm:$0xff]
        %v2338 = vmul.bf16 %v2332, %v477
        %v2339 = vmul.bf16 %v2333, %v481
        %v2340 = vmul.bf16 %v2334, %v479
        %v2341 = vmul.bf16 %v2335, %v477
        %v2342 = vmul.bf16 %v2336, %v481
        %v2343 = vmul.bf16 %v2337, %v479
        %v2344 = vmul.bf16 %v2332, %v531
        %v2345 = vmul.bf16 %v2333, %v535
        %v2346 = vmul.bf16 %v2334, %v533
        %v2347 = vmul.bf16 %v2335, %v531
        %v2348 = vmul.bf16 %v2336, %v535
        %v2349 = vmul.bf16 %v2337, %v533
        %v2350 = vmul.bf16 %v2332, %v546
        %v2351 = vmul.bf16 %v2333, %v550
        %v2352 = vmul.bf16 %v2334, %v548
        %v2353 = vmul.bf16 %v2335, %v546
        %v2354 = vmul.bf16 %v2336, %v550
        %v2355 = vmul.bf16 %v2337, %v548
        %v2356 = vld [vmem:[#allocation2 + $0x8] sm:$0xff]
        %v2357 = vld [vmem:[#allocation2 + $0x10] sm:$0xff]
        %v2358 = vld [vmem:[#allocation2 + $0x18] sm:$0xff]
        %v2359 = vld [vmem:[#allocation2 + $0x28] sm:$0xff]
        %v2360 = vld [vmem:[#allocation2 + $0x30] sm:$0xff]
        %v2361 = vld [vmem:[#allocation2 + $0x38] sm:$0xff]
        %v2362 = vmul.bf16 %v2356, %v567
        %v2363 = vmul.bf16 %v2357, %v571
        %v2364 = vmul.bf16 %v2358, %v569
        %v2365 = vmul.bf16 %v2359, %v567
        %v2366 = vmul.bf16 %v2360, %v571
        %v2367 = vmul.bf16 %v2361, %v569
        %v2368 = vmul.bf16 %v2356, %v582
        %v2369 = vmul.bf16 %v2357, %v586
        %v2370 = vmul.bf16 %v2358, %v584
        %v2371 = vmul.bf16 %v2359, %v582
        %v2372 = vmul.bf16 %v2360, %v586
        %v2373 = vmul.bf16 %v2361, %v584
        %v2374 = vmul.bf16 %v2356, %v597
        %v2375 = vmul.bf16 %v2357, %v601
        %v2376 = vmul.bf16 %v2358, %v599
        %v2377 = vmul.bf16 %v2359, %v597
        %v2378 = vmul.bf16 %v2360, %v601
        %v2379 = vmul.bf16 %v2361, %v599
        %2386 = vrot.lane.b32.xlu0 %v2332, 127
        %v2387 = vpop.permute.xlu0 %2386
        %2388 = vrot.lane.b32.xlu0 %v2333, 127
        %v2389 = vpop.permute.xlu0 %2388
        %2390 = vrot.lane.b32.xlu0 %v2334, 127
        %v2391 = vpop.permute.xlu0 %2390
        %2392 = vrot.lane.b32.xlu0 %v2335, 127
        %v2393 = vpop.permute.xlu0 %2392
        %2394 = vrot.lane.b32.xlu0 %v2336, 127
        %v2395 = vpop.permute.xlu0 %2394
        %2396 = vrot.lane.b32.xlu0 %v2337, 127
        %v2397 = vpop.permute.xlu0 %2396
        %v2398 = vsel %vm549, %v2387, %v2389
        %v2399 = vsel %vm549, %v2389, %v2391
        %v2400 = vsel %vm549, %v2393, %v2395
        %v2401 = vsel %vm549, %v2395, %v2397
        %2408 = vrot.lane.b32.xlu0 %v2344, 126
        %v2409 = vpop.permute.xlu0 %2408
        %2410 = vrot.lane.b32.xlu0 %v2345, 126
        %v2411 = vpop.permute.xlu0 %2410
        %2412 = vrot.lane.b32.xlu0 %v2346, 126
        %v2413 = vpop.permute.xlu0 %2412
        %2414 = vrot.lane.b32.xlu0 %v2347, 126
        %v2415 = vpop.permute.xlu0 %2414
        %2416 = vrot.lane.b32.xlu0 %v2348, 126
        %v2417 = vpop.permute.xlu0 %2416
        %2418 = vrot.lane.b32.xlu0 %v2349, 126
        %v2419 = vpop.permute.xlu0 %2418
        %v2420 = vsel %vm651, %v2409, %v2411
        %v2421 = vsel %vm651, %v2411, %v2413
        %v2422 = vsel %vm651, %v2415, %v2417
        %v2423 = vsel %vm651, %v2417, %v2419
        %2430 = vrot.lane.b32.xlu0 %v2350, 112
        %v2431 = vpop.permute.xlu0 %2430
        %2432 = vrot.lane.b32.xlu0 %v2351, 112
        %v2433 = vpop.permute.xlu0 %2432
        %2434 = vrot.lane.b32.xlu0 %v2352, 112
        %v2435 = vpop.permute.xlu0 %2434
        %2436 = vrot.lane.b32.xlu0 %v2353, 112
        %v2437 = vpop.permute.xlu0 %2436
        %2438 = vrot.lane.b32.xlu0 %v2354, 112
        %v2439 = vpop.permute.xlu0 %2438
        %2440 = vrot.lane.b32.xlu0 %v2355, 112
        %v2441 = vpop.permute.xlu0 %2440
        %v2442 = vsel %vm674, %v2431, %v2433
        %v2443 = vsel %vm674, %v2433, %v2435
        %v2444 = vsel %vm674, %v2437, %v2439
        %v2445 = vsel %vm674, %v2439, %v2441
        %2446 = vrot.lane.b32.xlu0 %v2333, 111
        %v2447 = vpop.permute.xlu0 %2446
        %2448 = vrot.lane.b32.xlu0 %v2334, 111
        %v2449 = vpop.permute.xlu0 %2448
        %2450 = vrot.lane.b32.xlu0 %v2336, 111
        %v2451 = vpop.permute.xlu0 %2450
        %2452 = vrot.lane.b32.xlu0 %v2337, 111
        %v2453 = vpop.permute.xlu0 %2452
        %v2454 = vsel %vm480, %v2447, %v2449
        %v2455 = vsel %vm480, %v2451, %v2453
        %2462 = vrot.lane.b32.xlu0 %v2362, 110
        %v2463 = vpop.permute.xlu0 %2462
        %2464 = vrot.lane.b32.xlu0 %v2363, 110
        %v2465 = vpop.permute.xlu0 %2464
        %2466 = vrot.lane.b32.xlu0 %v2364, 110
        %v2467 = vpop.permute.xlu0 %2466
        %2468 = vrot.lane.b32.xlu0 %v2365, 110
        %v2469 = vpop.permute.xlu0 %2468
        %2470 = vrot.lane.b32.xlu0 %v2366, 110
        %v2471 = vpop.permute.xlu0 %2470
        %2472 = vrot.lane.b32.xlu0 %v2367, 110
        %v2473 = vpop.permute.xlu0 %2472
        %v2474 = vsel %vm707, %v2463, %v2465
        %v2475 = vsel %vm707, %v2465, %v2467
        %v2476 = vsel %vm707, %v2469, %v2471
        %v2477 = vsel %vm707, %v2471, %v2473
        %2484 = vrot.lane.b32.xlu0 %v2368, 96
        %v2485 = vpop.permute.xlu0 %2484
        %2486 = vrot.lane.b32.xlu0 %v2369, 96
        %v2487 = vpop.permute.xlu0 %2486
        %2488 = vrot.lane.b32.xlu0 %v2370, 96
        %v2489 = vpop.permute.xlu0 %2488
        %2490 = vrot.lane.b32.xlu0 %v2371, 96
        %v2491 = vpop.permute.xlu0 %2490
        %2492 = vrot.lane.b32.xlu0 %v2372, 96
        %v2493 = vpop.permute.xlu0 %2492
        %2494 = vrot.lane.b32.xlu0 %v2373, 96
        %v2495 = vpop.permute.xlu0 %2494
        %v2496 = vsel %vm730, %v2485, %v2487
        %v2497 = vsel %vm730, %v2487, %v2489
        %v2498 = vsel %vm730, %v2491, %v2493
        %v2499 = vsel %vm730, %v2493, %v2495
        %2506 = vrot.lane.b32.xlu0 %v2356, 95
        %v2507 = vpop.permute.xlu0 %2506
        %2508 = vrot.lane.b32.xlu0 %v2357, 95
        %v2509 = vpop.permute.xlu0 %2508
        %2510 = vrot.lane.b32.xlu0 %v2358, 95
        %v2511 = vpop.permute.xlu0 %2510
        %2512 = vrot.lane.b32.xlu0 %v2359, 95
        %v2513 = vpop.permute.xlu0 %2512
        %2514 = vrot.lane.b32.xlu0 %v2360, 95
        %v2515 = vpop.permute.xlu0 %2514
        %2516 = vrot.lane.b32.xlu0 %v2361, 95
        %v2517 = vpop.permute.xlu0 %2516
        %v2518 = vsel %vm753, %v2507, %v2509
        %v2519 = vsel %vm753, %v2509, %v2511
        %v2520 = vsel %vm753, %v2513, %v2515
        %v2521 = vsel %vm753, %v2515, %v2517
        %2528 = vrot.lane.b32.xlu0 %v2374, 94
        %v2529 = vpop.permute.xlu0 %2528
        %2530 = vrot.lane.b32.xlu0 %v2375, 94
        %v2531 = vpop.permute.xlu0 %2530
        %2532 = vrot.lane.b32.xlu0 %v2376, 94
        %v2533 = vpop.permute.xlu0 %2532
        %2534 = vrot.lane.b32.xlu0 %v2377, 94
        %v2535 = vpop.permute.xlu0 %2534
        %2536 = vrot.lane.b32.xlu0 %v2378, 94
        %v2537 = vpop.permute.xlu0 %2536
        %2538 = vrot.lane.b32.xlu0 %v2379, 94
        %v2539 = vpop.permute.xlu0 %2538
        %v2540 = vsel %vm776, %v2529, %v2531
        %v2541 = vsel %vm776, %v2531, %v2533
        %v2542 = vsel %vm776, %v2535, %v2537
        %v2543 = vsel %vm776, %v2537, %v2539
        %2545 = vset.pattern.permute.xlu0 0
        %2546 = vperm.xlu0 %2545, %v2328
        %v2547 = vpop.permute.xlu0 %2546
        %2550 = vset.pattern.permute.xlu0 0
        %2551 = vperm.xlu0 %2550, %v2329
        %v2552 = vpop.permute.xlu0 %2551
        %2555 = vset.pattern.permute.xlu0 0
        %2556 = vperm.xlu0 %2555, %v2330
        %v2557 = vpop.permute.xlu0 %2556
        %2560 = vset.pattern.permute.xlu0 0
        %2561 = vperm.xlu0 %2560, %v2331
        %v2562 = vpop.permute.xlu0 %2561
        %v2572 = vunpack.c.l.b16 %v2319
        %v2573 = vunpack.c.h.b16 %v2319
        %v2574 = vunpack.c.l.b16 %v2320
        %v2575 = vunpack.c.l.b16 %v2321
        %v2576 = vunpack.c.h.b16 %v2321
        %v2577 = vunpack.c.l.b16 %v2322
        %v2578 = vunpack.c.l.b16 %v2323
        %v2579 = vunpack.c.h.b16 %v2323
        %v2580 = vunpack.c.l.b16 %v2324
        %v2581 = vunpack.c.l.b16 %v2325
        %v2582 = vunpack.c.h.b16 %v2325
        %v2583 = vunpack.c.l.b16 %v2326
        %v2584 = vpack.c.b16 %v2575, %v2572
        %v2585 = vpack.c.b16 %v2576, %v2573
        %v2586 = vpack.c.b16 %v2577, %v2574
        %v2587 = vpack.c.b16 %v2581, %v2578
        %v2588 = vpack.c.b16 %v2582, %v2579
        %v2589 = vpack.c.b16 %v2583, %v2580
        %2600 = vrot.lane.b32.xlu0 %v2338, 17
        %v2601 = vpop.permute.xlu0 %2600
        %2602 = vrot.lane.b32.xlu0 %v2339, 17
        %v2603 = vpop.permute.xlu0 %2602
        %2604 = vrot.lane.b32.xlu0 %v2340, 17
        %v2605 = vpop.permute.xlu0 %2604
        %2606 = vrot.lane.b32.xlu0 %v2341, 17
        %v2607 = vpop.permute.xlu0 %2606
        %2608 = vrot.lane.b32.xlu0 %v2342, 17
        %v2609 = vpop.permute.xlu0 %2608
        %2610 = vrot.lane.b32.xlu0 %v2343, 17
        %v2611 = vpop.permute.xlu0 %2610
        %2612 = vrot.lane.b32.xlu0 %v2398, 17
        %v2613 = vpop.permute.xlu0 %2612
        %2614 = vrot.lane.b32.xlu0 %v2399, 17
        %v2615 = vpop.permute.xlu0 %2614
        %2616 = vrot.lane.b32.xlu0 %v2391, 17
        %v2617 = vpop.permute.xlu0 %2616
        %2618 = vrot.lane.b32.xlu0 %v2400, 17
        %v2619 = vpop.permute.xlu0 %2618
        %2620 = vrot.lane.b32.xlu0 %v2401, 17
        %v2621 = vpop.permute.xlu0 %2620
        %2622 = vrot.lane.b32.xlu0 %v2397, 17
        %v2623 = vpop.permute.xlu0 %2622
        %2624 = vrot.lane.b32.xlu0 %v2420, 17
        %v2625 = vpop.permute.xlu0 %2624
        %2626 = vrot.lane.b32.xlu0 %v2421, 17
        %v2627 = vpop.permute.xlu0 %2626
        %2628 = vrot.lane.b32.xlu0 %v2413, 17
        %v2629 = vpop.permute.xlu0 %2628
        %2630 = vrot.lane.b32.xlu0 %v2422, 17
        %v2631 = vpop.permute.xlu0 %2630
        %2632 = vrot.lane.b32.xlu0 %v2423, 17
        %v2633 = vpop.permute.xlu0 %2632
        %2634 = vrot.lane.b32.xlu0 %v2419, 17
        %v2635 = vpop.permute.xlu0 %2634
        %2636 = vrot.lane.b32.xlu0 %v2442, 17
        %v2637 = vpop.permute.xlu0 %2636
        %2638 = vrot.lane.b32.xlu0 %v2443, 17
        %v2639 = vpop.permute.xlu0 %2638
        %2640 = vrot.lane.b32.xlu0 %v2435, 17
        %v2641 = vpop.permute.xlu0 %2640
        %2642 = vrot.lane.b32.xlu0 %v2444, 17
        %v2643 = vpop.permute.xlu0 %2642
        %2644 = vrot.lane.b32.xlu0 %v2445, 17
        %v2645 = vpop.permute.xlu0 %2644
        %2646 = vrot.lane.b32.xlu0 %v2441, 17
        %v2647 = vpop.permute.xlu0 %2646
        %2648 = vrot.lane.b32.xlu0 %v2447, 17
        %v2649 = vpop.permute.xlu0 %2648
        %2650 = vrot.lane.b32.xlu0 %v2454, 17
        %v2651 = vpop.permute.xlu0 %2650
        %2652 = vrot.lane.b32.xlu0 %v2449, 17
        %v2653 = vpop.permute.xlu0 %2652
        %2654 = vrot.lane.b32.xlu0 %v2451, 17
        %v2655 = vpop.permute.xlu0 %2654
        %2656 = vrot.lane.b32.xlu0 %v2455, 17
        %v2657 = vpop.permute.xlu0 %2656
        %2658 = vrot.lane.b32.xlu0 %v2453, 17
        %v2659 = vpop.permute.xlu0 %2658
        %2660 = vrot.lane.b32.xlu0 %v2463, 17
        %v2661 = vpop.permute.xlu0 %2660
        %2662 = vrot.lane.b32.xlu0 %v2474, 17
        %v2663 = vpop.permute.xlu0 %2662
        %2664 = vrot.lane.b32.xlu0 %v2475, 17
        %v2665 = vpop.permute.xlu0 %2664
        %2666 = vrot.lane.b32.xlu0 %v2469, 17
        %v2667 = vpop.permute.xlu0 %2666
        %2668 = vrot.lane.b32.xlu0 %v2476, 17
        %v2669 = vpop.permute.xlu0 %2668
        %2670 = vrot.lane.b32.xlu0 %v2477, 17
        %v2671 = vpop.permute.xlu0 %2670
        %2672 = vrot.lane.b32.xlu0 %v2485, 17
        %v2673 = vpop.permute.xlu0 %2672
        %2674 = vrot.lane.b32.xlu0 %v2496, 17
        %v2675 = vpop.permute.xlu0 %2674
        %2676 = vrot.lane.b32.xlu0 %v2497, 17
        %v2677 = vpop.permute.xlu0 %2676
        %2678 = vrot.lane.b32.xlu0 %v2491, 17
        %v2679 = vpop.permute.xlu0 %2678
        %2680 = vrot.lane.b32.xlu0 %v2498, 17
        %v2681 = vpop.permute.xlu0 %2680
        %2682 = vrot.lane.b32.xlu0 %v2499, 17
        %v2683 = vpop.permute.xlu0 %2682
        %2684 = vrot.lane.b32.xlu0 %v2507, 17
        %v2685 = vpop.permute.xlu0 %2684
        %2686 = vrot.lane.b32.xlu0 %v2518, 17
        %v2687 = vpop.permute.xlu0 %2686
        %2688 = vrot.lane.b32.xlu0 %v2519, 17
        %v2689 = vpop.permute.xlu0 %2688
        %2690 = vrot.lane.b32.xlu0 %v2513, 17
        %v2691 = vpop.permute.xlu0 %2690
        %2692 = vrot.lane.b32.xlu0 %v2520, 17
        %v2693 = vpop.permute.xlu0 %2692
        %2694 = vrot.lane.b32.xlu0 %v2521, 17
        %v2695 = vpop.permute.xlu0 %2694
        %2696 = vrot.lane.b32.xlu0 %v2529, 17
        %v2697 = vpop.permute.xlu0 %2696
        %2698 = vrot.lane.b32.xlu0 %v2540, 17
        %v2699 = vpop.permute.xlu0 %2698
        %2700 = vrot.lane.b32.xlu0 %v2541, 17
        %v2701 = vpop.permute.xlu0 %2700
        %2702 = vrot.lane.b32.xlu0 %v2535, 17
        %v2703 = vpop.permute.xlu0 %2702
        %2704 = vrot.lane.b32.xlu0 %v2542, 17
        %v2705 = vpop.permute.xlu0 %2704
        %2706 = vrot.lane.b32.xlu0 %v2543, 17
        %v2707 = vpop.permute.xlu0 %2706
        %v2708 = vsel %vm600, %v2601, %v2603
        %v2709 = vsel %vm600, %v2603, %v2605
        %v2710 = vsel %vm600, %v2607, %v2609
        %v2711 = vsel %vm600, %v2609, %v2611
        %v2712 = vsel %vm600, %v2613, %v2615
        %v2713 = vsel %vm600, %v2615, %v2617
        %v2714 = vsel %vm600, %v2619, %v2621
        %v2715 = vsel %vm600, %v2621, %v2623
        %v2716 = vsel %vm600, %v2625, %v2627
        %v2717 = vsel %vm600, %v2627, %v2629
        %v2718 = vsel %vm600, %v2631, %v2633
        %v2719 = vsel %vm600, %v2633, %v2635
        %v2720 = vsel %vm600, %v2637, %v2639
        %v2721 = vsel %vm600, %v2639, %v2641
        %v2722 = vsel %vm600, %v2643, %v2645
        %v2723 = vsel %vm600, %v2645, %v2647
        %v2724 = vsel %vm600, %v2649, %v2651
        %v2725 = vsel %vm600, %v2651, %v2653
        %v2726 = vsel %vm600, %v2655, %v2657
        %v2727 = vsel %vm600, %v2657, %v2659
        %v2728 = vsel %vm600, %v2661, %v2663
        %v2729 = vsel %vm600, %v2663, %v2665
        %v2730 = vsel %vm600, %v2667, %v2669
        %v2731 = vsel %vm600, %v2669, %v2671
        %v2732 = vsel %vm600, %v2673, %v2675
        %v2733 = vsel %vm600, %v2675, %v2677
        %v2734 = vsel %vm600, %v2679, %v2681
        %v2735 = vsel %vm600, %v2681, %v2683
        %v2736 = vsel %vm600, %v2685, %v2687
        %v2737 = vsel %vm600, %v2687, %v2689
        %v2738 = vsel %vm600, %v2691, %v2693
        %v2739 = vsel %vm600, %v2693, %v2695
        %v2740 = vsel %vm600, %v2697, %v2699
        %v2741 = vsel %vm600, %v2699, %v2701
        %v2742 = vsel %vm600, %v2703, %v2705
        %v2743 = vsel %vm600, %v2705, %v2707
        %v2781 = vsel %vm1017, %v2586, 0
        %v2784 = vsel %vm1017, %v2589, 0
        %2786 = vmatprep.subr.bf16.mxu0 %v2709
        %2787 = vmatpush1.bf16.msra.mxu0 %v2708
        %2788 = vmatprep.subr.bf16.mxu0 %v2711
        %2789 = vmatpush1.bf16.msra.mxu0 %v2710
        %2790 = vmatprep.subr.bf16.mxu0 %v2713
        %2791 = vmatpush1.bf16.msra.mxu0 %v2712
        %2792 = vmatprep.subr.bf16.mxu0 %v2715
        %2793 = vmatpush1.bf16.msra.mxu0 %v2714
        %2794 = vmatprep.subr.bf16.mxu0 %v2717
        %2795 = vmatpush1.bf16.msra.mxu0 %v2716
        %2796 = vmatprep.subr.bf16.mxu0 %v2719
        %2797 = vmatpush1.bf16.msra.mxu0 %v2718
        %2798 = vmatprep.subr.bf16.mxu0 %v2721
        %2799 = vmatpush1.bf16.msra.mxu0 %v2720
        %2800 = vmatprep.subr.bf16.mxu0 %v2723
        %2801 = vmatpush1.bf16.msra.mxu0 %v2722
        %2802 = vmatprep.subr.bf16.mxu0 %v2725
        %2803 = vmatpush1.bf16.msra.mxu0 %v2724
        %2804 = vmatprep.subr.bf16.mxu0 %v2727
        %2805 = vmatpush1.bf16.msra.mxu0 %v2726
        %2806 = vmatprep.subr.bf16.mxu0 %v2729
        %2807 = vmatpush1.bf16.msra.mxu0 %v2728
        %2808 = vmatprep.subr.bf16.mxu0 %v2731
        %2809 = vmatpush1.bf16.msra.mxu0 %v2730
        %2810 = vmatprep.subr.bf16.mxu0 %v2733
        %2811 = vmatpush1.bf16.msra.mxu0 %v2732
        %2812 = vmatprep.subr.bf16.mxu0 %v2735
        %2813 = vmatpush1.bf16.msra.mxu0 %v2734
        %2814 = vmatprep.subr.bf16.mxu0 %v2737
        %2815 = vmatpush1.bf16.msra.mxu0 %v2736
        %2816 = vmatprep.subr.bf16.mxu0 %v2739
        %2817 = vmatpush1.bf16.msra.mxu0 %v2738
        %2818 = vmatprep.mubr.bf16.mxu0 %v2585
        %2819 = vmatmul.mubr.bf16.gmra.mrb[0].mxu0 %v2584
        %v2820 = vpop.f32.mrb[0].mxu0
        %v2821 = vadd.f32 %v2547, %v2820
        %v2822 = vpop.f32.mrb[0].mxu0
        %v2823 = vadd.f32 %v2547, %v2822
        %v2824 = vpop.f32.mrb[0].mxu0
        %v2825 = vadd.f32 %v2552, %v2824
        %v2826 = vpop.f32.mrb[0].mxu0
        %v2827 = vadd.f32 %v2552, %v2826
        %2828 = vmatprep.mubr.bf16.mxu0 %v2588
        %2829 = vmatmul.mubr.bf16.gmra.mrb[0].mxu0 %v2587
        %v2830 = vpop.f32.mrb[0].mxu0
        %v2831 = vadd.f32 %v2557, %v2830
        %v2832 = vpop.f32.mrb[0].mxu0
        %v2833 = vadd.f32 %v2557, %v2832
        %v2834 = vpop.f32.mrb[0].mxu0
        %v2835 = vadd.f32 %v2562, %v2834
        %v2836 = vpop.f32.mrb[0].mxu0
        %v2837 = vadd.f32 %v2562, %v2836
        %2838 = vdwg.mxu0
        %2839 = vmatprep.subr.bf16.mxu0 %v2741
        %2840 = vmatpush1.bf16.msra.mxu0 %v2740
        %2841 = vmatprep.subr.bf16.mxu0 %v2743
        %2842 = vmatpush1.bf16.msra.mxu0 %v2742
        %2843 = vmatprep.subr.bf16.mxu0 0
        %2844 = vmatpush1.bf16.msra.mxu0 0
        %2845 = vmatprep.subr.bf16.mxu0 0
        %2846 = vmatpush1.bf16.msra.mxu0 0
        %2847 = vmatprep.subr.bf16.mxu0 0
        %2848 = vmatpush1.bf16.msra.mxu0 0
        %2849 = vmatprep.subr.bf16.mxu0 0
        %2850 = vmatpush1.bf16.msra.mxu0 0
        %2851 = vmatprep.subr.bf16.mxu0 0
        %2852 = vmatpush1.bf16.msra.mxu0 0
        %2853 = vmatprep.subr.bf16.mxu0 0
        %2854 = vmatpush1.bf16.msra.mxu0 0
        %2855 = vmatprep.subr.bf16.mxu0 0
        %2856 = vmatpush1.bf16.msra.mxu0 0
        %2857 = vmatprep.subr.bf16.mxu0 0
        %2858 = vmatpush1.bf16.msra.mxu0 0
        %2859 = vmatprep.subr.bf16.mxu0 0
        %2860 = vmatpush1.bf16.msra.mxu0 0
        %2861 = vmatprep.subr.bf16.mxu0 0
        %2862 = vmatpush1.bf16.msra.mxu0 0
        %2863 = vmatprep.subr.bf16.mxu0 0
        %2864 = vmatpush1.bf16.msra.mxu0 0
        %2865 = vmatprep.subr.bf16.mxu0 0
        %2866 = vmatpush1.bf16.msra.mxu0 0
        %2867 = vmatprep.subr.bf16.mxu0 0
        %2868 = vmatpush1.bf16.msra.mxu0 0
        %2869 = vmatprep.subr.bf16.mxu0 0
        %2870 = vmatpush1.bf16.msra.mxu0 0
        %2871 = vmatprep.mubr.bf16.mxu0 0
        %2872 = vmatmul.mubr.bf16.gmra.mrb[0].mxu0 %v2781
        %v2873 = vpop.f32.mrb[0].mxu0
        %v2874 = vadd.f32 %v2821, %v2873
        %v2875 = vpop.f32.mrb[0].mxu0
        %v2876 = vadd.f32 %v2823, %v2875
        %v2877 = vpop.f32.mrb[0].mxu0
        %v2878 = vadd.f32 %v2825, %v2877
        %v2879 = vpop.f32.mrb[0].mxu0
        %v2880 = vadd.f32 %v2827, %v2879
        %2881 = vmatprep.mubr.bf16.mxu0 0
        %2882 = vmatmul.mubr.bf16.gmra.mrb[0].mxu0 %v2784
        %v2883 = vpop.f32.mrb[0].mxu0
        %v2884 = vadd.f32 %v2831, %v2883
        %v2885 = vpop.f32.mrb[0].mxu0
        %v2886 = vadd.f32 %v2833, %v2885
        %v2887 = vpop.f32.mrb[0].mxu0
        %v2888 = vadd.f32 %v2835, %v2887
        %v2889 = vpop.f32.mrb[0].mxu0
        %v2890 = vadd.f32 %v2837, %v2889
        %2891 = vdwg.mxu0
        %v2892 = vmax.f32 %v2874, 0.0
        %v2893 = vmax.f32 %v2876, 0.0
        %v2894 = vmax.f32 %v2878, 0.0
        %v2895 = vmax.f32 %v2880, 0.0
        %v2896 = vmax.f32 %v2884, 0.0
        %v2897 = vmax.f32 %v2886, 0.0
        %v2898 = vmax.f32 %v2888, 0.0
        %v2899 = vmax.f32 %v2890, 0.0
        %v2900 = vpack.c.bf16 %v2894, %v2892
        %v2901 = vpack.c.bf16 %v2895, %v2893
        %v2902 = vpack.c.bf16 %v2898, %v2896
        %v2903 = vpack.c.bf16 %v2899, %v2897
        %2904 = vst [vmem:[#allocation2 + $0x8] sm:$0xff] %v2900
        %2905 = vst [vmem:[#allocation2 + $0x10] sm:$0xff] %v2901
        %2906 = vst [vmem:[#allocation2 + $0x28] sm:$0xff] %v2902
        %2907 = vst [vmem:[#allocation2 + $0x30] sm:$0xff] %v2903
        %s2908 = scalar_lea.vmem [#allocation10], 192
        %v2909 = vld [vmem:[%s2908] sm:$0xff]
        %v2910 = vld [vmem:[%s2908 + $0x8] sm:$0xf]
        %v2911 = vld [vmem:[%s2908 + $0xc] sm:$0xff]
        %v2912 = vld [vmem:[%s2908 + $0x14] sm:$0xf]
        %v2913 = vld [vmem:[%s2908 + $0x18] sm:$0xff]
        %v2914 = vld [vmem:[%s2908 + $0x20] sm:$0xf]
        %v2915 = vld [vmem:[%s2908 + $0x24] sm:$0xff]
        %v2916 = vld [vmem:[%s2908 + $0x2c] sm:$0xf]
        %s2917 = scalar_lea.vmem [#allocation12], 128
        %v2918 = vld [vmem:[%s2917] sm:$0xff]
        %v2919 = vld [vmem:[%s2917 + $0x8] sm:$0xff]
        %v2920 = vld [vmem:[%s2917 + $0x10] sm:$0xff]
        %v2921 = vld [vmem:[%s2917 + $0x18] sm:$0xff]
        %v2922 = vld [vmem:[#allocation2] sm:$0xff]
        %v2923 = vld [vmem:[#allocation2 + $0x8] sm:$0xff]
        %v2924 = vld [vmem:[#allocation2 + $0x10] sm:$0xff]
        %v2925 = vld [vmem:[#allocation2 + $0x20] sm:$0xff]
        %v2926 = vld [vmem:[#allocation2 + $0x28] sm:$0xff]
        %v2927 = vld [vmem:[#allocation2 + $0x30] sm:$0xff]
        %v2928 = vmul.bf16 %v2922, %v477
        %v2929 = vmul.bf16 %v2923, %v481
        %v2930 = vmul.bf16 %v2924, %v479
        %v2931 = vmul.bf16 %v2925, %v477
        %v2932 = vmul.bf16 %v2926, %v481
        %v2933 = vmul.bf16 %v2927, %v479
        %v2934 = vmul.bf16 %v2922, %v531
        %v2935 = vmul.bf16 %v2923, %v535
        %v2936 = vmul.bf16 %v2924, %v533
        %v2937 = vmul.bf16 %v2925, %v531
        %v2938 = vmul.bf16 %v2926, %v535
        %v2939 = vmul.bf16 %v2927, %v533
        %v2940 = vmul.bf16 %v2922, %v546
        %v2941 = vmul.bf16 %v2923, %v550
        %v2942 = vmul.bf16 %v2924, %v548
        %v2943 = vmul.bf16 %v2925, %v546
        %v2944 = vmul.bf16 %v2926, %v550
        %v2945 = vmul.bf16 %v2927, %v548
        %v2946 = vld [vmem:[#allocation2 + $0x8] sm:$0xff]
        %v2947 = vld [vmem:[#allocation2 + $0x10] sm:$0xff]
        %v2948 = vld [vmem:[#allocation2 + $0x18] sm:$0xff]
        %v2949 = vld [vmem:[#allocation2 + $0x28] sm:$0xff]
        %v2950 = vld [vmem:[#allocation2 + $0x30] sm:$0xff]
        %v2951 = vld [vmem:[#allocation2 + $0x38] sm:$0xff]
        %v2952 = vmul.bf16 %v2946, %v567
        %v2953 = vmul.bf16 %v2947, %v571
        %v2954 = vmul.bf16 %v2948, %v569
        %v2955 = vmul.bf16 %v2949, %v567
        %v2956 = vmul.bf16 %v2950, %v571
        %v2957 = vmul.bf16 %v2951, %v569
        %v2958 = vmul.bf16 %v2946, %v582
        %v2959 = vmul.bf16 %v2947, %v586
        %v2960 = vmul.bf16 %v2948, %v584
        %v2961 = vmul.bf16 %v2949, %v582
        %v2962 = vmul.bf16 %v2950, %v586
        %v2963 = vmul.bf16 %v2951, %v584
        %v2964 = vmul.bf16 %v2946, %v597
        %v2965 = vmul.bf16 %v2947, %v601
        %v2966 = vmul.bf16 %v2948, %v599
        %v2967 = vmul.bf16 %v2949, %v597
        %v2968 = vmul.bf16 %v2950, %v601
        %v2969 = vmul.bf16 %v2951, %v599
        %2976 = vrot.lane.b32.xlu0 %v2922, 127
        %v2977 = vpop.permute.xlu0 %2976
        %2978 = vrot.lane.b32.xlu0 %v2923, 127
        %v2979 = vpop.permute.xlu0 %2978
        %2980 = vrot.lane.b32.xlu0 %v2924, 127
        %v2981 = vpop.permute.xlu0 %2980
        %2982 = vrot.lane.b32.xlu0 %v2925, 127
        %v2983 = vpop.permute.xlu0 %2982
        %2984 = vrot.lane.b32.xlu0 %v2926, 127
        %v2985 = vpop.permute.xlu0 %2984
        %2986 = vrot.lane.b32.xlu0 %v2927, 127
        %v2987 = vpop.permute.xlu0 %2986
        %v2988 = vsel %vm549, %v2977, %v2979
        %v2989 = vsel %vm549, %v2979, %v2981
        %v2990 = vsel %vm549, %v2983, %v2985
        %v2991 = vsel %vm549, %v2985, %v2987
        %2998 = vrot.lane.b32.xlu0 %v2934, 126
        %v2999 = vpop.permute.xlu0 %2998
        %3000 = vrot.lane.b32.xlu0 %v2935, 126
        %v3001 = vpop.permute.xlu0 %3000
        %3002 = vrot.lane.b32.xlu0 %v2936, 126
        %v3003 = vpop.permute.xlu0 %3002
        %3004 = vrot.lane.b32.xlu0 %v2937, 126
        %v3005 = vpop.permute.xlu0 %3004
        %3006 = vrot.lane.b32.xlu0 %v2938, 126
        %v3007 = vpop.permute.xlu0 %3006
        %3008 = vrot.lane.b32.xlu0 %v2939, 126
        %v3009 = vpop.permute.xlu0 %3008
        %v3010 = vsel %vm651, %v2999, %v3001
        %v3011 = vsel %vm651, %v3001, %v3003
        %v3012 = vsel %vm651, %v3005, %v3007
        %v3013 = vsel %vm651, %v3007, %v3009
        %3020 = vrot.lane.b32.xlu0 %v2940, 112
        %v3021 = vpop.permute.xlu0 %3020
        %3022 = vrot.lane.b32.xlu0 %v2941, 112
        %v3023 = vpop.permute.xlu0 %3022
        %3024 = vrot.lane.b32.xlu0 %v2942, 112
        %v3025 = vpop.permute.xlu0 %3024
        %3026 = vrot.lane.b32.xlu0 %v2943, 112
        %v3027 = vpop.permute.xlu0 %3026
        %3028 = vrot.lane.b32.xlu0 %v2944, 112
        %v3029 = vpop.permute.xlu0 %3028
        %3030 = vrot.lane.b32.xlu0 %v2945, 112
        %v3031 = vpop.permute.xlu0 %3030
        %v3032 = vsel %vm674, %v3021, %v3023
        %v3033 = vsel %vm674, %v3023, %v3025
        %v3034 = vsel %vm674, %v3027, %v3029
        %v3035 = vsel %vm674, %v3029, %v3031
        %3036 = vrot.lane.b32.xlu0 %v2923, 111
        %v3037 = vpop.permute.xlu0 %3036
        %3038 = vrot.lane.b32.xlu0 %v2924, 111
        %v3039 = vpop.permute.xlu0 %3038
        %3040 = vrot.lane.b32.xlu0 %v2926, 111
        %v3041 = vpop.permute.xlu0 %3040
        %3042 = vrot.lane.b32.xlu0 %v2927, 111
        %v3043 = vpop.permute.xlu0 %3042
        %v3044 = vsel %vm480, %v3037, %v3039
        %v3045 = vsel %vm480, %v3041, %v3043
        %3052 = vrot.lane.b32.xlu0 %v2952, 110
        %v3053 = vpop.permute.xlu0 %3052
        %3054 = vrot.lane.b32.xlu0 %v2953, 110
        %v3055 = vpop.permute.xlu0 %3054
        %3056 = vrot.lane.b32.xlu0 %v2954, 110
        %v3057 = vpop.permute.xlu0 %3056
        %3058 = vrot.lane.b32.xlu0 %v2955, 110
        %v3059 = vpop.permute.xlu0 %3058
        %3060 = vrot.lane.b32.xlu0 %v2956, 110
        %v3061 = vpop.permute.xlu0 %3060
        %3062 = vrot.lane.b32.xlu0 %v2957, 110
        %v3063 = vpop.permute.xlu0 %3062
        %v3064 = vsel %vm707, %v3053, %v3055
        %v3065 = vsel %vm707, %v3055, %v3057
        %v3066 = vsel %vm707, %v3059, %v3061
        %v3067 = vsel %vm707, %v3061, %v3063
        %3074 = vrot.lane.b32.xlu0 %v2958, 96
        %v3075 = vpop.permute.xlu0 %3074
        %3076 = vrot.lane.b32.xlu0 %v2959, 96
        %v3077 = vpop.permute.xlu0 %3076
        %3078 = vrot.lane.b32.xlu0 %v2960, 96
        %v3079 = vpop.permute.xlu0 %3078
        %3080 = vrot.lane.b32.xlu0 %v2961, 96
        %v3081 = vpop.permute.xlu0 %3080
        %3082 = vrot.lane.b32.xlu0 %v2962, 96
        %v3083 = vpop.permute.xlu0 %3082
        %3084 = vrot.lane.b32.xlu0 %v2963, 96
        %v3085 = vpop.permute.xlu0 %3084
        %v3086 = vsel %vm730, %v3075, %v3077
        %v3087 = vsel %vm730, %v3077, %v3079
        %v3088 = vsel %vm730, %v3081, %v3083
        %v3089 = vsel %vm730, %v3083, %v3085
        %3096 = vrot.lane.b32.xlu0 %v2946, 95
        %v3097 = vpop.permute.xlu0 %3096
        %3098 = vrot.lane.b32.xlu0 %v2947, 95
        %v3099 = vpop.permute.xlu0 %3098
        %3100 = vrot.lane.b32.xlu0 %v2948, 95
        %v3101 = vpop.permute.xlu0 %3100
        %3102 = vrot.lane.b32.xlu0 %v2949, 95
        %v3103 = vpop.permute.xlu0 %3102
        %3104 = vrot.lane.b32.xlu0 %v2950, 95
        %v3105 = vpop.permute.xlu0 %3104
        %3106 = vrot.lane.b32.xlu0 %v2951, 95
        %v3107 = vpop.permute.xlu0 %3106
        %v3108 = vsel %vm753, %v3097, %v3099
        %v3109 = vsel %vm753, %v3099, %v3101
        %v3110 = vsel %vm753, %v3103, %v3105
        %v3111 = vsel %vm753, %v3105, %v3107
        %3118 = vrot.lane.b32.xlu0 %v2964, 94
        %v3119 = vpop.permute.xlu0 %3118
        %3120 = vrot.lane.b32.xlu0 %v2965, 94
        %v3121 = vpop.permute.xlu0 %3120
        %3122 = vrot.lane.b32.xlu0 %v2966, 94
        %v3123 = vpop.permute.xlu0 %3122
        %3124 = vrot.lane.b32.xlu0 %v2967, 94
        %v3125 = vpop.permute.xlu0 %3124
        %3126 = vrot.lane.b32.xlu0 %v2968, 94
        %v3127 = vpop.permute.xlu0 %3126
        %3128 = vrot.lane.b32.xlu0 %v2969, 94
        %v3129 = vpop.permute.xlu0 %3128
        %v3130 = vsel %vm776, %v3119, %v3121
        %v3131 = vsel %vm776, %v3121, %v3123
        %v3132 = vsel %vm776, %v3125, %v3127
        %v3133 = vsel %vm776, %v3127, %v3129
        %3135 = vset.pattern.permute.xlu0 0
        %3136 = vperm.xlu0 %3135, %v2918
        %v3137 = vpop.permute.xlu0 %3136
        %3140 = vset.pattern.permute.xlu0 0
        %3141 = vperm.xlu0 %3140, %v2919
        %v3142 = vpop.permute.xlu0 %3141
        %3145 = vset.pattern.permute.xlu0 0
        %3146 = vperm.xlu0 %3145, %v2920
        %v3147 = vpop.permute.xlu0 %3146
        %3150 = vset.pattern.permute.xlu0 0
        %3151 = vperm.xlu0 %3150, %v2921
        %v3152 = vpop.permute.xlu0 %3151
        %v3162 = vunpack.c.l.b16 %v2909
        %v3163 = vunpack.c.h.b16 %v2909
        %v3164 = vunpack.c.l.b16 %v2910
        %v3165 = vunpack.c.l.b16 %v2911
        %v3166 = vunpack.c.h.b16 %v2911
        %v3167 = vunpack.c.l.b16 %v2912
        %v3168 = vunpack.c.l.b16 %v2913
        %v3169 = vunpack.c.h.b16 %v2913
        %v3170 = vunpack.c.l.b16 %v2914
        %v3171 = vunpack.c.l.b16 %v2915
        %v3172 = vunpack.c.h.b16 %v2915
        %v3173 = vunpack.c.l.b16 %v2916
        %v3174 = vpack.c.b16 %v3165, %v3162
        %v3175 = vpack.c.b16 %v3166, %v3163
        %v3176 = vpack.c.b16 %v3167, %v3164
        %v3177 = vpack.c.b16 %v3171, %v3168
        %v3178 = vpack.c.b16 %v3172, %v3169
        %v3179 = vpack.c.b16 %v3173, %v3170
        %3190 = vrot.lane.b32.xlu0 %v2928, 17
        %v3191 = vpop.permute.xlu0 %3190
        %3192 = vrot.lane.b32.xlu0 %v2929, 17
        %v3193 = vpop.permute.xlu0 %3192
        %3194 = vrot.lane.b32.xlu0 %v2930, 17
        %v3195 = vpop.permute.xlu0 %3194
        %3196 = vrot.lane.b32.xlu0 %v2931, 17
        %v3197 = vpop.permute.xlu0 %3196
        %3198 = vrot.lane.b32.xlu0 %v2932, 17
        %v3199 = vpop.permute.xlu0 %3198
        %3200 = vrot.lane.b32.xlu0 %v2933, 17
        %v3201 = vpop.permute.xlu0 %3200
        %3202 = vrot.lane.b32.xlu0 %v2988, 17
        %v3203 = vpop.permute.xlu0 %3202
        %3204 = vrot.lane.b32.xlu0 %v2989, 17
        %v3205 = vpop.permute.xlu0 %3204
        %3206 = vrot.lane.b32.xlu0 %v2981, 17
        %v3207 = vpop.permute.xlu0 %3206
        %3208 = vrot.lane.b32.xlu0 %v2990, 17
        %v3209 = vpop.permute.xlu0 %3208
        %3210 = vrot.lane.b32.xlu0 %v2991, 17
        %v3211 = vpop.permute.xlu0 %3210
        %3212 = vrot.lane.b32.xlu0 %v2987, 17
        %v3213 = vpop.permute.xlu0 %3212
        %3214 = vrot.lane.b32.xlu0 %v3010, 17
        %v3215 = vpop.permute.xlu0 %3214
        %3216 = vrot.lane.b32.xlu0 %v3011, 17
        %v3217 = vpop.permute.xlu0 %3216
        %3218 = vrot.lane.b32.xlu0 %v3003, 17
        %v3219 = vpop.permute.xlu0 %3218
        %3220 = vrot.lane.b32.xlu0 %v3012, 17
        %v3221 = vpop.permute.xlu0 %3220
        %3222 = vrot.lane.b32.xlu0 %v3013, 17
        %v3223 = vpop.permute.xlu0 %3222
        %3224 = vrot.lane.b32.xlu0 %v3009, 17
        %v3225 = vpop.permute.xlu0 %3224
        %3226 = vrot.lane.b32.xlu0 %v3032, 17
        %v3227 = vpop.permute.xlu0 %3226
        %3228 = vrot.lane.b32.xlu0 %v3033, 17
        %v3229 = vpop.permute.xlu0 %3228
        %3230 = vrot.lane.b32.xlu0 %v3025, 17
        %v3231 = vpop.permute.xlu0 %3230
        %3232 = vrot.lane.b32.xlu0 %v3034, 17
        %v3233 = vpop.permute.xlu0 %3232
        %3234 = vrot.lane.b32.xlu0 %v3035, 17
        %v3235 = vpop.permute.xlu0 %3234
        %3236 = vrot.lane.b32.xlu0 %v3031, 17
        %v3237 = vpop.permute.xlu0 %3236
        %3238 = vrot.lane.b32.xlu0 %v3037, 17
        %v3239 = vpop.permute.xlu0 %3238
        %3240 = vrot.lane.b32.xlu0 %v3044, 17
        %v3241 = vpop.permute.xlu0 %3240
        %3242 = vrot.lane.b32.xlu0 %v3039, 17
        %v3243 = vpop.permute.xlu0 %3242
        %3244 = vrot.lane.b32.xlu0 %v3041, 17
        %v3245 = vpop.permute.xlu0 %3244
        %3246 = vrot.lane.b32.xlu0 %v3045, 17
        %v3247 = vpop.permute.xlu0 %3246
        %3248 = vrot.lane.b32.xlu0 %v3043, 17
        %v3249 = vpop.permute.xlu0 %3248
        %3250 = vrot.lane.b32.xlu0 %v3053, 17
        %v3251 = vpop.permute.xlu0 %3250
        %3252 = vrot.lane.b32.xlu0 %v3064, 17
        %v3253 = vpop.permute.xlu0 %3252
        %3254 = vrot.lane.b32.xlu0 %v3065, 17
        %v3255 = vpop.permute.xlu0 %3254
        %3256 = vrot.lane.b32.xlu0 %v3059, 17
        %v3257 = vpop.permute.xlu0 %3256
        %3258 = vrot.lane.b32.xlu0 %v3066, 17
        %v3259 = vpop.permute.xlu0 %3258
        %3260 = vrot.lane.b32.xlu0 %v3067, 17
        %v3261 = vpop.permute.xlu0 %3260
        %3262 = vrot.lane.b32.xlu0 %v3075, 17
        %v3263 = vpop.permute.xlu0 %3262
        %3264 = vrot.lane.b32.xlu0 %v3086, 17
        %v3265 = vpop.permute.xlu0 %3264
        %3266 = vrot.lane.b32.xlu0 %v3087, 17
        %v3267 = vpop.permute.xlu0 %3266
        %3268 = vrot.lane.b32.xlu0 %v3081, 17
        %v3269 = vpop.permute.xlu0 %3268
        %3270 = vrot.lane.b32.xlu0 %v3088, 17
        %v3271 = vpop.permute.xlu0 %3270
        %3272 = vrot.lane.b32.xlu0 %v3089, 17
        %v3273 = vpop.permute.xlu0 %3272
        %3274 = vrot.lane.b32.xlu0 %v3097, 17
        %v3275 = vpop.permute.xlu0 %3274
        %3276 = vrot.lane.b32.xlu0 %v3108, 17
        %v3277 = vpop.permute.xlu0 %3276
        %3278 = vrot.lane.b32.xlu0 %v3109, 17
        %v3279 = vpop.permute.xlu0 %3278
        %3280 = vrot.lane.b32.xlu0 %v3103, 17
        %v3281 = vpop.permute.xlu0 %3280
        %3282 = vrot.lane.b32.xlu0 %v3110, 17
        %v3283 = vpop.permute.xlu0 %3282
        %3284 = vrot.lane.b32.xlu0 %v3111, 17
        %v3285 = vpop.permute.xlu0 %3284
        %3286 = vrot.lane.b32.xlu0 %v3119, 17
        %v3287 = vpop.permute.xlu0 %3286
        %3288 = vrot.lane.b32.xlu0 %v3130, 17
        %v3289 = vpop.permute.xlu0 %3288
        %3290 = vrot.lane.b32.xlu0 %v3131, 17
        %v3291 = vpop.permute.xlu0 %3290
        %3292 = vrot.lane.b32.xlu0 %v3125, 17
        %v3293 = vpop.permute.xlu0 %3292
        %3294 = vrot.lane.b32.xlu0 %v3132, 17
        %v3295 = vpop.permute.xlu0 %3294
        %3296 = vrot.lane.b32.xlu0 %v3133, 17
        %v3297 = vpop.permute.xlu0 %3296
        %v3298 = vsel %vm600, %v3191, %v3193
        %v3299 = vsel %vm600, %v3193, %v3195
        %v3300 = vsel %vm600, %v3197, %v3199
        %v3301 = vsel %vm600, %v3199, %v3201
        %v3302 = vsel %vm600, %v3203, %v3205
        %v3303 = vsel %vm600, %v3205, %v3207
        %v3304 = vsel %vm600, %v3209, %v3211
        %v3305 = vsel %vm600, %v3211, %v3213
        %v3306 = vsel %vm600, %v3215, %v3217
        %v3307 = vsel %vm600, %v3217, %v3219
        %v3308 = vsel %vm600, %v3221, %v3223
        %v3309 = vsel %vm600, %v3223, %v3225
        %v3310 = vsel %vm600, %v3227, %v3229
        %v3311 = vsel %vm600, %v3229, %v3231
        %v3312 = vsel %vm600, %v3233, %v3235
        %v3313 = vsel %vm600, %v3235, %v3237
        %v3314 = vsel %vm600, %v3239, %v3241
        %v3315 = vsel %vm600, %v3241, %v3243
        %v3316 = vsel %vm600, %v3245, %v3247
        %v3317 = vsel %vm600, %v3247, %v3249
        %v3318 = vsel %vm600, %v3251, %v3253
        %v3319 = vsel %vm600, %v3253, %v3255
        %v3320 = vsel %vm600, %v3257, %v3259
        %v3321 = vsel %vm600, %v3259, %v3261
        %v3322 = vsel %vm600, %v3263, %v3265
        %v3323 = vsel %vm600, %v3265, %v3267
        %v3324 = vsel %vm600, %v3269, %v3271
        %v3325 = vsel %vm600, %v3271, %v3273
        %v3326 = vsel %vm600, %v3275, %v3277
        %v3327 = vsel %vm600, %v3277, %v3279
        %v3328 = vsel %vm600, %v3281, %v3283
        %v3329 = vsel %vm600, %v3283, %v3285
        %v3330 = vsel %vm600, %v3287, %v3289
        %v3331 = vsel %vm600, %v3289, %v3291
        %v3332 = vsel %vm600, %v3293, %v3295
        %v3333 = vsel %vm600, %v3295, %v3297
        %v3371 = vsel %vm1017, %v3176, 0
        %v3374 = vsel %vm1017, %v3179, 0
        %3376 = vmatprep.subr.bf16.mxu0 %v3299
        %3377 = vmatpush1.bf16.msra.mxu0 %v3298
        %3378 = vmatprep.subr.bf16.mxu0 %v3301
        %3379 = vmatpush1.bf16.msra.mxu0 %v3300
        %3380 = vmatprep.subr.bf16.mxu0 %v3303
        %3381 = vmatpush1.bf16.msra.mxu0 %v3302
        %3382 = vmatprep.subr.bf16.mxu0 %v3305
        %3383 = vmatpush1.bf16.msra.mxu0 %v3304
        %3384 = vmatprep.subr.bf16.mxu0 %v3307
        %3385 = vmatpush1.bf16.msra.mxu0 %v3306
        %3386 = vmatprep.subr.bf16.mxu0 %v3309
        %3387 = vmatpush1.bf16.msra.mxu0 %v3308
        %3388 = vmatprep.subr.bf16.mxu0 %v3311
        %3389 = vmatpush1.bf16.msra.mxu0 %v3310
        %3390 = vmatprep.subr.bf16.mxu0 %v3313
        %3391 = vmatpush1.bf16.msra.mxu0 %v3312
        %3392 = vmatprep.subr.bf16.mxu0 %v3315
        %3393 = vmatpush1.bf16.msra.mxu0 %v3314
        %3394 = vmatprep.subr.bf16.mxu0 %v3317
        %3395 = vmatpush1.bf16.msra.mxu0 %v3316
        %3396 = vmatprep.subr.bf16.mxu0 %v3319
        %3397 = vmatpush1.bf16.msra.mxu0 %v3318
        %3398 = vmatprep.subr.bf16.mxu0 %v3321
        %3399 = vmatpush1.bf16.msra.mxu0 %v3320
        %3400 = vmatprep.subr.bf16.mxu0 %v3323
        %3401 = vmatpush1.bf16.msra.mxu0 %v3322
        %3402 = vmatprep.subr.bf16.mxu0 %v3325
        %3403 = vmatpush1.bf16.msra.mxu0 %v3324
        %3404 = vmatprep.subr.bf16.mxu0 %v3327
        %3405 = vmatpush1.bf16.msra.mxu0 %v3326
        %3406 = vmatprep.subr.bf16.mxu0 %v3329
        %3407 = vmatpush1.bf16.msra.mxu0 %v3328
        %3408 = vmatprep.mubr.bf16.mxu0 %v3175
        %3409 = vmatmul.mubr.bf16.gmra.mrb[0].mxu0 %v3174
        %v3410 = vpop.f32.mrb[0].mxu0
        %v3411 = vadd.f32 %v3137, %v3410
        %v3412 = vpop.f32.mrb[0].mxu0
        %v3413 = vadd.f32 %v3137, %v3412
        %v3414 = vpop.f32.mrb[0].mxu0
        %v3415 = vadd.f32 %v3142, %v3414
        %v3416 = vpop.f32.mrb[0].mxu0
        %v3417 = vadd.f32 %v3142, %v3416
        %3418 = vmatprep.mubr.bf16.mxu0 %v3178
        %3419 = vmatmul.mubr.bf16.gmra.mrb[0].mxu0 %v3177
        %v3420 = vpop.f32.mrb[0].mxu0
        %v3421 = vadd.f32 %v3147, %v3420
        %v3422 = vpop.f32.mrb[0].mxu0
        %v3423 = vadd.f32 %v3147, %v3422
        %v3424 = vpop.f32.mrb[0].mxu0
        %v3425 = vadd.f32 %v3152, %v3424
        %v3426 = vpop.f32.mrb[0].mxu0
        %v3427 = vadd.f32 %v3152, %v3426
        %3428 = vdwg.mxu0
        %3429 = vmatprep.subr.bf16.mxu0 %v3331
        %3430 = vmatpush1.bf16.msra.mxu0 %v3330
        %3431 = vmatprep.subr.bf16.mxu0 %v3333
        %3432 = vmatpush1.bf16.msra.mxu0 %v3332
        %3433 = vmatprep.subr.bf16.mxu0 0
        %3434 = vmatpush1.bf16.msra.mxu0 0
        %3435 = vmatprep.subr.bf16.mxu0 0
        %3436 = vmatpush1.bf16.msra.mxu0 0
        %3437 = vmatprep.subr.bf16.mxu0 0
        %3438 = vmatpush1.bf16.msra.mxu0 0
        %3439 = vmatprep.subr.bf16.mxu0 0
        %3440 = vmatpush1.bf16.msra.mxu0 0
        %3441 = vmatprep.subr.bf16.mxu0 0
        %3442 = vmatpush1.bf16.msra.mxu0 0
        %3443 = vmatprep.subr.bf16.mxu0 0
        %3444 = vmatpush1.bf16.msra.mxu0 0
        %3445 = vmatprep.subr.bf16.mxu0 0
        %3446 = vmatpush1.bf16.msra.mxu0 0
        %3447 = vmatprep.subr.bf16.mxu0 0
        %3448 = vmatpush1.bf16.msra.mxu0 0
        %3449 = vmatprep.subr.bf16.mxu0 0
        %3450 = vmatpush1.bf16.msra.mxu0 0
        %3451 = vmatprep.subr.bf16.mxu0 0
        %3452 = vmatpush1.bf16.msra.mxu0 0
        %3453 = vmatprep.subr.bf16.mxu0 0
        %3454 = vmatpush1.bf16.msra.mxu0 0
        %3455 = vmatprep.subr.bf16.mxu0 0
        %3456 = vmatpush1.bf16.msra.mxu0 0
        %3457 = vmatprep.subr.bf16.mxu0 0
        %3458 = vmatpush1.bf16.msra.mxu0 0
        %3459 = vmatprep.subr.bf16.mxu0 0
        %3460 = vmatpush1.bf16.msra.mxu0 0
        %3461 = vmatprep.mubr.bf16.mxu0 0
        %3462 = vmatmul.mubr.bf16.gmra.mrb[0].mxu0 %v3371
        %v3463 = vpop.f32.mrb[0].mxu0
        %v3464 = vadd.f32 %v3411, %v3463
        %v3465 = vpop.f32.mrb[0].mxu0
        %v3466 = vadd.f32 %v3413, %v3465
        %v3467 = vpop.f32.mrb[0].mxu0
        %v3468 = vadd.f32 %v3415, %v3467
        %v3469 = vpop.f32.mrb[0].mxu0
        %v3470 = vadd.f32 %v3417, %v3469
        %3471 = vmatprep.mubr.bf16.mxu0 0
        %3472 = vmatmul.mubr.bf16.gmra.mrb[0].mxu0 %v3374
        %v3473 = vpop.f32.mrb[0].mxu0
        %v3474 = vadd.f32 %v3421, %v3473
        %v3475 = vpop.f32.mrb[0].mxu0
        %v3476 = vadd.f32 %v3423, %v3475
        %v3477 = vpop.f32.mrb[0].mxu0
        %v3478 = vadd.f32 %v3425, %v3477
        %v3479 = vpop.f32.mrb[0].mxu0
        %v3480 = vadd.f32 %v3427, %v3479
        %3481 = vdwg.mxu0
        %v3482 = vpack.c.bf16 %v3468, %v3464
        %v3483 = vpack.c.bf16 %v3470, %v3466
        %v3484 = vpack.c.bf16 %v3478, %v3474
        %v3485 = vpack.c.bf16 %v3480, %v3476
        %3486 = vst [vmem:[#allocation2 + $0x8] sm:$0xff] %v3482
        %3487 = vst [vmem:[#allocation2 + $0x10] sm:$0xff] %v3483
        %3488 = vst [vmem:[#allocation2 + $0x28] sm:$0xff] %v3484
        %3489 = vst [vmem:[#allocation2 + $0x30] sm:$0xff] %v3485
        %s3490 = scalar_lea.vmem [#allocation10], 240
        %v3491 = vld [vmem:[%s3490] sm:$0xff]
        %v3492 = vld [vmem:[%s3490 + $0x8] sm:$0xf]
        %v3493 = vld [vmem:[%s3490 + $0xc] sm:$0xff]
        %v3494 = vld [vmem:[%s3490 + $0x14] sm:$0xf]
        %v3495 = vld [vmem:[%s3490 + $0x18] sm:$0xff]
        %v3496 = vld [vmem:[%s3490 + $0x20] sm:$0xf]
        %v3497 = vld [vmem:[%s3490 + $0x24] sm:$0xff]
        %v3498 = vld [vmem:[%s3490 + $0x2c] sm:$0xf]
        %s3499 = scalar_lea.vmem [#allocation12], 160
        %v3500 = vld [vmem:[%s3499] sm:$0xff]
        %v3501 = vld [vmem:[%s3499 + $0x8] sm:$0xff]
        %v3502 = vld [vmem:[%s3499 + $0x10] sm:$0xff]
        %v3503 = vld [vmem:[%s3499 + $0x18] sm:$0xff]
        %v3504 = vld [vmem:[#allocation2] sm:$0xff]
        %v3505 = vld [vmem:[#allocation2 + $0x8] sm:$0xff]
        %v3506 = vld [vmem:[#allocation2 + $0x10] sm:$0xff]
        %v3507 = vld [vmem:[#allocation2 + $0x20] sm:$0xff]
        %v3508 = vld [vmem:[#allocation2 + $0x28] sm:$0xff]
        %v3509 = vld [vmem:[#allocation2 + $0x30] sm:$0xff]
        %v3510 = vmul.bf16 %v3504, %v477
        %v3511 = vmul.bf16 %v3505, %v481
        %v3512 = vmul.bf16 %v3506, %v479
        %v3513 = vmul.bf16 %v3507, %v477
        %v3514 = vmul.bf16 %v3508, %v481
        %v3515 = vmul.bf16 %v3509, %v479
        %v3516 = vmul.bf16 %v3504, %v531
        %v3517 = vmul.bf16 %v3505, %v535
        %v3518 = vmul.bf16 %v3506, %v533
        %v3519 = vmul.bf16 %v3507, %v531
        %v3520 = vmul.bf16 %v3508, %v535
        %v3521 = vmul.bf16 %v3509, %v533
        %v3522 = vmul.bf16 %v3504, %v546
        %v3523 = vmul.bf16 %v3505, %v550
        %v3524 = vmul.bf16 %v3506, %v548
        %v3525 = vmul.bf16 %v3507, %v546
        %v3526 = vmul.bf16 %v3508, %v550
        %v3527 = vmul.bf16 %v3509, %v548
        %v3528 = vld [vmem:[#allocation2 + $0x8] sm:$0xff]
        %v3529 = vld [vmem:[#allocation2 + $0x10] sm:$0xff]
        %v3530 = vld [vmem:[#allocation2 + $0x18] sm:$0xff]
        %v3531 = vld [vmem:[#allocation2 + $0x28] sm:$0xff]
        %v3532 = vld [vmem:[#allocation2 + $0x30] sm:$0xff]
        %v3533 = vld [vmem:[#allocation2 + $0x38] sm:$0xff]
        %v3534 = vmul.bf16 %v3528, %v567
        %v3535 = vmul.bf16 %v3529, %v571
        %v3536 = vmul.bf16 %v3530, %v569
        %v3537 = vmul.bf16 %v3531, %v567
        %v3538 = vmul.bf16 %v3532, %v571
        %v3539 = vmul.bf16 %v3533, %v569
        %v3540 = vmul.bf16 %v3528, %v582
        %v3541 = vmul.bf16 %v3529, %v586
        %v3542 = vmul.bf16 %v3530, %v584
        %v3543 = vmul.bf16 %v3531, %v582
        %v3544 = vmul.bf16 %v3532, %v586
        %v3545 = vmul.bf16 %v3533, %v584
        %v3546 = vmul.bf16 %v3528, %v597
        %v3547 = vmul.bf16 %v3529, %v601
        %v3548 = vmul.bf16 %v3530, %v599
        %v3549 = vmul.bf16 %v3531, %v597
        %v3550 = vmul.bf16 %v3532, %v601
        %v3551 = vmul.bf16 %v3533, %v599
        %3558 = vrot.lane.b32.xlu0 %v3504, 127
        %v3559 = vpop.permute.xlu0 %3558
        %3560 = vrot.lane.b32.xlu0 %v3505, 127
        %v3561 = vpop.permute.xlu0 %3560
        %3562 = vrot.lane.b32.xlu0 %v3506, 127
        %v3563 = vpop.permute.xlu0 %3562
        %3564 = vrot.lane.b32.xlu0 %v3507, 127
        %v3565 = vpop.permute.xlu0 %3564
        %3566 = vrot.lane.b32.xlu0 %v3508, 127
        %v3567 = vpop.permute.xlu0 %3566
        %3568 = vrot.lane.b32.xlu0 %v3509, 127
        %v3569 = vpop.permute.xlu0 %3568
        %v3570 = vsel %vm549, %v3559, %v3561
        %v3571 = vsel %vm549, %v3561, %v3563
        %v3572 = vsel %vm549, %v3565, %v3567
        %v3573 = vsel %vm549, %v3567, %v3569
        %3580 = vrot.lane.b32.xlu0 %v3516, 126
        %v3581 = vpop.permute.xlu0 %3580
        %3582 = vrot.lane.b32.xlu0 %v3517, 126
        %v3583 = vpop.permute.xlu0 %3582
        %3584 = vrot.lane.b32.xlu0 %v3518, 126
        %v3585 = vpop.permute.xlu0 %3584
        %3586 = vrot.lane.b32.xlu0 %v3519, 126
        %v3587 = vpop.permute.xlu0 %3586
        %3588 = vrot.lane.b32.xlu0 %v3520, 126
        %v3589 = vpop.permute.xlu0 %3588
        %3590 = vrot.lane.b32.xlu0 %v3521, 126
        %v3591 = vpop.permute.xlu0 %3590
        %v3592 = vsel %vm651, %v3581, %v3583
        %v3593 = vsel %vm651, %v3583, %v3585
        %v3594 = vsel %vm651, %v3587, %v3589
        %v3595 = vsel %vm651, %v3589, %v3591
        %3602 = vrot.lane.b32.xlu0 %v3522, 112
        %v3603 = vpop.permute.xlu0 %3602
        %3604 = vrot.lane.b32.xlu0 %v3523, 112
        %v3605 = vpop.permute.xlu0 %3604
        %3606 = vrot.lane.b32.xlu0 %v3524, 112
        %v3607 = vpop.permute.xlu0 %3606
        %3608 = vrot.lane.b32.xlu0 %v3525, 112
        %v3609 = vpop.permute.xlu0 %3608
        %3610 = vrot.lane.b32.xlu0 %v3526, 112
        %v3611 = vpop.permute.xlu0 %3610
        %3612 = vrot.lane.b32.xlu0 %v3527, 112
        %v3613 = vpop.permute.xlu0 %3612
        %v3614 = vsel %vm674, %v3603, %v3605
        %v3615 = vsel %vm674, %v3605, %v3607
        %v3616 = vsel %vm674, %v3609, %v3611
        %v3617 = vsel %vm674, %v3611, %v3613
        %3618 = vrot.lane.b32.xlu0 %v3505, 111
        %v3619 = vpop.permute.xlu0 %3618
        %3620 = vrot.lane.b32.xlu0 %v3506, 111
        %v3621 = vpop.permute.xlu0 %3620
        %3622 = vrot.lane.b32.xlu0 %v3508, 111
        %v3623 = vpop.permute.xlu0 %3622
        %3624 = vrot.lane.b32.xlu0 %v3509, 111
        %v3625 = vpop.permute.xlu0 %3624
        %v3626 = vsel %vm480, %v3619, %v3621
        %v3627 = vsel %vm480, %v3623, %v3625
        %3634 = vrot.lane.b32.xlu0 %v3534, 110
        %v3635 = vpop.permute.xlu0 %3634
        %3636 = vrot.lane.b32.xlu0 %v3535, 110
        %v3637 = vpop.permute.xlu0 %3636
        %3638 = vrot.lane.b32.xlu0 %v3536, 110
        %v3639 = vpop.permute.xlu0 %3638
        %3640 = vrot.lane.b32.xlu0 %v3537, 110
        %v3641 = vpop.permute.xlu0 %3640
        %3642 = vrot.lane.b32.xlu0 %v3538, 110
        %v3643 = vpop.permute.xlu0 %3642
        %3644 = vrot.lane.b32.xlu0 %v3539, 110
        %v3645 = vpop.permute.xlu0 %3644
        %v3646 = vsel %vm707, %v3635, %v3637
        %v3647 = vsel %vm707, %v3637, %v3639
        %v3648 = vsel %vm707, %v3641, %v3643
        %v3649 = vsel %vm707, %v3643, %v3645
        %3656 = vrot.lane.b32.xlu0 %v3540, 96
        %v3657 = vpop.permute.xlu0 %3656
        %3658 = vrot.lane.b32.xlu0 %v3541, 96
        %v3659 = vpop.permute.xlu0 %3658
        %3660 = vrot.lane.b32.xlu0 %v3542, 96
        %v3661 = vpop.permute.xlu0 %3660
        %3662 = vrot.lane.b32.xlu0 %v3543, 96
        %v3663 = vpop.permute.xlu0 %3662
        %3664 = vrot.lane.b32.xlu0 %v3544, 96
        %v3665 = vpop.permute.xlu0 %3664
        %3666 = vrot.lane.b32.xlu0 %v3545, 96
        %v3667 = vpop.permute.xlu0 %3666
        %v3668 = vsel %vm730, %v3657, %v3659
        %v3669 = vsel %vm730, %v3659, %v3661
        %v3670 = vsel %vm730, %v3663, %v3665
        %v3671 = vsel %vm730, %v3665, %v3667
        %3678 = vrot.lane.b32.xlu0 %v3528, 95
        %v3679 = vpop.permute.xlu0 %3678
        %3680 = vrot.lane.b32.xlu0 %v3529, 95
        %v3681 = vpop.permute.xlu0 %3680
        %3682 = vrot.lane.b32.xlu0 %v3530, 95
        %v3683 = vpop.permute.xlu0 %3682
        %3684 = vrot.lane.b32.xlu0 %v3531, 95
        %v3685 = vpop.permute.xlu0 %3684
        %3686 = vrot.lane.b32.xlu0 %v3532, 95
        %v3687 = vpop.permute.xlu0 %3686
        %3688 = vrot.lane.b32.xlu0 %v3533, 95
        %v3689 = vpop.permute.xlu0 %3688
        %v3690 = vsel %vm753, %v3679, %v3681
        %v3691 = vsel %vm753, %v3681, %v3683
        %v3692 = vsel %vm753, %v3685, %v3687
        %v3693 = vsel %vm753, %v3687, %v3689
        %3700 = vrot.lane.b32.xlu0 %v3546, 94
        %v3701 = vpop.permute.xlu0 %3700
        %3702 = vrot.lane.b32.xlu0 %v3547, 94
        %v3703 = vpop.permute.xlu0 %3702
        %3704 = vrot.lane.b32.xlu0 %v3548, 94
        %v3705 = vpop.permute.xlu0 %3704
        %3706 = vrot.lane.b32.xlu0 %v3549, 94
        %v3707 = vpop.permute.xlu0 %3706
        %3708 = vrot.lane.b32.xlu0 %v3550, 94
        %v3709 = vpop.permute.xlu0 %3708
        %3710 = vrot.lane.b32.xlu0 %v3551, 94
        %v3711 = vpop.permute.xlu0 %3710
        %v3712 = vsel %vm776, %v3701, %v3703
        %v3713 = vsel %vm776, %v3703, %v3705
        %v3714 = vsel %vm776, %v3707, %v3709
        %v3715 = vsel %vm776, %v3709, %v3711
        %3717 = vset.pattern.permute.xlu0 0
        %3718 = vperm.xlu0 %3717, %v3500
        %v3719 = vpop.permute.xlu0 %3718
        %3722 = vset.pattern.permute.xlu0 0
        %3723 = vperm.xlu0 %3722, %v3501
        %v3724 = vpop.permute.xlu0 %3723
        %3727 = vset.pattern.permute.xlu0 0
        %3728 = vperm.xlu0 %3727, %v3502
        %v3729 = vpop.permute.xlu0 %3728
        %3732 = vset.pattern.permute.xlu0 0
        %3733 = vperm.xlu0 %3732, %v3503
        %v3734 = vpop.permute.xlu0 %3733
        %v3744 = vunpack.c.l.b16 %v3491
        %v3745 = vunpack.c.h.b16 %v3491
        %v3746 = vunpack.c.l.b16 %v3492
        %v3747 = vunpack.c.l.b16 %v3493
        %v3748 = vunpack.c.h.b16 %v3493
        %v3749 = vunpack.c.l.b16 %v3494
        %v3750 = vunpack.c.l.b16 %v3495
        %v3751 = vunpack.c.h.b16 %v3495
        %v3752 = vunpack.c.l.b16 %v3496
        %v3753 = vunpack.c.l.b16 %v3497
        %v3754 = vunpack.c.h.b16 %v3497
        %v3755 = vunpack.c.l.b16 %v3498
        %v3756 = vpack.c.b16 %v3747, %v3744
        %v3757 = vpack.c.b16 %v3748, %v3745
        %v3758 = vpack.c.b16 %v3749, %v3746
        %v3759 = vpack.c.b16 %v3753, %v3750
        %v3760 = vpack.c.b16 %v3754, %v3751
        %v3761 = vpack.c.b16 %v3755, %v3752
        %3772 = vrot.lane.b32.xlu0 %v3510, 17
        %v3773 = vpop.permute.xlu0 %3772
        %3774 = vrot.lane.b32.xlu0 %v3511, 17
        %v3775 = vpop.permute.xlu0 %3774
        %3776 = vrot.lane.b32.xlu0 %v3512, 17
        %v3777 = vpop.permute.xlu0 %3776
        %3778 = vrot.lane.b32.xlu0 %v3513, 17
        %v3779 = vpop.permute.xlu0 %3778
        %3780 = vrot.lane.b32.xlu0 %v3514, 17
        %v3781 = vpop.permute.xlu0 %3780
        %3782 = vrot.lane.b32.xlu0 %v3515, 17
        %v3783 = vpop.permute.xlu0 %3782
        %3784 = vrot.lane.b32.xlu0 %v3570, 17
        %v3785 = vpop.permute.xlu0 %3784
        %3786 = vrot.lane.b32.xlu0 %v3571, 17
        %v3787 = vpop.permute.xlu0 %3786
        %3788 = vrot.lane.b32.xlu0 %v3563, 17
        %v3789 = vpop.permute.xlu0 %3788
        %3790 = vrot.lane.b32.xlu0 %v3572, 17
        %v3791 = vpop.permute.xlu0 %3790
        %3792 = vrot.lane.b32.xlu0 %v3573, 17
        %v3793 = vpop.permute.xlu0 %3792
        %3794 = vrot.lane.b32.xlu0 %v3569, 17
        %v3795 = vpop.permute.xlu0 %3794
        %3796 = vrot.lane.b32.xlu0 %v3592, 17
        %v3797 = vpop.permute.xlu0 %3796
        %3798 = vrot.lane.b32.xlu0 %v3593, 17
        %v3799 = vpop.permute.xlu0 %3798
        %3800 = vrot.lane.b32.xlu0 %v3585, 17
        %v3801 = vpop.permute.xlu0 %3800
        %3802 = vrot.lane.b32.xlu0 %v3594, 17
        %v3803 = vpop.permute.xlu0 %3802
        %3804 = vrot.lane.b32.xlu0 %v3595, 17
        %v3805 = vpop.permute.xlu0 %3804
        %3806 = vrot.lane.b32.xlu0 %v3591, 17
        %v3807 = vpop.permute.xlu0 %3806
        %3808 = vrot.lane.b32.xlu0 %v3614, 17
        %v3809 = vpop.permute.xlu0 %3808
        %3810 = vrot.lane.b32.xlu0 %v3615, 17
        %v3811 = vpop.permute.xlu0 %3810
        %3812 = vrot.lane.b32.xlu0 %v3607, 17
        %v3813 = vpop.permute.xlu0 %3812
        %3814 = vrot.lane.b32.xlu0 %v3616, 17
        %v3815 = vpop.permute.xlu0 %3814
        %3816 = vrot.lane.b32.xlu0 %v3617, 17
        %v3817 = vpop.permute.xlu0 %3816
        %3818 = vrot.lane.b32.xlu0 %v3613, 17
        %v3819 = vpop.permute.xlu0 %3818
        %3820 = vrot.lane.b32.xlu0 %v3619, 17
        %v3821 = vpop.permute.xlu0 %3820
        %3822 = vrot.lane.b32.xlu0 %v3626, 17
        %v3823 = vpop.permute.xlu0 %3822
        %3824 = vrot.lane.b32.xlu0 %v3621, 17
        %v3825 = vpop.permute.xlu0 %3824
        %3826 = vrot.lane.b32.xlu0 %v3623, 17
        %v3827 = vpop.permute.xlu0 %3826
        %3828 = vrot.lane.b32.xlu0 %v3627, 17
        %v3829 = vpop.permute.xlu0 %3828
        %3830 = vrot.lane.b32.xlu0 %v3625, 17
        %v3831 = vpop.permute.xlu0 %3830
        %3832 = vrot.lane.b32.xlu0 %v3635, 17
        %v3833 = vpop.permute.xlu0 %3832
        %3834 = vrot.lane.b32.xlu0 %v3646, 17
        %v3835 = vpop.permute.xlu0 %3834
        %3836 = vrot.lane.b32.xlu0 %v3647, 17
        %v3837 = vpop.permute.xlu0 %3836
        %3838 = vrot.lane.b32.xlu0 %v3641, 17
        %v3839 = vpop.permute.xlu0 %3838
        %3840 = vrot.lane.b32.xlu0 %v3648, 17
        %v3841 = vpop.permute.xlu0 %3840
        %3842 = vrot.lane.b32.xlu0 %v3649, 17
        %v3843 = vpop.permute.xlu0 %3842
        %3844 = vrot.lane.b32.xlu0 %v3657, 17
        %v3845 = vpop.permute.xlu0 %3844
        %3846 = vrot.lane.b32.xlu0 %v3668, 17
        %v3847 = vpop.permute.xlu0 %3846
        %3848 = vrot.lane.b32.xlu0 %v3669, 17
        %v3849 = vpop.permute.xlu0 %3848
        %3850 = vrot.lane.b32.xlu0 %v3663, 17
        %v3851 = vpop.permute.xlu0 %3850
        %3852 = vrot.lane.b32.xlu0 %v3670, 17
        %v3853 = vpop.permute.xlu0 %3852
        %3854 = vrot.lane.b32.xlu0 %v3671, 17
        %v3855 = vpop.permute.xlu0 %3854
        %3856 = vrot.lane.b32.xlu0 %v3679, 17
        %v3857 = vpop.permute.xlu0 %3856
        %3858 = vrot.lane.b32.xlu0 %v3690, 17
        %v3859 = vpop.permute.xlu0 %3858
        %3860 = vrot.lane.b32.xlu0 %v3691, 17
        %v3861 = vpop.permute.xlu0 %3860
        %3862 = vrot.lane.b32.xlu0 %v3685, 17
        %v3863 = vpop.permute.xlu0 %3862
        %3864 = vrot.lane.b32.xlu0 %v3692, 17
        %v3865 = vpop.permute.xlu0 %3864
        %3866 = vrot.lane.b32.xlu0 %v3693, 17
        %v3867 = vpop.permute.xlu0 %3866
        %3868 = vrot.lane.b32.xlu0 %v3701, 17
        %v3869 = vpop.permute.xlu0 %3868
        %3870 = vrot.lane.b32.xlu0 %v3712, 17
        %v3871 = vpop.permute.xlu0 %3870
        %3872 = vrot.lane.b32.xlu0 %v3713, 17
        %v3873 = vpop.permute.xlu0 %3872
        %3874 = vrot.lane.b32.xlu0 %v3707, 17
        %v3875 = vpop.permute.xlu0 %3874
        %3876 = vrot.lane.b32.xlu0 %v3714, 17
        %v3877 = vpop.permute.xlu0 %3876
        %3878 = vrot.lane.b32.xlu0 %v3715, 17
        %v3879 = vpop.permute.xlu0 %3878
        %v3880 = vsel %vm600, %v3773, %v3775
        %v3881 = vsel %vm600, %v3775, %v3777
        %v3882 = vsel %vm600, %v3779, %v3781
        %v3883 = vsel %vm600, %v3781, %v3783
        %v3884 = vsel %vm600, %v3785, %v3787
        %v3885 = vsel %vm600, %v3787, %v3789
        %v3886 = vsel %vm600, %v3791, %v3793
        %v3887 = vsel %vm600, %v3793, %v3795
        %v3888 = vsel %vm600, %v3797, %v3799
        %v3889 = vsel %vm600, %v3799, %v3801
        %v3890 = vsel %vm600, %v3803, %v3805
        %v3891 = vsel %vm600, %v3805, %v3807
        %v3892 = vsel %vm600, %v3809, %v3811
        %v3893 = vsel %vm600, %v3811, %v3813
        %v3894 = vsel %vm600, %v3815, %v3817
        %v3895 = vsel %vm600, %v3817, %v3819
        %v3896 = vsel %vm600, %v3821, %v3823
        %v3897 = vsel %vm600, %v3823, %v3825
        %v3898 = vsel %vm600, %v3827, %v3829
        %v3899 = vsel %vm600, %v3829, %v3831
        %v3900 = vsel %vm600, %v3833, %v3835
        %v3901 = vsel %vm600, %v3835, %v3837
        %v3902 = vsel %vm600, %v3839, %v3841
        %v3903 = vsel %vm600, %v3841, %v3843
        %v3904 = vsel %vm600, %v3845, %v3847
        %v3905 = vsel %vm600, %v3847, %v3849
        %v3906 = vsel %vm600, %v3851, %v3853
        %v3907 = vsel %vm600, %v3853, %v3855
        %v3908 = vsel %vm600, %v3857, %v3859
        %v3909 = vsel %vm600, %v3859, %v3861
        %v3910 = vsel %vm600, %v3863, %v3865
        %v3911 = vsel %vm600, %v3865, %v3867
        %v3912 = vsel %vm600, %v3869, %v3871
        %v3913 = vsel %vm600, %v3871, %v3873
        %v3914 = vsel %vm600, %v3875, %v3877
        %v3915 = vsel %vm600, %v3877, %v3879
        %v3953 = vsel %vm1017, %v3758, 0
        %v3956 = vsel %vm1017, %v3761, 0
        %3958 = vmatprep.subr.bf16.mxu0 %v3881
        %3959 = vmatpush1.bf16.msra.mxu0 %v3880
        %3960 = vmatprep.subr.bf16.mxu0 %v3883
        %3961 = vmatpush1.bf16.msra.mxu0 %v3882
        %3962 = vmatprep.subr.bf16.mxu0 %v3885
        %3963 = vmatpush1.bf16.msra.mxu0 %v3884
        %3964 = vmatprep.subr.bf16.mxu0 %v3887
        %3965 = vmatpush1.bf16.msra.mxu0 %v3886
        %3966 = vmatprep.subr.bf16.mxu0 %v3889
        %3967 = vmatpush1.bf16.msra.mxu0 %v3888
        %3968 = vmatprep.subr.bf16.mxu0 %v3891
        %3969 = vmatpush1.bf16.msra.mxu0 %v3890
        %3970 = vmatprep.subr.bf16.mxu0 %v3893
        %3971 = vmatpush1.bf16.msra.mxu0 %v3892
        %3972 = vmatprep.subr.bf16.mxu0 %v3895
        %3973 = vmatpush1.bf16.msra.mxu0 %v3894
        %3974 = vmatprep.subr.bf16.mxu0 %v3897
        %3975 = vmatpush1.bf16.msra.mxu0 %v3896
        %3976 = vmatprep.subr.bf16.mxu0 %v3899
        %3977 = vmatpush1.bf16.msra.mxu0 %v3898
        %3978 = vmatprep.subr.bf16.mxu0 %v3901
        %3979 = vmatpush1.bf16.msra.mxu0 %v3900
        %3980 = vmatprep.subr.bf16.mxu0 %v3903
        %3981 = vmatpush1.bf16.msra.mxu0 %v3902
        %3982 = vmatprep.subr.bf16.mxu0 %v3905
        %3983 = vmatpush1.bf16.msra.mxu0 %v3904
        %3984 = vmatprep.subr.bf16.mxu0 %v3907
        %3985 = vmatpush1.bf16.msra.mxu0 %v3906
        %3986 = vmatprep.subr.bf16.mxu0 %v3909
        %3987 = vmatpush1.bf16.msra.mxu0 %v3908
        %3988 = vmatprep.subr.bf16.mxu0 %v3911
        %3989 = vmatpush1.bf16.msra.mxu0 %v3910
        %3990 = vmatprep.mubr.bf16.mxu0 %v3757
        %3991 = vmatmul.mubr.bf16.gmra.mrb[0].mxu0 %v3756
        %v3992 = vpop.f32.mrb[0].mxu0
        %v3993 = vadd.f32 %v3719, %v3992
        %v3994 = vpop.f32.mrb[0].mxu0
        %v3995 = vadd.f32 %v3719, %v3994
        %v3996 = vpop.f32.mrb[0].mxu0
        %v3997 = vadd.f32 %v3724, %v3996
        %v3998 = vpop.f32.mrb[0].mxu0
        %v3999 = vadd.f32 %v3724, %v3998
        %4000 = vmatprep.mubr.bf16.mxu0 %v3760
        %4001 = vmatmul.mubr.bf16.gmra.mrb[0].mxu0 %v3759
        %v4002 = vpop.f32.mrb[0].mxu0
        %v4003 = vadd.f32 %v3729, %v4002
        %v4004 = vpop.f32.mrb[0].mxu0
        %v4005 = vadd.f32 %v3729, %v4004
        %v4006 = vpop.f32.mrb[0].mxu0
        %v4007 = vadd.f32 %v3734, %v4006
        %v4008 = vpop.f32.mrb[0].mxu0
        %v4009 = vadd.f32 %v3734, %v4008
        %4010 = vdwg.mxu0
        %4011 = vmatprep.subr.bf16.mxu0 %v3913
        %4012 = vmatpush1.bf16.msra.mxu0 %v3912
        %4013 = vmatprep.subr.bf16.mxu0 %v3915
        %4014 = vmatpush1.bf16.msra.mxu0 %v3914
        %4015 = vmatprep.subr.bf16.mxu0 0
        %4016 = vmatpush1.bf16.msra.mxu0 0
        %4017 = vmatprep.subr.bf16.mxu0 0
        %4018 = vmatpush1.bf16.msra.mxu0 0
        %4019 = vmatprep.subr.bf16.mxu0 0
        %4020 = vmatpush1.bf16.msra.mxu0 0
        %4021 = vmatprep.subr.bf16.mxu0 0
        %4022 = vmatpush1.bf16.msra.mxu0 0
        %4023 = vmatprep.subr.bf16.mxu0 0
        %4024 = vmatpush1.bf16.msra.mxu0 0
        %4025 = vmatprep.subr.bf16.mxu0 0
        %4026 = vmatpush1.bf16.msra.mxu0 0
        %4027 = vmatprep.subr.bf16.mxu0 0
        %4028 = vmatpush1.bf16.msra.mxu0 0
        %4029 = vmatprep.subr.bf16.mxu0 0
        %4030 = vmatpush1.bf16.msra.mxu0 0
        %4031 = vmatprep.subr.bf16.mxu0 0
        %4032 = vmatpush1.bf16.msra.mxu0 0
        %4033 = vmatprep.subr.bf16.mxu0 0
        %4034 = vmatpush1.bf16.msra.mxu0 0
        %4035 = vmatprep.subr.bf16.mxu0 0
        %4036 = vmatpush1.bf16.msra.mxu0 0
        %4037 = vmatprep.subr.bf16.mxu0 0
        %4038 = vmatpush1.bf16.msra.mxu0 0
        %4039 = vmatprep.subr.bf16.mxu0 0
        %4040 = vmatpush1.bf16.msra.mxu0 0
        %4041 = vmatprep.subr.bf16.mxu0 0
        %4042 = vmatpush1.bf16.msra.mxu0 0
        %4043 = vmatprep.mubr.bf16.mxu0 0
        %4044 = vmatmul.mubr.bf16.gmra.mrb[0].mxu0 %v3953
        %v4045 = vpop.f32.mrb[0].mxu0
        %v4046 = vadd.f32 %v3993, %v4045
        %v4047 = vpop.f32.mrb[0].mxu0
        %v4048 = vadd.f32 %v3995, %v4047
        %v4049 = vpop.f32.mrb[0].mxu0
        %v4050 = vadd.f32 %v3997, %v4049
        %v4051 = vpop.f32.mrb[0].mxu0
        %v4052 = vadd.f32 %v3999, %v4051
        %4053 = vmatprep.mubr.bf16.mxu0 0
        %4054 = vmatmul.mubr.bf16.gmra.mrb[0].mxu0 %v3956
        %v4055 = vpop.f32.mrb[0].mxu0
        %v4056 = vadd.f32 %v4003, %v4055
        %v4057 = vpop.f32.mrb[0].mxu0
        %v4058 = vadd.f32 %v4005, %v4057
        %v4059 = vpop.f32.mrb[0].mxu0
        %v4060 = vadd.f32 %v4007, %v4059
        %v4061 = vpop.f32.mrb[0].mxu0
        %v4062 = vadd.f32 %v4009, %v4061
        %4063 = vdwg.mxu0
        %v4064 = vmax.f32 %v4046, 0.0
        %v4065 = vmax.f32 %v4048, 0.0
        %v4066 = vmax.f32 %v4050, 0.0
        %v4067 = vmax.f32 %v4052, 0.0
        %v4068 = vmax.f32 %v4056, 0.0
        %v4069 = vmax.f32 %v4058, 0.0
        %v4070 = vmax.f32 %v4060, 0.0
        %v4071 = vmax.f32 %v4062, 0.0
        %v4072 = vpack.c.bf16 %v4066, %v4064
        %v4073 = vpack.c.bf16 %v4067, %v4065
        %v4074 = vpack.c.bf16 %v4070, %v4068
        %v4075 = vpack.c.bf16 %v4071, %v4069
        %4076 = vst [vmem:[#allocation2 + $0x8] sm:$0xff] %v4072
        %4077 = vst [vmem:[#allocation2 + $0x10] sm:$0xff] %v4073
        %4078 = vst [vmem:[#allocation2 + $0x28] sm:$0xff] %v4074
        %4079 = vst [vmem:[#allocation2 + $0x30] sm:$0xff] %v4075
        %s4080 = scalar_lea.vmem [#allocation10], 288
        %v4081 = vld [vmem:[%s4080] sm:$0xff]
        %v4082 = vld [vmem:[%s4080 + $0x8] sm:$0xf]
        %v4083 = vld [vmem:[%s4080 + $0xc] sm:$0xff]
        %v4084 = vld [vmem:[%s4080 + $0x14] sm:$0xf]
        %v4085 = vld [vmem:[%s4080 + $0x18] sm:$0xff]
        %v4086 = vld [vmem:[%s4080 + $0x20] sm:$0xf]
        %v4087 = vld [vmem:[%s4080 + $0x24] sm:$0xff]
        %v4088 = vld [vmem:[%s4080 + $0x2c] sm:$0xf]
        %s4089 = scalar_lea.vmem [#allocation12], 192
        %v4090 = vld [vmem:[%s4089] sm:$0xff]
        %v4091 = vld [vmem:[%s4089 + $0x8] sm:$0xff]
        %v4092 = vld [vmem:[%s4089 + $0x10] sm:$0xff]
        %v4093 = vld [vmem:[%s4089 + $0x18] sm:$0xff]
        %v4094 = vld [vmem:[#allocation2] sm:$0xff]
        %v4095 = vld [vmem:[#allocation2 + $0x8] sm:$0xff]
        %v4096 = vld [vmem:[#allocation2 + $0x10] sm:$0xff]
        %v4097 = vld [vmem:[#allocation2 + $0x20] sm:$0xff]
        %v4098 = vld [vmem:[#allocation2 + $0x28] sm:$0xff]
        %v4099 = vld [vmem:[#allocation2 + $0x30] sm:$0xff]
        %v4100 = vmul.bf16 %v4094, %v477
        %v4101 = vmul.bf16 %v4095, %v481
        %v4102 = vmul.bf16 %v4096, %v479
        %v4103 = vmul.bf16 %v4097, %v477
        %v4104 = vmul.bf16 %v4098, %v481
        %v4105 = vmul.bf16 %v4099, %v479
        %v4106 = vmul.bf16 %v4094, %v531
        %v4107 = vmul.bf16 %v4095, %v535
        %v4108 = vmul.bf16 %v4096, %v533
        %v4109 = vmul.bf16 %v4097, %v531
        %v4110 = vmul.bf16 %v4098, %v535
        %v4111 = vmul.bf16 %v4099, %v533
        %v4112 = vmul.bf16 %v4094, %v546
        %v4113 = vmul.bf16 %v4095, %v550
        %v4114 = vmul.bf16 %v4096, %v548
        %v4115 = vmul.bf16 %v4097, %v546
        %v4116 = vmul.bf16 %v4098, %v550
        %v4117 = vmul.bf16 %v4099, %v548
        %v4118 = vld [vmem:[#allocation2 + $0x8] sm:$0xff]
        %v4119 = vld [vmem:[#allocation2 + $0x10] sm:$0xff]
        %v4120 = vld [vmem:[#allocation2 + $0x18] sm:$0xff]
        %v4121 = vld [vmem:[#allocation2 + $0x28] sm:$0xff]
        %v4122 = vld [vmem:[#allocation2 + $0x30] sm:$0xff]
        %v4123 = vld [vmem:[#allocation2 + $0x38] sm:$0xff]
        %v4124 = vmul.bf16 %v4118, %v567
        %v4125 = vmul.bf16 %v4119, %v571
        %v4126 = vmul.bf16 %v4120, %v569
        %v4127 = vmul.bf16 %v4121, %v567
        %v4128 = vmul.bf16 %v4122, %v571
        %v4129 = vmul.bf16 %v4123, %v569
        %v4130 = vmul.bf16 %v4118, %v582
        %v4131 = vmul.bf16 %v4119, %v586
        %v4132 = vmul.bf16 %v4120, %v584
        %v4133 = vmul.bf16 %v4121, %v582
        %v4134 = vmul.bf16 %v4122, %v586
        %v4135 = vmul.bf16 %v4123, %v584
        %v4136 = vmul.bf16 %v4118, %v597
        %v4137 = vmul.bf16 %v4119, %v601
        %v4138 = vmul.bf16 %v4120, %v599
        %v4139 = vmul.bf16 %v4121, %v597
        %v4140 = vmul.bf16 %v4122, %v601
        %v4141 = vmul.bf16 %v4123, %v599
        %4148 = vrot.lane.b32.xlu0 %v4094, 127
        %v4149 = vpop.permute.xlu0 %4148
        %4150 = vrot.lane.b32.xlu0 %v4095, 127
        %v4151 = vpop.permute.xlu0 %4150
        %4152 = vrot.lane.b32.xlu0 %v4096, 127
        %v4153 = vpop.permute.xlu0 %4152
        %4154 = vrot.lane.b32.xlu0 %v4097, 127
        %v4155 = vpop.permute.xlu0 %4154
        %4156 = vrot.lane.b32.xlu0 %v4098, 127
        %v4157 = vpop.permute.xlu0 %4156
        %4158 = vrot.lane.b32.xlu0 %v4099, 127
        %v4159 = vpop.permute.xlu0 %4158
        %v4160 = vsel %vm549, %v4149, %v4151
        %v4161 = vsel %vm549, %v4151, %v4153
        %v4162 = vsel %vm549, %v4155, %v4157
        %v4163 = vsel %vm549, %v4157, %v4159
        %4170 = vrot.lane.b32.xlu0 %v4106, 126
        %v4171 = vpop.permute.xlu0 %4170
        %4172 = vrot.lane.b32.xlu0 %v4107, 126
        %v4173 = vpop.permute.xlu0 %4172
        %4174 = vrot.lane.b32.xlu0 %v4108, 126
        %v4175 = vpop.permute.xlu0 %4174
        %4176 = vrot.lane.b32.xlu0 %v4109, 126
        %v4177 = vpop.permute.xlu0 %4176
        %4178 = vrot.lane.b32.xlu0 %v4110, 126
        %v4179 = vpop.permute.xlu0 %4178
        %4180 = vrot.lane.b32.xlu0 %v4111, 126
        %v4181 = vpop.permute.xlu0 %4180
        %v4182 = vsel %vm651, %v4171, %v4173
        %v4183 = vsel %vm651, %v4173, %v4175
        %v4184 = vsel %vm651, %v4177, %v4179
        %v4185 = vsel %vm651, %v4179, %v4181
        %4192 = vrot.lane.b32.xlu0 %v4112, 112
        %v4193 = vpop.permute.xlu0 %4192
        %4194 = vrot.lane.b32.xlu0 %v4113, 112
        %v4195 = vpop.permute.xlu0 %4194
        %4196 = vrot.lane.b32.xlu0 %v4114, 112
        %v4197 = vpop.permute.xlu0 %4196
        %4198 = vrot.lane.b32.xlu0 %v4115, 112
        %v4199 = vpop.permute.xlu0 %4198
        %4200 = vrot.lane.b32.xlu0 %v4116, 112
        %v4201 = vpop.permute.xlu0 %4200
        %4202 = vrot.lane.b32.xlu0 %v4117, 112
        %v4203 = vpop.permute.xlu0 %4202
        %v4204 = vsel %vm674, %v4193, %v4195
        %v4205 = vsel %vm674, %v4195, %v4197
        %v4206 = vsel %vm674, %v4199, %v4201
        %v4207 = vsel %vm674, %v4201, %v4203
        %4208 = vrot.lane.b32.xlu0 %v4095, 111
        %v4209 = vpop.permute.xlu0 %4208
        %4210 = vrot.lane.b32.xlu0 %v4096, 111
        %v4211 = vpop.permute.xlu0 %4210
        %4212 = vrot.lane.b32.xlu0 %v4098, 111
        %v4213 = vpop.permute.xlu0 %4212
        %4214 = vrot.lane.b32.xlu0 %v4099, 111
        %v4215 = vpop.permute.xlu0 %4214
        %v4216 = vsel %vm480, %v4209, %v4211
        %v4217 = vsel %vm480, %v4213, %v4215
        %4224 = vrot.lane.b32.xlu0 %v4124, 110
        %v4225 = vpop.permute.xlu0 %4224
        %4226 = vrot.lane.b32.xlu0 %v4125, 110
        %v4227 = vpop.permute.xlu0 %4226
        %4228 = vrot.lane.b32.xlu0 %v4126, 110
        %v4229 = vpop.permute.xlu0 %4228
        %4230 = vrot.lane.b32.xlu0 %v4127, 110
        %v4231 = vpop.permute.xlu0 %4230
        %4232 = vrot.lane.b32.xlu0 %v4128, 110
        %v4233 = vpop.permute.xlu0 %4232
        %4234 = vrot.lane.b32.xlu0 %v4129, 110
        %v4235 = vpop.permute.xlu0 %4234
        %v4236 = vsel %vm707, %v4225, %v4227
        %v4237 = vsel %vm707, %v4227, %v4229
        %v4238 = vsel %vm707, %v4231, %v4233
        %v4239 = vsel %vm707, %v4233, %v4235
        %4246 = vrot.lane.b32.xlu0 %v4130, 96
        %v4247 = vpop.permute.xlu0 %4246
        %4248 = vrot.lane.b32.xlu0 %v4131, 96
        %v4249 = vpop.permute.xlu0 %4248
        %4250 = vrot.lane.b32.xlu0 %v4132, 96
        %v4251 = vpop.permute.xlu0 %4250
        %4252 = vrot.lane.b32.xlu0 %v4133, 96
        %v4253 = vpop.permute.xlu0 %4252
        %4254 = vrot.lane.b32.xlu0 %v4134, 96
        %v4255 = vpop.permute.xlu0 %4254
        %4256 = vrot.lane.b32.xlu0 %v4135, 96
        %v4257 = vpop.permute.xlu0 %4256
        %v4258 = vsel %vm730, %v4247, %v4249
        %v4259 = vsel %vm730, %v4249, %v4251
        %v4260 = vsel %vm730, %v4253, %v4255
        %v4261 = vsel %vm730, %v4255, %v4257
        %4268 = vrot.lane.b32.xlu0 %v4118, 95
        %v4269 = vpop.permute.xlu0 %4268
        %4270 = vrot.lane.b32.xlu0 %v4119, 95
        %v4271 = vpop.permute.xlu0 %4270
        %4272 = vrot.lane.b32.xlu0 %v4120, 95
        %v4273 = vpop.permute.xlu0 %4272
        %4274 = vrot.lane.b32.xlu0 %v4121, 95
        %v4275 = vpop.permute.xlu0 %4274
        %4276 = vrot.lane.b32.xlu0 %v4122, 95
        %v4277 = vpop.permute.xlu0 %4276
        %4278 = vrot.lane.b32.xlu0 %v4123, 95
        %v4279 = vpop.permute.xlu0 %4278
        %v4280 = vsel %vm753, %v4269, %v4271
        %v4281 = vsel %vm753, %v4271, %v4273
        %v4282 = vsel %vm753, %v4275, %v4277
        %v4283 = vsel %vm753, %v4277, %v4279
        %4290 = vrot.lane.b32.xlu0 %v4136, 94
        %v4291 = vpop.permute.xlu0 %4290
        %4292 = vrot.lane.b32.xlu0 %v4137, 94
        %v4293 = vpop.permute.xlu0 %4292
        %4294 = vrot.lane.b32.xlu0 %v4138, 94
        %v4295 = vpop.permute.xlu0 %4294
        %4296 = vrot.lane.b32.xlu0 %v4139, 94
        %v4297 = vpop.permute.xlu0 %4296
        %4298 = vrot.lane.b32.xlu0 %v4140, 94
        %v4299 = vpop.permute.xlu0 %4298
        %4300 = vrot.lane.b32.xlu0 %v4141, 94
        %v4301 = vpop.permute.xlu0 %4300
        %v4302 = vsel %vm776, %v4291, %v4293
        %v4303 = vsel %vm776, %v4293, %v4295
        %v4304 = vsel %vm776, %v4297, %v4299
        %v4305 = vsel %vm776, %v4299, %v4301
        %4307 = vset.pattern.permute.xlu0 0
        %4308 = vperm.xlu0 %4307, %v4090
        %v4309 = vpop.permute.xlu0 %4308
        %4312 = vset.pattern.permute.xlu0 0
        %4313 = vperm.xlu0 %4312, %v4091
        %v4314 = vpop.permute.xlu0 %4313
        %4317 = vset.pattern.permute.xlu0 0
        %4318 = vperm.xlu0 %4317, %v4092
        %v4319 = vpop.permute.xlu0 %4318
        %4322 = vset.pattern.permute.xlu0 0
        %4323 = vperm.xlu0 %4322, %v4093
        %v4324 = vpop.permute.xlu0 %4323
        %v4334 = vunpack.c.l.b16 %v4081
        %v4335 = vunpack.c.h.b16 %v4081
        %v4336 = vunpack.c.l.b16 %v4082
        %v4337 = vunpack.c.l.b16 %v4083
        %v4338 = vunpack.c.h.b16 %v4083
        %v4339 = vunpack.c.l.b16 %v4084
        %v4340 = vunpack.c.l.b16 %v4085
        %v4341 = vunpack.c.h.b16 %v4085
        %v4342 = vunpack.c.l.b16 %v4086
        %v4343 = vunpack.c.l.b16 %v4087
        %v4344 = vunpack.c.h.b16 %v4087
        %v4345 = vunpack.c.l.b16 %v4088
        %v4346 = vpack.c.b16 %v4337, %v4334
        %v4347 = vpack.c.b16 %v4338, %v4335
        %v4348 = vpack.c.b16 %v4339, %v4336
        %v4349 = vpack.c.b16 %v4343, %v4340
        %v4350 = vpack.c.b16 %v4344, %v4341
        %v4351 = vpack.c.b16 %v4345, %v4342
        %4362 = vrot.lane.b32.xlu0 %v4100, 17
        %v4363 = vpop.permute.xlu0 %4362
        %4364 = vrot.lane.b32.xlu0 %v4101, 17
        %v4365 = vpop.permute.xlu0 %4364
        %4366 = vrot.lane.b32.xlu0 %v4102, 17
        %v4367 = vpop.permute.xlu0 %4366
        %4368 = vrot.lane.b32.xlu0 %v4103, 17
        %v4369 = vpop.permute.xlu0 %4368
        %4370 = vrot.lane.b32.xlu0 %v4104, 17
        %v4371 = vpop.permute.xlu0 %4370
        %4372 = vrot.lane.b32.xlu0 %v4105, 17
        %v4373 = vpop.permute.xlu0 %4372
        %4374 = vrot.lane.b32.xlu0 %v4160, 17
        %v4375 = vpop.permute.xlu0 %4374
        %4376 = vrot.lane.b32.xlu0 %v4161, 17
        %v4377 = vpop.permute.xlu0 %4376
        %4378 = vrot.lane.b32.xlu0 %v4153, 17
        %v4379 = vpop.permute.xlu0 %4378
        %4380 = vrot.lane.b32.xlu0 %v4162, 17
        %v4381 = vpop.permute.xlu0 %4380
        %4382 = vrot.lane.b32.xlu0 %v4163, 17
        %v4383 = vpop.permute.xlu0 %4382
        %4384 = vrot.lane.b32.xlu0 %v4159, 17
        %v4385 = vpop.permute.xlu0 %4384
        %4386 = vrot.lane.b32.xlu0 %v4182, 17
        %v4387 = vpop.permute.xlu0 %4386
        %4388 = vrot.lane.b32.xlu0 %v4183, 17
        %v4389 = vpop.permute.xlu0 %4388
        %4390 = vrot.lane.b32.xlu0 %v4175, 17
        %v4391 = vpop.permute.xlu0 %4390
        %4392 = vrot.lane.b32.xlu0 %v4184, 17
        %v4393 = vpop.permute.xlu0 %4392
        %4394 = vrot.lane.b32.xlu0 %v4185, 17
        %v4395 = vpop.permute.xlu0 %4394
        %4396 = vrot.lane.b32.xlu0 %v4181, 17
        %v4397 = vpop.permute.xlu0 %4396
        %4398 = vrot.lane.b32.xlu0 %v4204, 17
        %v4399 = vpop.permute.xlu0 %4398
        %4400 = vrot.lane.b32.xlu0 %v4205, 17
        %v4401 = vpop.permute.xlu0 %4400
        %4402 = vrot.lane.b32.xlu0 %v4197, 17
        %v4403 = vpop.permute.xlu0 %4402
        %4404 = vrot.lane.b32.xlu0 %v4206, 17
        %v4405 = vpop.permute.xlu0 %4404
        %4406 = vrot.lane.b32.xlu0 %v4207, 17
        %v4407 = vpop.permute.xlu0 %4406
        %4408 = vrot.lane.b32.xlu0 %v4203, 17
        %v4409 = vpop.permute.xlu0 %4408
        %4410 = vrot.lane.b32.xlu0 %v4209, 17
        %v4411 = vpop.permute.xlu0 %4410
        %4412 = vrot.lane.b32.xlu0 %v4216, 17
        %v4413 = vpop.permute.xlu0 %4412
        %4414 = vrot.lane.b32.xlu0 %v4211, 17
        %v4415 = vpop.permute.xlu0 %4414
        %4416 = vrot.lane.b32.xlu0 %v4213, 17
        %v4417 = vpop.permute.xlu0 %4416
        %4418 = vrot.lane.b32.xlu0 %v4217, 17
        %v4419 = vpop.permute.xlu0 %4418
        %4420 = vrot.lane.b32.xlu0 %v4215, 17
        %v4421 = vpop.permute.xlu0 %4420
        %4422 = vrot.lane.b32.xlu0 %v4225, 17
        %v4423 = vpop.permute.xlu0 %4422
        %4424 = vrot.lane.b32.xlu0 %v4236, 17
        %v4425 = vpop.permute.xlu0 %4424
        %4426 = vrot.lane.b32.xlu0 %v4237, 17
        %v4427 = vpop.permute.xlu0 %4426
        %4428 = vrot.lane.b32.xlu0 %v4231, 17
        %v4429 = vpop.permute.xlu0 %4428
        %4430 = vrot.lane.b32.xlu0 %v4238, 17
        %v4431 = vpop.permute.xlu0 %4430
        %4432 = vrot.lane.b32.xlu0 %v4239, 17
        %v4433 = vpop.permute.xlu0 %4432
        %4434 = vrot.lane.b32.xlu0 %v4247, 17
        %v4435 = vpop.permute.xlu0 %4434
        %4436 = vrot.lane.b32.xlu0 %v4258, 17
        %v4437 = vpop.permute.xlu0 %4436
        %4438 = vrot.lane.b32.xlu0 %v4259, 17
        %v4439 = vpop.permute.xlu0 %4438
        %4440 = vrot.lane.b32.xlu0 %v4253, 17
        %v4441 = vpop.permute.xlu0 %4440
        %4442 = vrot.lane.b32.xlu0 %v4260, 17
        %v4443 = vpop.permute.xlu0 %4442
        %4444 = vrot.lane.b32.xlu0 %v4261, 17
        %v4445 = vpop.permute.xlu0 %4444
        %4446 = vrot.lane.b32.xlu0 %v4269, 17
        %v4447 = vpop.permute.xlu0 %4446
        %4448 = vrot.lane.b32.xlu0 %v4280, 17
        %v4449 = vpop.permute.xlu0 %4448
        %4450 = vrot.lane.b32.xlu0 %v4281, 17
        %v4451 = vpop.permute.xlu0 %4450
        %4452 = vrot.lane.b32.xlu0 %v4275, 17
        %v4453 = vpop.permute.xlu0 %4452
        %4454 = vrot.lane.b32.xlu0 %v4282, 17
        %v4455 = vpop.permute.xlu0 %4454
        %4456 = vrot.lane.b32.xlu0 %v4283, 17
        %v4457 = vpop.permute.xlu0 %4456
        %4458 = vrot.lane.b32.xlu0 %v4291, 17
        %v4459 = vpop.permute.xlu0 %4458
        %4460 = vrot.lane.b32.xlu0 %v4302, 17
        %v4461 = vpop.permute.xlu0 %4460
        %4462 = vrot.lane.b32.xlu0 %v4303, 17
        %v4463 = vpop.permute.xlu0 %4462
        %4464 = vrot.lane.b32.xlu0 %v4297, 17
        %v4465 = vpop.permute.xlu0 %4464
        %4466 = vrot.lane.b32.xlu0 %v4304, 17
        %v4467 = vpop.permute.xlu0 %4466
        %4468 = vrot.lane.b32.xlu0 %v4305, 17
        %v4469 = vpop.permute.xlu0 %4468
        %v4470 = vsel %vm600, %v4363, %v4365
        %v4471 = vsel %vm600, %v4365, %v4367
        %v4472 = vsel %vm600, %v4369, %v4371
        %v4473 = vsel %vm600, %v4371, %v4373
        %v4474 = vsel %vm600, %v4375, %v4377
        %v4475 = vsel %vm600, %v4377, %v4379
        %v4476 = vsel %vm600, %v4381, %v4383
        %v4477 = vsel %vm600, %v4383, %v4385
        %v4478 = vsel %vm600, %v4387, %v4389
        %v4479 = vsel %vm600, %v4389, %v4391
        %v4480 = vsel %vm600, %v4393, %v4395
        %v4481 = vsel %vm600, %v4395, %v4397
        %v4482 = vsel %vm600, %v4399, %v4401
        %v4483 = vsel %vm600, %v4401, %v4403
        %v4484 = vsel %vm600, %v4405, %v4407
        %v4485 = vsel %vm600, %v4407, %v4409
        %v4486 = vsel %vm600, %v4411, %v4413
        %v4487 = vsel %vm600, %v4413, %v4415
        %v4488 = vsel %vm600, %v4417, %v4419
        %v4489 = vsel %vm600, %v4419, %v4421
        %v4490 = vsel %vm600, %v4423, %v4425
        %v4491 = vsel %vm600, %v4425, %v4427
        %v4492 = vsel %vm600, %v4429, %v4431
        %v4493 = vsel %vm600, %v4431, %v4433
        %v4494 = vsel %vm600, %v4435, %v4437
        %v4495 = vsel %vm600, %v4437, %v4439
        %v4496 = vsel %vm600, %v4441, %v4443
        %v4497 = vsel %vm600, %v4443, %v4445
        %v4498 = vsel %vm600, %v4447, %v4449
        %v4499 = vsel %vm600, %v4449, %v4451
        %v4500 = vsel %vm600, %v4453, %v4455
        %v4501 = vsel %vm600, %v4455, %v4457
        %v4502 = vsel %vm600, %v4459, %v4461
        %v4503 = vsel %vm600, %v4461, %v4463
        %v4504 = vsel %vm600, %v4465, %v4467
        %v4505 = vsel %vm600, %v4467, %v4469
        %v4543 = vsel %vm1017, %v4348, 0
        %v4546 = vsel %vm1017, %v4351, 0
        %4548 = vmatprep.subr.bf16.mxu0 %v4471
        %4549 = vmatpush1.bf16.msra.mxu0 %v4470
        %4550 = vmatprep.subr.bf16.mxu0 %v4473
        %4551 = vmatpush1.bf16.msra.mxu0 %v4472
        %4552 = vmatprep.subr.bf16.mxu0 %v4475
        %4553 = vmatpush1.bf16.msra.mxu0 %v4474
        %4554 = vmatprep.subr.bf16.mxu0 %v4477
        %4555 = vmatpush1.bf16.msra.mxu0 %v4476
        %4556 = vmatprep.subr.bf16.mxu0 %v4479
        %4557 = vmatpush1.bf16.msra.mxu0 %v4478
        %4558 = vmatprep.subr.bf16.mxu0 %v4481
        %4559 = vmatpush1.bf16.msra.mxu0 %v4480
        %4560 = vmatprep.subr.bf16.mxu0 %v4483
        %4561 = vmatpush1.bf16.msra.mxu0 %v4482
        %4562 = vmatprep.subr.bf16.mxu0 %v4485
        %4563 = vmatpush1.bf16.msra.mxu0 %v4484
        %4564 = vmatprep.subr.bf16.mxu0 %v4487
        %4565 = vmatpush1.bf16.msra.mxu0 %v4486
        %4566 = vmatprep.subr.bf16.mxu0 %v4489
        %4567 = vmatpush1.bf16.msra.mxu0 %v4488
        %4568 = vmatprep.subr.bf16.mxu0 %v4491
        %4569 = vmatpush1.bf16.msra.mxu0 %v4490
        %4570 = vmatprep.subr.bf16.mxu0 %v4493
        %4571 = vmatpush1.bf16.msra.mxu0 %v4492
        %4572 = vmatprep.subr.bf16.mxu0 %v4495
        %4573 = vmatpush1.bf16.msra.mxu0 %v4494
        %4574 = vmatprep.subr.bf16.mxu0 %v4497
        %4575 = vmatpush1.bf16.msra.mxu0 %v4496
        %4576 = vmatprep.subr.bf16.mxu0 %v4499
        %4577 = vmatpush1.bf16.msra.mxu0 %v4498
        %4578 = vmatprep.subr.bf16.mxu0 %v4501
        %4579 = vmatpush1.bf16.msra.mxu0 %v4500
        %4580 = vmatprep.mubr.bf16.mxu0 %v4347
        %4581 = vmatmul.mubr.bf16.gmra.mrb[0].mxu0 %v4346
        %v4582 = vpop.f32.mrb[0].mxu0
        %v4583 = vadd.f32 %v4309, %v4582
        %v4584 = vpop.f32.mrb[0].mxu0
        %v4585 = vadd.f32 %v4309, %v4584
        %v4586 = vpop.f32.mrb[0].mxu0
        %v4587 = vadd.f32 %v4314, %v4586
        %v4588 = vpop.f32.mrb[0].mxu0
        %v4589 = vadd.f32 %v4314, %v4588
        %4590 = vmatprep.mubr.bf16.mxu0 %v4350
        %4591 = vmatmul.mubr.bf16.gmra.mrb[0].mxu0 %v4349
        %v4592 = vpop.f32.mrb[0].mxu0
        %v4593 = vadd.f32 %v4319, %v4592
        %v4594 = vpop.f32.mrb[0].mxu0
        %v4595 = vadd.f32 %v4319, %v4594
        %v4596 = vpop.f32.mrb[0].mxu0
        %v4597 = vadd.f32 %v4324, %v4596
        %v4598 = vpop.f32.mrb[0].mxu0
        %v4599 = vadd.f32 %v4324, %v4598
        %4600 = vdwg.mxu0
        %4601 = vmatprep.subr.bf16.mxu0 %v4503
        %4602 = vmatpush1.bf16.msra.mxu0 %v4502
        %4603 = vmatprep.subr.bf16.mxu0 %v4505
        %4604 = vmatpush1.bf16.msra.mxu0 %v4504
        %4605 = vmatprep.subr.bf16.mxu0 0
        %4606 = vmatpush1.bf16.msra.mxu0 0
        %4607 = vmatprep.subr.bf16.mxu0 0
        %4608 = vmatpush1.bf16.msra.mxu0 0
        %4609 = vmatprep.subr.bf16.mxu0 0
        %4610 = vmatpush1.bf16.msra.mxu0 0
        %4611 = vmatprep.subr.bf16.mxu0 0
        %4612 = vmatpush1.bf16.msra.mxu0 0
        %4613 = vmatprep.subr.bf16.mxu0 0
        %4614 = vmatpush1.bf16.msra.mxu0 0
        %4615 = vmatprep.subr.bf16.mxu0 0
        %4616 = vmatpush1.bf16.msra.mxu0 0
        %4617 = vmatprep.subr.bf16.mxu0 0
        %4618 = vmatpush1.bf16.msra.mxu0 0
        %4619 = vmatprep.subr.bf16.mxu0 0
        %4620 = vmatpush1.bf16.msra.mxu0 0
        %4621 = vmatprep.subr.bf16.mxu0 0
        %4622 = vmatpush1.bf16.msra.mxu0 0
        %4623 = vmatprep.subr.bf16.mxu0 0
        %4624 = vmatpush1.bf16.msra.mxu0 0
        %4625 = vmatprep.subr.bf16.mxu0 0
        %4626 = vmatpush1.bf16.msra.mxu0 0
        %4627 = vmatprep.subr.bf16.mxu0 0
        %4628 = vmatpush1.bf16.msra.mxu0 0
        %4629 = vmatprep.subr.bf16.mxu0 0
        %4630 = vmatpush1.bf16.msra.mxu0 0
        %4631 = vmatprep.subr.bf16.mxu0 0
        %4632 = vmatpush1.bf16.msra.mxu0 0
        %4633 = vmatprep.mubr.bf16.mxu0 0
        %4634 = vmatmul.mubr.bf16.gmra.mrb[0].mxu0 %v4543
        %v4635 = vpop.f32.mrb[0].mxu0
        %v4636 = vadd.f32 %v4583, %v4635
        %v4637 = vpop.f32.mrb[0].mxu0
        %v4638 = vadd.f32 %v4585, %v4637
        %v4639 = vpop.f32.mrb[0].mxu0
        %v4640 = vadd.f32 %v4587, %v4639
        %v4641 = vpop.f32.mrb[0].mxu0
        %v4642 = vadd.f32 %v4589, %v4641
        %4643 = vmatprep.mubr.bf16.mxu0 0
        %4644 = vmatmul.mubr.bf16.gmra.mrb[0].mxu0 %v4546
        %v4645 = vpop.f32.mrb[0].mxu0
        %v4646 = vadd.f32 %v4593, %v4645
        %v4647 = vpop.f32.mrb[0].mxu0
        %v4648 = vadd.f32 %v4595, %v4647
        %v4649 = vpop.f32.mrb[0].mxu0
        %v4650 = vadd.f32 %v4597, %v4649
        %v4651 = vpop.f32.mrb[0].mxu0
        %v4652 = vadd.f32 %v4599, %v4651
        %4653 = vdwg.mxu0
        %v4654 = vpack.c.bf16 %v4640, %v4636
        %v4655 = vpack.c.bf16 %v4642, %v4638
        %v4656 = vpack.c.bf16 %v4650, %v4646
        %v4657 = vpack.c.bf16 %v4652, %v4648
        %4658 = vst [vmem:[#allocation2 + $0x8] sm:$0xff] %v4654
        %4659 = vst [vmem:[#allocation2 + $0x10] sm:$0xff] %v4655
        %4660 = vst [vmem:[#allocation2 + $0x28] sm:$0xff] %v4656
        %4661 = vst [vmem:[#allocation2 + $0x30] sm:$0xff] %v4657
        %s4662 = scalar_lea.vmem [#allocation10], 336
        %v4663 = vld [vmem:[%s4662] sm:$0xff]
        %v4664 = vld [vmem:[%s4662 + $0x8] sm:$0xf]
        %v4665 = vld [vmem:[%s4662 + $0xc] sm:$0xff]
        %v4666 = vld [vmem:[%s4662 + $0x14] sm:$0xf]
        %v4667 = vld [vmem:[%s4662 + $0x18] sm:$0xff]
        %v4668 = vld [vmem:[%s4662 + $0x20] sm:$0xf]
        %v4669 = vld [vmem:[%s4662 + $0x24] sm:$0xff]
        %v4670 = vld [vmem:[%s4662 + $0x2c] sm:$0xf]
        %s4671 = scalar_lea.vmem [#allocation12], 224
        %v4672 = vld [vmem:[%s4671] sm:$0xff]
        %v4673 = vld [vmem:[%s4671 + $0x8] sm:$0xff]
        %v4674 = vld [vmem:[%s4671 + $0x10] sm:$0xff]
        %v4675 = vld [vmem:[%s4671 + $0x18] sm:$0xff]
        %v4676 = vld [vmem:[#allocation2] sm:$0xff]
        %v4677 = vld [vmem:[#allocation2 + $0x8] sm:$0xff]
        %v4678 = vld [vmem:[#allocation2 + $0x10] sm:$0xff]
        %v4679 = vld [vmem:[#allocation2 + $0x20] sm:$0xff]
        %v4680 = vld [vmem:[#allocation2 + $0x28] sm:$0xff]
        %v4681 = vld [vmem:[#allocation2 + $0x30] sm:$0xff]
        %v4682 = vmul.bf16 %v4676, %v477
        %v4683 = vmul.bf16 %v4677, %v481
        %v4684 = vmul.bf16 %v4678, %v479
        %v4685 = vmul.bf16 %v4679, %v477
        %v4686 = vmul.bf16 %v4680, %v481
        %v4687 = vmul.bf16 %v4681, %v479
        %v4688 = vmul.bf16 %v4676, %v531
        %v4689 = vmul.bf16 %v4677, %v535
        %v4690 = vmul.bf16 %v4678, %v533
        %v4691 = vmul.bf16 %v4679, %v531
        %v4692 = vmul.bf16 %v4680, %v535
        %v4693 = vmul.bf16 %v4681, %v533
        %v4694 = vmul.bf16 %v4676, %v546
        %v4695 = vmul.bf16 %v4677, %v550
        %v4696 = vmul.bf16 %v4678, %v548
        %v4697 = vmul.bf16 %v4679, %v546
        %v4698 = vmul.bf16 %v4680, %v550
        %v4699 = vmul.bf16 %v4681, %v548
        %v4700 = vld [vmem:[#allocation2 + $0x8] sm:$0xff]
        %v4701 = vld [vmem:[#allocation2 + $0x10] sm:$0xff]
        %v4702 = vld [vmem:[#allocation2 + $0x18] sm:$0xff]
        %v4703 = vld [vmem:[#allocation2 + $0x28] sm:$0xff]
        %v4704 = vld [vmem:[#allocation2 + $0x30] sm:$0xff]
        %v4705 = vld [vmem:[#allocation2 + $0x38] sm:$0xff]
        %v4706 = vmul.bf16 %v4700, %v567
        %v4707 = vmul.bf16 %v4701, %v571
        %v4708 = vmul.bf16 %v4702, %v569
        %v4709 = vmul.bf16 %v4703, %v567
        %v4710 = vmul.bf16 %v4704, %v571
        %v4711 = vmul.bf16 %v4705, %v569
        %v4712 = vmul.bf16 %v4700, %v582
        %v4713 = vmul.bf16 %v4701, %v586
        %v4714 = vmul.bf16 %v4702, %v584
        %v4715 = vmul.bf16 %v4703, %v582
        %v4716 = vmul.bf16 %v4704, %v586
        %v4717 = vmul.bf16 %v4705, %v584
        %v4718 = vmul.bf16 %v4700, %v597
        %v4719 = vmul.bf16 %v4701, %v601
        %v4720 = vmul.bf16 %v4702, %v599
        %v4721 = vmul.bf16 %v4703, %v597
        %v4722 = vmul.bf16 %v4704, %v601
        %v4723 = vmul.bf16 %v4705, %v599
        %4730 = vrot.lane.b32.xlu0 %v4676, 127
        %v4731 = vpop.permute.xlu0 %4730
        %4732 = vrot.lane.b32.xlu0 %v4677, 127
        %v4733 = vpop.permute.xlu0 %4732
        %4734 = vrot.lane.b32.xlu0 %v4678, 127
        %v4735 = vpop.permute.xlu0 %4734
        %4736 = vrot.lane.b32.xlu0 %v4679, 127
        %v4737 = vpop.permute.xlu0 %4736
        %4738 = vrot.lane.b32.xlu0 %v4680, 127
        %v4739 = vpop.permute.xlu0 %4738
        %4740 = vrot.lane.b32.xlu0 %v4681, 127
        %v4741 = vpop.permute.xlu0 %4740
        %v4742 = vsel %vm549, %v4731, %v4733
        %v4743 = vsel %vm549, %v4733, %v4735
        %v4744 = vsel %vm549, %v4737, %v4739
        %v4745 = vsel %vm549, %v4739, %v4741
        %4752 = vrot.lane.b32.xlu0 %v4688, 126
        %v4753 = vpop.permute.xlu0 %4752
        %4754 = vrot.lane.b32.xlu0 %v4689, 126
        %v4755 = vpop.permute.xlu0 %4754
        %4756 = vrot.lane.b32.xlu0 %v4690, 126
        %v4757 = vpop.permute.xlu0 %4756
        %4758 = vrot.lane.b32.xlu0 %v4691, 126
        %v4759 = vpop.permute.xlu0 %4758
        %4760 = vrot.lane.b32.xlu0 %v4692, 126
        %v4761 = vpop.permute.xlu0 %4760
        %4762 = vrot.lane.b32.xlu0 %v4693, 126
        %v4763 = vpop.permute.xlu0 %4762
        %v4764 = vsel %vm651, %v4753, %v4755
        %v4765 = vsel %vm651, %v4755, %v4757
        %v4766 = vsel %vm651, %v4759, %v4761
        %v4767 = vsel %vm651, %v4761, %v4763
        %4774 = vrot.lane.b32.xlu0 %v4694, 112
        %v4775 = vpop.permute.xlu0 %4774
        %4776 = vrot.lane.b32.xlu0 %v4695, 112
        %v4777 = vpop.permute.xlu0 %4776
        %4778 = vrot.lane.b32.xlu0 %v4696, 112
        %v4779 = vpop.permute.xlu0 %4778
        %4780 = vrot.lane.b32.xlu0 %v4697, 112
        %v4781 = vpop.permute.xlu0 %4780
        %4782 = vrot.lane.b32.xlu0 %v4698, 112
        %v4783 = vpop.permute.xlu0 %4782
        %4784 = vrot.lane.b32.xlu0 %v4699, 112
        %v4785 = vpop.permute.xlu0 %4784
        %v4786 = vsel %vm674, %v4775, %v4777
        %v4787 = vsel %vm674, %v4777, %v4779
        %v4788 = vsel %vm674, %v4781, %v4783
        %v4789 = vsel %vm674, %v4783, %v4785
        %4790 = vrot.lane.b32.xlu0 %v4677, 111
        %v4791 = vpop.permute.xlu0 %4790
        %4792 = vrot.lane.b32.xlu0 %v4678, 111
        %v4793 = vpop.permute.xlu0 %4792
        %4794 = vrot.lane.b32.xlu0 %v4680, 111
        %v4795 = vpop.permute.xlu0 %4794
        %4796 = vrot.lane.b32.xlu0 %v4681, 111
        %v4797 = vpop.permute.xlu0 %4796
        %v4798 = vsel %vm480, %v4791, %v4793
        %v4799 = vsel %vm480, %v4795, %v4797
        %4806 = vrot.lane.b32.xlu0 %v4706, 110
        %v4807 = vpop.permute.xlu0 %4806
        %4808 = vrot.lane.b32.xlu0 %v4707, 110
        %v4809 = vpop.permute.xlu0 %4808
        %4810 = vrot.lane.b32.xlu0 %v4708, 110
        %v4811 = vpop.permute.xlu0 %4810
        %4812 = vrot.lane.b32.xlu0 %v4709, 110
        %v4813 = vpop.permute.xlu0 %4812
        %4814 = vrot.lane.b32.xlu0 %v4710, 110
        %v4815 = vpop.permute.xlu0 %4814
        %4816 = vrot.lane.b32.xlu0 %v4711, 110
        %v4817 = vpop.permute.xlu0 %4816
        %v4818 = vsel %vm707, %v4807, %v4809
        %v4819 = vsel %vm707, %v4809, %v4811
        %v4820 = vsel %vm707, %v4813, %v4815
        %v4821 = vsel %vm707, %v4815, %v4817
        %4828 = vrot.lane.b32.xlu0 %v4712, 96
        %v4829 = vpop.permute.xlu0 %4828
        %4830 = vrot.lane.b32.xlu0 %v4713, 96
        %v4831 = vpop.permute.xlu0 %4830
        %4832 = vrot.lane.b32.xlu0 %v4714, 96
        %v4833 = vpop.permute.xlu0 %4832
        %4834 = vrot.lane.b32.xlu0 %v4715, 96
        %v4835 = vpop.permute.xlu0 %4834
        %4836 = vrot.lane.b32.xlu0 %v4716, 96
        %v4837 = vpop.permute.xlu0 %4836
        %4838 = vrot.lane.b32.xlu0 %v4717, 96
        %v4839 = vpop.permute.xlu0 %4838
        %v4840 = vsel %vm730, %v4829, %v4831
        %v4841 = vsel %vm730, %v4831, %v4833
        %v4842 = vsel %vm730, %v4835, %v4837
        %v4843 = vsel %vm730, %v4837, %v4839
        %4850 = vrot.lane.b32.xlu0 %v4700, 95
        %v4851 = vpop.permute.xlu0 %4850
        %4852 = vrot.lane.b32.xlu0 %v4701, 95
        %v4853 = vpop.permute.xlu0 %4852
        %4854 = vrot.lane.b32.xlu0 %v4702, 95
        %v4855 = vpop.permute.xlu0 %4854
        %4856 = vrot.lane.b32.xlu0 %v4703, 95
        %v4857 = vpop.permute.xlu0 %4856
        %4858 = vrot.lane.b32.xlu0 %v4704, 95
        %v4859 = vpop.permute.xlu0 %4858
        %4860 = vrot.lane.b32.xlu0 %v4705, 95
        %v4861 = vpop.permute.xlu0 %4860
        %v4862 = vsel %vm753, %v4851, %v4853
        %v4863 = vsel %vm753, %v4853, %v4855
        %v4864 = vsel %vm753, %v4857, %v4859
        %v4865 = vsel %vm753, %v4859, %v4861
        %4872 = vrot.lane.b32.xlu0 %v4718, 94
        %v4873 = vpop.permute.xlu0 %4872
        %4874 = vrot.lane.b32.xlu0 %v4719, 94
        %v4875 = vpop.permute.xlu0 %4874
        %4876 = vrot.lane.b32.xlu0 %v4720, 94
        %v4877 = vpop.permute.xlu0 %4876
        %4878 = vrot.lane.b32.xlu0 %v4721, 94
        %v4879 = vpop.permute.xlu0 %4878
        %4880 = vrot.lane.b32.xlu0 %v4722, 94
        %v4881 = vpop.permute.xlu0 %4880
        %4882 = vrot.lane.b32.xlu0 %v4723, 94
        %v4883 = vpop.permute.xlu0 %4882
        %v4884 = vsel %vm776, %v4873, %v4875
        %v4885 = vsel %vm776, %v4875, %v4877
        %v4886 = vsel %vm776, %v4879, %v4881
        %v4887 = vsel %vm776, %v4881, %v4883
        %4889 = vset.pattern.permute.xlu0 0
        %4890 = vperm.xlu0 %4889, %v4672
        %v4891 = vpop.permute.xlu0 %4890
        %4894 = vset.pattern.permute.xlu0 0
        %4895 = vperm.xlu0 %4894, %v4673
        %v4896 = vpop.permute.xlu0 %4895
        %4899 = vset.pattern.permute.xlu0 0
        %4900 = vperm.xlu0 %4899, %v4674
        %v4901 = vpop.permute.xlu0 %4900
        %4904 = vset.pattern.permute.xlu0 0
        %4905 = vperm.xlu0 %4904, %v4675
        %v4906 = vpop.permute.xlu0 %4905
        %v4916 = vunpack.c.l.b16 %v4663
        %v4917 = vunpack.c.h.b16 %v4663
        %v4918 = vunpack.c.l.b16 %v4664
        %v4919 = vunpack.c.l.b16 %v4665
        %v4920 = vunpack.c.h.b16 %v4665
        %v4921 = vunpack.c.l.b16 %v4666
        %v4922 = vunpack.c.l.b16 %v4667
        %v4923 = vunpack.c.h.b16 %v4667
        %v4924 = vunpack.c.l.b16 %v4668
        %v4925 = vunpack.c.l.b16 %v4669
        %v4926 = vunpack.c.h.b16 %v4669
        %v4927 = vunpack.c.l.b16 %v4670
        %v4928 = vpack.c.b16 %v4919, %v4916
        %v4929 = vpack.c.b16 %v4920, %v4917
        %v4930 = vpack.c.b16 %v4921, %v4918
        %v4931 = vpack.c.b16 %v4925, %v4922
        %v4932 = vpack.c.b16 %v4926, %v4923
        %v4933 = vpack.c.b16 %v4927, %v4924
        %4944 = vrot.lane.b32.xlu0 %v4682, 17
        %v4945 = vpop.permute.xlu0 %4944
        %4946 = vrot.lane.b32.xlu0 %v4683, 17
        %v4947 = vpop.permute.xlu0 %4946
        %4948 = vrot.lane.b32.xlu0 %v4684, 17
        %v4949 = vpop.permute.xlu0 %4948
        %4950 = vrot.lane.b32.xlu0 %v4685, 17
        %v4951 = vpop.permute.xlu0 %4950
        %4952 = vrot.lane.b32.xlu0 %v4686, 17
        %v4953 = vpop.permute.xlu0 %4952
        %4954 = vrot.lane.b32.xlu0 %v4687, 17
        %v4955 = vpop.permute.xlu0 %4954
        %4956 = vrot.lane.b32.xlu0 %v4742, 17
        %v4957 = vpop.permute.xlu0 %4956
        %4958 = vrot.lane.b32.xlu0 %v4743, 17
        %v4959 = vpop.permute.xlu0 %4958
        %4960 = vrot.lane.b32.xlu0 %v4735, 17
        %v4961 = vpop.permute.xlu0 %4960
        %4962 = vrot.lane.b32.xlu0 %v4744, 17
        %v4963 = vpop.permute.xlu0 %4962
        %4964 = vrot.lane.b32.xlu0 %v4745, 17
        %v4965 = vpop.permute.xlu0 %4964
        %4966 = vrot.lane.b32.xlu0 %v4741, 17
        %v4967 = vpop.permute.xlu0 %4966
        %4968 = vrot.lane.b32.xlu0 %v4764, 17
        %v4969 = vpop.permute.xlu0 %4968
        %4970 = vrot.lane.b32.xlu0 %v4765, 17
        %v4971 = vpop.permute.xlu0 %4970
        %4972 = vrot.lane.b32.xlu0 %v4757, 17
        %v4973 = vpop.permute.xlu0 %4972
        %4974 = vrot.lane.b32.xlu0 %v4766, 17
        %v4975 = vpop.permute.xlu0 %4974
        %4976 = vrot.lane.b32.xlu0 %v4767, 17
        %v4977 = vpop.permute.xlu0 %4976
        %4978 = vrot.lane.b32.xlu0 %v4763, 17
        %v4979 = vpop.permute.xlu0 %4978
        %4980 = vrot.lane.b32.xlu0 %v4786, 17
        %v4981 = vpop.permute.xlu0 %4980
        %4982 = vrot.lane.b32.xlu0 %v4787, 17
        %v4983 = vpop.permute.xlu0 %4982
        %4984 = vrot.lane.b32.xlu0 %v4779, 17
        %v4985 = vpop.permute.xlu0 %4984
        %4986 = vrot.lane.b32.xlu0 %v4788, 17
        %v4987 = vpop.permute.xlu0 %4986
        %4988 = vrot.lane.b32.xlu0 %v4789, 17
        %v4989 = vpop.permute.xlu0 %4988
        %4990 = vrot.lane.b32.xlu0 %v4785, 17
        %v4991 = vpop.permute.xlu0 %4990
        %4992 = vrot.lane.b32.xlu0 %v4791, 17
        %v4993 = vpop.permute.xlu0 %4992
        %4994 = vrot.lane.b32.xlu0 %v4798, 17
        %v4995 = vpop.permute.xlu0 %4994
        %4996 = vrot.lane.b32.xlu0 %v4793, 17
        %v4997 = vpop.permute.xlu0 %4996
        %4998 = vrot.lane.b32.xlu0 %v4795, 17
        %v4999 = vpop.permute.xlu0 %4998
        %5000 = vrot.lane.b32.xlu0 %v4799, 17
        %v5001 = vpop.permute.xlu0 %5000
        %5002 = vrot.lane.b32.xlu0 %v4797, 17
        %v5003 = vpop.permute.xlu0 %5002
        %5004 = vrot.lane.b32.xlu0 %v4807, 17
        %v5005 = vpop.permute.xlu0 %5004
        %5006 = vrot.lane.b32.xlu0 %v4818, 17
        %v5007 = vpop.permute.xlu0 %5006
        %5008 = vrot.lane.b32.xlu0 %v4819, 17
        %v5009 = vpop.permute.xlu0 %5008
        %5010 = vrot.lane.b32.xlu0 %v4813, 17
        %v5011 = vpop.permute.xlu0 %5010
        %5012 = vrot.lane.b32.xlu0 %v4820, 17
        %v5013 = vpop.permute.xlu0 %5012
        %5014 = vrot.lane.b32.xlu0 %v4821, 17
        %v5015 = vpop.permute.xlu0 %5014
        %5016 = vrot.lane.b32.xlu0 %v4829, 17
        %v5017 = vpop.permute.xlu0 %5016
        %5018 = vrot.lane.b32.xlu0 %v4840, 17
        %v5019 = vpop.permute.xlu0 %5018
        %5020 = vrot.lane.b32.xlu0 %v4841, 17
        %v5021 = vpop.permute.xlu0 %5020
        %5022 = vrot.lane.b32.xlu0 %v4835, 17
        %v5023 = vpop.permute.xlu0 %5022
        %5024 = vrot.lane.b32.xlu0 %v4842, 17
        %v5025 = vpop.permute.xlu0 %5024
        %5026 = vrot.lane.b32.xlu0 %v4843, 17
        %v5027 = vpop.permute.xlu0 %5026
        %5028 = vrot.lane.b32.xlu0 %v4851, 17
        %v5029 = vpop.permute.xlu0 %5028
        %5030 = vrot.lane.b32.xlu0 %v4862, 17
        %v5031 = vpop.permute.xlu0 %5030
        %5032 = vrot.lane.b32.xlu0 %v4863, 17
        %v5033 = vpop.permute.xlu0 %5032
        %5034 = vrot.lane.b32.xlu0 %v4857, 17
        %v5035 = vpop.permute.xlu0 %5034
        %5036 = vrot.lane.b32.xlu0 %v4864, 17
        %v5037 = vpop.permute.xlu0 %5036
        %5038 = vrot.lane.b32.xlu0 %v4865, 17
        %v5039 = vpop.permute.xlu0 %5038
        %5040 = vrot.lane.b32.xlu0 %v4873, 17
        %v5041 = vpop.permute.xlu0 %5040
        %5042 = vrot.lane.b32.xlu0 %v4884, 17
        %v5043 = vpop.permute.xlu0 %5042
        %5044 = vrot.lane.b32.xlu0 %v4885, 17
        %v5045 = vpop.permute.xlu0 %5044
        %5046 = vrot.lane.b32.xlu0 %v4879, 17
        %v5047 = vpop.permute.xlu0 %5046
        %5048 = vrot.lane.b32.xlu0 %v4886, 17
        %v5049 = vpop.permute.xlu0 %5048
        %5050 = vrot.lane.b32.xlu0 %v4887, 17
        %v5051 = vpop.permute.xlu0 %5050
        %v5052 = vsel %vm600, %v4945, %v4947
        %v5053 = vsel %vm600, %v4947, %v4949
        %v5054 = vsel %vm600, %v4951, %v4953
        %v5055 = vsel %vm600, %v4953, %v4955
        %v5056 = vsel %vm600, %v4957, %v4959
        %v5057 = vsel %vm600, %v4959, %v4961
        %v5058 = vsel %vm600, %v4963, %v4965
        %v5059 = vsel %vm600, %v4965, %v4967
        %v5060 = vsel %vm600, %v4969, %v4971
        %v5061 = vsel %vm600, %v4971, %v4973
        %v5062 = vsel %vm600, %v4975, %v4977
        %v5063 = vsel %vm600, %v4977, %v4979
        %v5064 = vsel %vm600, %v4981, %v4983
        %v5065 = vsel %vm600, %v4983, %v4985
        %v5066 = vsel %vm600, %v4987, %v4989
        %v5067 = vsel %vm600, %v4989, %v4991
        %v5068 = vsel %vm600, %v4993, %v4995
        %v5069 = vsel %vm600, %v4995, %v4997
        %v5070 = vsel %vm600, %v4999, %v5001
        %v5071 = vsel %vm600, %v5001, %v5003
        %v5072 = vsel %vm600, %v5005, %v5007
        %v5073 = vsel %vm600, %v5007, %v5009
        %v5074 = vsel %vm600, %v5011, %v5013
        %v5075 = vsel %vm600, %v5013, %v5015
        %v5076 = vsel %vm600, %v5017, %v5019
        %v5077 = vsel %vm600, %v5019, %v5021
        %v5078 = vsel %vm600, %v5023, %v5025
        %v5079 = vsel %vm600, %v5025, %v5027
        %v5080 = vsel %vm600, %v5029, %v5031
        %v5081 = vsel %vm600, %v5031, %v5033
        %v5082 = vsel %vm600, %v5035, %v5037
        %v5083 = vsel %vm600, %v5037, %v5039
        %v5084 = vsel %vm600, %v5041, %v5043
        %v5085 = vsel %vm600, %v5043, %v5045
        %v5086 = vsel %vm600, %v5047, %v5049
        %v5087 = vsel %vm600, %v5049, %v5051
        %v5125 = vsel %vm1017, %v4930, 0
        %v5128 = vsel %vm1017, %v4933, 0
        %5130 = vmatprep.subr.bf16.mxu0 %v5053
        %5131 = vmatpush1.bf16.msra.mxu0 %v5052
        %5132 = vmatprep.subr.bf16.mxu0 %v5055
        %5133 = vmatpush1.bf16.msra.mxu0 %v5054
        %5134 = vmatprep.subr.bf16.mxu0 %v5057
        %5135 = vmatpush1.bf16.msra.mxu0 %v5056
        %5136 = vmatprep.subr.bf16.mxu0 %v5059
        %5137 = vmatpush1.bf16.msra.mxu0 %v5058
        %5138 = vmatprep.subr.bf16.mxu0 %v5061
        %5139 = vmatpush1.bf16.msra.mxu0 %v5060
        %5140 = vmatprep.subr.bf16.mxu0 %v5063
        %5141 = vmatpush1.bf16.msra.mxu0 %v5062
        %5142 = vmatprep.subr.bf16.mxu0 %v5065
        %5143 = vmatpush1.bf16.msra.mxu0 %v5064
        %5144 = vmatprep.subr.bf16.mxu0 %v5067
        %5145 = vmatpush1.bf16.msra.mxu0 %v5066
        %5146 = vmatprep.subr.bf16.mxu0 %v5069
        %5147 = vmatpush1.bf16.msra.mxu0 %v5068
        %5148 = vmatprep.subr.bf16.mxu0 %v5071
        %5149 = vmatpush1.bf16.msra.mxu0 %v5070
        %5150 = vmatprep.subr.bf16.mxu0 %v5073
        %5151 = vmatpush1.bf16.msra.mxu0 %v5072
        %5152 = vmatprep.subr.bf16.mxu0 %v5075
        %5153 = vmatpush1.bf16.msra.mxu0 %v5074
        %5154 = vmatprep.subr.bf16.mxu0 %v5077
        %5155 = vmatpush1.bf16.msra.mxu0 %v5076
        %5156 = vmatprep.subr.bf16.mxu0 %v5079
        %5157 = vmatpush1.bf16.msra.mxu0 %v5078
        %5158 = vmatprep.subr.bf16.mxu0 %v5081
        %5159 = vmatpush1.bf16.msra.mxu0 %v5080
        %5160 = vmatprep.subr.bf16.mxu0 %v5083
        %5161 = vmatpush1.bf16.msra.mxu0 %v5082
        %5162 = vmatprep.mubr.bf16.mxu0 %v4929
        %5163 = vmatmul.mubr.bf16.gmra.mrb[0].mxu0 %v4928
        %v5164 = vpop.f32.mrb[0].mxu0
        %v5165 = vadd.f32 %v4891, %v5164
        %v5166 = vpop.f32.mrb[0].mxu0
        %v5167 = vadd.f32 %v4891, %v5166
        %v5168 = vpop.f32.mrb[0].mxu0
        %v5169 = vadd.f32 %v4896, %v5168
        %v5170 = vpop.f32.mrb[0].mxu0
        %v5171 = vadd.f32 %v4896, %v5170
        %5172 = vmatprep.mubr.bf16.mxu0 %v4932
        %5173 = vmatmul.mubr.bf16.gmra.mrb[0].mxu0 %v4931
        %v5174 = vpop.f32.mrb[0].mxu0
        %v5175 = vadd.f32 %v4901, %v5174
        %v5176 = vpop.f32.mrb[0].mxu0
        %v5177 = vadd.f32 %v4901, %v5176
        %v5178 = vpop.f32.mrb[0].mxu0
        %v5179 = vadd.f32 %v4906, %v5178
        %v5180 = vpop.f32.mrb[0].mxu0
        %v5181 = vadd.f32 %v4906, %v5180
        %5182 = vdwg.mxu0
        %5183 = vmatprep.subr.bf16.mxu0 %v5085
        %5184 = vmatpush1.bf16.msra.mxu0 %v5084
        %5185 = vmatprep.subr.bf16.mxu0 %v5087
        %5186 = vmatpush1.bf16.msra.mxu0 %v5086
        %5187 = vmatprep.subr.bf16.mxu0 0
        %5188 = vmatpush1.bf16.msra.mxu0 0
        %5189 = vmatprep.subr.bf16.mxu0 0
        %5190 = vmatpush1.bf16.msra.mxu0 0
        %5191 = vmatprep.subr.bf16.mxu0 0
        %5192 = vmatpush1.bf16.msra.mxu0 0
        %5193 = vmatprep.subr.bf16.mxu0 0
        %5194 = vmatpush1.bf16.msra.mxu0 0
        %5195 = vmatprep.subr.bf16.mxu0 0
        %5196 = vmatpush1.bf16.msra.mxu0 0
        %5197 = vmatprep.subr.bf16.mxu0 0
        %5198 = vmatpush1.bf16.msra.mxu0 0
        %5199 = vmatprep.subr.bf16.mxu0 0
        %5200 = vmatpush1.bf16.msra.mxu0 0
        %5201 = vmatprep.subr.bf16.mxu0 0
        %5202 = vmatpush1.bf16.msra.mxu0 0
        %5203 = vmatprep.subr.bf16.mxu0 0
        %5204 = vmatpush1.bf16.msra.mxu0 0
        %5205 = vmatprep.subr.bf16.mxu0 0
        %5206 = vmatpush1.bf16.msra.mxu0 0
        %5207 = vmatprep.subr.bf16.mxu0 0
        %5208 = vmatpush1.bf16.msra.mxu0 0
        %5209 = vmatprep.subr.bf16.mxu0 0
        %5210 = vmatpush1.bf16.msra.mxu0 0
        %5211 = vmatprep.subr.bf16.mxu0 0
        %5212 = vmatpush1.bf16.msra.mxu0 0
        %5213 = vmatprep.subr.bf16.mxu0 0
        %5214 = vmatpush1.bf16.msra.mxu0 0
        %5215 = vmatprep.mubr.bf16.mxu0 0
        %5216 = vmatmul.mubr.bf16.gmra.mrb[0].mxu0 %v5125
        %v5217 = vpop.f32.mrb[0].mxu0
        %v5218 = vadd.f32 %v5165, %v5217
        %v5219 = vpop.f32.mrb[0].mxu0
        %v5220 = vadd.f32 %v5167, %v5219
        %v5221 = vpop.f32.mrb[0].mxu0
        %v5222 = vadd.f32 %v5169, %v5221
        %v5223 = vpop.f32.mrb[0].mxu0
        %v5224 = vadd.f32 %v5171, %v5223
        %5225 = vmatprep.mubr.bf16.mxu0 0
        %5226 = vmatmul.mubr.bf16.gmra.mrb[0].mxu0 %v5128
        %v5227 = vpop.f32.mrb[0].mxu0
        %v5228 = vadd.f32 %v5175, %v5227
        %v5229 = vpop.f32.mrb[0].mxu0
        %v5230 = vadd.f32 %v5177, %v5229
        %v5231 = vpop.f32.mrb[0].mxu0
        %v5232 = vadd.f32 %v5179, %v5231
        %v5233 = vpop.f32.mrb[0].mxu0
        %v5234 = vadd.f32 %v5181, %v5233
        %5235 = vdwg.mxu0
        %v5236 = vmax.f32 %v5218, 0.0
        %v5237 = vmax.f32 %v5220, 0.0
        %v5238 = vmax.f32 %v5222, 0.0
        %v5239 = vmax.f32 %v5224, 0.0
        %v5240 = vmax.f32 %v5228, 0.0
        %v5241 = vmax.f32 %v5230, 0.0
        %v5242 = vmax.f32 %v5232, 0.0
        %v5243 = vmax.f32 %v5234, 0.0
        %v5244 = vpack.c.bf16 %v5238, %v5236
        %v5245 = vpack.c.bf16 %v5239, %v5237
        %v5246 = vpack.c.bf16 %v5242, %v5240
        %v5247 = vpack.c.bf16 %v5243, %v5241
        %5248 = vst [vmem:[#allocation2 + $0x8] sm:$0xff] %v5244
        %5249 = vst [vmem:[#allocation2 + $0x10] sm:$0xff] %v5245
        %5250 = vst [vmem:[#allocation2 + $0x28] sm:$0xff] %v5246
        %5251 = vst [vmem:[#allocation2 + $0x30] sm:$0xff] %v5247
        %s5252 = scalar_lea.vmem [#allocation10], 384
        %v5253 = vld [vmem:[%s5252] sm:$0xff]
        %v5254 = vld [vmem:[%s5252 + $0x8] sm:$0xf]
        %v5255 = vld [vmem:[%s5252 + $0xc] sm:$0xff]
        %v5256 = vld [vmem:[%s5252 + $0x14] sm:$0xf]
        %v5257 = vld [vmem:[%s5252 + $0x18] sm:$0xff]
        %v5258 = vld [vmem:[%s5252 + $0x20] sm:$0xf]
        %v5259 = vld [vmem:[%s5252 + $0x24] sm:$0xff]
        %v5260 = vld [vmem:[%s5252 + $0x2c] sm:$0xf]
        %s5261 = scalar_lea.vmem [#allocation12], 256
        %v5262 = vld [vmem:[%s5261] sm:$0xff]
        %v5263 = vld [vmem:[%s5261 + $0x8] sm:$0xff]
        %v5264 = vld [vmem:[%s5261 + $0x10] sm:$0xff]
        %v5265 = vld [vmem:[%s5261 + $0x18] sm:$0xff]
        %v5266 = vld [vmem:[#allocation2] sm:$0xff]
        %v5267 = vld [vmem:[#allocation2 + $0x8] sm:$0xff]
        %v5268 = vld [vmem:[#allocation2 + $0x10] sm:$0xff]
        %v5269 = vld [vmem:[#allocation2 + $0x20] sm:$0xff]
        %v5270 = vld [vmem:[#allocation2 + $0x28] sm:$0xff]
        %v5271 = vld [vmem:[#allocation2 + $0x30] sm:$0xff]
        %v5272 = vmul.bf16 %v5266, %v477
        %v5273 = vmul.bf16 %v5267, %v481
        %v5274 = vmul.bf16 %v5268, %v479
        %v5275 = vmul.bf16 %v5269, %v477
        %v5276 = vmul.bf16 %v5270, %v481
        %v5277 = vmul.bf16 %v5271, %v479
        %v5278 = vmul.bf16 %v5266, %v531
        %v5279 = vmul.bf16 %v5267, %v535
        %v5280 = vmul.bf16 %v5268, %v533
        %v5281 = vmul.bf16 %v5269, %v531
        %v5282 = vmul.bf16 %v5270, %v535
        %v5283 = vmul.bf16 %v5271, %v533
        %v5284 = vmul.bf16 %v5266, %v546
        %v5285 = vmul.bf16 %v5267, %v550
        %v5286 = vmul.bf16 %v5268, %v548
        %v5287 = vmul.bf16 %v5269, %v546
        %v5288 = vmul.bf16 %v5270, %v550
        %v5289 = vmul.bf16 %v5271, %v548
        %v5290 = vld [vmem:[#allocation2 + $0x8] sm:$0xff]
        %v5291 = vld [vmem:[#allocation2 + $0x10] sm:$0xff]
        %v5292 = vld [vmem:[#allocation2 + $0x18] sm:$0xff]
        %v5293 = vld [vmem:[#allocation2 + $0x28] sm:$0xff]
        %v5294 = vld [vmem:[#allocation2 + $0x30] sm:$0xff]
        %v5295 = vld [vmem:[#allocation2 + $0x38] sm:$0xff]
        %v5296 = vmul.bf16 %v5290, %v567
        %v5297 = vmul.bf16 %v5291, %v571
        %v5298 = vmul.bf16 %v5292, %v569
        %v5299 = vmul.bf16 %v5293, %v567
        %v5300 = vmul.bf16 %v5294, %v571
        %v5301 = vmul.bf16 %v5295, %v569
        %v5302 = vmul.bf16 %v5290, %v582
        %v5303 = vmul.bf16 %v5291, %v586
        %v5304 = vmul.bf16 %v5292, %v584
        %v5305 = vmul.bf16 %v5293, %v582
        %v5306 = vmul.bf16 %v5294, %v586
        %v5307 = vmul.bf16 %v5295, %v584
        %v5308 = vmul.bf16 %v5290, %v597
        %v5309 = vmul.bf16 %v5291, %v601
        %v5310 = vmul.bf16 %v5292, %v599
        %v5311 = vmul.bf16 %v5293, %v597
        %v5312 = vmul.bf16 %v5294, %v601
        %v5313 = vmul.bf16 %v5295, %v599
        %5320 = vrot.lane.b32.xlu0 %v5266, 127
        %v5321 = vpop.permute.xlu0 %5320
        %5322 = vrot.lane.b32.xlu0 %v5267, 127
        %v5323 = vpop.permute.xlu0 %5322
        %5324 = vrot.lane.b32.xlu0 %v5268, 127
        %v5325 = vpop.permute.xlu0 %5324
        %5326 = vrot.lane.b32.xlu0 %v5269, 127
        %v5327 = vpop.permute.xlu0 %5326
        %5328 = vrot.lane.b32.xlu0 %v5270, 127
        %v5329 = vpop.permute.xlu0 %5328
        %5330 = vrot.lane.b32.xlu0 %v5271, 127
        %v5331 = vpop.permute.xlu0 %5330
        %v5332 = vsel %vm549, %v5321, %v5323
        %v5333 = vsel %vm549, %v5323, %v5325
        %v5334 = vsel %vm549, %v5327, %v5329
        %v5335 = vsel %vm549, %v5329, %v5331
        %5342 = vrot.lane.b32.xlu0 %v5278, 126
        %v5343 = vpop.permute.xlu0 %5342
        %5344 = vrot.lane.b32.xlu0 %v5279, 126
        %v5345 = vpop.permute.xlu0 %5344
        %5346 = vrot.lane.b32.xlu0 %v5280, 126
        %v5347 = vpop.permute.xlu0 %5346
        %5348 = vrot.lane.b32.xlu0 %v5281, 126
        %v5349 = vpop.permute.xlu0 %5348
        %5350 = vrot.lane.b32.xlu0 %v5282, 126
        %v5351 = vpop.permute.xlu0 %5350
        %5352 = vrot.lane.b32.xlu0 %v5283, 126
        %v5353 = vpop.permute.xlu0 %5352
        %v5354 = vsel %vm651, %v5343, %v5345
        %v5355 = vsel %vm651, %v5345, %v5347
        %v5356 = vsel %vm651, %v5349, %v5351
        %v5357 = vsel %vm651, %v5351, %v5353
        %5364 = vrot.lane.b32.xlu0 %v5284, 112
        %v5365 = vpop.permute.xlu0 %5364
        %5366 = vrot.lane.b32.xlu0 %v5285, 112
        %v5367 = vpop.permute.xlu0 %5366
        %5368 = vrot.lane.b32.xlu0 %v5286, 112
        %v5369 = vpop.permute.xlu0 %5368
        %5370 = vrot.lane.b32.xlu0 %v5287, 112
        %v5371 = vpop.permute.xlu0 %5370
        %5372 = vrot.lane.b32.xlu0 %v5288, 112
        %v5373 = vpop.permute.xlu0 %5372
        %5374 = vrot.lane.b32.xlu0 %v5289, 112
        %v5375 = vpop.permute.xlu0 %5374
        %v5376 = vsel %vm674, %v5365, %v5367
        %v5377 = vsel %vm674, %v5367, %v5369
        %v5378 = vsel %vm674, %v5371, %v5373
        %v5379 = vsel %vm674, %v5373, %v5375
        %5380 = vrot.lane.b32.xlu0 %v5267, 111
        %v5381 = vpop.permute.xlu0 %5380
        %5382 = vrot.lane.b32.xlu0 %v5268, 111
        %v5383 = vpop.permute.xlu0 %5382
        %5384 = vrot.lane.b32.xlu0 %v5270, 111
        %v5385 = vpop.permute.xlu0 %5384
        %5386 = vrot.lane.b32.xlu0 %v5271, 111
        %v5387 = vpop.permute.xlu0 %5386
        %v5388 = vsel %vm480, %v5381, %v5383
        %v5389 = vsel %vm480, %v5385, %v5387
        %5396 = vrot.lane.b32.xlu0 %v5296, 110
        %v5397 = vpop.permute.xlu0 %5396
        %5398 = vrot.lane.b32.xlu0 %v5297, 110
        %v5399 = vpop.permute.xlu0 %5398
        %5400 = vrot.lane.b32.xlu0 %v5298, 110
        %v5401 = vpop.permute.xlu0 %5400
        %5402 = vrot.lane.b32.xlu0 %v5299, 110
        %v5403 = vpop.permute.xlu0 %5402
        %5404 = vrot.lane.b32.xlu0 %v5300, 110
        %v5405 = vpop.permute.xlu0 %5404
        %5406 = vrot.lane.b32.xlu0 %v5301, 110
        %v5407 = vpop.permute.xlu0 %5406
        %v5408 = vsel %vm707, %v5397, %v5399
        %v5409 = vsel %vm707, %v5399, %v5401
        %v5410 = vsel %vm707, %v5403, %v5405
        %v5411 = vsel %vm707, %v5405, %v5407
        %5418 = vrot.lane.b32.xlu0 %v5302, 96
        %v5419 = vpop.permute.xlu0 %5418
        %5420 = vrot.lane.b32.xlu0 %v5303, 96
        %v5421 = vpop.permute.xlu0 %5420
        %5422 = vrot.lane.b32.xlu0 %v5304, 96
        %v5423 = vpop.permute.xlu0 %5422
        %5424 = vrot.lane.b32.xlu0 %v5305, 96
        %v5425 = vpop.permute.xlu0 %5424
        %5426 = vrot.lane.b32.xlu0 %v5306, 96
        %v5427 = vpop.permute.xlu0 %5426
        %5428 = vrot.lane.b32.xlu0 %v5307, 96
        %v5429 = vpop.permute.xlu0 %5428
        %v5430 = vsel %vm730, %v5419, %v5421
        %v5431 = vsel %vm730, %v5421, %v5423
        %v5432 = vsel %vm730, %v5425, %v5427
        %v5433 = vsel %vm730, %v5427, %v5429
        %5440 = vrot.lane.b32.xlu0 %v5290, 95
        %v5441 = vpop.permute.xlu0 %5440
        %5442 = vrot.lane.b32.xlu0 %v5291, 95
        %v5443 = vpop.permute.xlu0 %5442
        %5444 = vrot.lane.b32.xlu0 %v5292, 95
        %v5445 = vpop.permute.xlu0 %5444
        %5446 = vrot.lane.b32.xlu0 %v5293, 95
        %v5447 = vpop.permute.xlu0 %5446
        %5448 = vrot.lane.b32.xlu0 %v5294, 95
        %v5449 = vpop.permute.xlu0 %5448
        %5450 = vrot.lane.b32.xlu0 %v5295, 95
        %v5451 = vpop.permute.xlu0 %5450
        %v5452 = vsel %vm753, %v5441, %v5443
        %v5453 = vsel %vm753, %v5443, %v5445
        %v5454 = vsel %vm753, %v5447, %v5449
        %v5455 = vsel %vm753, %v5449, %v5451
        %5462 = vrot.lane.b32.xlu0 %v5308, 94
        %v5463 = vpop.permute.xlu0 %5462
        %5464 = vrot.lane.b32.xlu0 %v5309, 94
        %v5465 = vpop.permute.xlu0 %5464
        %5466 = vrot.lane.b32.xlu0 %v5310, 94
        %v5467 = vpop.permute.xlu0 %5466
        %5468 = vrot.lane.b32.xlu0 %v5311, 94
        %v5469 = vpop.permute.xlu0 %5468
        %5470 = vrot.lane.b32.xlu0 %v5312, 94
        %v5471 = vpop.permute.xlu0 %5470
        %5472 = vrot.lane.b32.xlu0 %v5313, 94
        %v5473 = vpop.permute.xlu0 %5472
        %v5474 = vsel %vm776, %v5463, %v5465
        %v5475 = vsel %vm776, %v5465, %v5467
        %v5476 = vsel %vm776, %v5469, %v5471
        %v5477 = vsel %vm776, %v5471, %v5473
        %5479 = vset.pattern.permute.xlu0 0
        %5480 = vperm.xlu0 %5479, %v5262
        %v5481 = vpop.permute.xlu0 %5480
        %5484 = vset.pattern.permute.xlu0 0
        %5485 = vperm.xlu0 %5484, %v5263
        %v5486 = vpop.permute.xlu0 %5485
        %5489 = vset.pattern.permute.xlu0 0
        %5490 = vperm.xlu0 %5489, %v5264
        %v5491 = vpop.permute.xlu0 %5490
        %5494 = vset.pattern.permute.xlu0 0
        %5495 = vperm.xlu0 %5494, %v5265
        %v5496 = vpop.permute.xlu0 %5495
        %v5506 = vunpack.c.l.b16 %v5253
        %v5507 = vunpack.c.h.b16 %v5253
        %v5508 = vunpack.c.l.b16 %v5254
        %v5509 = vunpack.c.l.b16 %v5255
        %v5510 = vunpack.c.h.b16 %v5255
        %v5511 = vunpack.c.l.b16 %v5256
        %v5512 = vunpack.c.l.b16 %v5257
        %v5513 = vunpack.c.h.b16 %v5257
        %v5514 = vunpack.c.l.b16 %v5258
        %v5515 = vunpack.c.l.b16 %v5259
        %v5516 = vunpack.c.h.b16 %v5259
        %v5517 = vunpack.c.l.b16 %v5260
        %v5518 = vpack.c.b16 %v5509, %v5506
        %v5519 = vpack.c.b16 %v5510, %v5507
        %v5520 = vpack.c.b16 %v5511, %v5508
        %v5521 = vpack.c.b16 %v5515, %v5512
        %v5522 = vpack.c.b16 %v5516, %v5513
        %v5523 = vpack.c.b16 %v5517, %v5514
        %5534 = vrot.lane.b32.xlu0 %v5272, 17
        %v5535 = vpop.permute.xlu0 %5534
        %5536 = vrot.lane.b32.xlu0 %v5273, 17
        %v5537 = vpop.permute.xlu0 %5536
        %5538 = vrot.lane.b32.xlu0 %v5274, 17
        %v5539 = vpop.permute.xlu0 %5538
        %5540 = vrot.lane.b32.xlu0 %v5275, 17
        %v5541 = vpop.permute.xlu0 %5540
        %5542 = vrot.lane.b32.xlu0 %v5276, 17
        %v5543 = vpop.permute.xlu0 %5542
        %5544 = vrot.lane.b32.xlu0 %v5277, 17
        %v5545 = vpop.permute.xlu0 %5544
        %5546 = vrot.lane.b32.xlu0 %v5332, 17
        %v5547 = vpop.permute.xlu0 %5546
        %5548 = vrot.lane.b32.xlu0 %v5333, 17
        %v5549 = vpop.permute.xlu0 %5548
        %5550 = vrot.lane.b32.xlu0 %v5325, 17
        %v5551 = vpop.permute.xlu0 %5550
        %5552 = vrot.lane.b32.xlu0 %v5334, 17
        %v5553 = vpop.permute.xlu0 %5552
        %5554 = vrot.lane.b32.xlu0 %v5335, 17
        %v5555 = vpop.permute.xlu0 %5554
        %5556 = vrot.lane.b32.xlu0 %v5331, 17
        %v5557 = vpop.permute.xlu0 %5556
        %5558 = vrot.lane.b32.xlu0 %v5354, 17
        %v5559 = vpop.permute.xlu0 %5558
        %5560 = vrot.lane.b32.xlu0 %v5355, 17
        %v5561 = vpop.permute.xlu0 %5560
        %5562 = vrot.lane.b32.xlu0 %v5347, 17
        %v5563 = vpop.permute.xlu0 %5562
        %5564 = vrot.lane.b32.xlu0 %v5356, 17
        %v5565 = vpop.permute.xlu0 %5564
        %5566 = vrot.lane.b32.xlu0 %v5357, 17
        %v5567 = vpop.permute.xlu0 %5566
        %5568 = vrot.lane.b32.xlu0 %v5353, 17
        %v5569 = vpop.permute.xlu0 %5568
        %5570 = vrot.lane.b32.xlu0 %v5376, 17
        %v5571 = vpop.permute.xlu0 %5570
        %5572 = vrot.lane.b32.xlu0 %v5377, 17
        %v5573 = vpop.permute.xlu0 %5572
        %5574 = vrot.lane.b32.xlu0 %v5369, 17
        %v5575 = vpop.permute.xlu0 %5574
        %5576 = vrot.lane.b32.xlu0 %v5378, 17
        %v5577 = vpop.permute.xlu0 %5576
        %5578 = vrot.lane.b32.xlu0 %v5379, 17
        %v5579 = vpop.permute.xlu0 %5578
        %5580 = vrot.lane.b32.xlu0 %v5375, 17
        %v5581 = vpop.permute.xlu0 %5580
        %5582 = vrot.lane.b32.xlu0 %v5381, 17
        %v5583 = vpop.permute.xlu0 %5582
        %5584 = vrot.lane.b32.xlu0 %v5388, 17
        %v5585 = vpop.permute.xlu0 %5584
        %5586 = vrot.lane.b32.xlu0 %v5383, 17
        %v5587 = vpop.permute.xlu0 %5586
        %5588 = vrot.lane.b32.xlu0 %v5385, 17
        %v5589 = vpop.permute.xlu0 %5588
        %5590 = vrot.lane.b32.xlu0 %v5389, 17
        %v5591 = vpop.permute.xlu0 %5590
        %5592 = vrot.lane.b32.xlu0 %v5387, 17
        %v5593 = vpop.permute.xlu0 %5592
        %5594 = vrot.lane.b32.xlu0 %v5397, 17
        %v5595 = vpop.permute.xlu0 %5594
        %5596 = vrot.lane.b32.xlu0 %v5408, 17
        %v5597 = vpop.permute.xlu0 %5596
        %5598 = vrot.lane.b32.xlu0 %v5409, 17
        %v5599 = vpop.permute.xlu0 %5598
        %5600 = vrot.lane.b32.xlu0 %v5403, 17
        %v5601 = vpop.permute.xlu0 %5600
        %5602 = vrot.lane.b32.xlu0 %v5410, 17
        %v5603 = vpop.permute.xlu0 %5602
        %5604 = vrot.lane.b32.xlu0 %v5411, 17
        %v5605 = vpop.permute.xlu0 %5604
        %5606 = vrot.lane.b32.xlu0 %v5419, 17
        %v5607 = vpop.permute.xlu0 %5606
        %5608 = vrot.lane.b32.xlu0 %v5430, 17
        %v5609 = vpop.permute.xlu0 %5608
        %5610 = vrot.lane.b32.xlu0 %v5431, 17
        %v5611 = vpop.permute.xlu0 %5610
        %5612 = vrot.lane.b32.xlu0 %v5425, 17
        %v5613 = vpop.permute.xlu0 %5612
        %5614 = vrot.lane.b32.xlu0 %v5432, 17
        %v5615 = vpop.permute.xlu0 %5614
        %5616 = vrot.lane.b32.xlu0 %v5433, 17
        %v5617 = vpop.permute.xlu0 %5616
        %5618 = vrot.lane.b32.xlu0 %v5441, 17
        %v5619 = vpop.permute.xlu0 %5618
        %5620 = vrot.lane.b32.xlu0 %v5452, 17
        %v5621 = vpop.permute.xlu0 %5620
        %5622 = vrot.lane.b32.xlu0 %v5453, 17
        %v5623 = vpop.permute.xlu0 %5622
        %5624 = vrot.lane.b32.xlu0 %v5447, 17
        %v5625 = vpop.permute.xlu0 %5624
        %5626 = vrot.lane.b32.xlu0 %v5454, 17
        %v5627 = vpop.permute.xlu0 %5626
        %5628 = vrot.lane.b32.xlu0 %v5455, 17
        %v5629 = vpop.permute.xlu0 %5628
        %5630 = vrot.lane.b32.xlu0 %v5463, 17
        %v5631 = vpop.permute.xlu0 %5630
        %5632 = vrot.lane.b32.xlu0 %v5474, 17
        %v5633 = vpop.permute.xlu0 %5632
        %5634 = vrot.lane.b32.xlu0 %v5475, 17
        %v5635 = vpop.permute.xlu0 %5634
        %5636 = vrot.lane.b32.xlu0 %v5469, 17
        %v5637 = vpop.permute.xlu0 %5636
        %5638 = vrot.lane.b32.xlu0 %v5476, 17
        %v5639 = vpop.permute.xlu0 %5638
        %5640 = vrot.lane.b32.xlu0 %v5477, 17
        %v5641 = vpop.permute.xlu0 %5640
        %v5642 = vsel %vm600, %v5535, %v5537
        %v5643 = vsel %vm600, %v5537, %v5539
        %v5644 = vsel %vm600, %v5541, %v5543
        %v5645 = vsel %vm600, %v5543, %v5545
        %v5646 = vsel %vm600, %v5547, %v5549
        %v5647 = vsel %vm600, %v5549, %v5551
        %v5648 = vsel %vm600, %v5553, %v5555
        %v5649 = vsel %vm600, %v5555, %v5557
        %v5650 = vsel %vm600, %v5559, %v5561
        %v5651 = vsel %vm600, %v5561, %v5563
        %v5652 = vsel %vm600, %v5565, %v5567
        %v5653 = vsel %vm600, %v5567, %v5569
        %v5654 = vsel %vm600, %v5571, %v5573
        %v5655 = vsel %vm600, %v5573, %v5575
        %v5656 = vsel %vm600, %v5577, %v5579
        %v5657 = vsel %vm600, %v5579, %v5581
        %v5658 = vsel %vm600, %v5583, %v5585
        %v5659 = vsel %vm600, %v5585, %v5587
        %v5660 = vsel %vm600, %v5589, %v5591
        %v5661 = vsel %vm600, %v5591, %v5593
        %v5662 = vsel %vm600, %v5595, %v5597
        %v5663 = vsel %vm600, %v5597, %v5599
        %v5664 = vsel %vm600, %v5601, %v5603
        %v5665 = vsel %vm600, %v5603, %v5605
        %v5666 = vsel %vm600, %v5607, %v5609
        %v5667 = vsel %vm600, %v5609, %v5611
        %v5668 = vsel %vm600, %v5613, %v5615
        %v5669 = vsel %vm600, %v5615, %v5617
        %v5670 = vsel %vm600, %v5619, %v5621
        %v5671 = vsel %vm600, %v5621, %v5623
        %v5672 = vsel %vm600, %v5625, %v5627
        %v5673 = vsel %vm600, %v5627, %v5629
        %v5674 = vsel %vm600, %v5631, %v5633
        %v5675 = vsel %vm600, %v5633, %v5635
        %v5676 = vsel %vm600, %v5637, %v5639
        %v5677 = vsel %vm600, %v5639, %v5641
        %v5715 = vsel %vm1017, %v5520, 0
        %v5718 = vsel %vm1017, %v5523, 0
        %5720 = vmatprep.subr.bf16.mxu0 %v5643
        %5721 = vmatpush1.bf16.msra.mxu0 %v5642
        %5722 = vmatprep.subr.bf16.mxu0 %v5645
        %5723 = vmatpush1.bf16.msra.mxu0 %v5644
        %5724 = vmatprep.subr.bf16.mxu0 %v5647
        %5725 = vmatpush1.bf16.msra.mxu0 %v5646
        %5726 = vmatprep.subr.bf16.mxu0 %v5649
        %5727 = vmatpush1.bf16.msra.mxu0 %v5648
        %5728 = vmatprep.subr.bf16.mxu0 %v5651
        %5729 = vmatpush1.bf16.msra.mxu0 %v5650
        %5730 = vmatprep.subr.bf16.mxu0 %v5653
        %5731 = vmatpush1.bf16.msra.mxu0 %v5652
        %5732 = vmatprep.subr.bf16.mxu0 %v5655
        %5733 = vmatpush1.bf16.msra.mxu0 %v5654
        %5734 = vmatprep.subr.bf16.mxu0 %v5657
        %5735 = vmatpush1.bf16.msra.mxu0 %v5656
        %5736 = vmatprep.subr.bf16.mxu0 %v5659
        %5737 = vmatpush1.bf16.msra.mxu0 %v5658
        %5738 = vmatprep.subr.bf16.mxu0 %v5661
        %5739 = vmatpush1.bf16.msra.mxu0 %v5660
        %5740 = vmatprep.subr.bf16.mxu0 %v5663
        %5741 = vmatpush1.bf16.msra.mxu0 %v5662
        %5742 = vmatprep.subr.bf16.mxu0 %v5665
        %5743 = vmatpush1.bf16.msra.mxu0 %v5664
        %5744 = vmatprep.subr.bf16.mxu0 %v5667
        %5745 = vmatpush1.bf16.msra.mxu0 %v5666
        %5746 = vmatprep.subr.bf16.mxu0 %v5669
        %5747 = vmatpush1.bf16.msra.mxu0 %v5668
        %5748 = vmatprep.subr.bf16.mxu0 %v5671
        %5749 = vmatpush1.bf16.msra.mxu0 %v5670
        %5750 = vmatprep.subr.bf16.mxu0 %v5673
        %5751 = vmatpush1.bf16.msra.mxu0 %v5672
        %5752 = vmatprep.mubr.bf16.mxu0 %v5519
        %5753 = vmatmul.mubr.bf16.gmra.mrb[0].mxu0 %v5518
        %v5754 = vpop.f32.mrb[0].mxu0
        %v5755 = vadd.f32 %v5481, %v5754
        %v5756 = vpop.f32.mrb[0].mxu0
        %v5757 = vadd.f32 %v5481, %v5756
        %v5758 = vpop.f32.mrb[0].mxu0
        %v5759 = vadd.f32 %v5486, %v5758
        %v5760 = vpop.f32.mrb[0].mxu0
        %v5761 = vadd.f32 %v5486, %v5760
        %5762 = vmatprep.mubr.bf16.mxu0 %v5522
        %5763 = vmatmul.mubr.bf16.gmra.mrb[0].mxu0 %v5521
        %v5764 = vpop.f32.mrb[0].mxu0
        %v5765 = vadd.f32 %v5491, %v5764
        %v5766 = vpop.f32.mrb[0].mxu0
        %v5767 = vadd.f32 %v5491, %v5766
        %v5768 = vpop.f32.mrb[0].mxu0
        %v5769 = vadd.f32 %v5496, %v5768
        %v5770 = vpop.f32.mrb[0].mxu0
        %v5771 = vadd.f32 %v5496, %v5770
        %5772 = vdwg.mxu0
        %5773 = vmatprep.subr.bf16.mxu0 %v5675
        %5774 = vmatpush1.bf16.msra.mxu0 %v5674
        %5775 = vmatprep.subr.bf16.mxu0 %v5677
        %5776 = vmatpush1.bf16.msra.mxu0 %v5676
        %5777 = vmatprep.subr.bf16.mxu0 0
        %5778 = vmatpush1.bf16.msra.mxu0 0
        %5779 = vmatprep.subr.bf16.mxu0 0
        %5780 = vmatpush1.bf16.msra.mxu0 0
        %5781 = vmatprep.subr.bf16.mxu0 0
        %5782 = vmatpush1.bf16.msra.mxu0 0
        %5783 = vmatprep.subr.bf16.mxu0 0
        %5784 = vmatpush1.bf16.msra.mxu0 0
        %5785 = vmatprep.subr.bf16.mxu0 0
        %5786 = vmatpush1.bf16.msra.mxu0 0
        %5787 = vmatprep.subr.bf16.mxu0 0
        %5788 = vmatpush1.bf16.msra.mxu0 0
        %5789 = vmatprep.subr.bf16.mxu0 0
        %5790 = vmatpush1.bf16.msra.mxu0 0
        %5791 = vmatprep.subr.bf16.mxu0 0
        %5792 = vmatpush1.bf16.msra.mxu0 0
        %5793 = vmatprep.subr.bf16.mxu0 0
        %5794 = vmatpush1.bf16.msra.mxu0 0
        %5795 = vmatprep.subr.bf16.mxu0 0
        %5796 = vmatpush1.bf16.msra.mxu0 0
        %5797 = vmatprep.subr.bf16.mxu0 0
        %5798 = vmatpush1.bf16.msra.mxu0 0
        %5799 = vmatprep.subr.bf16.mxu0 0
        %5800 = vmatpush1.bf16.msra.mxu0 0
        %5801 = vmatprep.subr.bf16.mxu0 0
        %5802 = vmatpush1.bf16.msra.mxu0 0
        %5803 = vmatprep.subr.bf16.mxu0 0
        %5804 = vmatpush1.bf16.msra.mxu0 0
        %5805 = vmatprep.mubr.bf16.mxu0 0
        %5806 = vmatmul.mubr.bf16.gmra.mrb[0].mxu0 %v5715
        %v5807 = vpop.f32.mrb[0].mxu0
        %v5808 = vadd.f32 %v5755, %v5807
        %v5809 = vpop.f32.mrb[0].mxu0
        %v5810 = vadd.f32 %v5757, %v5809
        %v5811 = vpop.f32.mrb[0].mxu0
        %v5812 = vadd.f32 %v5759, %v5811
        %v5813 = vpop.f32.mrb[0].mxu0
        %v5814 = vadd.f32 %v5761, %v5813
        %5815 = vmatprep.mubr.bf16.mxu0 0
        %5816 = vmatmul.mubr.bf16.gmra.mrb[0].mxu0 %v5718
        %v5817 = vpop.f32.mrb[0].mxu0
        %v5818 = vadd.f32 %v5765, %v5817
        %v5819 = vpop.f32.mrb[0].mxu0
        %v5820 = vadd.f32 %v5767, %v5819
        %v5821 = vpop.f32.mrb[0].mxu0
        %v5822 = vadd.f32 %v5769, %v5821
        %v5823 = vpop.f32.mrb[0].mxu0
        %v5824 = vadd.f32 %v5771, %v5823
        %5825 = vdwg.mxu0
        %v5826 = vpack.c.bf16 %v5812, %v5808
        %v5827 = vpack.c.bf16 %v5814, %v5810
        %v5828 = vpack.c.bf16 %v5822, %v5818
        %v5829 = vpack.c.bf16 %v5824, %v5820
        %5830 = vst [vmem:[#allocation2 + $0x8] sm:$0xff] %v5826
        %5831 = vst [vmem:[#allocation2 + $0x10] sm:$0xff] %v5827
        %5832 = vst [vmem:[#allocation2 + $0x28] sm:$0xff] %v5828
        %5833 = vst [vmem:[#allocation2 + $0x30] sm:$0xff] %v5829
        %s5834 = scalar_lea.vmem [#allocation10], 432
        %v5835 = vld [vmem:[%s5834] sm:$0xff]
        %v5836 = vld [vmem:[%s5834 + $0x8] sm:$0xf]
        %v5837 = vld [vmem:[%s5834 + $0xc] sm:$0xff]
        %v5838 = vld [vmem:[%s5834 + $0x14] sm:$0xf]
        %v5839 = vld [vmem:[%s5834 + $0x18] sm:$0xff]
        %v5840 = vld [vmem:[%s5834 + $0x20] sm:$0xf]
        %v5841 = vld [vmem:[%s5834 + $0x24] sm:$0xff]
        %v5842 = vld [vmem:[%s5834 + $0x2c] sm:$0xf]
        %s5843 = scalar_lea.vmem [#allocation12], 288
        %v5844 = vld [vmem:[%s5843] sm:$0xff]
        %v5845 = vld [vmem:[%s5843 + $0x8] sm:$0xff]
        %v5846 = vld [vmem:[%s5843 + $0x10] sm:$0xff]
        %v5847 = vld [vmem:[%s5843 + $0x18] sm:$0xff]
        %v5848 = vld [vmem:[#allocation2] sm:$0xff]
        %v5849 = vld [vmem:[#allocation2 + $0x8] sm:$0xff]
        %v5850 = vld [vmem:[#allocation2 + $0x10] sm:$0xff]
        %v5851 = vld [vmem:[#allocation2 + $0x20] sm:$0xff]
        %v5852 = vld [vmem:[#allocation2 + $0x28] sm:$0xff]
        %v5853 = vld [vmem:[#allocation2 + $0x30] sm:$0xff]
        %v5854 = vmul.bf16 %v5848, %v477
        %v5855 = vmul.bf16 %v5849, %v481
        %v5856 = vmul.bf16 %v5850, %v479
        %v5857 = vmul.bf16 %v5851, %v477
        %v5858 = vmul.bf16 %v5852, %v481
        %v5859 = vmul.bf16 %v5853, %v479
        %v5860 = vmul.bf16 %v5848, %v531
        %v5861 = vmul.bf16 %v5849, %v535
        %v5862 = vmul.bf16 %v5850, %v533
        %v5863 = vmul.bf16 %v5851, %v531
        %v5864 = vmul.bf16 %v5852, %v535
        %v5865 = vmul.bf16 %v5853, %v533
        %v5866 = vmul.bf16 %v5848, %v546
        %v5867 = vmul.bf16 %v5849, %v550
        %v5868 = vmul.bf16 %v5850, %v548
        %v5869 = vmul.bf16 %v5851, %v546
        %v5870 = vmul.bf16 %v5852, %v550
        %v5871 = vmul.bf16 %v5853, %v548
        %v5872 = vld [vmem:[#allocation2 + $0x8] sm:$0xff]
        %v5873 = vld [vmem:[#allocation2 + $0x10] sm:$0xff]
        %v5874 = vld [vmem:[#allocation2 + $0x18] sm:$0xff]
        %v5875 = vld [vmem:[#allocation2 + $0x28] sm:$0xff]
        %v5876 = vld [vmem:[#allocation2 + $0x30] sm:$0xff]
        %v5877 = vld [vmem:[#allocation2 + $0x38] sm:$0xff]
        %v5878 = vmul.bf16 %v5872, %v567
        %v5879 = vmul.bf16 %v5873, %v571
        %v5880 = vmul.bf16 %v5874, %v569
        %v5881 = vmul.bf16 %v5875, %v567
        %v5882 = vmul.bf16 %v5876, %v571
        %v5883 = vmul.bf16 %v5877, %v569
        %v5884 = vmul.bf16 %v5872, %v582
        %v5885 = vmul.bf16 %v5873, %v586
        %v5886 = vmul.bf16 %v5874, %v584
        %v5887 = vmul.bf16 %v5875, %v582
        %v5888 = vmul.bf16 %v5876, %v586
        %v5889 = vmul.bf16 %v5877, %v584
        %v5890 = vmul.bf16 %v5872, %v597
        %v5891 = vmul.bf16 %v5873, %v601
        %v5892 = vmul.bf16 %v5874, %v599
        %v5893 = vmul.bf16 %v5875, %v597
        %v5894 = vmul.bf16 %v5876, %v601
        %v5895 = vmul.bf16 %v5877, %v599
        %5902 = vrot.lane.b32.xlu0 %v5848, 127
        %v5903 = vpop.permute.xlu0 %5902
        %5904 = vrot.lane.b32.xlu0 %v5849, 127
        %v5905 = vpop.permute.xlu0 %5904
        %5906 = vrot.lane.b32.xlu0 %v5850, 127
        %v5907 = vpop.permute.xlu0 %5906
        %5908 = vrot.lane.b32.xlu0 %v5851, 127
        %v5909 = vpop.permute.xlu0 %5908
        %5910 = vrot.lane.b32.xlu0 %v5852, 127
        %v5911 = vpop.permute.xlu0 %5910
        %5912 = vrot.lane.b32.xlu0 %v5853, 127
        %v5913 = vpop.permute.xlu0 %5912
        %v5914 = vsel %vm549, %v5903, %v5905
        %v5915 = vsel %vm549, %v5905, %v5907
        %v5916 = vsel %vm549, %v5909, %v5911
        %v5917 = vsel %vm549, %v5911, %v5913
        %5924 = vrot.lane.b32.xlu0 %v5860, 126
        %v5925 = vpop.permute.xlu0 %5924
        %5926 = vrot.lane.b32.xlu0 %v5861, 126
        %v5927 = vpop.permute.xlu0 %5926
        %5928 = vrot.lane.b32.xlu0 %v5862, 126
        %v5929 = vpop.permute.xlu0 %5928
        %5930 = vrot.lane.b32.xlu0 %v5863, 126
        %v5931 = vpop.permute.xlu0 %5930
        %5932 = vrot.lane.b32.xlu0 %v5864, 126
        %v5933 = vpop.permute.xlu0 %5932
        %5934 = vrot.lane.b32.xlu0 %v5865, 126
        %v5935 = vpop.permute.xlu0 %5934
        %v5936 = vsel %vm651, %v5925, %v5927
        %v5937 = vsel %vm651, %v5927, %v5929
        %v5938 = vsel %vm651, %v5931, %v5933
        %v5939 = vsel %vm651, %v5933, %v5935
        %5946 = vrot.lane.b32.xlu0 %v5866, 112
        %v5947 = vpop.permute.xlu0 %5946
        %5948 = vrot.lane.b32.xlu0 %v5867, 112
        %v5949 = vpop.permute.xlu0 %5948
        %5950 = vrot.lane.b32.xlu0 %v5868, 112
        %v5951 = vpop.permute.xlu0 %5950
        %5952 = vrot.lane.b32.xlu0 %v5869, 112
        %v5953 = vpop.permute.xlu0 %5952
        %5954 = vrot.lane.b32.xlu0 %v5870, 112
        %v5955 = vpop.permute.xlu0 %5954
        %5956 = vrot.lane.b32.xlu0 %v5871, 112
        %v5957 = vpop.permute.xlu0 %5956
        %v5958 = vsel %vm674, %v5947, %v5949
        %v5959 = vsel %vm674, %v5949, %v5951
        %v5960 = vsel %vm674, %v5953, %v5955
        %v5961 = vsel %vm674, %v5955, %v5957
        %5962 = vrot.lane.b32.xlu0 %v5849, 111
        %v5963 = vpop.permute.xlu0 %5962
        %5964 = vrot.lane.b32.xlu0 %v5850, 111
        %v5965 = vpop.permute.xlu0 %5964
        %5966 = vrot.lane.b32.xlu0 %v5852, 111
        %v5967 = vpop.permute.xlu0 %5966
        %5968 = vrot.lane.b32.xlu0 %v5853, 111
        %v5969 = vpop.permute.xlu0 %5968
        %v5970 = vsel %vm480, %v5963, %v5965
        %v5971 = vsel %vm480, %v5967, %v5969
        %5978 = vrot.lane.b32.xlu0 %v5878, 110
        %v5979 = vpop.permute.xlu0 %5978
        %5980 = vrot.lane.b32.xlu0 %v5879, 110
        %v5981 = vpop.permute.xlu0 %5980
        %5982 = vrot.lane.b32.xlu0 %v5880, 110
        %v5983 = vpop.permute.xlu0 %5982
        %5984 = vrot.lane.b32.xlu0 %v5881, 110
        %v5985 = vpop.permute.xlu0 %5984
        %5986 = vrot.lane.b32.xlu0 %v5882, 110
        %v5987 = vpop.permute.xlu0 %5986
        %5988 = vrot.lane.b32.xlu0 %v5883, 110
        %v5989 = vpop.permute.xlu0 %5988
        %v5990 = vsel %vm707, %v5979, %v5981
        %v5991 = vsel %vm707, %v5981, %v5983
        %v5992 = vsel %vm707, %v5985, %v5987
        %v5993 = vsel %vm707, %v5987, %v5989
        %6000 = vrot.lane.b32.xlu0 %v5884, 96
        %v6001 = vpop.permute.xlu0 %6000
        %6002 = vrot.lane.b32.xlu0 %v5885, 96
        %v6003 = vpop.permute.xlu0 %6002
        %6004 = vrot.lane.b32.xlu0 %v5886, 96
        %v6005 = vpop.permute.xlu0 %6004
        %6006 = vrot.lane.b32.xlu0 %v5887, 96
        %v6007 = vpop.permute.xlu0 %6006
        %6008 = vrot.lane.b32.xlu0 %v5888, 96
        %v6009 = vpop.permute.xlu0 %6008
        %6010 = vrot.lane.b32.xlu0 %v5889, 96
        %v6011 = vpop.permute.xlu0 %6010
        %v6012 = vsel %vm730, %v6001, %v6003
        %v6013 = vsel %vm730, %v6003, %v6005
        %v6014 = vsel %vm730, %v6007, %v6009
        %v6015 = vsel %vm730, %v6009, %v6011
        %6022 = vrot.lane.b32.xlu0 %v5872, 95
        %v6023 = vpop.permute.xlu0 %6022
        %6024 = vrot.lane.b32.xlu0 %v5873, 95
        %v6025 = vpop.permute.xlu0 %6024
        %6026 = vrot.lane.b32.xlu0 %v5874, 95
        %v6027 = vpop.permute.xlu0 %6026
        %6028 = vrot.lane.b32.xlu0 %v5875, 95
        %v6029 = vpop.permute.xlu0 %6028
        %6030 = vrot.lane.b32.xlu0 %v5876, 95
        %v6031 = vpop.permute.xlu0 %6030
        %6032 = vrot.lane.b32.xlu0 %v5877, 95
        %v6033 = vpop.permute.xlu0 %6032
        %v6034 = vsel %vm753, %v6023, %v6025
        %v6035 = vsel %vm753, %v6025, %v6027
        %v6036 = vsel %vm753, %v6029, %v6031
        %v6037 = vsel %vm753, %v6031, %v6033
        %6044 = vrot.lane.b32.xlu0 %v5890, 94
        %v6045 = vpop.permute.xlu0 %6044
        %6046 = vrot.lane.b32.xlu0 %v5891, 94
        %v6047 = vpop.permute.xlu0 %6046
        %6048 = vrot.lane.b32.xlu0 %v5892, 94
        %v6049 = vpop.permute.xlu0 %6048
        %6050 = vrot.lane.b32.xlu0 %v5893, 94
        %v6051 = vpop.permute.xlu0 %6050
        %6052 = vrot.lane.b32.xlu0 %v5894, 94
        %v6053 = vpop.permute.xlu0 %6052
        %6054 = vrot.lane.b32.xlu0 %v5895, 94
        %v6055 = vpop.permute.xlu0 %6054
        %v6056 = vsel %vm776, %v6045, %v6047
        %v6057 = vsel %vm776, %v6047, %v6049
        %v6058 = vsel %vm776, %v6051, %v6053
        %v6059 = vsel %vm776, %v6053, %v6055
        %6061 = vset.pattern.permute.xlu0 0
        %6062 = vperm.xlu0 %6061, %v5844
        %v6063 = vpop.permute.xlu0 %6062
        %6066 = vset.pattern.permute.xlu0 0
        %6067 = vperm.xlu0 %6066, %v5845
        %v6068 = vpop.permute.xlu0 %6067
        %6071 = vset.pattern.permute.xlu0 0
        %6072 = vperm.xlu0 %6071, %v5846
        %v6073 = vpop.permute.xlu0 %6072
        %6076 = vset.pattern.permute.xlu0 0
        %6077 = vperm.xlu0 %6076, %v5847
        %v6078 = vpop.permute.xlu0 %6077
        %v6088 = vunpack.c.l.b16 %v5835
        %v6089 = vunpack.c.h.b16 %v5835
        %v6090 = vunpack.c.l.b16 %v5836
        %v6091 = vunpack.c.l.b16 %v5837
        %v6092 = vunpack.c.h.b16 %v5837
        %v6093 = vunpack.c.l.b16 %v5838
        %v6094 = vunpack.c.l.b16 %v5839
        %v6095 = vunpack.c.h.b16 %v5839
        %v6096 = vunpack.c.l.b16 %v5840
        %v6097 = vunpack.c.l.b16 %v5841
        %v6098 = vunpack.c.h.b16 %v5841
        %v6099 = vunpack.c.l.b16 %v5842
        %v6100 = vpack.c.b16 %v6091, %v6088
        %v6101 = vpack.c.b16 %v6092, %v6089
        %v6102 = vpack.c.b16 %v6093, %v6090
        %v6103 = vpack.c.b16 %v6097, %v6094
        %v6104 = vpack.c.b16 %v6098, %v6095
        %v6105 = vpack.c.b16 %v6099, %v6096
        %6116 = vrot.lane.b32.xlu0 %v5854, 17
        %v6117 = vpop.permute.xlu0 %6116
        %6118 = vrot.lane.b32.xlu0 %v5855, 17
        %v6119 = vpop.permute.xlu0 %6118
        %6120 = vrot.lane.b32.xlu0 %v5856, 17
        %v6121 = vpop.permute.xlu0 %6120
        %6122 = vrot.lane.b32.xlu0 %v5857, 17
        %v6123 = vpop.permute.xlu0 %6122
        %6124 = vrot.lane.b32.xlu0 %v5858, 17
        %v6125 = vpop.permute.xlu0 %6124
        %6126 = vrot.lane.b32.xlu0 %v5859, 17
        %v6127 = vpop.permute.xlu0 %6126
        %6128 = vrot.lane.b32.xlu0 %v5914, 17
        %v6129 = vpop.permute.xlu0 %6128
        %6130 = vrot.lane.b32.xlu0 %v5915, 17
        %v6131 = vpop.permute.xlu0 %6130
        %6132 = vrot.lane.b32.xlu0 %v5907, 17
        %v6133 = vpop.permute.xlu0 %6132
        %6134 = vrot.lane.b32.xlu0 %v5916, 17
        %v6135 = vpop.permute.xlu0 %6134
        %6136 = vrot.lane.b32.xlu0 %v5917, 17
        %v6137 = vpop.permute.xlu0 %6136
        %6138 = vrot.lane.b32.xlu0 %v5913, 17
        %v6139 = vpop.permute.xlu0 %6138
        %6140 = vrot.lane.b32.xlu0 %v5936, 17
        %v6141 = vpop.permute.xlu0 %6140
        %6142 = vrot.lane.b32.xlu0 %v5937, 17
        %v6143 = vpop.permute.xlu0 %6142
        %6144 = vrot.lane.b32.xlu0 %v5929, 17
        %v6145 = vpop.permute.xlu0 %6144
        %6146 = vrot.lane.b32.xlu0 %v5938, 17
        %v6147 = vpop.permute.xlu0 %6146
        %6148 = vrot.lane.b32.xlu0 %v5939, 17
        %v6149 = vpop.permute.xlu0 %6148
        %6150 = vrot.lane.b32.xlu0 %v5935, 17
        %v6151 = vpop.permute.xlu0 %6150
        %6152 = vrot.lane.b32.xlu0 %v5958, 17
        %v6153 = vpop.permute.xlu0 %6152
        %6154 = vrot.lane.b32.xlu0 %v5959, 17
        %v6155 = vpop.permute.xlu0 %6154
        %6156 = vrot.lane.b32.xlu0 %v5951, 17
        %v6157 = vpop.permute.xlu0 %6156
        %6158 = vrot.lane.b32.xlu0 %v5960, 17
        %v6159 = vpop.permute.xlu0 %6158
        %6160 = vrot.lane.b32.xlu0 %v5961, 17
        %v6161 = vpop.permute.xlu0 %6160
        %6162 = vrot.lane.b32.xlu0 %v5957, 17
        %v6163 = vpop.permute.xlu0 %6162
        %6164 = vrot.lane.b32.xlu0 %v5963, 17
        %v6165 = vpop.permute.xlu0 %6164
        %6166 = vrot.lane.b32.xlu0 %v5970, 17
        %v6167 = vpop.permute.xlu0 %6166
        %6168 = vrot.lane.b32.xlu0 %v5965, 17
        %v6169 = vpop.permute.xlu0 %6168
        %6170 = vrot.lane.b32.xlu0 %v5967, 17
        %v6171 = vpop.permute.xlu0 %6170
        %6172 = vrot.lane.b32.xlu0 %v5971, 17
        %v6173 = vpop.permute.xlu0 %6172
        %6174 = vrot.lane.b32.xlu0 %v5969, 17
        %v6175 = vpop.permute.xlu0 %6174
        %6176 = vrot.lane.b32.xlu0 %v5979, 17
        %v6177 = vpop.permute.xlu0 %6176
        %6178 = vrot.lane.b32.xlu0 %v5990, 17
        %v6179 = vpop.permute.xlu0 %6178
        %6180 = vrot.lane.b32.xlu0 %v5991, 17
        %v6181 = vpop.permute.xlu0 %6180
        %6182 = vrot.lane.b32.xlu0 %v5985, 17
        %v6183 = vpop.permute.xlu0 %6182
        %6184 = vrot.lane.b32.xlu0 %v5992, 17
        %v6185 = vpop.permute.xlu0 %6184
        %6186 = vrot.lane.b32.xlu0 %v5993, 17
        %v6187 = vpop.permute.xlu0 %6186
        %6188 = vrot.lane.b32.xlu0 %v6001, 17
        %v6189 = vpop.permute.xlu0 %6188
        %6190 = vrot.lane.b32.xlu0 %v6012, 17
        %v6191 = vpop.permute.xlu0 %6190
        %6192 = vrot.lane.b32.xlu0 %v6013, 17
        %v6193 = vpop.permute.xlu0 %6192
        %6194 = vrot.lane.b32.xlu0 %v6007, 17
        %v6195 = vpop.permute.xlu0 %6194
        %6196 = vrot.lane.b32.xlu0 %v6014, 17
        %v6197 = vpop.permute.xlu0 %6196
        %6198 = vrot.lane.b32.xlu0 %v6015, 17
        %v6199 = vpop.permute.xlu0 %6198
        %6200 = vrot.lane.b32.xlu0 %v6023, 17
        %v6201 = vpop.permute.xlu0 %6200
        %6202 = vrot.lane.b32.xlu0 %v6034, 17
        %v6203 = vpop.permute.xlu0 %6202
        %6204 = vrot.lane.b32.xlu0 %v6035, 17
        %v6205 = vpop.permute.xlu0 %6204
        %6206 = vrot.lane.b32.xlu0 %v6029, 17
        %v6207 = vpop.permute.xlu0 %6206
        %6208 = vrot.lane.b32.xlu0 %v6036, 17
        %v6209 = vpop.permute.xlu0 %6208
        %6210 = vrot.lane.b32.xlu0 %v6037, 17
        %v6211 = vpop.permute.xlu0 %6210
        %6212 = vrot.lane.b32.xlu0 %v6045, 17
        %v6213 = vpop.permute.xlu0 %6212
        %6214 = vrot.lane.b32.xlu0 %v6056, 17
        %v6215 = vpop.permute.xlu0 %6214
        %6216 = vrot.lane.b32.xlu0 %v6057, 17
        %v6217 = vpop.permute.xlu0 %6216
        %6218 = vrot.lane.b32.xlu0 %v6051, 17
        %v6219 = vpop.permute.xlu0 %6218
        %6220 = vrot.lane.b32.xlu0 %v6058, 17
        %v6221 = vpop.permute.xlu0 %6220
        %6222 = vrot.lane.b32.xlu0 %v6059, 17
        %v6223 = vpop.permute.xlu0 %6222
        %v6224 = vsel %vm600, %v6117, %v6119
        %v6225 = vsel %vm600, %v6119, %v6121
        %v6226 = vsel %vm600, %v6123, %v6125
        %v6227 = vsel %vm600, %v6125, %v6127
        %v6228 = vsel %vm600, %v6129, %v6131
        %v6229 = vsel %vm600, %v6131, %v6133
        %v6230 = vsel %vm600, %v6135, %v6137
        %v6231 = vsel %vm600, %v6137, %v6139
        %v6232 = vsel %vm600, %v6141, %v6143
        %v6233 = vsel %vm600, %v6143, %v6145
        %v6234 = vsel %vm600, %v6147, %v6149
        %v6235 = vsel %vm600, %v6149, %v6151
        %v6236 = vsel %vm600, %v6153, %v6155
        %v6237 = vsel %vm600, %v6155, %v6157
        %v6238 = vsel %vm600, %v6159, %v6161
        %v6239 = vsel %vm600, %v6161, %v6163
        %v6240 = vsel %vm600, %v6165, %v6167
        %v6241 = vsel %vm600, %v6167, %v6169
        %v6242 = vsel %vm600, %v6171, %v6173
        %v6243 = vsel %vm600, %v6173, %v6175
        %v6244 = vsel %vm600, %v6177, %v6179
        %v6245 = vsel %vm600, %v6179, %v6181
        %v6246 = vsel %vm600, %v6183, %v6185
        %v6247 = vsel %vm600, %v6185, %v6187
        %v6248 = vsel %vm600, %v6189, %v6191
        %v6249 = vsel %vm600, %v6191, %v6193
        %v6250 = vsel %vm600, %v6195, %v6197
        %v6251 = vsel %vm600, %v6197, %v6199
        %v6252 = vsel %vm600, %v6201, %v6203
        %v6253 = vsel %vm600, %v6203, %v6205
        %v6254 = vsel %vm600, %v6207, %v6209
        %v6255 = vsel %vm600, %v6209, %v6211
        %v6256 = vsel %vm600, %v6213, %v6215
        %v6257 = vsel %vm600, %v6215, %v6217
        %v6258 = vsel %vm600, %v6219, %v6221
        %v6259 = vsel %vm600, %v6221, %v6223
        %v6297 = vsel %vm1017, %v6102, 0
        %v6300 = vsel %vm1017, %v6105, 0
        %6302 = vmatprep.subr.bf16.mxu0 %v6225
        %6303 = vmatpush1.bf16.msra.mxu0 %v6224
        %6304 = vmatprep.subr.bf16.mxu0 %v6227
        %6305 = vmatpush1.bf16.msra.mxu0 %v6226
        %6306 = vmatprep.subr.bf16.mxu0 %v6229
        %6307 = vmatpush1.bf16.msra.mxu0 %v6228
        %6308 = vmatprep.subr.bf16.mxu0 %v6231
        %6309 = vmatpush1.bf16.msra.mxu0 %v6230
        %6310 = vmatprep.subr.bf16.mxu0 %v6233
        %6311 = vmatpush1.bf16.msra.mxu0 %v6232
        %6312 = vmatprep.subr.bf16.mxu0 %v6235
        %6313 = vmatpush1.bf16.msra.mxu0 %v6234
        %6314 = vmatprep.subr.bf16.mxu0 %v6237
        %6315 = vmatpush1.bf16.msra.mxu0 %v6236
        %6316 = vmatprep.subr.bf16.mxu0 %v6239
        %6317 = vmatpush1.bf16.msra.mxu0 %v6238
        %6318 = vmatprep.subr.bf16.mxu0 %v6241
        %6319 = vmatpush1.bf16.msra.mxu0 %v6240
        %6320 = vmatprep.subr.bf16.mxu0 %v6243
        %6321 = vmatpush1.bf16.msra.mxu0 %v6242
        %6322 = vmatprep.subr.bf16.mxu0 %v6245
        %6323 = vmatpush1.bf16.msra.mxu0 %v6244
        %6324 = vmatprep.subr.bf16.mxu0 %v6247
        %6325 = vmatpush1.bf16.msra.mxu0 %v6246
        %6326 = vmatprep.subr.bf16.mxu0 %v6249
        %6327 = vmatpush1.bf16.msra.mxu0 %v6248
        %6328 = vmatprep.subr.bf16.mxu0 %v6251
        %6329 = vmatpush1.bf16.msra.mxu0 %v6250
        %6330 = vmatprep.subr.bf16.mxu0 %v6253
        %6331 = vmatpush1.bf16.msra.mxu0 %v6252
        %6332 = vmatprep.subr.bf16.mxu0 %v6255
        %6333 = vmatpush1.bf16.msra.mxu0 %v6254
        %6334 = vmatprep.mubr.bf16.mxu0 %v6101
        %6335 = vmatmul.mubr.bf16.gmra.mrb[0].mxu0 %v6100
        %v6336 = vpop.f32.mrb[0].mxu0
        %v6337 = vadd.f32 %v6063, %v6336
        %v6338 = vpop.f32.mrb[0].mxu0
        %v6339 = vadd.f32 %v6063, %v6338
        %v6340 = vpop.f32.mrb[0].mxu0
        %v6341 = vadd.f32 %v6068, %v6340
        %v6342 = vpop.f32.mrb[0].mxu0
        %v6343 = vadd.f32 %v6068, %v6342
        %6344 = vmatprep.mubr.bf16.mxu0 %v6104
        %6345 = vmatmul.mubr.bf16.gmra.mrb[0].mxu0 %v6103
        %v6346 = vpop.f32.mrb[0].mxu0
        %v6347 = vadd.f32 %v6073, %v6346
        %v6348 = vpop.f32.mrb[0].mxu0
        %v6349 = vadd.f32 %v6073, %v6348
        %v6350 = vpop.f32.mrb[0].mxu0
        %v6351 = vadd.f32 %v6078, %v6350
        %v6352 = vpop.f32.mrb[0].mxu0
        %v6353 = vadd.f32 %v6078, %v6352
        %6354 = vdwg.mxu0
        %6355 = vmatprep.subr.bf16.mxu0 %v6257
        %6356 = vmatpush1.bf16.msra.mxu0 %v6256
        %6357 = vmatprep.subr.bf16.mxu0 %v6259
        %6358 = vmatpush1.bf16.msra.mxu0 %v6258
        %6359 = vmatprep.subr.bf16.mxu0 0
        %6360 = vmatpush1.bf16.msra.mxu0 0
        %6361 = vmatprep.subr.bf16.mxu0 0
        %6362 = vmatpush1.bf16.msra.mxu0 0
        %6363 = vmatprep.subr.bf16.mxu0 0
        %6364 = vmatpush1.bf16.msra.mxu0 0
        %6365 = vmatprep.subr.bf16.mxu0 0
        %6366 = vmatpush1.bf16.msra.mxu0 0
        %6367 = vmatprep.subr.bf16.mxu0 0
        %6368 = vmatpush1.bf16.msra.mxu0 0
        %6369 = vmatprep.subr.bf16.mxu0 0
        %6370 = vmatpush1.bf16.msra.mxu0 0
        %6371 = vmatprep.subr.bf16.mxu0 0
        %6372 = vmatpush1.bf16.msra.mxu0 0
        %6373 = vmatprep.subr.bf16.mxu0 0
        %6374 = vmatpush1.bf16.msra.mxu0 0
        %6375 = vmatprep.subr.bf16.mxu0 0
        %6376 = vmatpush1.bf16.msra.mxu0 0
        %6377 = vmatprep.subr.bf16.mxu0 0
        %6378 = vmatpush1.bf16.msra.mxu0 0
        %6379 = vmatprep.subr.bf16.mxu0 0
        %6380 = vmatpush1.bf16.msra.mxu0 0
        %6381 = vmatprep.subr.bf16.mxu0 0
        %6382 = vmatpush1.bf16.msra.mxu0 0
        %6383 = vmatprep.subr.bf16.mxu0 0
        %6384 = vmatpush1.bf16.msra.mxu0 0
        %6385 = vmatprep.subr.bf16.mxu0 0
        %6386 = vmatpush1.bf16.msra.mxu0 0
        %6387 = vmatprep.mubr.bf16.mxu0 0
        %6388 = vmatmul.mubr.bf16.gmra.mrb[0].mxu0 %v6297
        %v6389 = vpop.f32.mrb[0].mxu0
        %v6390 = vadd.f32 %v6337, %v6389
        %v6391 = vpop.f32.mrb[0].mxu0
        %v6392 = vadd.f32 %v6339, %v6391
        %v6393 = vpop.f32.mrb[0].mxu0
        %v6394 = vadd.f32 %v6341, %v6393
        %v6395 = vpop.f32.mrb[0].mxu0
        %v6396 = vadd.f32 %v6343, %v6395
        %6397 = vmatprep.mubr.bf16.mxu0 0
        %6398 = vmatmul.mubr.bf16.gmra.mrb[0].mxu0 %v6300
        %v6399 = vpop.f32.mrb[0].mxu0
        %v6400 = vadd.f32 %v6347, %v6399
        %v6401 = vpop.f32.mrb[0].mxu0
        %v6402 = vadd.f32 %v6349, %v6401
        %v6403 = vpop.f32.mrb[0].mxu0
        %v6404 = vadd.f32 %v6351, %v6403
        %v6405 = vpop.f32.mrb[0].mxu0
        %v6406 = vadd.f32 %v6353, %v6405
        %6407 = vdwg.mxu0
        %v6408 = vmax.f32 %v6390, 0.0
        %v6409 = vmax.f32 %v6392, 0.0
        %v6410 = vmax.f32 %v6394, 0.0
        %v6411 = vmax.f32 %v6396, 0.0
        %v6412 = vmax.f32 %v6400, 0.0
        %v6413 = vmax.f32 %v6402, 0.0
        %v6414 = vmax.f32 %v6404, 0.0
        %v6415 = vmax.f32 %v6406, 0.0
        %v6416 = vpack.c.bf16 %v6410, %v6408
        %v6417 = vpack.c.bf16 %v6411, %v6409
        %v6418 = vpack.c.bf16 %v6414, %v6412
        %v6419 = vpack.c.bf16 %v6415, %v6413
        %6420 = vst [vmem:[#allocation2 + $0x8] sm:$0xff] %v6416
        %6421 = vst [vmem:[#allocation2 + $0x10] sm:$0xff] %v6417
        %6422 = vst [vmem:[#allocation2 + $0x28] sm:$0xff] %v6418
        %6423 = vst [vmem:[#allocation2 + $0x30] sm:$0xff] %v6419
        %s6424 = scalar_lea.vmem [#allocation10], 480
        %v6425 = vld [vmem:[%s6424] sm:$0xff]
        %v6426 = vld [vmem:[%s6424 + $0x8] sm:$0xf]
        %v6427 = vld [vmem:[%s6424 + $0xc] sm:$0xff]
        %v6428 = vld [vmem:[%s6424 + $0x14] sm:$0xf]
        %v6429 = vld [vmem:[%s6424 + $0x18] sm:$0xff]
        %v6430 = vld [vmem:[%s6424 + $0x20] sm:$0xf]
        %v6431 = vld [vmem:[%s6424 + $0x24] sm:$0xff]
        %v6432 = vld [vmem:[%s6424 + $0x2c] sm:$0xf]
        %s6433 = scalar_lea.vmem [#allocation12], 320
        %v6434 = vld [vmem:[%s6433] sm:$0xff]
        %v6435 = vld [vmem:[%s6433 + $0x8] sm:$0xff]
        %v6436 = vld [vmem:[%s6433 + $0x10] sm:$0xff]
        %v6437 = vld [vmem:[%s6433 + $0x18] sm:$0xff]
        %v6438 = vld [vmem:[#allocation2] sm:$0xff]
        %v6439 = vld [vmem:[#allocation2 + $0x8] sm:$0xff]
        %v6440 = vld [vmem:[#allocation2 + $0x10] sm:$0xff]
        %v6441 = vld [vmem:[#allocation2 + $0x20] sm:$0xff]
        %v6442 = vld [vmem:[#allocation2 + $0x28] sm:$0xff]
        %v6443 = vld [vmem:[#allocation2 + $0x30] sm:$0xff]
        %v6444 = vmul.bf16 %v6438, %v477
        %v6445 = vmul.bf16 %v6439, %v481
        %v6446 = vmul.bf16 %v6440, %v479
        %v6447 = vmul.bf16 %v6441, %v477
        %v6448 = vmul.bf16 %v6442, %v481
        %v6449 = vmul.bf16 %v6443, %v479
        %v6450 = vmul.bf16 %v6438, %v531
        %v6451 = vmul.bf16 %v6439, %v535
        %v6452 = vmul.bf16 %v6440, %v533
        %v6453 = vmul.bf16 %v6441, %v531
        %v6454 = vmul.bf16 %v6442, %v535
        %v6455 = vmul.bf16 %v6443, %v533
        %v6456 = vmul.bf16 %v6438, %v546
        %v6457 = vmul.bf16 %v6439, %v550
        %v6458 = vmul.bf16 %v6440, %v548
        %v6459 = vmul.bf16 %v6441, %v546
        %v6460 = vmul.bf16 %v6442, %v550
        %v6461 = vmul.bf16 %v6443, %v548
        %v6462 = vld [vmem:[#allocation2 + $0x8] sm:$0xff]
        %v6463 = vld [vmem:[#allocation2 + $0x10] sm:$0xff]
        %v6464 = vld [vmem:[#allocation2 + $0x18] sm:$0xff]
        %v6465 = vld [vmem:[#allocation2 + $0x28] sm:$0xff]
        %v6466 = vld [vmem:[#allocation2 + $0x30] sm:$0xff]
        %v6467 = vld [vmem:[#allocation2 + $0x38] sm:$0xff]
        %v6468 = vmul.bf16 %v6462, %v567
        %v6469 = vmul.bf16 %v6463, %v571
        %v6470 = vmul.bf16 %v6464, %v569
        %v6471 = vmul.bf16 %v6465, %v567
        %v6472 = vmul.bf16 %v6466, %v571
        %v6473 = vmul.bf16 %v6467, %v569
        %v6474 = vmul.bf16 %v6462, %v582
        %v6475 = vmul.bf16 %v6463, %v586
        %v6476 = vmul.bf16 %v6464, %v584
        %v6477 = vmul.bf16 %v6465, %v582
        %v6478 = vmul.bf16 %v6466, %v586
        %v6479 = vmul.bf16 %v6467, %v584
        %v6480 = vmul.bf16 %v6462, %v597
        %v6481 = vmul.bf16 %v6463, %v601
        %v6482 = vmul.bf16 %v6464, %v599
        %v6483 = vmul.bf16 %v6465, %v597
        %v6484 = vmul.bf16 %v6466, %v601
        %v6485 = vmul.bf16 %v6467, %v599
        %6492 = vrot.lane.b32.xlu0 %v6438, 127
        %v6493 = vpop.permute.xlu0 %6492
        %6494 = vrot.lane.b32.xlu0 %v6439, 127
        %v6495 = vpop.permute.xlu0 %6494
        %6496 = vrot.lane.b32.xlu0 %v6440, 127
        %v6497 = vpop.permute.xlu0 %6496
        %6498 = vrot.lane.b32.xlu0 %v6441, 127
        %v6499 = vpop.permute.xlu0 %6498
        %6500 = vrot.lane.b32.xlu0 %v6442, 127
        %v6501 = vpop.permute.xlu0 %6500
        %6502 = vrot.lane.b32.xlu0 %v6443, 127
        %v6503 = vpop.permute.xlu0 %6502
        %v6504 = vsel %vm549, %v6493, %v6495
        %v6505 = vsel %vm549, %v6495, %v6497
        %v6506 = vsel %vm549, %v6499, %v6501
        %v6507 = vsel %vm549, %v6501, %v6503
        %6514 = vrot.lane.b32.xlu0 %v6450, 126
        %v6515 = vpop.permute.xlu0 %6514
        %6516 = vrot.lane.b32.xlu0 %v6451, 126
        %v6517 = vpop.permute.xlu0 %6516
        %6518 = vrot.lane.b32.xlu0 %v6452, 126
        %v6519 = vpop.permute.xlu0 %6518
        %6520 = vrot.lane.b32.xlu0 %v6453, 126
        %v6521 = vpop.permute.xlu0 %6520
        %6522 = vrot.lane.b32.xlu0 %v6454, 126
        %v6523 = vpop.permute.xlu0 %6522
        %6524 = vrot.lane.b32.xlu0 %v6455, 126
        %v6525 = vpop.permute.xlu0 %6524
        %v6526 = vsel %vm651, %v6515, %v6517
        %v6527 = vsel %vm651, %v6517, %v6519
        %v6528 = vsel %vm651, %v6521, %v6523
        %v6529 = vsel %vm651, %v6523, %v6525
        %6536 = vrot.lane.b32.xlu0 %v6456, 112
        %v6537 = vpop.permute.xlu0 %6536
        %6538 = vrot.lane.b32.xlu0 %v6457, 112
        %v6539 = vpop.permute.xlu0 %6538
        %6540 = vrot.lane.b32.xlu0 %v6458, 112
        %v6541 = vpop.permute.xlu0 %6540
        %6542 = vrot.lane.b32.xlu0 %v6459, 112
        %v6543 = vpop.permute.xlu0 %6542
        %6544 = vrot.lane.b32.xlu0 %v6460, 112
        %v6545 = vpop.permute.xlu0 %6544
        %6546 = vrot.lane.b32.xlu0 %v6461, 112
        %v6547 = vpop.permute.xlu0 %6546
        %v6548 = vsel %vm674, %v6537, %v6539
        %v6549 = vsel %vm674, %v6539, %v6541
        %v6550 = vsel %vm674, %v6543, %v6545
        %v6551 = vsel %vm674, %v6545, %v6547
        %6552 = vrot.lane.b32.xlu0 %v6439, 111
        %v6553 = vpop.permute.xlu0 %6552
        %6554 = vrot.lane.b32.xlu0 %v6440, 111
        %v6555 = vpop.permute.xlu0 %6554
        %6556 = vrot.lane.b32.xlu0 %v6442, 111
        %v6557 = vpop.permute.xlu0 %6556
        %6558 = vrot.lane.b32.xlu0 %v6443, 111
        %v6559 = vpop.permute.xlu0 %6558
        %v6560 = vsel %vm480, %v6553, %v6555
        %v6561 = vsel %vm480, %v6557, %v6559
        %6568 = vrot.lane.b32.xlu0 %v6468, 110
        %v6569 = vpop.permute.xlu0 %6568
        %6570 = vrot.lane.b32.xlu0 %v6469, 110
        %v6571 = vpop.permute.xlu0 %6570
        %6572 = vrot.lane.b32.xlu0 %v6470, 110
        %v6573 = vpop.permute.xlu0 %6572
        %6574 = vrot.lane.b32.xlu0 %v6471, 110
        %v6575 = vpop.permute.xlu0 %6574
        %6576 = vrot.lane.b32.xlu0 %v6472, 110
        %v6577 = vpop.permute.xlu0 %6576
        %6578 = vrot.lane.b32.xlu0 %v6473, 110
        %v6579 = vpop.permute.xlu0 %6578
        %v6580 = vsel %vm707, %v6569, %v6571
        %v6581 = vsel %vm707, %v6571, %v6573
        %v6582 = vsel %vm707, %v6575, %v6577
        %v6583 = vsel %vm707, %v6577, %v6579
        %6590 = vrot.lane.b32.xlu0 %v6474, 96
        %v6591 = vpop.permute.xlu0 %6590
        %6592 = vrot.lane.b32.xlu0 %v6475, 96
        %v6593 = vpop.permute.xlu0 %6592
        %6594 = vrot.lane.b32.xlu0 %v6476, 96
        %v6595 = vpop.permute.xlu0 %6594
        %6596 = vrot.lane.b32.xlu0 %v6477, 96
        %v6597 = vpop.permute.xlu0 %6596
        %6598 = vrot.lane.b32.xlu0 %v6478, 96
        %v6599 = vpop.permute.xlu0 %6598
        %6600 = vrot.lane.b32.xlu0 %v6479, 96
        %v6601 = vpop.permute.xlu0 %6600
        %v6602 = vsel %vm730, %v6591, %v6593
        %v6603 = vsel %vm730, %v6593, %v6595
        %v6604 = vsel %vm730, %v6597, %v6599
        %v6605 = vsel %vm730, %v6599, %v6601
        %6612 = vrot.lane.b32.xlu0 %v6462, 95
        %v6613 = vpop.permute.xlu0 %6612
        %6614 = vrot.lane.b32.xlu0 %v6463, 95
        %v6615 = vpop.permute.xlu0 %6614
        %6616 = vrot.lane.b32.xlu0 %v6464, 95
        %v6617 = vpop.permute.xlu0 %6616
        %6618 = vrot.lane.b32.xlu0 %v6465, 95
        %v6619 = vpop.permute.xlu0 %6618
        %6620 = vrot.lane.b32.xlu0 %v6466, 95
        %v6621 = vpop.permute.xlu0 %6620
        %6622 = vrot.lane.b32.xlu0 %v6467, 95
        %v6623 = vpop.permute.xlu0 %6622
        %v6624 = vsel %vm753, %v6613, %v6615
        %v6625 = vsel %vm753, %v6615, %v6617
        %v6626 = vsel %vm753, %v6619, %v6621
        %v6627 = vsel %vm753, %v6621, %v6623
        %6634 = vrot.lane.b32.xlu0 %v6480, 94
        %v6635 = vpop.permute.xlu0 %6634
        %6636 = vrot.lane.b32.xlu0 %v6481, 94
        %v6637 = vpop.permute.xlu0 %6636
        %6638 = vrot.lane.b32.xlu0 %v6482, 94
        %v6639 = vpop.permute.xlu0 %6638
        %6640 = vrot.lane.b32.xlu0 %v6483, 94
        %v6641 = vpop.permute.xlu0 %6640
        %6642 = vrot.lane.b32.xlu0 %v6484, 94
        %v6643 = vpop.permute.xlu0 %6642
        %6644 = vrot.lane.b32.xlu0 %v6485, 94
        %v6645 = vpop.permute.xlu0 %6644
        %v6646 = vsel %vm776, %v6635, %v6637
        %v6647 = vsel %vm776, %v6637, %v6639
        %v6648 = vsel %vm776, %v6641, %v6643
        %v6649 = vsel %vm776, %v6643, %v6645
        %6651 = vset.pattern.permute.xlu0 0
        %6652 = vperm.xlu0 %6651, %v6434
        %v6653 = vpop.permute.xlu0 %6652
        %6656 = vset.pattern.permute.xlu0 0
        %6657 = vperm.xlu0 %6656, %v6435
        %v6658 = vpop.permute.xlu0 %6657
        %6661 = vset.pattern.permute.xlu0 0
        %6662 = vperm.xlu0 %6661, %v6436
        %v6663 = vpop.permute.xlu0 %6662
        %6666 = vset.pattern.permute.xlu0 0
        %6667 = vperm.xlu0 %6666, %v6437
        %v6668 = vpop.permute.xlu0 %6667
        %v6678 = vunpack.c.l.b16 %v6425
        %v6679 = vunpack.c.h.b16 %v6425
        %v6680 = vunpack.c.l.b16 %v6426
        %v6681 = vunpack.c.l.b16 %v6427
        %v6682 = vunpack.c.h.b16 %v6427
        %v6683 = vunpack.c.l.b16 %v6428
        %v6684 = vunpack.c.l.b16 %v6429
        %v6685 = vunpack.c.h.b16 %v6429
        %v6686 = vunpack.c.l.b16 %v6430
        %v6687 = vunpack.c.l.b16 %v6431
        %v6688 = vunpack.c.h.b16 %v6431
        %v6689 = vunpack.c.l.b16 %v6432
        %v6690 = vpack.c.b16 %v6681, %v6678
        %v6691 = vpack.c.b16 %v6682, %v6679
        %v6692 = vpack.c.b16 %v6683, %v6680
        %v6693 = vpack.c.b16 %v6687, %v6684
        %v6694 = vpack.c.b16 %v6688, %v6685
        %v6695 = vpack.c.b16 %v6689, %v6686
        %6706 = vrot.lane.b32.xlu0 %v6444, 17
        %v6707 = vpop.permute.xlu0 %6706
        %6708 = vrot.lane.b32.xlu0 %v6445, 17
        %v6709 = vpop.permute.xlu0 %6708
        %6710 = vrot.lane.b32.xlu0 %v6446, 17
        %v6711 = vpop.permute.xlu0 %6710
        %6712 = vrot.lane.b32.xlu0 %v6447, 17
        %v6713 = vpop.permute.xlu0 %6712
        %6714 = vrot.lane.b32.xlu0 %v6448, 17
        %v6715 = vpop.permute.xlu0 %6714
        %6716 = vrot.lane.b32.xlu0 %v6449, 17
        %v6717 = vpop.permute.xlu0 %6716
        %6718 = vrot.lane.b32.xlu0 %v6504, 17
        %v6719 = vpop.permute.xlu0 %6718
        %6720 = vrot.lane.b32.xlu0 %v6505, 17
        %v6721 = vpop.permute.xlu0 %6720
        %6722 = vrot.lane.b32.xlu0 %v6497, 17
        %v6723 = vpop.permute.xlu0 %6722
        %6724 = vrot.lane.b32.xlu0 %v6506, 17
        %v6725 = vpop.permute.xlu0 %6724
        %6726 = vrot.lane.b32.xlu0 %v6507, 17
        %v6727 = vpop.permute.xlu0 %6726
        %6728 = vrot.lane.b32.xlu0 %v6503, 17
        %v6729 = vpop.permute.xlu0 %6728
        %6730 = vrot.lane.b32.xlu0 %v6526, 17
        %v6731 = vpop.permute.xlu0 %6730
        %6732 = vrot.lane.b32.xlu0 %v6527, 17
        %v6733 = vpop.permute.xlu0 %6732
        %6734 = vrot.lane.b32.xlu0 %v6519, 17
        %v6735 = vpop.permute.xlu0 %6734
        %6736 = vrot.lane.b32.xlu0 %v6528, 17
        %v6737 = vpop.permute.xlu0 %6736
        %6738 = vrot.lane.b32.xlu0 %v6529, 17
        %v6739 = vpop.permute.xlu0 %6738
        %6740 = vrot.lane.b32.xlu0 %v6525, 17
        %v6741 = vpop.permute.xlu0 %6740
        %6742 = vrot.lane.b32.xlu0 %v6548, 17
        %v6743 = vpop.permute.xlu0 %6742
        %6744 = vrot.lane.b32.xlu0 %v6549, 17
        %v6745 = vpop.permute.xlu0 %6744
        %6746 = vrot.lane.b32.xlu0 %v6541, 17
        %v6747 = vpop.permute.xlu0 %6746
        %6748 = vrot.lane.b32.xlu0 %v6550, 17
        %v6749 = vpop.permute.xlu0 %6748
        %6750 = vrot.lane.b32.xlu0 %v6551, 17
        %v6751 = vpop.permute.xlu0 %6750
        %6752 = vrot.lane.b32.xlu0 %v6547, 17
        %v6753 = vpop.permute.xlu0 %6752
        %6754 = vrot.lane.b32.xlu0 %v6553, 17
        %v6755 = vpop.permute.xlu0 %6754
        %6756 = vrot.lane.b32.xlu0 %v6560, 17
        %v6757 = vpop.permute.xlu0 %6756
        %6758 = vrot.lane.b32.xlu0 %v6555, 17
        %v6759 = vpop.permute.xlu0 %6758
        %6760 = vrot.lane.b32.xlu0 %v6557, 17
        %v6761 = vpop.permute.xlu0 %6760
        %6762 = vrot.lane.b32.xlu0 %v6561, 17
        %v6763 = vpop.permute.xlu0 %6762
        %6764 = vrot.lane.b32.xlu0 %v6559, 17
        %v6765 = vpop.permute.xlu0 %6764
        %6766 = vrot.lane.b32.xlu0 %v6569, 17
        %v6767 = vpop.permute.xlu0 %6766
        %6768 = vrot.lane.b32.xlu0 %v6580, 17
        %v6769 = vpop.permute.xlu0 %6768
        %6770 = vrot.lane.b32.xlu0 %v6581, 17
        %v6771 = vpop.permute.xlu0 %6770
        %6772 = vrot.lane.b32.xlu0 %v6575, 17
        %v6773 = vpop.permute.xlu0 %6772
        %6774 = vrot.lane.b32.xlu0 %v6582, 17
        %v6775 = vpop.permute.xlu0 %6774
        %6776 = vrot.lane.b32.xlu0 %v6583, 17
        %v6777 = vpop.permute.xlu0 %6776
        %6778 = vrot.lane.b32.xlu0 %v6591, 17
        %v6779 = vpop.permute.xlu0 %6778
        %6780 = vrot.lane.b32.xlu0 %v6602, 17
        %v6781 = vpop.permute.xlu0 %6780
        %6782 = vrot.lane.b32.xlu0 %v6603, 17
        %v6783 = vpop.permute.xlu0 %6782
        %6784 = vrot.lane.b32.xlu0 %v6597, 17
        %v6785 = vpop.permute.xlu0 %6784
        %6786 = vrot.lane.b32.xlu0 %v6604, 17
        %v6787 = vpop.permute.xlu0 %6786
        %6788 = vrot.lane.b32.xlu0 %v6605, 17
        %v6789 = vpop.permute.xlu0 %6788
        %6790 = vrot.lane.b32.xlu0 %v6613, 17
        %v6791 = vpop.permute.xlu0 %6790
        %6792 = vrot.lane.b32.xlu0 %v6624, 17
        %v6793 = vpop.permute.xlu0 %6792
        %6794 = vrot.lane.b32.xlu0 %v6625, 17
        %v6795 = vpop.permute.xlu0 %6794
        %6796 = vrot.lane.b32.xlu0 %v6619, 17
        %v6797 = vpop.permute.xlu0 %6796
        %6798 = vrot.lane.b32.xlu0 %v6626, 17
        %v6799 = vpop.permute.xlu0 %6798
        %6800 = vrot.lane.b32.xlu0 %v6627, 17
        %v6801 = vpop.permute.xlu0 %6800
        %6802 = vrot.lane.b32.xlu0 %v6635, 17
        %v6803 = vpop.permute.xlu0 %6802
        %6804 = vrot.lane.b32.xlu0 %v6646, 17
        %v6805 = vpop.permute.xlu0 %6804
        %6806 = vrot.lane.b32.xlu0 %v6647, 17
        %v6807 = vpop.permute.xlu0 %6806
        %6808 = vrot.lane.b32.xlu0 %v6641, 17
        %v6809 = vpop.permute.xlu0 %6808
        %6810 = vrot.lane.b32.xlu0 %v6648, 17
        %v6811 = vpop.permute.xlu0 %6810
        %6812 = vrot.lane.b32.xlu0 %v6649, 17
        %v6813 = vpop.permute.xlu0 %6812
        %v6814 = vsel %vm600, %v6707, %v6709
        %v6815 = vsel %vm600, %v6709, %v6711
        %v6816 = vsel %vm600, %v6713, %v6715
        %v6817 = vsel %vm600, %v6715, %v6717
        %v6818 = vsel %vm600, %v6719, %v6721
        %v6819 = vsel %vm600, %v6721, %v6723
        %v6820 = vsel %vm600, %v6725, %v6727
        %v6821 = vsel %vm600, %v6727, %v6729
        %v6822 = vsel %vm600, %v6731, %v6733
        %v6823 = vsel %vm600, %v6733, %v6735
        %v6824 = vsel %vm600, %v6737, %v6739
        %v6825 = vsel %vm600, %v6739, %v6741
        %v6826 = vsel %vm600, %v6743, %v6745
        %v6827 = vsel %vm600, %v6745, %v6747
        %v6828 = vsel %vm600, %v6749, %v6751
        %v6829 = vsel %vm600, %v6751, %v6753
        %v6830 = vsel %vm600, %v6755, %v6757
        %v6831 = vsel %vm600, %v6757, %v6759
        %v6832 = vsel %vm600, %v6761, %v6763
        %v6833 = vsel %vm600, %v6763, %v6765
        %v6834 = vsel %vm600, %v6767, %v6769
        %v6835 = vsel %vm600, %v6769, %v6771
        %v6836 = vsel %vm600, %v6773, %v6775
        %v6837 = vsel %vm600, %v6775, %v6777
        %v6838 = vsel %vm600, %v6779, %v6781
        %v6839 = vsel %vm600, %v6781, %v6783
        %v6840 = vsel %vm600, %v6785, %v6787
        %v6841 = vsel %vm600, %v6787, %v6789
        %v6842 = vsel %vm600, %v6791, %v6793
        %v6843 = vsel %vm600, %v6793, %v6795
        %v6844 = vsel %vm600, %v6797, %v6799
        %v6845 = vsel %vm600, %v6799, %v6801
        %v6846 = vsel %vm600, %v6803, %v6805
        %v6847 = vsel %vm600, %v6805, %v6807
        %v6848 = vsel %vm600, %v6809, %v6811
        %v6849 = vsel %vm600, %v6811, %v6813
        %v6887 = vsel %vm1017, %v6692, 0
        %v6890 = vsel %vm1017, %v6695, 0
        %6892 = vmatprep.subr.bf16.mxu0 %v6815
        %6893 = vmatpush1.bf16.msra.mxu0 %v6814
        %6894 = vmatprep.subr.bf16.mxu0 %v6817
        %6895 = vmatpush1.bf16.msra.mxu0 %v6816
        %6896 = vmatprep.subr.bf16.mxu0 %v6819
        %6897 = vmatpush1.bf16.msra.mxu0 %v6818
        %6898 = vmatprep.subr.bf16.mxu0 %v6821
        %6899 = vmatpush1.bf16.msra.mxu0 %v6820
        %6900 = vmatprep.subr.bf16.mxu0 %v6823
        %6901 = vmatpush1.bf16.msra.mxu0 %v6822
        %6902 = vmatprep.subr.bf16.mxu0 %v6825
        %6903 = vmatpush1.bf16.msra.mxu0 %v6824
        %6904 = vmatprep.subr.bf16.mxu0 %v6827
        %6905 = vmatpush1.bf16.msra.mxu0 %v6826
        %6906 = vmatprep.subr.bf16.mxu0 %v6829
        %6907 = vmatpush1.bf16.msra.mxu0 %v6828
        %6908 = vmatprep.subr.bf16.mxu0 %v6831
        %6909 = vmatpush1.bf16.msra.mxu0 %v6830
        %6910 = vmatprep.subr.bf16.mxu0 %v6833
        %6911 = vmatpush1.bf16.msra.mxu0 %v6832
        %6912 = vmatprep.subr.bf16.mxu0 %v6835
        %6913 = vmatpush1.bf16.msra.mxu0 %v6834
        %6914 = vmatprep.subr.bf16.mxu0 %v6837
        %6915 = vmatpush1.bf16.msra.mxu0 %v6836
        %6916 = vmatprep.subr.bf16.mxu0 %v6839
        %6917 = vmatpush1.bf16.msra.mxu0 %v6838
        %6918 = vmatprep.subr.bf16.mxu0 %v6841
        %6919 = vmatpush1.bf16.msra.mxu0 %v6840
        %6920 = vmatprep.subr.bf16.mxu0 %v6843
        %6921 = vmatpush1.bf16.msra.mxu0 %v6842
        %6922 = vmatprep.subr.bf16.mxu0 %v6845
        %6923 = vmatpush1.bf16.msra.mxu0 %v6844
        %6924 = vmatprep.mubr.bf16.mxu0 %v6691
        %6925 = vmatmul.mubr.bf16.gmra.mrb[0].mxu0 %v6690
        %v6926 = vpop.f32.mrb[0].mxu0
        %v6927 = vadd.f32 %v6653, %v6926
        %v6928 = vpop.f32.mrb[0].mxu0
        %v6929 = vadd.f32 %v6653, %v6928
        %v6930 = vpop.f32.mrb[0].mxu0
        %v6931 = vadd.f32 %v6658, %v6930
        %v6932 = vpop.f32.mrb[0].mxu0
        %v6933 = vadd.f32 %v6658, %v6932
        %6934 = vmatprep.mubr.bf16.mxu0 %v6694
        %6935 = vmatmul.mubr.bf16.gmra.mrb[0].mxu0 %v6693
        %v6936 = vpop.f32.mrb[0].mxu0
        %v6937 = vadd.f32 %v6663, %v6936
        %v6938 = vpop.f32.mrb[0].mxu0
        %v6939 = vadd.f32 %v6663, %v6938
        %v6940 = vpop.f32.mrb[0].mxu0
        %v6941 = vadd.f32 %v6668, %v6940
        %v6942 = vpop.f32.mrb[0].mxu0
        %v6943 = vadd.f32 %v6668, %v6942
        %6944 = vdwg.mxu0
        %6945 = vmatprep.subr.bf16.mxu0 %v6847
        %6946 = vmatpush1.bf16.msra.mxu0 %v6846
        %6947 = vmatprep.subr.bf16.mxu0 %v6849
        %6948 = vmatpush1.bf16.msra.mxu0 %v6848
        %6949 = vmatprep.subr.bf16.mxu0 0
        %6950 = vmatpush1.bf16.msra.mxu0 0
        %6951 = vmatprep.subr.bf16.mxu0 0
        %6952 = vmatpush1.bf16.msra.mxu0 0
        %6953 = vmatprep.subr.bf16.mxu0 0
        %6954 = vmatpush1.bf16.msra.mxu0 0
        %6955 = vmatprep.subr.bf16.mxu0 0
        %6956 = vmatpush1.bf16.msra.mxu0 0
        %6957 = vmatprep.subr.bf16.mxu0 0
        %6958 = vmatpush1.bf16.msra.mxu0 0
        %6959 = vmatprep.subr.bf16.mxu0 0
        %6960 = vmatpush1.bf16.msra.mxu0 0
        %6961 = vmatprep.subr.bf16.mxu0 0
        %6962 = vmatpush1.bf16.msra.mxu0 0
        %6963 = vmatprep.subr.bf16.mxu0 0
        %6964 = vmatpush1.bf16.msra.mxu0 0
        %6965 = vmatprep.subr.bf16.mxu0 0
        %6966 = vmatpush1.bf16.msra.mxu0 0
        %6967 = vmatprep.subr.bf16.mxu0 0
        %6968 = vmatpush1.bf16.msra.mxu0 0
        %6969 = vmatprep.subr.bf16.mxu0 0
        %6970 = vmatpush1.bf16.msra.mxu0 0
        %6971 = vmatprep.subr.bf16.mxu0 0
        %6972 = vmatpush1.bf16.msra.mxu0 0
        %6973 = vmatprep.subr.bf16.mxu0 0
        %6974 = vmatpush1.bf16.msra.mxu0 0
        %6975 = vmatprep.subr.bf16.mxu0 0
        %6976 = vmatpush1.bf16.msra.mxu0 0
        %6977 = vmatprep.mubr.bf16.mxu0 0
        %6978 = vmatmul.mubr.bf16.gmra.mrb[0].mxu0 %v6887
        %v6979 = vpop.f32.mrb[0].mxu0
        %v6980 = vadd.f32 %v6927, %v6979
        %v6981 = vpop.f32.mrb[0].mxu0
        %v6982 = vadd.f32 %v6929, %v6981
        %v6983 = vpop.f32.mrb[0].mxu0
        %v6984 = vadd.f32 %v6931, %v6983
        %v6985 = vpop.f32.mrb[0].mxu0
        %v6986 = vadd.f32 %v6933, %v6985
        %6987 = vmatprep.mubr.bf16.mxu0 0
        %6988 = vmatmul.mubr.bf16.gmra.mrb[0].mxu0 %v6890
        %v6989 = vpop.f32.mrb[0].mxu0
        %v6990 = vadd.f32 %v6937, %v6989
        %v6991 = vpop.f32.mrb[0].mxu0
        %v6992 = vadd.f32 %v6939, %v6991
        %v6993 = vpop.f32.mrb[0].mxu0
        %v6994 = vadd.f32 %v6941, %v6993
        %v6995 = vpop.f32.mrb[0].mxu0
        %v6996 = vadd.f32 %v6943, %v6995
        %6997 = vdwg.mxu0
        %v6998 = vpack.c.bf16 %v6984, %v6980
        %v6999 = vpack.c.bf16 %v6986, %v6982
        %v7000 = vpack.c.bf16 %v6994, %v6990
        %v7001 = vpack.c.bf16 %v6996, %v6992
        %7002 = vst [vmem:[#allocation2 + $0x8] sm:$0xff] %v6998
        %7003 = vst [vmem:[#allocation2 + $0x10] sm:$0xff] %v6999
        %7004 = vst [vmem:[#allocation2 + $0x28] sm:$0xff] %v7000
        %7005 = vst [vmem:[#allocation2 + $0x30] sm:$0xff] %v7001
        %s7006 = scalar_lea.vmem [#allocation10], 528
        %v7007 = vld [vmem:[%s7006] sm:$0xff]
        %v7008 = vld [vmem:[%s7006 + $0x8] sm:$0xf]
        %v7009 = vld [vmem:[%s7006 + $0xc] sm:$0xff]
        %v7010 = vld [vmem:[%s7006 + $0x14] sm:$0xf]
        %v7011 = vld [vmem:[%s7006 + $0x18] sm:$0xff]
        %v7012 = vld [vmem:[%s7006 + $0x20] sm:$0xf]
        %v7013 = vld [vmem:[%s7006 + $0x24] sm:$0xff]
        %v7014 = vld [vmem:[%s7006 + $0x2c] sm:$0xf]
        %s7015 = scalar_lea.vmem [#allocation12], 352
        %v7016 = vld [vmem:[%s7015] sm:$0xff]
        %v7017 = vld [vmem:[%s7015 + $0x8] sm:$0xff]
        %v7018 = vld [vmem:[%s7015 + $0x10] sm:$0xff]
        %v7019 = vld [vmem:[%s7015 + $0x18] sm:$0xff]
        %v7020 = vld [vmem:[#allocation2] sm:$0xff]
        %v7021 = vld [vmem:[#allocation2 + $0x8] sm:$0xff]
        %v7022 = vld [vmem:[#allocation2 + $0x10] sm:$0xff]
        %v7023 = vld [vmem:[#allocation2 + $0x20] sm:$0xff]
        %v7024 = vld [vmem:[#allocation2 + $0x28] sm:$0xff]
        %v7025 = vld [vmem:[#allocation2 + $0x30] sm:$0xff]
        %v7026 = vmul.bf16 %v7020, %v477
        %v7027 = vmul.bf16 %v7021, %v481
        %v7028 = vmul.bf16 %v7022, %v479
        %v7029 = vmul.bf16 %v7023, %v477
        %v7030 = vmul.bf16 %v7024, %v481
        %v7031 = vmul.bf16 %v7025, %v479
        %v7032 = vmul.bf16 %v7020, %v531
        %v7033 = vmul.bf16 %v7021, %v535
        %v7034 = vmul.bf16 %v7022, %v533
        %v7035 = vmul.bf16 %v7023, %v531
        %v7036 = vmul.bf16 %v7024, %v535
        %v7037 = vmul.bf16 %v7025, %v533
        %v7038 = vmul.bf16 %v7020, %v546
        %v7039 = vmul.bf16 %v7021, %v550
        %v7040 = vmul.bf16 %v7022, %v548
        %v7041 = vmul.bf16 %v7023, %v546
        %v7042 = vmul.bf16 %v7024, %v550
        %v7043 = vmul.bf16 %v7025, %v548
        %v7044 = vld [vmem:[#allocation2 + $0x8] sm:$0xff]
        %v7045 = vld [vmem:[#allocation2 + $0x10] sm:$0xff]
        %v7046 = vld [vmem:[#allocation2 + $0x18] sm:$0xff]
        %v7047 = vld [vmem:[#allocation2 + $0x28] sm:$0xff]
        %v7048 = vld [vmem:[#allocation2 + $0x30] sm:$0xff]
        %v7049 = vld [vmem:[#allocation2 + $0x38] sm:$0xff]
        %v7050 = vmul.bf16 %v7044, %v567
        %v7051 = vmul.bf16 %v7045, %v571
        %v7052 = vmul.bf16 %v7046, %v569
        %v7053 = vmul.bf16 %v7047, %v567
        %v7054 = vmul.bf16 %v7048, %v571
        %v7055 = vmul.bf16 %v7049, %v569
        %v7056 = vmul.bf16 %v7044, %v582
        %v7057 = vmul.bf16 %v7045, %v586
        %v7058 = vmul.bf16 %v7046, %v584
        %v7059 = vmul.bf16 %v7047, %v582
        %v7060 = vmul.bf16 %v7048, %v586
        %v7061 = vmul.bf16 %v7049, %v584
        %v7062 = vmul.bf16 %v7044, %v597
        %v7063 = vmul.bf16 %v7045, %v601
        %v7064 = vmul.bf16 %v7046, %v599
        %v7065 = vmul.bf16 %v7047, %v597
        %v7066 = vmul.bf16 %v7048, %v601
        %v7067 = vmul.bf16 %v7049, %v599
        %7074 = vrot.lane.b32.xlu0 %v7020, 127
        %v7075 = vpop.permute.xlu0 %7074
        %7076 = vrot.lane.b32.xlu0 %v7021, 127
        %v7077 = vpop.permute.xlu0 %7076
        %7078 = vrot.lane.b32.xlu0 %v7022, 127
        %v7079 = vpop.permute.xlu0 %7078
        %7080 = vrot.lane.b32.xlu0 %v7023, 127
        %v7081 = vpop.permute.xlu0 %7080
        %7082 = vrot.lane.b32.xlu0 %v7024, 127
        %v7083 = vpop.permute.xlu0 %7082
        %7084 = vrot.lane.b32.xlu0 %v7025, 127
        %v7085 = vpop.permute.xlu0 %7084
        %v7086 = vsel %vm549, %v7075, %v7077
        %v7087 = vsel %vm549, %v7077, %v7079
        %v7088 = vsel %vm549, %v7081, %v7083
        %v7089 = vsel %vm549, %v7083, %v7085
        %7096 = vrot.lane.b32.xlu0 %v7032, 126
        %v7097 = vpop.permute.xlu0 %7096
        %7098 = vrot.lane.b32.xlu0 %v7033, 126
        %v7099 = vpop.permute.xlu0 %7098
        %7100 = vrot.lane.b32.xlu0 %v7034, 126
        %v7101 = vpop.permute.xlu0 %7100
        %7102 = vrot.lane.b32.xlu0 %v7035, 126
        %v7103 = vpop.permute.xlu0 %7102
        %7104 = vrot.lane.b32.xlu0 %v7036, 126
        %v7105 = vpop.permute.xlu0 %7104
        %7106 = vrot.lane.b32.xlu0 %v7037, 126
        %v7107 = vpop.permute.xlu0 %7106
        %v7108 = vsel %vm651, %v7097, %v7099
        %v7109 = vsel %vm651, %v7099, %v7101
        %v7110 = vsel %vm651, %v7103, %v7105
        %v7111 = vsel %vm651, %v7105, %v7107
        %7118 = vrot.lane.b32.xlu0 %v7038, 112
        %v7119 = vpop.permute.xlu0 %7118
        %7120 = vrot.lane.b32.xlu0 %v7039, 112
        %v7121 = vpop.permute.xlu0 %7120
        %7122 = vrot.lane.b32.xlu0 %v7040, 112
        %v7123 = vpop.permute.xlu0 %7122
        %7124 = vrot.lane.b32.xlu0 %v7041, 112
        %v7125 = vpop.permute.xlu0 %7124
        %7126 = vrot.lane.b32.xlu0 %v7042, 112
        %v7127 = vpop.permute.xlu0 %7126
        %7128 = vrot.lane.b32.xlu0 %v7043, 112
        %v7129 = vpop.permute.xlu0 %7128
        %v7130 = vsel %vm674, %v7119, %v7121
        %v7131 = vsel %vm674, %v7121, %v7123
        %v7132 = vsel %vm674, %v7125, %v7127
        %v7133 = vsel %vm674, %v7127, %v7129
        %7134 = vrot.lane.b32.xlu0 %v7021, 111
        %v7135 = vpop.permute.xlu0 %7134
        %7136 = vrot.lane.b32.xlu0 %v7022, 111
        %v7137 = vpop.permute.xlu0 %7136
        %7138 = vrot.lane.b32.xlu0 %v7024, 111
        %v7139 = vpop.permute.xlu0 %7138
        %7140 = vrot.lane.b32.xlu0 %v7025, 111
        %v7141 = vpop.permute.xlu0 %7140
        %v7142 = vsel %vm480, %v7135, %v7137
        %v7143 = vsel %vm480, %v7139, %v7141
        %7150 = vrot.lane.b32.xlu0 %v7050, 110
        %v7151 = vpop.permute.xlu0 %7150
        %7152 = vrot.lane.b32.xlu0 %v7051, 110
        %v7153 = vpop.permute.xlu0 %7152
        %7154 = vrot.lane.b32.xlu0 %v7052, 110
        %v7155 = vpop.permute.xlu0 %7154
        %7156 = vrot.lane.b32.xlu0 %v7053, 110
        %v7157 = vpop.permute.xlu0 %7156
        %7158 = vrot.lane.b32.xlu0 %v7054, 110
        %v7159 = vpop.permute.xlu0 %7158
        %7160 = vrot.lane.b32.xlu0 %v7055, 110
        %v7161 = vpop.permute.xlu0 %7160
        %v7162 = vsel %vm707, %v7151, %v7153
        %v7163 = vsel %vm707, %v7153, %v7155
        %v7164 = vsel %vm707, %v7157, %v7159
        %v7165 = vsel %vm707, %v7159, %v7161
        %7172 = vrot.lane.b32.xlu0 %v7056, 96
        %v7173 = vpop.permute.xlu0 %7172
        %7174 = vrot.lane.b32.xlu0 %v7057, 96
        %v7175 = vpop.permute.xlu0 %7174
        %7176 = vrot.lane.b32.xlu0 %v7058, 96
        %v7177 = vpop.permute.xlu0 %7176
        %7178 = vrot.lane.b32.xlu0 %v7059, 96
        %v7179 = vpop.permute.xlu0 %7178
        %7180 = vrot.lane.b32.xlu0 %v7060, 96
        %v7181 = vpop.permute.xlu0 %7180
        %7182 = vrot.lane.b32.xlu0 %v7061, 96
        %v7183 = vpop.permute.xlu0 %7182
        %v7184 = vsel %vm730, %v7173, %v7175
        %v7185 = vsel %vm730, %v7175, %v7177
        %v7186 = vsel %vm730, %v7179, %v7181
        %v7187 = vsel %vm730, %v7181, %v7183
        %7194 = vrot.lane.b32.xlu0 %v7044, 95
        %v7195 = vpop.permute.xlu0 %7194
        %7196 = vrot.lane.b32.xlu0 %v7045, 95
        %v7197 = vpop.permute.xlu0 %7196
        %7198 = vrot.lane.b32.xlu0 %v7046, 95
        %v7199 = vpop.permute.xlu0 %7198
        %7200 = vrot.lane.b32.xlu0 %v7047, 95
        %v7201 = vpop.permute.xlu0 %7200
        %7202 = vrot.lane.b32.xlu0 %v7048, 95
        %v7203 = vpop.permute.xlu0 %7202
        %7204 = vrot.lane.b32.xlu0 %v7049, 95
        %v7205 = vpop.permute.xlu0 %7204
        %v7206 = vsel %vm753, %v7195, %v7197
        %v7207 = vsel %vm753, %v7197, %v7199
        %v7208 = vsel %vm753, %v7201, %v7203
        %v7209 = vsel %vm753, %v7203, %v7205
        %7216 = vrot.lane.b32.xlu0 %v7062, 94
        %v7217 = vpop.permute.xlu0 %7216
        %7218 = vrot.lane.b32.xlu0 %v7063, 94
        %v7219 = vpop.permute.xlu0 %7218
        %7220 = vrot.lane.b32.xlu0 %v7064, 94
        %v7221 = vpop.permute.xlu0 %7220
        %7222 = vrot.lane.b32.xlu0 %v7065, 94
        %v7223 = vpop.permute.xlu0 %7222
        %7224 = vrot.lane.b32.xlu0 %v7066, 94
        %v7225 = vpop.permute.xlu0 %7224
        %7226 = vrot.lane.b32.xlu0 %v7067, 94
        %v7227 = vpop.permute.xlu0 %7226
        %v7228 = vsel %vm776, %v7217, %v7219
        %v7229 = vsel %vm776, %v7219, %v7221
        %v7230 = vsel %vm776, %v7223, %v7225
        %v7231 = vsel %vm776, %v7225, %v7227
        %7233 = vset.pattern.permute.xlu0 0
        %7234 = vperm.xlu0 %7233, %v7016
        %v7235 = vpop.permute.xlu0 %7234
        %7238 = vset.pattern.permute.xlu0 0
        %7239 = vperm.xlu0 %7238, %v7017
        %v7240 = vpop.permute.xlu0 %7239
        %7243 = vset.pattern.permute.xlu0 0
        %7244 = vperm.xlu0 %7243, %v7018
        %v7245 = vpop.permute.xlu0 %7244
        %7248 = vset.pattern.permute.xlu0 0
        %7249 = vperm.xlu0 %7248, %v7019
        %v7250 = vpop.permute.xlu0 %7249
        %v7260 = vunpack.c.l.b16 %v7007
        %v7261 = vunpack.c.h.b16 %v7007
        %v7262 = vunpack.c.l.b16 %v7008
        %v7263 = vunpack.c.l.b16 %v7009
        %v7264 = vunpack.c.h.b16 %v7009
        %v7265 = vunpack.c.l.b16 %v7010
        %v7266 = vunpack.c.l.b16 %v7011
        %v7267 = vunpack.c.h.b16 %v7011
        %v7268 = vunpack.c.l.b16 %v7012
        %v7269 = vunpack.c.l.b16 %v7013
        %v7270 = vunpack.c.h.b16 %v7013
        %v7271 = vunpack.c.l.b16 %v7014
        %v7272 = vpack.c.b16 %v7263, %v7260
        %v7273 = vpack.c.b16 %v7264, %v7261
        %v7274 = vpack.c.b16 %v7265, %v7262
        %v7275 = vpack.c.b16 %v7269, %v7266
        %v7276 = vpack.c.b16 %v7270, %v7267
        %v7277 = vpack.c.b16 %v7271, %v7268
        %7288 = vrot.lane.b32.xlu0 %v7026, 17
        %v7289 = vpop.permute.xlu0 %7288
        %7290 = vrot.lane.b32.xlu0 %v7027, 17
        %v7291 = vpop.permute.xlu0 %7290
        %7292 = vrot.lane.b32.xlu0 %v7028, 17
        %v7293 = vpop.permute.xlu0 %7292
        %7294 = vrot.lane.b32.xlu0 %v7029, 17
        %v7295 = vpop.permute.xlu0 %7294
        %7296 = vrot.lane.b32.xlu0 %v7030, 17
        %v7297 = vpop.permute.xlu0 %7296
        %7298 = vrot.lane.b32.xlu0 %v7031, 17
        %v7299 = vpop.permute.xlu0 %7298
        %7300 = vrot.lane.b32.xlu0 %v7086, 17
        %v7301 = vpop.permute.xlu0 %7300
        %7302 = vrot.lane.b32.xlu0 %v7087, 17
        %v7303 = vpop.permute.xlu0 %7302
        %7304 = vrot.lane.b32.xlu0 %v7079, 17
        %v7305 = vpop.permute.xlu0 %7304
        %7306 = vrot.lane.b32.xlu0 %v7088, 17
        %v7307 = vpop.permute.xlu0 %7306
        %7308 = vrot.lane.b32.xlu0 %v7089, 17
        %v7309 = vpop.permute.xlu0 %7308
        %7310 = vrot.lane.b32.xlu0 %v7085, 17
        %v7311 = vpop.permute.xlu0 %7310
        %7312 = vrot.lane.b32.xlu0 %v7108, 17
        %v7313 = vpop.permute.xlu0 %7312
        %7314 = vrot.lane.b32.xlu0 %v7109, 17
        %v7315 = vpop.permute.xlu0 %7314
        %7316 = vrot.lane.b32.xlu0 %v7101, 17
        %v7317 = vpop.permute.xlu0 %7316
        %7318 = vrot.lane.b32.xlu0 %v7110, 17
        %v7319 = vpop.permute.xlu0 %7318
        %7320 = vrot.lane.b32.xlu0 %v7111, 17
        %v7321 = vpop.permute.xlu0 %7320
        %7322 = vrot.lane.b32.xlu0 %v7107, 17
        %v7323 = vpop.permute.xlu0 %7322
        %7324 = vrot.lane.b32.xlu0 %v7130, 17
        %v7325 = vpop.permute.xlu0 %7324
        %7326 = vrot.lane.b32.xlu0 %v7131, 17
        %v7327 = vpop.permute.xlu0 %7326
        %7328 = vrot.lane.b32.xlu0 %v7123, 17
        %v7329 = vpop.permute.xlu0 %7328
        %7330 = vrot.lane.b32.xlu0 %v7132, 17
        %v7331 = vpop.permute.xlu0 %7330
        %7332 = vrot.lane.b32.xlu0 %v7133, 17
        %v7333 = vpop.permute.xlu0 %7332
        %7334 = vrot.lane.b32.xlu0 %v7129, 17
        %v7335 = vpop.permute.xlu0 %7334
        %7336 = vrot.lane.b32.xlu0 %v7135, 17
        %v7337 = vpop.permute.xlu0 %7336
        %7338 = vrot.lane.b32.xlu0 %v7142, 17
        %v7339 = vpop.permute.xlu0 %7338
        %7340 = vrot.lane.b32.xlu0 %v7137, 17
        %v7341 = vpop.permute.xlu0 %7340
        %7342 = vrot.lane.b32.xlu0 %v7139, 17
        %v7343 = vpop.permute.xlu0 %7342
        %7344 = vrot.lane.b32.xlu0 %v7143, 17
        %v7345 = vpop.permute.xlu0 %7344
        %7346 = vrot.lane.b32.xlu0 %v7141, 17
        %v7347 = vpop.permute.xlu0 %7346
        %7348 = vrot.lane.b32.xlu0 %v7151, 17
        %v7349 = vpop.permute.xlu0 %7348
        %7350 = vrot.lane.b32.xlu0 %v7162, 17
        %v7351 = vpop.permute.xlu0 %7350
        %7352 = vrot.lane.b32.xlu0 %v7163, 17
        %v7353 = vpop.permute.xlu0 %7352
        %7354 = vrot.lane.b32.xlu0 %v7157, 17
        %v7355 = vpop.permute.xlu0 %7354
        %7356 = vrot.lane.b32.xlu0 %v7164, 17
        %v7357 = vpop.permute.xlu0 %7356
        %7358 = vrot.lane.b32.xlu0 %v7165, 17
        %v7359 = vpop.permute.xlu0 %7358
        %7360 = vrot.lane.b32.xlu0 %v7173, 17
        %v7361 = vpop.permute.xlu0 %7360
        %7362 = vrot.lane.b32.xlu0 %v7184, 17
        %v7363 = vpop.permute.xlu0 %7362
        %7364 = vrot.lane.b32.xlu0 %v7185, 17
        %v7365 = vpop.permute.xlu0 %7364
        %7366 = vrot.lane.b32.xlu0 %v7179, 17
        %v7367 = vpop.permute.xlu0 %7366
        %7368 = vrot.lane.b32.xlu0 %v7186, 17
        %v7369 = vpop.permute.xlu0 %7368
        %7370 = vrot.lane.b32.xlu0 %v7187, 17
        %v7371 = vpop.permute.xlu0 %7370
        %7372 = vrot.lane.b32.xlu0 %v7195, 17
        %v7373 = vpop.permute.xlu0 %7372
        %7374 = vrot.lane.b32.xlu0 %v7206, 17
        %v7375 = vpop.permute.xlu0 %7374
        %7376 = vrot.lane.b32.xlu0 %v7207, 17
        %v7377 = vpop.permute.xlu0 %7376
        %7378 = vrot.lane.b32.xlu0 %v7201, 17
        %v7379 = vpop.permute.xlu0 %7378
        %7380 = vrot.lane.b32.xlu0 %v7208, 17
        %v7381 = vpop.permute.xlu0 %7380
        %7382 = vrot.lane.b32.xlu0 %v7209, 17
        %v7383 = vpop.permute.xlu0 %7382
        %7384 = vrot.lane.b32.xlu0 %v7217, 17
        %v7385 = vpop.permute.xlu0 %7384
        %7386 = vrot.lane.b32.xlu0 %v7228, 17
        %v7387 = vpop.permute.xlu0 %7386
        %7388 = vrot.lane.b32.xlu0 %v7229, 17
        %v7389 = vpop.permute.xlu0 %7388
        %7390 = vrot.lane.b32.xlu0 %v7223, 17
        %v7391 = vpop.permute.xlu0 %7390
        %7392 = vrot.lane.b32.xlu0 %v7230, 17
        %v7393 = vpop.permute.xlu0 %7392
        %7394 = vrot.lane.b32.xlu0 %v7231, 17
        %v7395 = vpop.permute.xlu0 %7394
        %v7396 = vsel %vm600, %v7289, %v7291
        %v7397 = vsel %vm600, %v7291, %v7293
        %v7398 = vsel %vm600, %v7295, %v7297
        %v7399 = vsel %vm600, %v7297, %v7299
        %v7400 = vsel %vm600, %v7301, %v7303
        %v7401 = vsel %vm600, %v7303, %v7305
        %v7402 = vsel %vm600, %v7307, %v7309
        %v7403 = vsel %vm600, %v7309, %v7311
        %v7404 = vsel %vm600, %v7313, %v7315
        %v7405 = vsel %vm600, %v7315, %v7317
        %v7406 = vsel %vm600, %v7319, %v7321
        %v7407 = vsel %vm600, %v7321, %v7323
        %v7408 = vsel %vm600, %v7325, %v7327
        %v7409 = vsel %vm600, %v7327, %v7329
        %v7410 = vsel %vm600, %v7331, %v7333
        %v7411 = vsel %vm600, %v7333, %v7335
        %v7412 = vsel %vm600, %v7337, %v7339
        %v7413 = vsel %vm600, %v7339, %v7341
        %v7414 = vsel %vm600, %v7343, %v7345
        %v7415 = vsel %vm600, %v7345, %v7347
        %v7416 = vsel %vm600, %v7349, %v7351
        %v7417 = vsel %vm600, %v7351, %v7353
        %v7418 = vsel %vm600, %v7355, %v7357
        %v7419 = vsel %vm600, %v7357, %v7359
        %v7420 = vsel %vm600, %v7361, %v7363
        %v7421 = vsel %vm600, %v7363, %v7365
        %v7422 = vsel %vm600, %v7367, %v7369
        %v7423 = vsel %vm600, %v7369, %v7371
        %v7424 = vsel %vm600, %v7373, %v7375
        %v7425 = vsel %vm600, %v7375, %v7377
        %v7426 = vsel %vm600, %v7379, %v7381
        %v7427 = vsel %vm600, %v7381, %v7383
        %v7428 = vsel %vm600, %v7385, %v7387
        %v7429 = vsel %vm600, %v7387, %v7389
        %v7430 = vsel %vm600, %v7391, %v7393
        %v7431 = vsel %vm600, %v7393, %v7395
        %v7469 = vsel %vm1017, %v7274, 0
        %v7472 = vsel %vm1017, %v7277, 0
        %7474 = vmatprep.subr.bf16.mxu0 %v7397
        %7475 = vmatpush1.bf16.msra.mxu0 %v7396
        %7476 = vmatprep.subr.bf16.mxu0 %v7399
        %7477 = vmatpush1.bf16.msra.mxu0 %v7398
        %7478 = vmatprep.subr.bf16.mxu0 %v7401
        %7479 = vmatpush1.bf16.msra.mxu0 %v7400
        %7480 = vmatprep.subr.bf16.mxu0 %v7403
        %7481 = vmatpush1.bf16.msra.mxu0 %v7402
        %7482 = vmatprep.subr.bf16.mxu0 %v7405
        %7483 = vmatpush1.bf16.msra.mxu0 %v7404
        %7484 = vmatprep.subr.bf16.mxu0 %v7407
        %7485 = vmatpush1.bf16.msra.mxu0 %v7406
        %7486 = vmatprep.subr.bf16.mxu0 %v7409
        %7487 = vmatpush1.bf16.msra.mxu0 %v7408
        %7488 = vmatprep.subr.bf16.mxu0 %v7411
        %7489 = vmatpush1.bf16.msra.mxu0 %v7410
        %7490 = vmatprep.subr.bf16.mxu0 %v7413
        %7491 = vmatpush1.bf16.msra.mxu0 %v7412
        %7492 = vmatprep.subr.bf16.mxu0 %v7415
        %7493 = vmatpush1.bf16.msra.mxu0 %v7414
        %7494 = vmatprep.subr.bf16.mxu0 %v7417
        %7495 = vmatpush1.bf16.msra.mxu0 %v7416
        %7496 = vmatprep.subr.bf16.mxu0 %v7419
        %7497 = vmatpush1.bf16.msra.mxu0 %v7418
        %7498 = vmatprep.subr.bf16.mxu0 %v7421
        %7499 = vmatpush1.bf16.msra.mxu0 %v7420
        %7500 = vmatprep.subr.bf16.mxu0 %v7423
        %7501 = vmatpush1.bf16.msra.mxu0 %v7422
        %7502 = vmatprep.subr.bf16.mxu0 %v7425
        %7503 = vmatpush1.bf16.msra.mxu0 %v7424
        %7504 = vmatprep.subr.bf16.mxu0 %v7427
        %7505 = vmatpush1.bf16.msra.mxu0 %v7426
        %7506 = vmatprep.mubr.bf16.mxu0 %v7273
        %7507 = vmatmul.mubr.bf16.gmra.mrb[0].mxu0 %v7272
        %v7508 = vpop.f32.mrb[0].mxu0
        %v7509 = vadd.f32 %v7235, %v7508
        %v7510 = vpop.f32.mrb[0].mxu0
        %v7511 = vadd.f32 %v7235, %v7510
        %v7512 = vpop.f32.mrb[0].mxu0
        %v7513 = vadd.f32 %v7240, %v7512
        %v7514 = vpop.f32.mrb[0].mxu0
        %v7515 = vadd.f32 %v7240, %v7514
        %7516 = vmatprep.mubr.bf16.mxu0 %v7276
        %7517 = vmatmul.mubr.bf16.gmra.mrb[0].mxu0 %v7275
        %v7518 = vpop.f32.mrb[0].mxu0
        %v7519 = vadd.f32 %v7245, %v7518
        %v7520 = vpop.f32.mrb[0].mxu0
        %v7521 = vadd.f32 %v7245, %v7520
        %v7522 = vpop.f32.mrb[0].mxu0
        %v7523 = vadd.f32 %v7250, %v7522
        %v7524 = vpop.f32.mrb[0].mxu0
        %v7525 = vadd.f32 %v7250, %v7524
        %7526 = vdwg.mxu0
        %7527 = vmatprep.subr.bf16.mxu0 %v7429
        %7528 = vmatpush1.bf16.msra.mxu0 %v7428
        %7529 = vmatprep.subr.bf16.mxu0 %v7431
        %7530 = vmatpush1.bf16.msra.mxu0 %v7430
        %7531 = vmatprep.subr.bf16.mxu0 0
        %7532 = vmatpush1.bf16.msra.mxu0 0
        %7533 = vmatprep.subr.bf16.mxu0 0
        %7534 = vmatpush1.bf16.msra.mxu0 0
        %7535 = vmatprep.subr.bf16.mxu0 0
        %7536 = vmatpush1.bf16.msra.mxu0 0
        %7537 = vmatprep.subr.bf16.mxu0 0
        %7538 = vmatpush1.bf16.msra.mxu0 0
        %7539 = vmatprep.subr.bf16.mxu0 0
        %7540 = vmatpush1.bf16.msra.mxu0 0
        %7541 = vmatprep.subr.bf16.mxu0 0
        %7542 = vmatpush1.bf16.msra.mxu0 0
        %7543 = vmatprep.subr.bf16.mxu0 0
        %7544 = vmatpush1.bf16.msra.mxu0 0
        %7545 = vmatprep.subr.bf16.mxu0 0
        %7546 = vmatpush1.bf16.msra.mxu0 0
        %7547 = vmatprep.subr.bf16.mxu0 0
        %7548 = vmatpush1.bf16.msra.mxu0 0
        %7549 = vmatprep.subr.bf16.mxu0 0
        %7550 = vmatpush1.bf16.msra.mxu0 0
        %7551 = vmatprep.subr.bf16.mxu0 0
        %7552 = vmatpush1.bf16.msra.mxu0 0
        %7553 = vmatprep.subr.bf16.mxu0 0
        %7554 = vmatpush1.bf16.msra.mxu0 0
        %7555 = vmatprep.subr.bf16.mxu0 0
        %7556 = vmatpush1.bf16.msra.mxu0 0
        %7557 = vmatprep.subr.bf16.mxu0 0
        %7558 = vmatpush1.bf16.msra.mxu0 0
        %7559 = vmatprep.mubr.bf16.mxu0 0
        %7560 = vmatmul.mubr.bf16.gmra.mrb[0].mxu0 %v7469
        %v7561 = vpop.f32.mrb[0].mxu0
        %v7562 = vadd.f32 %v7509, %v7561
        %v7563 = vpop.f32.mrb[0].mxu0
        %v7564 = vadd.f32 %v7511, %v7563
        %v7565 = vpop.f32.mrb[0].mxu0
        %v7566 = vadd.f32 %v7513, %v7565
        %v7567 = vpop.f32.mrb[0].mxu0
        %v7568 = vadd.f32 %v7515, %v7567
        %7569 = vmatprep.mubr.bf16.mxu0 0
        %7570 = vmatmul.mubr.bf16.gmra.mrb[0].mxu0 %v7472
        %v7571 = vpop.f32.mrb[0].mxu0
        %v7572 = vadd.f32 %v7519, %v7571
        %v7573 = vpop.f32.mrb[0].mxu0
        %v7574 = vadd.f32 %v7521, %v7573
        %v7575 = vpop.f32.mrb[0].mxu0
        %v7576 = vadd.f32 %v7523, %v7575
        %v7577 = vpop.f32.mrb[0].mxu0
        %v7578 = vadd.f32 %v7525, %v7577
        %7579 = vdwg.mxu0
        %v7580 = vld [vmem:[#allocation3] sm:$0xff]
        %v7581 = vld [vmem:[#allocation3 + $0x8] sm:$0xff]
        %v7582 = vld [vmem:[#allocation3 + $0x10] sm:$0xff]
        %v7583 = vld [vmem:[#allocation3 + $0x18] sm:$0xff]
        %v7584 = vld [vmem:[#allocation3 + $0x20] sm:$0xff]
        %v7585 = vld [vmem:[#allocation3 + $0x28] sm:$0xff]
        %v7586 = vld [vmem:[#allocation3 + $0x30] sm:$0xff]
        %v7587 = vld [vmem:[#allocation3 + $0x38] sm:$0xff]
        %v7588 = vadd.f32 %v7562, %v7580
        %v7589 = vadd.f32 %v7564, %v7581
        %v7590 = vadd.f32 %v7566, %v7582
        %v7591 = vadd.f32 %v7568, %v7583
        %v7592 = vadd.f32 %v7572, %v7584
        %v7593 = vadd.f32 %v7574, %v7585
        %v7594 = vadd.f32 %v7576, %v7586
        %v7595 = vadd.f32 %v7578, %v7587
        %v7596 = vpack.c.bf16 %v7590, %v7588
        %v7597 = vpack.c.bf16 %v7591, %v7589
        %v7598 = vpack.c.bf16 %v7594, %v7592
        %v7599 = vpack.c.bf16 %v7595, %v7593
        %7600 = vst [vmem:[#allocation2 + $0x8] sm:$0xff] %v7596
        %7601 = vst [vmem:[#allocation2 + $0x10] sm:$0xff] %v7597
        %7602 = vst [vmem:[#allocation2 + $0x28] sm:$0xff] %v7598
        %7603 = vst [vmem:[#allocation2 + $0x30] sm:$0xff] %v7599
        %v7604 = vld [vmem:[#allocation13] sm:$0xff]
        %v7605 = vld [vmem:[#allocation13 + $0x8] sm:$0xf]
        %v7606 = vld [vmem:[#allocation13 + $0xc] sm:$0xff]
        %v7607 = vld [vmem:[#allocation13 + $0x14] sm:$0xf]
        %v7608 = vld [vmem:[#allocation13 + $0x18] sm:$0xff]
        %v7609 = vld [vmem:[#allocation13 + $0x20] sm:$0xf]
        %v7610 = vld [vmem:[#allocation13 + $0x24] sm:$0xff]
        %v7611 = vld [vmem:[#allocation13 + $0x2c] sm:$0xf]
        %v7612 = vld [vmem:[#allocation13 + $0x30] sm:$0xff]
        %v7613 = vld [vmem:[#allocation13 + $0x38] sm:$0xf]
        %v7614 = vld [vmem:[#allocation13 + $0x3c] sm:$0xff]
        %v7615 = vld [vmem:[#allocation13 + $0x44] sm:$0xf]
        %v7616 = vld [vmem:[#allocation15] sm:$0xff]
        %v7617 = vld [vmem:[#allocation15 + $0x8] sm:$0xff]
        %v7618 = vld [vmem:[#allocation15 + $0x10] sm:$0xff]
        %v7619 = vld [vmem:[#allocation15 + $0x18] sm:$0xff]
        %v7620 = vld [vmem:[#allocation15 + $0x20] sm:$0xff]
        %v7621 = vld [vmem:[#allocation15 + $0x28] sm:$0xff]
        %v7622 = vld [vmem:[#allocation2] sm:$0xff]
        %v7623 = vld [vmem:[#allocation2 + $0x8] sm:$0xff]
        %v7624 = vld [vmem:[#allocation2 + $0x10] sm:$0xff]
        %v7625 = vld [vmem:[#allocation2 + $0x20] sm:$0xff]
        %v7626 = vld [vmem:[#allocation2 + $0x28] sm:$0xff]
        %v7627 = vld [vmem:[#allocation2 + $0x30] sm:$0xff]
        %v7628 = vmul.bf16 %v7622, %v477
        %v7629 = vmul.bf16 %v7623, %v481
        %v7630 = vmul.bf16 %v7624, %v479
        %v7631 = vmul.bf16 %v7625, %v477
        %v7632 = vmul.bf16 %v7626, %v481
        %v7633 = vmul.bf16 %v7627, %v479
        %v7634 = vmul.bf16 %v7622, %v531
        %v7635 = vmul.bf16 %v7623, %v535
        %v7636 = vmul.bf16 %v7624, %v533
        %v7637 = vmul.bf16 %v7625, %v531
        %v7638 = vmul.bf16 %v7626, %v535
        %v7639 = vmul.bf16 %v7627, %v533
        %v7640 = vmul.bf16 %v7622, %v546
        %v7641 = vmul.bf16 %v7623, %v550
        %v7642 = vmul.bf16 %v7624, %v548
        %v7643 = vmul.bf16 %v7625, %v546
        %v7644 = vmul.bf16 %v7626, %v550
        %v7645 = vmul.bf16 %v7627, %v548
        %v7646 = vld [vmem:[#allocation2 + $0x8] sm:$0xff]
        %v7647 = vld [vmem:[#allocation2 + $0x10] sm:$0xff]
        %v7648 = vld [vmem:[#allocation2 + $0x18] sm:$0xff]
        %v7649 = vld [vmem:[#allocation2 + $0x28] sm:$0xff]
        %v7650 = vld [vmem:[#allocation2 + $0x30] sm:$0xff]
        %v7651 = vld [vmem:[#allocation2 + $0x38] sm:$0xff]
        %v7652 = vmul.bf16 %v7646, %v567
        %v7653 = vmul.bf16 %v7647, %v571
        %v7654 = vmul.bf16 %v7648, %v569
        %v7655 = vmul.bf16 %v7649, %v567
        %v7656 = vmul.bf16 %v7650, %v571
        %v7657 = vmul.bf16 %v7651, %v569
        %v7658 = vmul.bf16 %v7646, %v582
        %v7659 = vmul.bf16 %v7647, %v586
        %v7660 = vmul.bf16 %v7648, %v584
        %v7661 = vmul.bf16 %v7649, %v582
        %v7662 = vmul.bf16 %v7650, %v586
        %v7663 = vmul.bf16 %v7651, %v584
        %v7664 = vmul.bf16 %v7646, %v597
        %v7665 = vmul.bf16 %v7647, %v601
        %v7666 = vmul.bf16 %v7648, %v599
        %v7667 = vmul.bf16 %v7649, %v597
        %v7668 = vmul.bf16 %v7650, %v601
        %v7669 = vmul.bf16 %v7651, %v599
        %7676 = vrot.lane.b32.xlu0 %v7622, 127
        %v7677 = vpop.permute.xlu0 %7676
        %7678 = vrot.lane.b32.xlu0 %v7623, 127
        %v7679 = vpop.permute.xlu0 %7678
        %7680 = vrot.lane.b32.xlu0 %v7624, 127
        %v7681 = vpop.permute.xlu0 %7680
        %7682 = vrot.lane.b32.xlu0 %v7625, 127
        %v7683 = vpop.permute.xlu0 %7682
        %7684 = vrot.lane.b32.xlu0 %v7626, 127
        %v7685 = vpop.permute.xlu0 %7684
        %7686 = vrot.lane.b32.xlu0 %v7627, 127
        %v7687 = vpop.permute.xlu0 %7686
        %v7688 = vsel %vm549, %v7677, %v7679
        %v7689 = vsel %vm549, %v7679, %v7681
        %v7690 = vsel %vm549, %v7683, %v7685
        %v7691 = vsel %vm549, %v7685, %v7687
        %7698 = vrot.lane.b32.xlu0 %v7634, 126
        %v7699 = vpop.permute.xlu0 %7698
        %7700 = vrot.lane.b32.xlu0 %v7635, 126
        %v7701 = vpop.permute.xlu0 %7700
        %7702 = vrot.lane.b32.xlu0 %v7636, 126
        %v7703 = vpop.permute.xlu0 %7702
        %7704 = vrot.lane.b32.xlu0 %v7637, 126
        %v7705 = vpop.permute.xlu0 %7704
        %7706 = vrot.lane.b32.xlu0 %v7638, 126
        %v7707 = vpop.permute.xlu0 %7706
        %7708 = vrot.lane.b32.xlu0 %v7639, 126
        %v7709 = vpop.permute.xlu0 %7708
        %v7710 = vsel %vm651, %v7699, %v7701
        %v7711 = vsel %vm651, %v7701, %v7703
        %v7712 = vsel %vm651, %v7705, %v7707
        %v7713 = vsel %vm651, %v7707, %v7709
        %7720 = vrot.lane.b32.xlu0 %v7640, 112
        %v7721 = vpop.permute.xlu0 %7720
        %7722 = vrot.lane.b32.xlu0 %v7641, 112
        %v7723 = vpop.permute.xlu0 %7722
        %7724 = vrot.lane.b32.xlu0 %v7642, 112
        %v7725 = vpop.permute.xlu0 %7724
        %7726 = vrot.lane.b32.xlu0 %v7643, 112
        %v7727 = vpop.permute.xlu0 %7726
        %7728 = vrot.lane.b32.xlu0 %v7644, 112
        %v7729 = vpop.permute.xlu0 %7728
        %7730 = vrot.lane.b32.xlu0 %v7645, 112
        %v7731 = vpop.permute.xlu0 %7730
        %v7732 = vsel %vm674, %v7721, %v7723
        %v7733 = vsel %vm674, %v7723, %v7725
        %v7734 = vsel %vm674, %v7727, %v7729
        %v7735 = vsel %vm674, %v7729, %v7731
        %7736 = vrot.lane.b32.xlu0 %v7623, 111
        %v7737 = vpop.permute.xlu0 %7736
        %7738 = vrot.lane.b32.xlu0 %v7624, 111
        %v7739 = vpop.permute.xlu0 %7738
        %7740 = vrot.lane.b32.xlu0 %v7626, 111
        %v7741 = vpop.permute.xlu0 %7740
        %7742 = vrot.lane.b32.xlu0 %v7627, 111
        %v7743 = vpop.permute.xlu0 %7742
        %v7744 = vsel %vm480, %v7737, %v7739
        %v7745 = vsel %vm480, %v7741, %v7743
        %7752 = vrot.lane.b32.xlu0 %v7652, 110
        %v7753 = vpop.permute.xlu0 %7752
        %7754 = vrot.lane.b32.xlu0 %v7653, 110
        %v7755 = vpop.permute.xlu0 %7754
        %7756 = vrot.lane.b32.xlu0 %v7654, 110
        %v7757 = vpop.permute.xlu0 %7756
        %7758 = vrot.lane.b32.xlu0 %v7655, 110
        %v7759 = vpop.permute.xlu0 %7758
        %7760 = vrot.lane.b32.xlu0 %v7656, 110
        %v7761 = vpop.permute.xlu0 %7760
        %7762 = vrot.lane.b32.xlu0 %v7657, 110
        %v7763 = vpop.permute.xlu0 %7762
        %v7764 = vsel %vm707, %v7753, %v7755
        %v7765 = vsel %vm707, %v7755, %v7757
        %v7766 = vsel %vm707, %v7759, %v7761
        %v7767 = vsel %vm707, %v7761, %v7763
        %7774 = vrot.lane.b32.xlu0 %v7658, 96
        %v7775 = vpop.permute.xlu0 %7774
        %7776 = vrot.lane.b32.xlu0 %v7659, 96
        %v7777 = vpop.permute.xlu0 %7776
        %7778 = vrot.lane.b32.xlu0 %v7660, 96
        %v7779 = vpop.permute.xlu0 %7778
        %7780 = vrot.lane.b32.xlu0 %v7661, 96
        %v7781 = vpop.permute.xlu0 %7780
        %7782 = vrot.lane.b32.xlu0 %v7662, 96
        %v7783 = vpop.permute.xlu0 %7782
        %7784 = vrot.lane.b32.xlu0 %v7663, 96
        %v7785 = vpop.permute.xlu0 %7784
        %v7786 = vsel %vm730, %v7775, %v7777
        %v7787 = vsel %vm730, %v7777, %v7779
        %v7788 = vsel %vm730, %v7781, %v7783
        %v7789 = vsel %vm730, %v7783, %v7785
        %7796 = vrot.lane.b32.xlu0 %v7646, 95
        %v7797 = vpop.permute.xlu0 %7796
        %7798 = vrot.lane.b32.xlu0 %v7647, 95
        %v7799 = vpop.permute.xlu0 %7798
        %7800 = vrot.lane.b32.xlu0 %v7648, 95
        %v7801 = vpop.permute.xlu0 %7800
        %7802 = vrot.lane.b32.xlu0 %v7649, 95
        %v7803 = vpop.permute.xlu0 %7802
        %7804 = vrot.lane.b32.xlu0 %v7650, 95
        %v7805 = vpop.permute.xlu0 %7804
        %7806 = vrot.lane.b32.xlu0 %v7651, 95
        %v7807 = vpop.permute.xlu0 %7806
        %v7808 = vsel %vm753, %v7797, %v7799
        %v7809 = vsel %vm753, %v7799, %v7801
        %v7810 = vsel %vm753, %v7803, %v7805
        %v7811 = vsel %vm753, %v7805, %v7807
        %7818 = vrot.lane.b32.xlu0 %v7664, 94
        %v7819 = vpop.permute.xlu0 %7818
        %7820 = vrot.lane.b32.xlu0 %v7665, 94
        %v7821 = vpop.permute.xlu0 %7820
        %7822 = vrot.lane.b32.xlu0 %v7666, 94
        %v7823 = vpop.permute.xlu0 %7822
        %7824 = vrot.lane.b32.xlu0 %v7667, 94
        %v7825 = vpop.permute.xlu0 %7824
        %7826 = vrot.lane.b32.xlu0 %v7668, 94
        %v7827 = vpop.permute.xlu0 %7826
        %7828 = vrot.lane.b32.xlu0 %v7669, 94
        %v7829 = vpop.permute.xlu0 %7828
        %v7830 = vsel %vm776, %v7819, %v7821
        %v7831 = vsel %vm776, %v7821, %v7823
        %v7832 = vsel %vm776, %v7825, %v7827
        %v7833 = vsel %vm776, %v7827, %v7829
        %7835 = vset.pattern.permute.xlu0 0
        %7836 = vperm.xlu0 %7835, %v7616
        %v7837 = vpop.permute.xlu0 %7836
        %7840 = vset.pattern.permute.xlu0 0
        %7841 = vperm.xlu0 %7840, %v7617
        %v7842 = vpop.permute.xlu0 %7841
        %7845 = vset.pattern.permute.xlu0 0
        %7846 = vperm.xlu0 %7845, %v7618
        %v7847 = vpop.permute.xlu0 %7846
        %7850 = vset.pattern.permute.xlu0 0
        %7851 = vperm.xlu0 %7850, %v7619
        %v7852 = vpop.permute.xlu0 %7851
        %7855 = vset.pattern.permute.xlu0 0
        %7856 = vperm.xlu0 %7855, %v7620
        %v7857 = vpop.permute.xlu0 %7856
        %7860 = vset.pattern.permute.xlu0 0
        %7861 = vperm.xlu0 %7860, %v7621
        %v7862 = vpop.permute.xlu0 %7861
        %v7876 = vunpack.c.l.b16 %v7604
        %v7877 = vunpack.c.h.b16 %v7604
        %v7878 = vunpack.c.l.b16 %v7605
        %v7879 = vunpack.c.l.b16 %v7606
        %v7880 = vunpack.c.h.b16 %v7606
        %v7881 = vunpack.c.l.b16 %v7607
        %v7882 = vunpack.c.l.b16 %v7608
        %v7883 = vunpack.c.h.b16 %v7608
        %v7884 = vunpack.c.l.b16 %v7609
        %v7885 = vunpack.c.l.b16 %v7610
        %v7886 = vunpack.c.h.b16 %v7610
        %v7887 = vunpack.c.l.b16 %v7611
        %v7888 = vunpack.c.l.b16 %v7612
        %v7889 = vunpack.c.h.b16 %v7612
        %v7890 = vunpack.c.l.b16 %v7613
        %v7891 = vunpack.c.l.b16 %v7614
        %v7892 = vunpack.c.h.b16 %v7614
        %v7893 = vunpack.c.l.b16 %v7615
        %v7894 = vpack.c.b16 %v7879, %v7876
        %v7895 = vpack.c.b16 %v7880, %v7877
        %v7896 = vpack.c.b16 %v7881, %v7878
        %v7897 = vpack.c.b16 %v7885, %v7882
        %v7898 = vpack.c.b16 %v7886, %v7883
        %v7899 = vpack.c.b16 %v7887, %v7884
        %v7900 = vpack.c.b16 %v7891, %v7888
        %v7901 = vpack.c.b16 %v7892, %v7889
        %v7902 = vpack.c.b16 %v7893, %v7890
        %7915 = vrot.lane.b32.xlu0 %v7628, 17
        %v7916 = vpop.permute.xlu0 %7915
        %7917 = vrot.lane.b32.xlu0 %v7629, 17
        %v7918 = vpop.permute.xlu0 %7917
        %7919 = vrot.lane.b32.xlu0 %v7630, 17
        %v7920 = vpop.permute.xlu0 %7919
        %7921 = vrot.lane.b32.xlu0 %v7631, 17
        %v7922 = vpop.permute.xlu0 %7921
        %7923 = vrot.lane.b32.xlu0 %v7632, 17
        %v7924 = vpop.permute.xlu0 %7923
        %7925 = vrot.lane.b32.xlu0 %v7633, 17
        %v7926 = vpop.permute.xlu0 %7925
        %7927 = vrot.lane.b32.xlu0 %v7688, 17
        %v7928 = vpop.permute.xlu0 %7927
        %7929 = vrot.lane.b32.xlu0 %v7689, 17
        %v7930 = vpop.permute.xlu0 %7929
        %7931 = vrot.lane.b32.xlu0 %v7681, 17
        %v7932 = vpop.permute.xlu0 %7931
        %7933 = vrot.lane.b32.xlu0 %v7690, 17
        %v7934 = vpop.permute.xlu0 %7933
        %7935 = vrot.lane.b32.xlu0 %v7691, 17
        %v7936 = vpop.permute.xlu0 %7935
        %7937 = vrot.lane.b32.xlu0 %v7687, 17
        %v7938 = vpop.permute.xlu0 %7937
        %7939 = vrot.lane.b32.xlu0 %v7710, 17
        %v7940 = vpop.permute.xlu0 %7939
        %7941 = vrot.lane.b32.xlu0 %v7711, 17
        %v7942 = vpop.permute.xlu0 %7941
        %7943 = vrot.lane.b32.xlu0 %v7703, 17
        %v7944 = vpop.permute.xlu0 %7943
        %7945 = vrot.lane.b32.xlu0 %v7712, 17
        %v7946 = vpop.permute.xlu0 %7945
        %7947 = vrot.lane.b32.xlu0 %v7713, 17
        %v7948 = vpop.permute.xlu0 %7947
        %7949 = vrot.lane.b32.xlu0 %v7709, 17
        %v7950 = vpop.permute.xlu0 %7949
        %7951 = vrot.lane.b32.xlu0 %v7732, 17
        %v7952 = vpop.permute.xlu0 %7951
        %7953 = vrot.lane.b32.xlu0 %v7733, 17
        %v7954 = vpop.permute.xlu0 %7953
        %7955 = vrot.lane.b32.xlu0 %v7725, 17
        %v7956 = vpop.permute.xlu0 %7955
        %7957 = vrot.lane.b32.xlu0 %v7734, 17
        %v7958 = vpop.permute.xlu0 %7957
        %7959 = vrot.lane.b32.xlu0 %v7735, 17
        %v7960 = vpop.permute.xlu0 %7959
        %7961 = vrot.lane.b32.xlu0 %v7731, 17
        %v7962 = vpop.permute.xlu0 %7961
        %7963 = vrot.lane.b32.xlu0 %v7737, 17
        %v7964 = vpop.permute.xlu0 %7963
        %7965 = vrot.lane.b32.xlu0 %v7744, 17
        %v7966 = vpop.permute.xlu0 %7965
        %7967 = vrot.lane.b32.xlu0 %v7739, 17
        %v7968 = vpop.permute.xlu0 %7967
        %7969 = vrot.lane.b32.xlu0 %v7741, 17
        %v7970 = vpop.permute.xlu0 %7969
        %7971 = vrot.lane.b32.xlu0 %v7745, 17
        %v7972 = vpop.permute.xlu0 %7971
        %7973 = vrot.lane.b32.xlu0 %v7743, 17
        %v7974 = vpop.permute.xlu0 %7973
        %7975 = vrot.lane.b32.xlu0 %v7753, 17
        %v7976 = vpop.permute.xlu0 %7975
        %7977 = vrot.lane.b32.xlu0 %v7764, 17
        %v7978 = vpop.permute.xlu0 %7977
        %7979 = vrot.lane.b32.xlu0 %v7765, 17
        %v7980 = vpop.permute.xlu0 %7979
        %7981 = vrot.lane.b32.xlu0 %v7759, 17
        %v7982 = vpop.permute.xlu0 %7981
        %7983 = vrot.lane.b32.xlu0 %v7766, 17
        %v7984 = vpop.permute.xlu0 %7983
        %7985 = vrot.lane.b32.xlu0 %v7767, 17
        %v7986 = vpop.permute.xlu0 %7985
        %7987 = vrot.lane.b32.xlu0 %v7775, 17
        %v7988 = vpop.permute.xlu0 %7987
        %7989 = vrot.lane.b32.xlu0 %v7786, 17
        %v7990 = vpop.permute.xlu0 %7989
        %7991 = vrot.lane.b32.xlu0 %v7787, 17
        %v7992 = vpop.permute.xlu0 %7991
        %7993 = vrot.lane.b32.xlu0 %v7781, 17
        %v7994 = vpop.permute.xlu0 %7993
        %7995 = vrot.lane.b32.xlu0 %v7788, 17
        %v7996 = vpop.permute.xlu0 %7995
        %7997 = vrot.lane.b32.xlu0 %v7789, 17
        %v7998 = vpop.permute.xlu0 %7997
        %7999 = vrot.lane.b32.xlu0 %v7797, 17
        %v8000 = vpop.permute.xlu0 %7999
        %8001 = vrot.lane.b32.xlu0 %v7808, 17
        %v8002 = vpop.permute.xlu0 %8001
        %8003 = vrot.lane.b32.xlu0 %v7809, 17
        %v8004 = vpop.permute.xlu0 %8003
        %8005 = vrot.lane.b32.xlu0 %v7803, 17
        %v8006 = vpop.permute.xlu0 %8005
        %8007 = vrot.lane.b32.xlu0 %v7810, 17
        %v8008 = vpop.permute.xlu0 %8007
        %8009 = vrot.lane.b32.xlu0 %v7811, 17
        %v8010 = vpop.permute.xlu0 %8009
        %8011 = vrot.lane.b32.xlu0 %v7819, 17
        %v8012 = vpop.permute.xlu0 %8011
        %8013 = vrot.lane.b32.xlu0 %v7830, 17
        %v8014 = vpop.permute.xlu0 %8013
        %8015 = vrot.lane.b32.xlu0 %v7831, 17
        %v8016 = vpop.permute.xlu0 %8015
        %8017 = vrot.lane.b32.xlu0 %v7825, 17
        %v8018 = vpop.permute.xlu0 %8017
        %8019 = vrot.lane.b32.xlu0 %v7832, 17
        %v8020 = vpop.permute.xlu0 %8019
        %8021 = vrot.lane.b32.xlu0 %v7833, 17
        %v8022 = vpop.permute.xlu0 %8021
        %v8023 = vsel %vm600, %v7916, %v7918
        %v8024 = vsel %vm600, %v7918, %v7920
        %v8025 = vsel %vm600, %v7922, %v7924
        %v8026 = vsel %vm600, %v7924, %v7926
        %v8027 = vsel %vm600, %v7928, %v7930
        %v8028 = vsel %vm600, %v7930, %v7932
        %v8029 = vsel %vm600, %v7934, %v7936
        %v8030 = vsel %vm600, %v7936, %v7938
        %v8031 = vsel %vm600, %v7940, %v7942
        %v8032 = vsel %vm600, %v7942, %v7944
        %v8033 = vsel %vm600, %v7946, %v7948
        %v8034 = vsel %vm600, %v7948, %v7950
        %v8035 = vsel %vm600, %v7952, %v7954
        %v8036 = vsel %vm600, %v7954, %v7956
        %v8037 = vsel %vm600, %v7958, %v7960
        %v8038 = vsel %vm600, %v7960, %v7962
        %v8039 = vsel %vm600, %v7964, %v7966
        %v8040 = vsel %vm600, %v7966, %v7968
        %v8041 = vsel %vm600, %v7970, %v7972
        %v8042 = vsel %vm600, %v7972, %v7974
        %v8043 = vsel %vm600, %v7976, %v7978
        %v8044 = vsel %vm600, %v7978, %v7980
        %v8045 = vsel %vm600, %v7982, %v7984
        %v8046 = vsel %vm600, %v7984, %v7986
        %v8047 = vsel %vm600, %v7988, %v7990
        %v8048 = vsel %vm600, %v7990, %v7992
        %v8049 = vsel %vm600, %v7994, %v7996
        %v8050 = vsel %vm600, %v7996, %v7998
        %v8051 = vsel %vm600, %v8000, %v8002
        %v8052 = vsel %vm600, %v8002, %v8004
        %v8053 = vsel %vm600, %v8006, %v8008
        %v8054 = vsel %vm600, %v8008, %v8010
        %v8055 = vsel %vm600, %v8012, %v8014
        %v8056 = vsel %vm600, %v8014, %v8016
        %v8057 = vsel %vm600, %v8018, %v8020
        %v8058 = vsel %vm600, %v8020, %v8022
        %v8096 = vsel %vm1017, %v7896, 0
        %v8099 = vsel %vm1017, %v7899, 0
        %v8102 = vsel %vm1017, %v7902, 0
        %8104 = vmatprep.subr.bf16.mxu0 %v8024
        %8105 = vmatpush1.bf16.msra.mxu0 %v8023
        %8106 = vmatprep.subr.bf16.mxu0 %v8026
        %8107 = vmatpush1.bf16.msra.mxu0 %v8025
        %8108 = vmatprep.subr.bf16.mxu0 %v8028
        %8109 = vmatpush1.bf16.msra.mxu0 %v8027
        %8110 = vmatprep.subr.bf16.mxu0 %v8030
        %8111 = vmatpush1.bf16.msra.mxu0 %v8029
        %8112 = vmatprep.subr.bf16.mxu0 %v8032
        %8113 = vmatpush1.bf16.msra.mxu0 %v8031
        %8114 = vmatprep.subr.bf16.mxu0 %v8034
        %8115 = vmatpush1.bf16.msra.mxu0 %v8033
        %8116 = vmatprep.subr.bf16.mxu0 %v8036
        %8117 = vmatpush1.bf16.msra.mxu0 %v8035
        %8118 = vmatprep.subr.bf16.mxu0 %v8038
        %8119 = vmatpush1.bf16.msra.mxu0 %v8037
        %8120 = vmatprep.subr.bf16.mxu0 %v8040
        %8121 = vmatpush1.bf16.msra.mxu0 %v8039
        %8122 = vmatprep.subr.bf16.mxu0 %v8042
        %8123 = vmatpush1.bf16.msra.mxu0 %v8041
        %8124 = vmatprep.subr.bf16.mxu0 %v8044
        %8125 = vmatpush1.bf16.msra.mxu0 %v8043
        %8126 = vmatprep.subr.bf16.mxu0 %v8046
        %8127 = vmatpush1.bf16.msra.mxu0 %v8045
        %8128 = vmatprep.subr.bf16.mxu0 %v8048
        %8129 = vmatpush1.bf16.msra.mxu0 %v8047
        %8130 = vmatprep.subr.bf16.mxu0 %v8050
        %8131 = vmatpush1.bf16.msra.mxu0 %v8049
        %8132 = vmatprep.subr.bf16.mxu0 %v8052
        %8133 = vmatpush1.bf16.msra.mxu0 %v8051
        %8134 = vmatprep.subr.bf16.mxu0 %v8054
        %8135 = vmatpush1.bf16.msra.mxu0 %v8053
        %8136 = vmatprep.mubr.bf16.mxu0 %v7895
        %8137 = vmatmul.mubr.bf16.gmra.mrb[0].mxu0 %v7894
        %v8138 = vpop.f32.mrb[0].mxu0
        %v8139 = vadd.f32 %v7837, %v8138
        %v8140 = vpop.f32.mrb[0].mxu0
        %v8141 = vadd.f32 %v7837, %v8140
        %v8142 = vpop.f32.mrb[0].mxu0
        %v8143 = vadd.f32 %v7842, %v8142
        %v8144 = vpop.f32.mrb[0].mxu0
        %v8145 = vadd.f32 %v7842, %v8144
        %8146 = vmatprep.mubr.bf16.mxu0 %v7898
        %8147 = vmatmul.mubr.bf16.gmra.mrb[0].mxu0 %v7897
        %v8148 = vpop.f32.mrb[0].mxu0
        %v8149 = vadd.f32 %v7847, %v8148
        %v8150 = vpop.f32.mrb[0].mxu0
        %v8151 = vadd.f32 %v7847, %v8150
        %v8152 = vpop.f32.mrb[0].mxu0
        %v8153 = vadd.f32 %v7852, %v8152
        %v8154 = vpop.f32.mrb[0].mxu0
        %v8155 = vadd.f32 %v7852, %v8154
        %8156 = vmatprep.mubr.bf16.mxu0 %v7901
        %8157 = vmatmul.mubr.bf16.gmra.mrb[0].mxu0 %v7900
        %v8158 = vpop.f32.mrb[0].mxu0
        %v8159 = vadd.f32 %v7857, %v8158
        %v8160 = vpop.f32.mrb[0].mxu0
        %v8161 = vadd.f32 %v7857, %v8160
        %v8162 = vpop.f32.mrb[0].mxu0
        %v8163 = vadd.f32 %v7862, %v8162
        %v8164 = vpop.f32.mrb[0].mxu0
        %v8165 = vadd.f32 %v7862, %v8164
        %8166 = vdwg.mxu0
        %8167 = vmatprep.subr.bf16.mxu0 %v8056
        %8168 = vmatpush1.bf16.msra.mxu0 %v8055
        %8169 = vmatprep.subr.bf16.mxu0 %v8058
        %8170 = vmatpush1.bf16.msra.mxu0 %v8057
        %8171 = vmatprep.subr.bf16.mxu0 0
        %8172 = vmatpush1.bf16.msra.mxu0 0
        %8173 = vmatprep.subr.bf16.mxu0 0
        %8174 = vmatpush1.bf16.msra.mxu0 0
        %8175 = vmatprep.subr.bf16.mxu0 0
        %8176 = vmatpush1.bf16.msra.mxu0 0
        %8177 = vmatprep.subr.bf16.mxu0 0
        %8178 = vmatpush1.bf16.msra.mxu0 0
        %8179 = vmatprep.subr.bf16.mxu0 0
        %8180 = vmatpush1.bf16.msra.mxu0 0
        %8181 = vmatprep.subr.bf16.mxu0 0
        %8182 = vmatpush1.bf16.msra.mxu0 0
        %8183 = vmatprep.subr.bf16.mxu0 0
        %8184 = vmatpush1.bf16.msra.mxu0 0
        %8185 = vmatprep.subr.bf16.mxu0 0
        %8186 = vmatpush1.bf16.msra.mxu0 0
        %8187 = vmatprep.subr.bf16.mxu0 0
        %8188 = vmatpush1.bf16.msra.mxu0 0
        %8189 = vmatprep.subr.bf16.mxu0 0
        %8190 = vmatpush1.bf16.msra.mxu0 0
        %8191 = vmatprep.subr.bf16.mxu0 0
        %8192 = vmatpush1.bf16.msra.mxu0 0
        %8193 = vmatprep.subr.bf16.mxu0 0
        %8194 = vmatpush1.bf16.msra.mxu0 0
        %8195 = vmatprep.subr.bf16.mxu0 0
        %8196 = vmatpush1.bf16.msra.mxu0 0
        %8197 = vmatprep.subr.bf16.mxu0 0
        %8198 = vmatpush1.bf16.msra.mxu0 0
        %8199 = vmatprep.mubr.bf16.mxu0 0
        %8200 = vmatmul.mubr.bf16.gmra.mrb[0].mxu0 %v8096
        %v8201 = vpop.f32.mrb[0].mxu0
        %v8202 = vadd.f32 %v8139, %v8201
        %v8203 = vpop.f32.mrb[0].mxu0
        %v8204 = vadd.f32 %v8141, %v8203
        %v8205 = vpop.f32.mrb[0].mxu0
        %v8206 = vadd.f32 %v8143, %v8205
        %v8207 = vpop.f32.mrb[0].mxu0
        %v8208 = vadd.f32 %v8145, %v8207
        %8209 = vmatprep.mubr.bf16.mxu0 0
        %8210 = vmatmul.mubr.bf16.gmra.mrb[0].mxu0 %v8099
        %v8211 = vpop.f32.mrb[0].mxu0
        %v8212 = vadd.f32 %v8149, %v8211
        %v8213 = vpop.f32.mrb[0].mxu0
        %v8214 = vadd.f32 %v8151, %v8213
        %v8215 = vpop.f32.mrb[0].mxu0
        %v8216 = vadd.f32 %v8153, %v8215
        %v8217 = vpop.f32.mrb[0].mxu0
        %v8218 = vadd.f32 %v8155, %v8217
        %8219 = vmatprep.mubr.bf16.mxu0 0
        %8220 = vmatmul.mubr.bf16.gmra.mrb[0].mxu0 %v8102
        %v8221 = vpop.f32.mrb[0].mxu0
        %v8222 = vadd.f32 %v8159, %v8221
        %v8223 = vpop.f32.mrb[0].mxu0
        %v8224 = vadd.f32 %v8161, %v8223
        %v8225 = vpop.f32.mrb[0].mxu0
        %v8226 = vadd.f32 %v8163, %v8225
        %v8227 = vpop.f32.mrb[0].mxu0
        %v8228 = vadd.f32 %v8165, %v8227
        %8229 = vdwg.mxu0
        %8230 = vst [vmem:[%s379] sm:$0xff] %v8202
        %8231 = vst [vmem:[%s379 + $0x8] sm:$0xff] %v8204
        %8232 = vst [vmem:[%s379 + $0x10] sm:$0xff] %v8206
        %8233 = vst [vmem:[%s379 + $0x18] sm:$0xff] %v8208
        %8234 = vst [vmem:[%s379 + $0x20] sm:$0xff] %v8212
        %8235 = vst [vmem:[%s379 + $0x28] sm:$0xff] %v8214
        %8236 = vst [vmem:[%s379 + $0x30] sm:$0xff] %v8216
        %8237 = vst [vmem:[%s379 + $0x38] sm:$0xff] %v8218
        %8238 = vst [vmem:[%s379 + $0x40] sm:$0xff] %v8222
        %8239 = vst [vmem:[%s379 + $0x48] sm:$0xff] %v8224
        %8240 = vst [vmem:[%s379 + $0x50] sm:$0xff] %v8226
        %8241 = vst [vmem:[%s379 + $0x58] sm:$0xff] %v8228
        %s8242 = sand.u32 %s187, 1
        %s8243 = scalar_lea.sflag [#allocation6], %s8242
        %s8244 = sand.u32 %s187, 1
        %s8245 = smul.addr %s8244, 96
        %s8246 = scalar_lea.vmem [#allocation16], %s8245
        // Predicated region
        $region77: #{vit_forward.1} parent=47 // pred_check
          %p8247 = pneg %p197
        $region78: #{vit_forward.1} parent=47 // pred_check_branch
          %8249 = sbr.rel (%p8247) target = $region80
        $region79: #{vit_forward.1} parent=47 // pred_region
          %s8251 = ssub.s32 1536, 1536
          %8252 = vsyncadd %s8243, %s8251
          %s8253 = smul.addr %s27, 12
          %s8254 = smul.addr %s8253, 128
          %s8255 = scalar_lea.hbm %s7, %s8254
          %s8256 = sshll.u32 %s8246, 4
          %s8257 = int_to_ptr.vmem [resolvable:$true] %s8256
          %8262 = dma.vmem_to_hbm [thread:$0]  %s8257, 1536, %s8255, %s8243, 256, 256, 16
        $region80: #{vit_forward.1} parent=47 // pred_fallthru
          _
      $region48: #{vit_forward.1} parent=5 // pred_fallthru
        _
      %p8263 = scmp.le.s32.totalorder 2, %s22
      // Predicated region
      $region81: #{vit_forward.1} parent=5 // pred_check
        %p8264 = pneg %p8263
      $region82: #{vit_forward.1} parent=5 // pred_check_branch
        %8266 = sbr.rel (%p8264) target = $region84
      $region83: #{vit_forward.1} parent=5 // pred_region
        %s8267 = ssub.s32 %s22, 2
        // Predicated region
        $region85: #{vit_forward.1} parent=83 // pred_check
          %p8268 = pneg %p203
        $region86: #{vit_forward.1} parent=83 // pred_check_branch
          %8270 = sbr.rel (%p8268) target = $region88
        $region87: #{vit_forward.1} parent=83 // pred_region
          %s8271 = sand.u32 %s188, 1
          %s8272 = scalar_lea.sflag [#allocation6], %s8271
          %s8273 = sand.u32 %s188, 1
          %s8274 = smul.addr %s8273, 96
          %s8275 = scalar_lea.vmem [#allocation16], %s8274
          %8276 = dma.done %s8272, 1536
        $region88: #{vit_forward.1} parent=83 // pred_fallthru
          _
      $region84: #{vit_forward.1} parent=5 // pred_fallthru
        _
    $region6: #{vit_forward.1} parent=1 // loop_footer
      %s26 = sadd.s32 1, %s22
    $region7: #{vit_forward.1} parent=1 // loop_footer_branch
      %21 = sbr.rel target = $region3
    $region8: #{vit_forward.1} parent=1 // loop_exit
      _
    %8277 = vsyncpa [#allocation5], 1
    %s8278 = scalar_lea.sflag [#allocation5], 1
    %8279 = vsyncpa %s8278, 1
    %8280 = vsyncpa [#allocation8], 1
    %8281 = vsyncpa [#allocation11], 1
    %8282 = vsyncpa [#allocation14], 1
    %8283 = vsyncpa [#allocation6], 1
    %s8284 = scalar_lea.sflag [#allocation6], 1
    %8285 = vsyncpa %s8284, 1

</llo_original>
